<compile_context>
chip_gen: v7x
topology: tpu7x:2x2x1
jax: 0.10.0
libtpu: 0.0.40
codegen_flags: <defaults>
</compile_context>

<pallas_src>
import jax
import jax.numpy as jnp
from jax.experimental import pallas as pl
from jax.experimental.pallas import tpu as pltpu


# ------------------------------ fused kernel ------------------------------- #

def _make_fused_kernel(N, H, W, Cin, C, n_blocks, is_classifier):
    """Build the fused DSCNN forward kernel (all shapes static via closure)."""
    HW = H * W
    NHW = N * H * W

    def kernel(*refs):
        it = iter(refs)
        x_ref = next(it)                      # (N, H, W, Cin)
        w0_ref = next(it)                     # (9*Cin, C)   BN-scale folded
        b0_ref = next(it)                     # (1, C)
        blk_refs = [tuple(next(it) for _ in range(4)) for _ in range(n_blocks)]
        if is_classifier:
            wl_ref = next(it)                 # (C, K)
            bl_ref = next(it)                 # (1, K)
        o_ref = next(it)                      # (N, K) or (N, C)
        xin_pad = next(it)                    # scratch (N, H+2, W+2, Cin)
        patches = next(it)                    # scratch (N*H*W, 9*Cin)
        xpad = next(it)                       # scratch (N, H+2, W+2, C)

        # Zero the padded scratch buffers once; only interiors are rewritten
        # afterwards, so the borders stay zero ('same' padding).
        xin_pad[...] = jnp.zeros_like(xin_pad)
        xpad[...] = jnp.zeros_like(xpad)

        # ---- initial 3x3 conv: im2col -> one MXU matmul, + bias + ReLU ----
        xin_pad[:, 1:H + 1, 1:W + 1, :] = x_ref[...]
        for kh in range(3):
            for kw in range(3):
                j = kh * 3 + kw
                patches[:, j * Cin:(j + 1) * Cin] = (
                    xin_pad[:, kh:kh + H, kw:kw + W, :].reshape(NHW, Cin))
        y = jnp.dot(patches[...], w0_ref[...],
                    preferred_element_type=jnp.float32) + b0_ref[0]
        act = jnp.maximum(y, 0.0)                          # (NHW, C)

        # ---- depthwise-separable blocks (dw 3x3 on VPU, pw 1x1 on MXU) ----
        for wd_ref, bd_ref, wp_ref, bp_ref in blk_refs:
            xpad[:, 1:H + 1, 1:W + 1, :] = act.reshape(N, H, W, C)
            acc = jnp.zeros((N, H, W, C), jnp.float32)
            for kh in range(3):
                for kw in range(3):
                    acc = acc + (xpad[:, kh:kh + H, kw:kw + W, :]
                                 * wd_ref[kh, kw])
            y = jnp.maximum(acc + bd_ref[0], 0.0).reshape(NHW, C)
            y = jnp.dot(y, wp_ref[...],
                        preferred_element_type=jnp.float32) + bp_ref[0]
            act = jnp.maximum(y, 0.0)                      # (NHW, C)

        # ---- global average pool (+ optional classifier), fused ----
        feats = jnp.sum(act.reshape(N, HW, C), axis=1) * (1.0 / float(HW))
        if is_classifier:
            o_ref[...] = (jnp.dot(feats, wl_ref[...],
                                  preferred_element_type=jnp.float32)
                          + bl_ref[0])
        else:
            o_ref[...] = feats

    return kernel


# ------------------------------ Pallas wrapper ------------------------------ #

def dscnn_forward_pallas(x_nchw, fp, is_classifier):
    """Fused forward pass. `fp` are BN-folded params from prepare_folded_params."""
    x = jnp.transpose(x_nchw, (0, 2, 3, 1)).astype(jnp.float32)  # NCHW -> NHWC
    N, H, W, Cin = x.shape
    C = fp['w0'].shape[-1]
    n_blocks = len(fp['blocks'])
    n_out = fp['wl'].shape[-1] if is_classifier else C

    args = [x, fp['w0'], fp['b0']]
    for blk in fp['blocks']:
        args += [blk['wd'], blk['bd'], blk['wp'], blk['bp']]
    if is_classifier:
        args += [fp['wl'], fp['bl']]

    kernel = _make_fused_kernel(N, H, W, Cin, C, n_blocks, is_classifier)
    return pl.pallas_call(
        kernel,
        out_shape=jax.ShapeDtypeStruct((N, n_out), jnp.float32),
        in_specs=[pl.BlockSpec(memory_space=pltpu.MemorySpace.VMEM)
                  for _ in args],
        out_specs=pl.BlockSpec(memory_space=pltpu.MemorySpace.VMEM),
        scratch_shapes=[
            pltpu.VMEM((N, H + 2, W + 2, Cin), jnp.float32),   # padded input
            pltpu.VMEM((N * H * W, 9 * Cin), jnp.float32),     # im2col patches
            pltpu.VMEM((N, H + 2, W + 2, C), jnp.float32),     # padded acts
        ],
    )(*args)


# ------------------------- parameter preparation ---------------------------- #

def _fold_bn_scale_shift(conv_bias, gamma, beta, mean, var, eps=1e-5):
    """Eval-mode BatchNorm (+ conv bias) -> per-channel scale / shift."""
    s = gamma / jnp.sqrt(var + eps)
    b = (conv_bias - mean) * s + beta
    return s.astype(jnp.float32), b.astype(jnp.float32)


def prepare_folded_params(p, is_classifier):
    """Fold BN scale into the weights once, outside the forward hot path."""
    s0, b0 = _fold_bn_scale_shift(p['b0'], *p['bn0'])
    kh, kw, Cin, C = p['w0'].shape
    w0 = (p['w0'] * s0[None, None, None, :]).reshape(kh * kw * Cin, C)
    fp = {'w0': w0.astype(jnp.float32),
          'b0': b0.reshape(1, -1),
          'blocks': []}
    for blk in p['blocks']:
        sd, bd = _fold_bn_scale_shift(blk['bd'], *blk['bnd'])
        sp, bp = _fold_bn_scale_shift(blk['bp'], *blk['bnp'])
        fp['blocks'].append({
            'wd': (blk['wd'] * sd[None, None, :]).astype(jnp.float32),
            'bd': bd.reshape(1, -1),
            'wp': (blk['wp'] * sp[None, :]).astype(jnp.float32),
            'bp': bp.reshape(1, -1),
        })
    if is_classifier:
        fp['wl'] = p['wl'].astype(jnp.float32)
        fp['bl'] = p['bl'].reshape(1, -1).astype(jnp.float32)
    return fp


def make_params(key, in_channels, ds_cnn_size, ds_cnn_number,
                is_classifier, classes_number):
    keys = iter(jax.random.split(key, 64))

    def nrm(shape, scale=0.1):
        return (scale * jax.random.normal(next(keys), shape)).astype(jnp.float32)

    def bn(c):
        g = (1.0 + nrm((c,)))
        b = nrm((c,))
        m = nrm((c,))
        v = (0.5 + jax.random.uniform(next(keys), (c,))).astype(jnp.float32)
        return (g, b, m, v)

    p = {
        'w0': nrm((3, 3, in_channels, ds_cnn_size)),   # HWIO
        'b0': nrm((ds_cnn_size,)),
        'bn0': bn(ds_cnn_size),
        'blocks': [],
    }
    for _ in range(ds_cnn_number):
        p['blocks'].append({
            'wd': nrm((3, 3, ds_cnn_size)),            # depthwise, per-channel
            'bd': nrm((ds_cnn_size,)),
            'bnd': bn(ds_cnn_size),
            'wp': nrm((ds_cnn_size, ds_cnn_size)),     # pointwise (Cin, Cout)
            'bp': nrm((ds_cnn_size,)),
            'bnp': bn(ds_cnn_size),
        })
    if is_classifier:
        p['wl'] = nrm((ds_cnn_size, classes_number))   # pre-transposed (C, K)
        p['bl'] = nrm((classes_number,))
    return p


# ----------------------------- pure-JAX reference --------------------------- #

def dscnn_forward_ref(x_nchw, p, is_classifier, eps=1e-5):
    """Pure-JAX reference (same eval-mode BN semantics) for validation."""
    x = jnp.transpose(x_nchw, (0, 2, 3, 1)).astype(jnp.float32)

    def bn_relu(y, g, b, m, v):
        return jnp.maximum((y - m) * (g / jnp.sqrt(v + eps)) + b, 0.0)

    y = jax.lax.conv_general_dilated(
        x, p['w0'], (1, 1), 'SAME',
        dimension_numbers=('NHWC', 'HWIO', 'NHWC'))
    y = bn_relu(y + p['b0'], *p['bn0'])
    for blk in p['blocks']:
        C = y.shape[-1]
        wd = blk['wd'].reshape(3, 3, 1, C)
        z = jax.lax.conv_general_dilated(
            y, wd, (1, 1), 'SAME',
            dimension_numbers=('NHWC', 'HWIO', 'NHWC'),
            feature_group_count=C)
        y = bn_relu(z + blk['bd'], *blk['bnd'])
        z = jnp.einsum('nhwc,cd->nhwd', y, blk['wp']) + blk['bp']
        y = bn_relu(z, *blk['bnp'])
    feats = jnp.mean(y, axis=(1, 2))
    if is_classifier:
        feats = feats @ p['wl'] + p['bl']
    return feats


if __name__ == "__main__":
    key = jax.random.PRNGKey(0)
    kx, kp = jax.random.split(key)

    # Small, module-consistent configuration.
    N, Cin, H, W = 2, 4, 16, 16
    ds_cnn_size, ds_cnn_number = 32, 2
    is_classifier, classes_number = True, 8

    x = jax.random.normal(kx, (N, Cin, H, W), dtype=jnp.float32)  # NCHW input
    params = make_params(kp, Cin, ds_cnn_size, ds_cnn_number,
                         is_classifier, classes_number)
    folded = prepare_folded_params(params, is_classifier)  # once, outside hot path

    out = dscnn_forward_pallas(x, folded, is_classifier)
    out = jax.block_until_ready(out)

    ref = dscnn_forward_ref(x, params, is_classifier)
    assert out.shape == (N, classes_number), out.shape
    max_err = float(jnp.max(jnp.abs(out - ref)))
    assert max_err < 1e-3, f"max abs error vs reference: {max_err}"

    print("KERNEL_OK")
</pallas_src>

<mosaic_0001>
module attributes {stable_mosaic.version = 11 : i64} {
  func.func @kernel(%arg0: memref<2x16x16x4xf32, #tpu.memory_space<vmem>>, %arg1: memref<36x32xf32, #tpu.memory_space<vmem>>, %arg2: memref<1x32xf32, #tpu.memory_space<vmem>>, %arg3: memref<3x3x32xf32, #tpu.memory_space<vmem>>, %arg4: memref<1x32xf32, #tpu.memory_space<vmem>>, %arg5: memref<32x32xf32, #tpu.memory_space<vmem>>, %arg6: memref<1x32xf32, #tpu.memory_space<vmem>>, %arg7: memref<3x3x32xf32, #tpu.memory_space<vmem>>, %arg8: memref<1x32xf32, #tpu.memory_space<vmem>>, %arg9: memref<32x32xf32, #tpu.memory_space<vmem>>, %arg10: memref<1x32xf32, #tpu.memory_space<vmem>>, %arg11: memref<32x8xf32, #tpu.memory_space<vmem>>, %arg12: memref<1x8xf32, #tpu.memory_space<vmem>>, %arg13: memref<2x8xf32, #tpu.memory_space<vmem>>, %arg14: memref<2x18x18x4xf32, #tpu.memory_space<vmem>>, %arg15: memref<512x36xf32, #tpu.memory_space<vmem>>, %arg16: memref<2x18x18x32xf32, #tpu.memory_space<vmem>>) attributes {dimension_semantics = [], scalar_prefetch = 0 : i64, scratch_operands = 3 : i64, tpu.core_type = #tpu.core_type<tc>} {
    %cst = arith.constant 0.000000e+00 : f32
    %0 = vector.broadcast %cst : f32 to vector<2x18x18x4xf32>
    %c0 = arith.constant 0 : index
    %c0_0 = arith.constant 0 : index
    %c0_1 = arith.constant 0 : index
    %c0_2 = arith.constant 0 : index
    %1 = vector.load %arg14[%c0, %c0_0, %c0_1, %c0_2] : memref<2x18x18x4xf32, #tpu.memory_space<vmem>>, vector<2x18x18x4xf32>
    tpu.vector_store %arg14[%c0, %c0_0, %c0_1, %c0_2], %0 {strides = array<i32>} : memref<2x18x18x4xf32, #tpu.memory_space<vmem>>, vector<2x18x18x4xf32>,
    %cst_3 = arith.constant 0.000000e+00 : f32
    %2 = vector.broadcast %cst_3 : f32 to vector<2x18x18x32xf32>
    %c0_4 = arith.constant 0 : index
    %c0_5 = arith.constant 0 : index
    %c0_6 = arith.constant 0 : index
    %c0_7 = arith.constant 0 : index
    %3 = vector.load %arg16[%c0_4, %c0_5, %c0_6, %c0_7] : memref<2x18x18x32xf32, #tpu.memory_space<vmem>>, vector<2x18x18x32xf32>
    tpu.vector_store %arg16[%c0_4, %c0_5, %c0_6, %c0_7], %2 {strides = array<i32>} : memref<2x18x18x32xf32, #tpu.memory_space<vmem>>, vector<2x18x18x32xf32>,
    %c0_8 = arith.constant 0 : index
    %c0_9 = arith.constant 0 : index
    %c0_10 = arith.constant 0 : index
    %c0_11 = arith.constant 0 : index
    %4 = vector.load %arg0[%c0_8, %c0_9, %c0_10, %c0_11] : memref<2x16x16x4xf32, #tpu.memory_space<vmem>>, vector<2x16x16x4xf32>
    %c0_12 = arith.constant 0 : index
    %c1 = arith.constant 1 : index
    %c1_13 = arith.constant 1 : index
    %c0_14 = arith.constant 0 : index
    %5 = vector.load %arg14[%c0_12, %c1, %c1_13, %c0_14] : memref<2x18x18x4xf32, #tpu.memory_space<vmem>>, vector<2x16x16x4xf32>
    tpu.vector_store %arg14[%c0_12, %c1, %c1_13, %c0_14], %4 {strides = array<i32>} : memref<2x18x18x4xf32, #tpu.memory_space<vmem>>, vector<2x16x16x4xf32>,
    %c0_15 = arith.constant 0 : index
    %c0_16 = arith.constant 0 : index
    %c0_17 = arith.constant 0 : index
    %c0_18 = arith.constant 0 : index
    %6 = vector.load %arg14[%c0_15, %c0_16, %c0_17, %c0_18] : memref<2x18x18x4xf32, #tpu.memory_space<vmem>>, vector<2x16x16x4xf32>
    %7 = vector.shape_cast %6 : vector<2x16x16x4xf32> to vector<512x4xf32>
    %c0_19 = arith.constant 0 : index
    %c0_20 = arith.constant 0 : index
    %8 = vector.load %arg15[%c0_19, %c0_20] : memref<512x36xf32, #tpu.memory_space<vmem>>, vector<512x4xf32>
    tpu.vector_store %arg15[%c0_19, %c0_20], %7 {strides = array<i32>} : memref<512x36xf32, #tpu.memory_space<vmem>>, vector<512x4xf32>,
    %c0_21 = arith.constant 0 : index
    %c0_22 = arith.constant 0 : index
    %c1_23 = arith.constant 1 : index
    %c0_24 = arith.constant 0 : index
    %9 = vector.load %arg14[%c0_21, %c0_22, %c1_23, %c0_24] : memref<2x18x18x4xf32, #tpu.memory_space<vmem>>, vector<2x16x16x4xf32>
    %10 = vector.shape_cast %9 : vector<2x16x16x4xf32> to vector<512x4xf32>
    %c0_25 = arith.constant 0 : index
    %c4 = arith.constant 4 : index
    %11 = vector.load %arg15[%c0_25, %c4] : memref<512x36xf32, #tpu.memory_space<vmem>>, vector<512x4xf32>
    tpu.vector_store %arg15[%c0_25, %c4], %10 {strides = array<i32>} : memref<512x36xf32, #tpu.memory_space<vmem>>, vector<512x4xf32>,
    %c0_26 = arith.constant 0 : index
    %c0_27 = arith.constant 0 : index
    %c2 = arith.constant 2 : index
    %c0_28 = arith.constant 0 : index
    %12 = vector.load %arg14[%c0_26, %c0_27, %c2, %c0_28] : memref<2x18x18x4xf32, #tpu.memory_space<vmem>>, vector<2x16x16x4xf32>
    %13 = vector.shape_cast %12 : vector<2x16x16x4xf32> to vector<512x4xf32>
    %c0_29 = arith.constant 0 : index
    %c8 = arith.constant 8 : index
    %14 = vector.load %arg15[%c0_29, %c8] : memref<512x36xf32, #tpu.memory_space<vmem>>, vector<512x4xf32>
    tpu.vector_store %arg15[%c0_29, %c8], %13 {strides = array<i32>} : memref<512x36xf32, #tpu.memory_space<vmem>>, vector<512x4xf32>,
    %c0_30 = arith.constant 0 : index
    %c1_31 = arith.constant 1 : index
    %c0_32 = arith.constant 0 : index
    %c0_33 = arith.constant 0 : index
    %15 = vector.load %arg14[%c0_30, %c1_31, %c0_32, %c0_33] : memref<2x18x18x4xf32, #tpu.memory_space<vmem>>, vector<2x16x16x4xf32>
    %16 = vector.shape_cast %15 : vector<2x16x16x4xf32> to vector<512x4xf32>
    %c0_34 = arith.constant 0 : index
    %c12 = arith.constant 12 : index
    %17 = vector.load %arg15[%c0_34, %c12] : memref<512x36xf32, #tpu.memory_space<vmem>>, vector<512x4xf32>
    tpu.vector_store %arg15[%c0_34, %c12], %16 {strides = array<i32>} : memref<512x36xf32, #tpu.memory_space<vmem>>, vector<512x4xf32>,
    %c0_35 = arith.constant 0 : index
    %c1_36 = arith.constant 1 : index
    %c1_37 = arith.constant 1 : index
    %c0_38 = arith.constant 0 : index
    %18 = vector.load %arg14[%c0_35, %c1_36, %c1_37, %c0_38] : memref<2x18x18x4xf32, #tpu.memory_space<vmem>>, vector<2x16x16x4xf32>
    %19 = vector.shape_cast %18 : vector<2x16x16x4xf32> to vector<512x4xf32>
    %c0_39 = arith.constant 0 : index
    %c16 = arith.constant 16 : index
    %20 = vector.load %arg15[%c0_39, %c16] : memref<512x36xf32, #tpu.memory_space<vmem>>, vector<512x4xf32>
    tpu.vector_store %arg15[%c0_39, %c16], %19 {strides = array<i32>} : memref<512x36xf32, #tpu.memory_space<vmem>>, vector<512x4xf32>,
    %c0_40 = arith.constant 0 : index
    %c1_41 = arith.constant 1 : index
    %c2_42 = arith.constant 2 : index
    %c0_43 = arith.constant 0 : index
    %21 = vector.load %arg14[%c0_40, %c1_41, %c2_42, %c0_43] : memref<2x18x18x4xf32, #tpu.memory_space<vmem>>, vector<2x16x16x4xf32>
    %22 = vector.shape_cast %21 : vector<2x16x16x4xf32> to vector<512x4xf32>
    %c0_44 = arith.constant 0 : index
    %c20 = arith.constant 20 : index
    %23 = vector.load %arg15[%c0_44, %c20] : memref<512x36xf32, #tpu.memory_space<vmem>>, vector<512x4xf32>
    tpu.vector_store %arg15[%c0_44, %c20], %22 {strides = array<i32>} : memref<512x36xf32, #tpu.memory_space<vmem>>, vector<512x4xf32>,
    %c0_45 = arith.constant 0 : index
    %c2_46 = arith.constant 2 : index
    %c0_47 = arith.constant 0 : index
    %c0_48 = arith.constant 0 : index
    %24 = vector.load %arg14[%c0_45, %c2_46, %c0_47, %c0_48] : memref<2x18x18x4xf32, #tpu.memory_space<vmem>>, vector<2x16x16x4xf32>
    %25 = vector.shape_cast %24 : vector<2x16x16x4xf32> to vector<512x4xf32>
    %c0_49 = arith.constant 0 : index
    %c24 = arith.constant 24 : index
    %26 = vector.load %arg15[%c0_49, %c24] : memref<512x36xf32, #tpu.memory_space<vmem>>, vector<512x4xf32>
    tpu.vector_store %arg15[%c0_49, %c24], %25 {strides = array<i32>} : memref<512x36xf32, #tpu.memory_space<vmem>>, vector<512x4xf32>,
    %c0_50 = arith.constant 0 : index
    %c2_51 = arith.constant 2 : index
    %c1_52 = arith.constant 1 : index
    %c0_53 = arith.constant 0 : index
    %27 = vector.load %arg14[%c0_50, %c2_51, %c1_52, %c0_53] : memref<2x18x18x4xf32, #tpu.memory_space<vmem>>, vector<2x16x16x4xf32>
    %28 = vector.shape_cast %27 : vector<2x16x16x4xf32> to vector<512x4xf32>
    %c0_54 = arith.constant 0 : index
    %c28 = arith.constant 28 : index
    %29 = vector.load %arg15[%c0_54, %c28] : memref<512x36xf32, #tpu.memory_space<vmem>>, vector<512x4xf32>
    tpu.vector_store %arg15[%c0_54, %c28], %28 {strides = array<i32>} : memref<512x36xf32, #tpu.memory_space<vmem>>, vector<512x4xf32>,
    %c0_55 = arith.constant 0 : index
    %c2_56 = arith.constant 2 : index
    %c2_57 = arith.constant 2 : index
    %c0_58 = arith.constant 0 : index
    %30 = vector.load %arg14[%c0_55, %c2_56, %c2_57, %c0_58] : memref<2x18x18x4xf32, #tpu.memory_space<vmem>>, vector<2x16x16x4xf32>
    %31 = vector.shape_cast %30 : vector<2x16x16x4xf32> to vector<512x4xf32>
    %c0_59 = arith.constant 0 : index
    %c32 = arith.constant 32 : index
    %32 = vector.load %arg15[%c0_59, %c32] : memref<512x36xf32, #tpu.memory_space<vmem>>, vector<512x4xf32>
    tpu.vector_store %arg15[%c0_59, %c32], %31 {strides = array<i32>} : memref<512x36xf32, #tpu.memory_space<vmem>>, vector<512x4xf32>,
    %c0_60 = arith.constant 0 : index
    %c0_61 = arith.constant 0 : index
    %33 = vector.load %arg15[%c0_60, %c0_61] : memref<512x36xf32, #tpu.memory_space<vmem>>, vector<512x36xf32>
    %c0_62 = arith.constant 0 : index
    %c0_63 = arith.constant 0 : index
    %34 = vector.load %arg1[%c0_62, %c0_63] : memref<36x32xf32, #tpu.memory_space<vmem>>, vector<36x32xf32>
    %cst_64 = arith.constant dense<0.000000e+00> : vector<512x32xf32>
    %35 = tpu.matmul %33, %34, %cst_64 {dimension_numbers = #tpu.dot_dimension_numbers<[1], [0], [0], [1], [0, 0, 1, 1], [], []>} : vector<512x36xf32>, vector<36x32xf32>, vector<512x32xf32> -> vector<512x32xf32>
    %c0_65 = arith.constant 0 : index
    %c0_66 = arith.constant 0 : index
    %36 = vector.load %arg2[%c0_65, %c0_66] : memref<1x32xf32, #tpu.memory_space<vmem>>, vector<1x32xf32>
    %37 = vector.shape_cast %36 : vector<1x32xf32> to vector<32xf32>
    %38 = vector.shape_cast %37 : vector<32xf32> to vector<1x32xf32>
    %39 = vector.broadcast %38 : vector<1x32xf32> to vector<512x32xf32>
    %40 = arith.addf %35, %39 : vector<512x32xf32>
    %cst_67 = arith.constant 0.000000e+00 : f32
    %41 = vector.broadcast %cst_67 : f32 to vector<512x32xf32>
    %42 = arith.maximumf %40, %41 : vector<512x32xf32>
    %43 = vector.shape_cast %42 : vector<512x32xf32> to vector<2x16x16x32xf32>
    %c0_68 = arith.constant 0 : index
    %c1_69 = arith.constant 1 : index
    %c1_70 = arith.constant 1 : index
    %c0_71 = arith.constant 0 : index
    %44 = vector.load %arg16[%c0_68, %c1_69, %c1_70, %c0_71] : memref<2x18x18x32xf32, #tpu.memory_space<vmem>>, vector<2x16x16x32xf32>
    tpu.vector_store %arg16[%c0_68, %c1_69, %c1_70, %c0_71], %43 {strides = array<i32>} : memref<2x18x18x32xf32, #tpu.memory_space<vmem>>, vector<2x16x16x32xf32>,
    %cst_72 = arith.constant 0.000000e+00 : f32
    %45 = vector.broadcast %cst_72 : f32 to vector<2x16x16x32xf32>
    %c0_73 = arith.constant 0 : index
    %c0_74 = arith.constant 0 : index
    %c0_75 = arith.constant 0 : index
    %c0_76 = arith.constant 0 : index
    %46 = vector.load %arg16[%c0_73, %c0_74, %c0_75, %c0_76] : memref<2x18x18x32xf32, #tpu.memory_space<vmem>>, vector<2x16x16x32xf32>
    %c0_77 = arith.constant 0 : index
    %c0_78 = arith.constant 0 : index
    %c0_79 = arith.constant 0 : index
    %47 = vector.load %arg3[%c0_77, %c0_78, %c0_79] : memref<3x3x32xf32, #tpu.memory_space<vmem>>, vector<1x1x32xf32>
    %48 = vector.shape_cast %47 : vector<1x1x32xf32> to vector<32xf32>
    %49 = vector.shape_cast %48 : vector<32xf32> to vector<1x1x1x32xf32>
    %50 = vector.broadcast %49 : vector<1x1x1x32xf32> to vector<2x16x16x32xf32>
    %51 = arith.mulf %46, %50 : vector<2x16x16x32xf32>
    %52 = arith.addf %45, %51 : vector<2x16x16x32xf32>
    %c0_80 = arith.constant 0 : index
    %c0_81 = arith.constant 0 : index
    %c1_82 = arith.constant 1 : index
    %c0_83 = arith.constant 0 : index
    %53 = vector.load %arg16[%c0_80, %c0_81, %c1_82, %c0_83] : memref<2x18x18x32xf32, #tpu.memory_space<vmem>>, vector<2x16x16x32xf32>
    %c0_84 = arith.constant 0 : index
    %c1_85 = arith.constant 1 : index
    %c0_86 = arith.constant 0 : index
    %54 = vector.load %arg3[%c0_84, %c1_85, %c0_86] : memref<3x3x32xf32, #tpu.memory_space<vmem>>, vector<1x1x32xf32>
    %55 = vector.shape_cast %54 : vector<1x1x32xf32> to vector<32xf32>
    %56 = vector.shape_cast %55 : vector<32xf32> to vector<1x1x1x32xf32>
    %57 = vector.broadcast %56 : vector<1x1x1x32xf32> to vector<2x16x16x32xf32>
    %58 = arith.mulf %53, %57 : vector<2x16x16x32xf32>
    %59 = arith.addf %52, %58 : vector<2x16x16x32xf32>
    %c0_87 = arith.constant 0 : index
    %c0_88 = arith.constant 0 : index
    %c2_89 = arith.constant 2 : index
    %c0_90 = arith.constant 0 : index
    %60 = vector.load %arg16[%c0_87, %c0_88, %c2_89, %c0_90] : memref<2x18x18x32xf32, #tpu.memory_space<vmem>>, vector<2x16x16x32xf32>
    %c0_91 = arith.constant 0 : index
    %c2_92 = arith.constant 2 : index
    %c0_93 = arith.constant 0 : index
    %61 = vector.load %arg3[%c0_91, %c2_92, %c0_93] : memref<3x3x32xf32, #tpu.memory_space<vmem>>, vector<1x1x32xf32>
    %62 = vector.shape_cast %61 : vector<1x1x32xf32> to vector<32xf32>
    %63 = vector.shape_cast %62 : vector<32xf32> to vector<1x1x1x32xf32>
    %64 = vector.broadcast %63 : vector<1x1x1x32xf32> to vector<2x16x16x32xf32>
    %65 = arith.mulf %60, %64 : vector<2x16x16x32xf32>
    %66 = arith.addf %59, %65 : vector<2x16x16x32xf32>
    %c0_94 = arith.constant 0 : index
    %c1_95 = arith.constant 1 : index
    %c0_96 = arith.constant 0 : index
    %c0_97 = arith.constant 0 : index
    %67 = vector.load %arg16[%c0_94, %c1_95, %c0_96, %c0_97] : memref<2x18x18x32xf32, #tpu.memory_space<vmem>>, vector<2x16x16x32xf32>
    %c1_98 = arith.constant 1 : index
    %c0_99 = arith.constant 0 : index
    %c0_100 = arith.constant 0 : index
    %68 = vector.load %arg3[%c1_98, %c0_99, %c0_100] : memref<3x3x32xf32, #tpu.memory_space<vmem>>, vector<1x1x32xf32>
    %69 = vector.shape_cast %68 : vector<1x1x32xf32> to vector<32xf32>
    %70 = vector.shape_cast %69 : vector<32xf32> to vector<1x1x1x32xf32>
    %71 = vector.broadcast %70 : vector<1x1x1x32xf32> to vector<2x16x16x32xf32>
    %72 = arith.mulf %67, %71 : vector<2x16x16x32xf32>
    %73 = arith.addf %66, %72 : vector<2x16x16x32xf32>
    %c0_101 = arith.constant 0 : index
    %c1_102 = arith.constant 1 : index
    %c1_103 = arith.constant 1 : index
    %c0_104 = arith.constant 0 : index
    %74 = vector.load %arg16[%c0_101, %c1_102, %c1_103, %c0_104] : memref<2x18x18x32xf32, #tpu.memory_space<vmem>>, vector<2x16x16x32xf32>
    %c1_105 = arith.constant 1 : index
    %c1_106 = arith.constant 1 : index
    %c0_107 = arith.constant 0 : index
    %75 = vector.load %arg3[%c1_105, %c1_106, %c0_107] : memref<3x3x32xf32, #tpu.memory_space<vmem>>, vector<1x1x32xf32>
    %76 = vector.shape_cast %75 : vector<1x1x32xf32> to vector<32xf32>
    %77 = vector.shape_cast %76 : vector<32xf32> to vector<1x1x1x32xf32>
    %78 = vector.broadcast %77 : vector<1x1x1x32xf32> to vector<2x16x16x32xf32>
    %79 = arith.mulf %74, %78 : vector<2x16x16x32xf32>
    %80 = arith.addf %73, %79 : vector<2x16x16x32xf32>
    %c0_108 = arith.constant 0 : index
    %c1_109 = arith.constant 1 : index
    %c2_110 = arith.constant 2 : index
    %c0_111 = arith.constant 0 : index
    %81 = vector.load %arg16[%c0_108, %c1_109, %c2_110, %c0_111] : memref<2x18x18x32xf32, #tpu.memory_space<vmem>>, vector<2x16x16x32xf32>
    %c1_112 = arith.constant 1 : index
    %c2_113 = arith.constant 2 : index
    %c0_114 = arith.constant 0 : index
    %82 = vector.load %arg3[%c1_112, %c2_113, %c0_114] : memref<3x3x32xf32, #tpu.memory_space<vmem>>, vector<1x1x32xf32>
    %83 = vector.shape_cast %82 : vector<1x1x32xf32> to vector<32xf32>
    %84 = vector.shape_cast %83 : vector<32xf32> to vector<1x1x1x32xf32>
    %85 = vector.broadcast %84 : vector<1x1x1x32xf32> to vector<2x16x16x32xf32>
    %86 = arith.mulf %81, %85 : vector<2x16x16x32xf32>
    %87 = arith.addf %80, %86 : vector<2x16x16x32xf32>
    %c0_115 = arith.constant 0 : index
    %c2_116 = arith.constant 2 : index
    %c0_117 = arith.constant 0 : index
    %c0_118 = arith.constant 0 : index
    %88 = vector.load %arg16[%c0_115, %c2_116, %c0_117, %c0_118] : memref<2x18x18x32xf32, #tpu.memory_space<vmem>>, vector<2x16x16x32xf32>
    %c2_119 = arith.constant 2 : index
    %c0_120 = arith.constant 0 : index
    %c0_121 = arith.constant 0 : index
    %89 = vector.load %arg3[%c2_119, %c0_120, %c0_121] : memref<3x3x32xf32, #tpu.memory_space<vmem>>, vector<1x1x32xf32>
    %90 = vector.shape_cast %89 : vector<1x1x32xf32> to vector<32xf32>
    %91 = vector.shape_cast %90 : vector<32xf32> to vector<1x1x1x32xf32>
    %92 = vector.broadcast %91 : vector<1x1x1x32xf32> to vector<2x16x16x32xf32>
    %93 = arith.mulf %88, %92 : vector<2x16x16x32xf32>
    %94 = arith.addf %87, %93 : vector<2x16x16x32xf32>
    %c0_122 = arith.constant 0 : index
    %c2_123 = arith.constant 2 : index
    %c1_124 = arith.constant 1 : index
    %c0_125 = arith.constant 0 : index
    %95 = vector.load %arg16[%c0_122, %c2_123, %c1_124, %c0_125] : memref<2x18x18x32xf32, #tpu.memory_space<vmem>>, vector<2x16x16x32xf32>
    %c2_126 = arith.constant 2 : index
    %c1_127 = arith.constant 1 : index
    %c0_128 = arith.constant 0 : index
    %96 = vector.load %arg3[%c2_126, %c1_127, %c0_128] : memref<3x3x32xf32, #tpu.memory_space<vmem>>, vector<1x1x32xf32>
    %97 = vector.shape_cast %96 : vector<1x1x32xf32> to vector<32xf32>
    %98 = vector.shape_cast %97 : vector<32xf32> to vector<1x1x1x32xf32>
    %99 = vector.broadcast %98 : vector<1x1x1x32xf32> to vector<2x16x16x32xf32>
    %100 = arith.mulf %95, %99 : vector<2x16x16x32xf32>
    %101 = arith.addf %94, %100 : vector<2x16x16x32xf32>
    %c0_129 = arith.constant 0 : index
    %c2_130 = arith.constant 2 : index
    %c2_131 = arith.constant 2 : index
    %c0_132 = arith.constant 0 : index
    %102 = vector.load %arg16[%c0_129, %c2_130, %c2_131, %c0_132] : memref<2x18x18x32xf32, #tpu.memory_space<vmem>>, vector<2x16x16x32xf32>
    %c2_133 = arith.constant 2 : index
    %c2_134 = arith.constant 2 : index
    %c0_135 = arith.constant 0 : index
    %103 = vector.load %arg3[%c2_133, %c2_134, %c0_135] : memref<3x3x32xf32, #tpu.memory_space<vmem>>, vector<1x1x32xf32>
    %104 = vector.shape_cast %103 : vector<1x1x32xf32> to vector<32xf32>
    %105 = vector.shape_cast %104 : vector<32xf32> to vector<1x1x1x32xf32>
    %106 = vector.broadcast %105 : vector<1x1x1x32xf32> to vector<2x16x16x32xf32>
    %107 = arith.mulf %102, %106 : vector<2x16x16x32xf32>
    %108 = arith.addf %101, %107 : vector<2x16x16x32xf32>
    %c0_136 = arith.constant 0 : index
    %c0_137 = arith.constant 0 : index
    %109 = vector.load %arg4[%c0_136, %c0_137] : memref<1x32xf32, #tpu.memory_space<vmem>>, vector<1x32xf32>
    %110 = vector.shape_cast %109 : vector<1x32xf32> to vector<32xf32>
    %111 = vector.shape_cast %110 : vector<32xf32> to vector<1x1x1x32xf32>
    %112 = vector.broadcast %111 : vector<1x1x1x32xf32> to vector<2x16x16x32xf32>
    %113 = arith.addf %108, %112 : vector<2x16x16x32xf32>
    %cst_138 = arith.constant 0.000000e+00 : f32
    %114 = vector.broadcast %cst_138 : f32 to vector<2x16x16x32xf32>
    %115 = arith.maximumf %113, %114 : vector<2x16x16x32xf32>
    %116 = vector.shape_cast %115 : vector<2x16x16x32xf32> to vector<512x32xf32>
    %c0_139 = arith.constant 0 : index
    %c0_140 = arith.constant 0 : index
    %117 = vector.load %arg5[%c0_139, %c0_140] : memref<32x32xf32, #tpu.memory_space<vmem>>, vector<32x32xf32>
    %cst_141 = arith.constant dense<0.000000e+00> : vector<512x32xf32>
    %118 = tpu.matmul %116, %117, %cst_141 {dimension_numbers = #tpu.dot_dimension_numbers<[1], [0], [0], [1], [0, 0, 1, 1], [], []>} : vector<512x32xf32>, vector<32x32xf32>, vector<512x32xf32> -> vector<512x32xf32>
    %c0_142 = arith.constant 0 : index
    %c0_143 = arith.constant 0 : index
    %119 = vector.load %arg6[%c0_142, %c0_143] : memref<1x32xf32, #tpu.memory_space<vmem>>, vector<1x32xf32>
    %120 = vector.shape_cast %119 : vector<1x32xf32> to vector<32xf32>
    %121 = vector.shape_cast %120 : vector<32xf32> to vector<1x32xf32>
    %122 = vector.broadcast %121 : vector<1x32xf32> to vector<512x32xf32>
    %123 = arith.addf %118, %122 : vector<512x32xf32>
    %cst_144 = arith.constant 0.000000e+00 : f32
    %124 = vector.broadcast %cst_144 : f32 to vector<512x32xf32>
    %125 = arith.maximumf %123, %124 : vector<512x32xf32>
    %126 = vector.shape_cast %125 : vector<512x32xf32> to vector<2x16x16x32xf32>
    %c0_145 = arith.constant 0 : index
    %c1_146 = arith.constant 1 : index
    %c1_147 = arith.constant 1 : index
    %c0_148 = arith.constant 0 : index
    %127 = vector.load %arg16[%c0_145, %c1_146, %c1_147, %c0_148] : memref<2x18x18x32xf32, #tpu.memory_space<vmem>>, vector<2x16x16x32xf32>
    tpu.vector_store %arg16[%c0_145, %c1_146, %c1_147, %c0_148], %126 {strides = array<i32>} : memref<2x18x18x32xf32, #tpu.memory_space<vmem>>, vector<2x16x16x32xf32>,
    %cst_149 = arith.constant 0.000000e+00 : f32
    %128 = vector.broadcast %cst_149 : f32 to vector<2x16x16x32xf32>
    %c0_150 = arith.constant 0 : index
    %c0_151 = arith.constant 0 : index
    %c0_152 = arith.constant 0 : index
    %c0_153 = arith.constant 0 : index
    %129 = vector.load %arg16[%c0_150, %c0_151, %c0_152, %c0_153] : memref<2x18x18x32xf32, #tpu.memory_space<vmem>>, vector<2x16x16x32xf32>
    %c0_154 = arith.constant 0 : index
    %c0_155 = arith.constant 0 : index
    %c0_156 = arith.constant 0 : index
    %130 = vector.load %arg7[%c0_154, %c0_155, %c0_156] : memref<3x3x32xf32, #tpu.memory_space<vmem>>, vector<1x1x32xf32>
    %131 = vector.shape_cast %130 : vector<1x1x32xf32> to vector<32xf32>
    %132 = vector.shape_cast %131 : vector<32xf32> to vector<1x1x1x32xf32>
    %133 = vector.broadcast %132 : vector<1x1x1x32xf32> to vector<2x16x16x32xf32>
    %134 = arith.mulf %129, %133 : vector<2x16x16x32xf32>
    %135 = arith.addf %128, %134 : vector<2x16x16x32xf32>
    %c0_157 = arith.constant 0 : index
    %c0_158 = arith.constant 0 : index
    %c1_159 = arith.constant 1 : index
    %c0_160 = arith.constant 0 : index
    %136 = vector.load %arg16[%c0_157, %c0_158, %c1_159, %c0_160] : memref<2x18x18x32xf32, #tpu.memory_space<vmem>>, vector<2x16x16x32xf32>
    %c0_161 = arith.constant 0 : index
    %c1_162 = arith.constant 1 : index
    %c0_163 = arith.constant 0 : index
    %137 = vector.load %arg7[%c0_161, %c1_162, %c0_163] : memref<3x3x32xf32, #tpu.memory_space<vmem>>, vector<1x1x32xf32>
    %138 = vector.shape_cast %137 : vector<1x1x32xf32> to vector<32xf32>
    %139 = vector.shape_cast %138 : vector<32xf32> to vector<1x1x1x32xf32>
    %140 = vector.broadcast %139 : vector<1x1x1x32xf32> to vector<2x16x16x32xf32>
    %141 = arith.mulf %136, %140 : vector<2x16x16x32xf32>
    %142 = arith.addf %135, %141 : vector<2x16x16x32xf32>
    %c0_164 = arith.constant 0 : index
    %c0_165 = arith.constant 0 : index
    %c2_166 = arith.constant 2 : index
    %c0_167 = arith.constant 0 : index
    %143 = vector.load %arg16[%c0_164, %c0_165, %c2_166, %c0_167] : memref<2x18x18x32xf32, #tpu.memory_space<vmem>>, vector<2x16x16x32xf32>
    %c0_168 = arith.constant 0 : index
    %c2_169 = arith.constant 2 : index
    %c0_170 = arith.constant 0 : index
    %144 = vector.load %arg7[%c0_168, %c2_169, %c0_170] : memref<3x3x32xf32, #tpu.memory_space<vmem>>, vector<1x1x32xf32>
    %145 = vector.shape_cast %144 : vector<1x1x32xf32> to vector<32xf32>
    %146 = vector.shape_cast %145 : vector<32xf32> to vector<1x1x1x32xf32>
    %147 = vector.broadcast %146 : vector<1x1x1x32xf32> to vector<2x16x16x32xf32>
    %148 = arith.mulf %143, %147 : vector<2x16x16x32xf32>
    %149 = arith.addf %142, %148 : vector<2x16x16x32xf32>
    %c0_171 = arith.constant 0 : index
    %c1_172 = arith.constant 1 : index
    %c0_173 = arith.constant 0 : index
    %c0_174 = arith.constant 0 : index
    %150 = vector.load %arg16[%c0_171, %c1_172, %c0_173, %c0_174] : memref<2x18x18x32xf32, #tpu.memory_space<vmem>>, vector<2x16x16x32xf32>
    %c1_175 = arith.constant 1 : index
    %c0_176 = arith.constant 0 : index
    %c0_177 = arith.constant 0 : index
    %151 = vector.load %arg7[%c1_175, %c0_176, %c0_177] : memref<3x3x32xf32, #tpu.memory_space<vmem>>, vector<1x1x32xf32>
    %152 = vector.shape_cast %151 : vector<1x1x32xf32> to vector<32xf32>
    %153 = vector.shape_cast %152 : vector<32xf32> to vector<1x1x1x32xf32>
    %154 = vector.broadcast %153 : vector<1x1x1x32xf32> to vector<2x16x16x32xf32>
    %155 = arith.mulf %150, %154 : vector<2x16x16x32xf32>
    %156 = arith.addf %149, %155 : vector<2x16x16x32xf32>
    %c0_178 = arith.constant 0 : index
    %c1_179 = arith.constant 1 : index
    %c1_180 = arith.constant 1 : index
    %c0_181 = arith.constant 0 : index
    %157 = vector.load %arg16[%c0_178, %c1_179, %c1_180, %c0_181] : memref<2x18x18x32xf32, #tpu.memory_space<vmem>>, vector<2x16x16x32xf32>
    %c1_182 = arith.constant 1 : index
    %c1_183 = arith.constant 1 : index
    %c0_184 = arith.constant 0 : index
    %158 = vector.load %arg7[%c1_182, %c1_183, %c0_184] : memref<3x3x32xf32, #tpu.memory_space<vmem>>, vector<1x1x32xf32>
    %159 = vector.shape_cast %158 : vector<1x1x32xf32> to vector<32xf32>
    %160 = vector.shape_cast %159 : vector<32xf32> to vector<1x1x1x32xf32>
    %161 = vector.broadcast %160 : vector<1x1x1x32xf32> to vector<2x16x16x32xf32>
    %162 = arith.mulf %157, %161 : vector<2x16x16x32xf32>
    %163 = arith.addf %156, %162 : vector<2x16x16x32xf32>
    %c0_185 = arith.constant 0 : index
    %c1_186 = arith.constant 1 : index
    %c2_187 = arith.constant 2 : index
    %c0_188 = arith.constant 0 : index
    %164 = vector.load %arg16[%c0_185, %c1_186, %c2_187, %c0_188] : memref<2x18x18x32xf32, #tpu.memory_space<vmem>>, vector<2x16x16x32xf32>
    %c1_189 = arith.constant 1 : index
    %c2_190 = arith.constant 2 : index
    %c0_191 = arith.constant 0 : index
    %165 = vector.load %arg7[%c1_189, %c2_190, %c0_191] : memref<3x3x32xf32, #tpu.memory_space<vmem>>, vector<1x1x32xf32>
    %166 = vector.shape_cast %165 : vector<1x1x32xf32> to vector<32xf32>
    %167 = vector.shape_cast %166 : vector<32xf32> to vector<1x1x1x32xf32>
    %168 = vector.broadcast %167 : vector<1x1x1x32xf32> to vector<2x16x16x32xf32>
    %169 = arith.mulf %164, %168 : vector<2x16x16x32xf32>
    %170 = arith.addf %163, %169 : vector<2x16x16x32xf32>
    %c0_192 = arith.constant 0 : index
    %c2_193 = arith.constant 2 : index
    %c0_194 = arith.constant 0 : index
    %c0_195 = arith.constant 0 : index
    %171 = vector.load %arg16[%c0_192, %c2_193, %c0_194, %c0_195] : memref<2x18x18x32xf32, #tpu.memory_space<vmem>>, vector<2x16x16x32xf32>
    %c2_196 = arith.constant 2 : index
    %c0_197 = arith.constant 0 : index
    %c0_198 = arith.constant 0 : index
    %172 = vector.load %arg7[%c2_196, %c0_197, %c0_198] : memref<3x3x32xf32, #tpu.memory_space<vmem>>, vector<1x1x32xf32>
    %173 = vector.shape_cast %172 : vector<1x1x32xf32> to vector<32xf32>
    %174 = vector.shape_cast %173 : vector<32xf32> to vector<1x1x1x32xf32>
    %175 = vector.broadcast %174 : vector<1x1x1x32xf32> to vector<2x16x16x32xf32>
    %176 = arith.mulf %171, %175 : vector<2x16x16x32xf32>
    %177 = arith.addf %170, %176 : vector<2x16x16x32xf32>
    %c0_199 = arith.constant 0 : index
    %c2_200 = arith.constant 2 : index
    %c1_201 = arith.constant 1 : index
    %c0_202 = arith.constant 0 : index
    %178 = vector.load %arg16[%c0_199, %c2_200, %c1_201, %c0_202] : memref<2x18x18x32xf32, #tpu.memory_space<vmem>>, vector<2x16x16x32xf32>
    %c2_203 = arith.constant 2 : index
    %c1_204 = arith.constant 1 : index
    %c0_205 = arith.constant 0 : index
    %179 = vector.load %arg7[%c2_203, %c1_204, %c0_205] : memref<3x3x32xf32, #tpu.memory_space<vmem>>, vector<1x1x32xf32>
    %180 = vector.shape_cast %179 : vector<1x1x32xf32> to vector<32xf32>
    %181 = vector.shape_cast %180 : vector<32xf32> to vector<1x1x1x32xf32>
    %182 = vector.broadcast %181 : vector<1x1x1x32xf32> to vector<2x16x16x32xf32>
    %183 = arith.mulf %178, %182 : vector<2x16x16x32xf32>
    %184 = arith.addf %177, %183 : vector<2x16x16x32xf32>
    %c0_206 = arith.constant 0 : index
    %c2_207 = arith.constant 2 : index
    %c2_208 = arith.constant 2 : index
    %c0_209 = arith.constant 0 : index
    %185 = vector.load %arg16[%c0_206, %c2_207, %c2_208, %c0_209] : memref<2x18x18x32xf32, #tpu.memory_space<vmem>>, vector<2x16x16x32xf32>
    %c2_210 = arith.constant 2 : index
    %c2_211 = arith.constant 2 : index
    %c0_212 = arith.constant 0 : index
    %186 = vector.load %arg7[%c2_210, %c2_211, %c0_212] : memref<3x3x32xf32, #tpu.memory_space<vmem>>, vector<1x1x32xf32>
    %187 = vector.shape_cast %186 : vector<1x1x32xf32> to vector<32xf32>
    %188 = vector.shape_cast %187 : vector<32xf32> to vector<1x1x1x32xf32>
    %189 = vector.broadcast %188 : vector<1x1x1x32xf32> to vector<2x16x16x32xf32>
    %190 = arith.mulf %185, %189 : vector<2x16x16x32xf32>
    %191 = arith.addf %184, %190 : vector<2x16x16x32xf32>
    %c0_213 = arith.constant 0 : index
    %c0_214 = arith.constant 0 : index
    %192 = vector.load %arg8[%c0_213, %c0_214] : memref<1x32xf32, #tpu.memory_space<vmem>>, vector<1x32xf32>
    %193 = vector.shape_cast %192 : vector<1x32xf32> to vector<32xf32>
    %194 = vector.shape_cast %193 : vector<32xf32> to vector<1x1x1x32xf32>
    %195 = vector.broadcast %194 : vector<1x1x1x32xf32> to vector<2x16x16x32xf32>
    %196 = arith.addf %191, %195 : vector<2x16x16x32xf32>
    %cst_215 = arith.constant 0.000000e+00 : f32
    %197 = vector.broadcast %cst_215 : f32 to vector<2x16x16x32xf32>
    %198 = arith.maximumf %196, %197 : vector<2x16x16x32xf32>
    %199 = vector.shape_cast %198 : vector<2x16x16x32xf32> to vector<512x32xf32>
    %c0_216 = arith.constant 0 : index
    %c0_217 = arith.constant 0 : index
    %200 = vector.load %arg9[%c0_216, %c0_217] : memref<32x32xf32, #tpu.memory_space<vmem>>, vector<32x32xf32>
    %cst_218 = arith.constant dense<0.000000e+00> : vector<512x32xf32>
    %201 = tpu.matmul %199, %200, %cst_218 {dimension_numbers = #tpu.dot_dimension_numbers<[1], [0], [0], [1], [0, 0, 1, 1], [], []>} : vector<512x32xf32>, vector<32x32xf32>, vector<512x32xf32> -> vector<512x32xf32>
    %c0_219 = arith.constant 0 : index
    %c0_220 = arith.constant 0 : index
    %202 = vector.load %arg10[%c0_219, %c0_220] : memref<1x32xf32, #tpu.memory_space<vmem>>, vector<1x32xf32>
    %203 = vector.shape_cast %202 : vector<1x32xf32> to vector<32xf32>
    %204 = vector.shape_cast %203 : vector<32xf32> to vector<1x32xf32>
    %205 = vector.broadcast %204 : vector<1x32xf32> to vector<512x32xf32>
    %206 = arith.addf %201, %205 : vector<512x32xf32>
    %cst_221 = arith.constant 0.000000e+00 : f32
    %207 = vector.broadcast %cst_221 : f32 to vector<512x32xf32>
    %208 = arith.maximumf %206, %207 : vector<512x32xf32>
    %209 = vector.shape_cast %208 : vector<512x32xf32> to vector<2x256x32xf32>
    %cst_222 = arith.constant dense<0.000000e+00> : vector<2x32xf32>
    %210 = vector.multi_reduction <add>, %209, %cst_222 [1] : vector<2x256x32xf32> to vector<2x32xf32>
    %cst_223 = arith.constant 3.906250e-03 : f32
    %211 = vector.broadcast %cst_223 : f32 to vector<2x32xf32>
    %212 = arith.mulf %210, %211 : vector<2x32xf32>
    %c0_224 = arith.constant 0 : index
    %c0_225 = arith.constant 0 : index
    %213 = vector.load %arg11[%c0_224, %c0_225] : memref<32x8xf32, #tpu.memory_space<vmem>>, vector<32x8xf32>
    %cst_226 = arith.constant dense<0.000000e+00> : vector<2x8xf32>
    %214 = tpu.matmul %212, %213, %cst_226 {dimension_numbers = #tpu.dot_dimension_numbers<[1], [0], [0], [1], [0, 0, 1, 1], [], []>} : vector<2x32xf32>, vector<32x8xf32>, vector<2x8xf32> -> vector<2x8xf32>
    %c0_227 = arith.constant 0 : index
    %c0_228 = arith.constant 0 : index
    %215 = vector.load %arg12[%c0_227, %c0_228] : memref<1x8xf32, #tpu.memory_space<vmem>>, vector<1x8xf32>
    %216 = vector.shape_cast %215 : vector<1x8xf32> to vector<8xf32>
    %217 = vector.shape_cast %216 : vector<8xf32> to vector<1x8xf32>
    %218 = vector.broadcast %217 : vector<1x8xf32> to vector<2x8xf32>
    %219 = arith.addf %214, %218 : vector<2x8xf32>
    %c0_229 = arith.constant 0 : index
    %c0_230 = arith.constant 0 : index
    %220 = vector.load %arg13[%c0_229, %c0_230] : memref<2x8xf32, #tpu.memory_space<vmem>>, vector<2x8xf32>
    tpu.vector_store %arg13[%c0_229, %c0_230], %219 {strides = array<i32>} : memref<2x8xf32, #tpu.memory_space<vmem>>, vector<2x8xf32>,
    return
  }
}

</mosaic_0001>

<llo_original>
// kernel: tpu_custom_call.1
$region0: #{tpu_custom_call.1}
  #allocation0 [shape = 'u32[]', space=smem, size = 0x4, offset = 0x4, fixed_abs, tag = 'smem constant byte address 0x4 - core index']
  #allocation1 [shape = 'u32[144,128]{1,0:T(1,128)}', space=vmem, size = 0x12000, scoped, tag = 'internal scratch']
  #allocation2 [shape = 'f32[2,18,18,4]{3,2,1,0:T(8,128)}', space=vmem, size = 0x6c000, scoped, tag = 'scratch operand']
  #allocation3 [shape = 'f32[512,36]{1,0:T(8,128)}', space=vmem, size = 0x40000, scoped, tag = 'scratch operand']
  #allocation4 [shape = 'f32[2,18,18,32]{3,2,1,0:T(8,128)}', space=vmem, size = 0x6c000, scoped, tag = 'scratch operand']
  %s0 = inlined_call_operand.vmem [shape: f32[2,16,16,4], index: 0, kind: input, shape index: {}]
  %s1 = inlined_call_operand.vmem [shape: f32[36,32], index: 1, kind: input, shape index: {}]
  %s2 = inlined_call_operand.vmem [shape: f32[1,32], index: 2, kind: input, shape index: {}]
  %s3 = inlined_call_operand.vmem [shape: f32[3,3,32], index: 3, kind: input, shape index: {}]
  %s4 = inlined_call_operand.vmem [shape: f32[1,32], index: 4, kind: input, shape index: {}]
  %s5 = inlined_call_operand.vmem [shape: f32[32,32], index: 5, kind: input, shape index: {}]
  %s6 = inlined_call_operand.vmem [shape: f32[1,32], index: 6, kind: input, shape index: {}]
  %s7 = inlined_call_operand.vmem [shape: f32[3,3,32], index: 7, kind: input, shape index: {}]
  %s8 = inlined_call_operand.vmem [shape: f32[1,32], index: 8, kind: input, shape index: {}]
  %s9 = inlined_call_operand.vmem [shape: f32[32,32], index: 9, kind: input, shape index: {}]
  %s10 = inlined_call_operand.vmem [shape: f32[1,32], index: 10, kind: input, shape index: {}]
  %s11 = inlined_call_operand.vmem [shape: f32[32,8], index: 11, kind: input, shape index: {}]
  %s12 = inlined_call_operand.vmem [shape: f32[1,8], index: 12, kind: input, shape index: {}]
  %s13 = inlined_call_operand.hbm [shape: f32[2,8], index: 13, kind: output, shape index: {}]
  %s14 = sld [smem:[#allocation0]]
  $region62: #{tpu_custom_call.1} parent=0
    _
  %s16 = ssub.s32 1, %s14
  %s17 = scalar_select 0, %s16, %s14
  $region1: #{tpu_custom_call.1} parent=0
    #allocation5 [shape = 'u8[1024]{0}', space=vmem, size = 0x400, scoped, tag = 'output window, operand 0, single buffered']
    #allocation6 [shape = 's32[1]{0}', space=sflag, size = 0x4, scoped, tag = 'scoped memory for tpu_custom_call.1']
    %18 = vsyncpa [#allocation6], 0
    // Predicated region
    $region2: #{tpu_custom_call.1} parent=1 // pred_check
      _
    $region3: #{tpu_custom_call.1} parent=1 // pred_check_branch
      %20 = sbr.rel (0) target = $region5
    $region4: #{tpu_custom_call.1} parent=1 // pred_region
      _
    $region5: #{tpu_custom_call.1} parent=1 // pred_fallthru
      _
    // Predicated region
    $region6: #{tpu_custom_call.1} parent=1 // pred_check
      _
    $region7: #{tpu_custom_call.1} parent=1 // pred_check_branch
      %22 = sbr.rel (0) target = $region9
    $region8: #{tpu_custom_call.1} parent=1 // pred_region
      _
    $region9: #{tpu_custom_call.1} parent=1 // pred_fallthru
      _
    // Predicated region
    $region10: #{tpu_custom_call.1} parent=1 // pred_check
      _
    $region11: #{tpu_custom_call.1} parent=1 // pred_check_branch
      %24 = sbr.rel (0) target = $region13
    $region12: #{tpu_custom_call.1} parent=1 // pred_region
      _
    $region13: #{tpu_custom_call.1} parent=1 // pred_fallthru
      _
    // Predicated region
    $region14: #{tpu_custom_call.1} parent=1 // pred_check
      _
    $region15: #{tpu_custom_call.1} parent=1 // pred_check_branch
      %26 = sbr.rel (0) target = $region17
    $region16: #{tpu_custom_call.1} parent=1 // pred_region
      _
    $region17: #{tpu_custom_call.1} parent=1 // pred_fallthru
      _
    // Predicated region
    $region18: #{tpu_custom_call.1} parent=1 // pred_check
      _
    $region19: #{tpu_custom_call.1} parent=1 // pred_check_branch
      %28 = sbr.rel (0) target = $region21
    $region20: #{tpu_custom_call.1} parent=1 // pred_region
      _
    $region21: #{tpu_custom_call.1} parent=1 // pred_fallthru
      _
    // Predicated region
    $region22: #{tpu_custom_call.1} parent=1 // pred_check
      _
    $region23: #{tpu_custom_call.1} parent=1 // pred_check_branch
      %30 = sbr.rel (0) target = $region25
    $region24: #{tpu_custom_call.1} parent=1 // pred_region
      _
    $region25: #{tpu_custom_call.1} parent=1 // pred_fallthru
      _
    // Predicated region
    $region26: #{tpu_custom_call.1} parent=1 // pred_check
      _
    $region27: #{tpu_custom_call.1} parent=1 // pred_check_branch
      %32 = sbr.rel (0) target = $region29
    $region28: #{tpu_custom_call.1} parent=1 // pred_region
      _
    $region29: #{tpu_custom_call.1} parent=1 // pred_fallthru
      _
    // Predicated region
    $region30: #{tpu_custom_call.1} parent=1 // pred_check
      _
    $region31: #{tpu_custom_call.1} parent=1 // pred_check_branch
      %34 = sbr.rel (0) target = $region33
    $region32: #{tpu_custom_call.1} parent=1 // pred_region
      _
    $region33: #{tpu_custom_call.1} parent=1 // pred_fallthru
      _
    // Predicated region
    $region34: #{tpu_custom_call.1} parent=1 // pred_check
      _
    $region35: #{tpu_custom_call.1} parent=1 // pred_check_branch
      %36 = sbr.rel (0) target = $region37
    $region36: #{tpu_custom_call.1} parent=1 // pred_region
      _
    $region37: #{tpu_custom_call.1} parent=1 // pred_fallthru
      _
    // Predicated region
    $region38: #{tpu_custom_call.1} parent=1 // pred_check
      _
    $region39: #{tpu_custom_call.1} parent=1 // pred_check_branch
      %38 = sbr.rel (0) target = $region41
    $region40: #{tpu_custom_call.1} parent=1 // pred_region
      _
    $region41: #{tpu_custom_call.1} parent=1 // pred_fallthru
      _
    // Predicated region
    $region42: #{tpu_custom_call.1} parent=1 // pred_check
      _
    $region43: #{tpu_custom_call.1} parent=1 // pred_check_branch
      %40 = sbr.rel (0) target = $region45
    $region44: #{tpu_custom_call.1} parent=1 // pred_region
      _
    $region45: #{tpu_custom_call.1} parent=1 // pred_fallthru
      _
    // Predicated region
    $region46: #{tpu_custom_call.1} parent=1 // pred_check
      _
    $region47: #{tpu_custom_call.1} parent=1 // pred_check_branch
      %42 = sbr.rel (0) target = $region49
    $region48: #{tpu_custom_call.1} parent=1 // pred_region
      _
    $region49: #{tpu_custom_call.1} parent=1 // pred_fallthru
      _
    // Predicated region
    $region50: #{tpu_custom_call.1} parent=1 // pred_check
      _
    $region51: #{tpu_custom_call.1} parent=1 // pred_check_branch
      %44 = sbr.rel (0) target = $region53
    $region52: #{tpu_custom_call.1} parent=1 // pred_region
      _
    $region53: #{tpu_custom_call.1} parent=1 // pred_fallthru
      _
    %vm45 = vcmask 31744
    %46 = vst.msk [vmem:[#allocation2] sm:$0xff] %vm45, 0.0
    %47 = vst.msk [vmem:[#allocation2 + $0x8] sm:$0xff] %vm45, 0.0
    %vm48 = vcmask 25600
    %49 = vst.msk [vmem:[#allocation2 + $0x10] sm:$0x3] %vm48, 0.0
    %50 = vst.msk [vmem:[#allocation2 + $0x18] sm:$0xff] %vm45, 0.0
    %51 = vst.msk [vmem:[#allocation2 + $0x20] sm:$0xff] %vm45, 0.0
    %52 = vst.msk [vmem:[#allocation2 + $0x28] sm:$0x3] %vm48, 0.0
    %53 = vst.msk [vmem:[#allocation2 + $0x30] sm:$0xff] %vm45, 0.0
    %54 = vst.msk [vmem:[#allocation2 + $0x38] sm:$0xff] %vm45, 0.0
    %55 = vst.msk [vmem:[#allocation2 + $0x40] sm:$0x3] %vm48, 0.0
    %56 = vst.msk [vmem:[#allocation2 + $0x48] sm:$0xff] %vm45, 0.0
    %57 = vst.msk [vmem:[#allocation2 + $0x50] sm:$0xff] %vm45, 0.0
    %58 = vst.msk [vmem:[#allocation2 + $0x58] sm:$0x3] %vm48, 0.0
    %59 = vst.msk [vmem:[#allocation2 + $0x60] sm:$0xff] %vm45, 0.0
    %60 = vst.msk [vmem:[#allocation2 + $0x68] sm:$0xff] %vm45, 0.0
    %61 = vst.msk [vmem:[#allocation2 + $0x70] sm:$0x3] %vm48, 0.0
    %62 = vst.msk [vmem:[#allocation2 + $0x78] sm:$0xff] %vm45, 0.0
    %63 = vst.msk [vmem:[#allocation2 + $0x80] sm:$0xff] %vm45, 0.0
    %64 = vst.msk [vmem:[#allocation2 + $0x88] sm:$0x3] %vm48, 0.0
    %65 = vst.msk [vmem:[#allocation2 + $0x90] sm:$0xff] %vm45, 0.0
    %66 = vst.msk [vmem:[#allocation2 + $0x98] sm:$0xff] %vm45, 0.0
    %67 = vst.msk [vmem:[#allocation2 + $0xa0] sm:$0x3] %vm48, 0.0
    %68 = vst.msk [vmem:[#allocation2 + $0xa8] sm:$0xff] %vm45, 0.0
    %69 = vst.msk [vmem:[#allocation2 + $0xb0] sm:$0xff] %vm45, 0.0
    %70 = vst.msk [vmem:[#allocation2 + $0xb8] sm:$0x3] %vm48, 0.0
    %71 = vst.msk [vmem:[#allocation2 + $0xc0] sm:$0xff] %vm45, 0.0
    %72 = vst.msk [vmem:[#allocation2 + $0xc8] sm:$0xff] %vm45, 0.0
    %73 = vst.msk [vmem:[#allocation2 + $0xd0] sm:$0x3] %vm48, 0.0
    %74 = vst.msk [vmem:[#allocation2 + $0xd8] sm:$0xff] %vm45, 0.0
    %75 = vst.msk [vmem:[#allocation2 + $0xe0] sm:$0xff] %vm45, 0.0
    %76 = vst.msk [vmem:[#allocation2 + $0xe8] sm:$0x3] %vm48, 0.0
    %77 = vst.msk [vmem:[#allocation2 + $0xf0] sm:$0xff] %vm45, 0.0
    %78 = vst.msk [vmem:[#allocation2 + $0xf8] sm:$0xff] %vm45, 0.0
    %79 = vst.msk [vmem:[#allocation2 + $0x100] sm:$0x3] %vm48, 0.0
    %80 = vst.msk [vmem:[#allocation2 + $0x108] sm:$0xff] %vm45, 0.0
    %81 = vst.msk [vmem:[#allocation2 + $0x110] sm:$0xff] %vm45, 0.0
    %82 = vst.msk [vmem:[#allocation2 + $0x118] sm:$0x3] %vm48, 0.0
    %83 = vst.msk [vmem:[#allocation2 + $0x120] sm:$0xff] %vm45, 0.0
    %84 = vst.msk [vmem:[#allocation2 + $0x128] sm:$0xff] %vm45, 0.0
    %85 = vst.msk [vmem:[#allocation2 + $0x130] sm:$0x3] %vm48, 0.0
    %86 = vst.msk [vmem:[#allocation2 + $0x138] sm:$0xff] %vm45, 0.0
    %87 = vst.msk [vmem:[#allocation2 + $0x140] sm:$0xff] %vm45, 0.0
    %88 = vst.msk [vmem:[#allocation2 + $0x148] sm:$0x3] %vm48, 0.0
    %89 = vst.msk [vmem:[#allocation2 + $0x150] sm:$0xff] %vm45, 0.0
    %90 = vst.msk [vmem:[#allocation2 + $0x158] sm:$0xff] %vm45, 0.0
    %91 = vst.msk [vmem:[#allocation2 + $0x160] sm:$0x3] %vm48, 0.0
    %92 = vst.msk [vmem:[#allocation2 + $0x168] sm:$0xff] %vm45, 0.0
    %93 = vst.msk [vmem:[#allocation2 + $0x170] sm:$0xff] %vm45, 0.0
    %94 = vst.msk [vmem:[#allocation2 + $0x178] sm:$0x3] %vm48, 0.0
    %95 = vst.msk [vmem:[#allocation2 + $0x180] sm:$0xff] %vm45, 0.0
    %96 = vst.msk [vmem:[#allocation2 + $0x188] sm:$0xff] %vm45, 0.0
    %97 = vst.msk [vmem:[#allocation2 + $0x190] sm:$0x3] %vm48, 0.0
    %98 = vst.msk [vmem:[#allocation2 + $0x198] sm:$0xff] %vm45, 0.0
    %99 = vst.msk [vmem:[#allocation2 + $0x1a0] sm:$0xff] %vm45, 0.0
    %100 = vst.msk [vmem:[#allocation2 + $0x1a8] sm:$0x3] %vm48, 0.0
    %101 = vst.msk [vmem:[#allocation2 + $0x1b0] sm:$0xff] %vm45, 0.0
    %102 = vst.msk [vmem:[#allocation2 + $0x1b8] sm:$0xff] %vm45, 0.0
    %103 = vst.msk [vmem:[#allocation2 + $0x1c0] sm:$0x3] %vm48, 0.0
    %104 = vst.msk [vmem:[#allocation2 + $0x1c8] sm:$0xff] %vm45, 0.0
    %105 = vst.msk [vmem:[#allocation2 + $0x1d0] sm:$0xff] %vm45, 0.0
    %106 = vst.msk [vmem:[#allocation2 + $0x1d8] sm:$0x3] %vm48, 0.0
    %107 = vst.msk [vmem:[#allocation2 + $0x1e0] sm:$0xff] %vm45, 0.0
    %108 = vst.msk [vmem:[#allocation2 + $0x1e8] sm:$0xff] %vm45, 0.0
    %109 = vst.msk [vmem:[#allocation2 + $0x1f0] sm:$0x3] %vm48, 0.0
    %110 = vst.msk [vmem:[#allocation2 + $0x1f8] sm:$0xff] %vm45, 0.0
    %111 = vst.msk [vmem:[#allocation2 + $0x200] sm:$0xff] %vm45, 0.0
    %112 = vst.msk [vmem:[#allocation2 + $0x208] sm:$0x3] %vm48, 0.0
    %113 = vst.msk [vmem:[#allocation2 + $0x210] sm:$0xff] %vm45, 0.0
    %114 = vst.msk [vmem:[#allocation2 + $0x218] sm:$0xff] %vm45, 0.0
    %115 = vst.msk [vmem:[#allocation2 + $0x220] sm:$0x3] %vm48, 0.0
    %116 = vst.msk [vmem:[#allocation2 + $0x228] sm:$0xff] %vm45, 0.0
    %117 = vst.msk [vmem:[#allocation2 + $0x230] sm:$0xff] %vm45, 0.0
    %118 = vst.msk [vmem:[#allocation2 + $0x238] sm:$0x3] %vm48, 0.0
    %119 = vst.msk [vmem:[#allocation2 + $0x240] sm:$0xff] %vm45, 0.0
    %120 = vst.msk [vmem:[#allocation2 + $0x248] sm:$0xff] %vm45, 0.0
    %121 = vst.msk [vmem:[#allocation2 + $0x250] sm:$0x3] %vm48, 0.0
    %122 = vst.msk [vmem:[#allocation2 + $0x258] sm:$0xff] %vm45, 0.0
    %123 = vst.msk [vmem:[#allocation2 + $0x260] sm:$0xff] %vm45, 0.0
    %124 = vst.msk [vmem:[#allocation2 + $0x268] sm:$0x3] %vm48, 0.0
    %125 = vst.msk [vmem:[#allocation2 + $0x270] sm:$0xff] %vm45, 0.0
    %126 = vst.msk [vmem:[#allocation2 + $0x278] sm:$0xff] %vm45, 0.0
    %127 = vst.msk [vmem:[#allocation2 + $0x280] sm:$0x3] %vm48, 0.0
    %128 = vst.msk [vmem:[#allocation2 + $0x288] sm:$0xff] %vm45, 0.0
    %129 = vst.msk [vmem:[#allocation2 + $0x290] sm:$0xff] %vm45, 0.0
    %130 = vst.msk [vmem:[#allocation2 + $0x298] sm:$0x3] %vm48, 0.0
    %131 = vst.msk [vmem:[#allocation2 + $0x2a0] sm:$0xff] %vm45, 0.0
    %132 = vst.msk [vmem:[#allocation2 + $0x2a8] sm:$0xff] %vm45, 0.0
    %133 = vst.msk [vmem:[#allocation2 + $0x2b0] sm:$0x3] %vm48, 0.0
    %134 = vst.msk [vmem:[#allocation2 + $0x2b8] sm:$0xff] %vm45, 0.0
    %135 = vst.msk [vmem:[#allocation2 + $0x2c0] sm:$0xff] %vm45, 0.0
    %136 = vst.msk [vmem:[#allocation2 + $0x2c8] sm:$0x3] %vm48, 0.0
    %137 = vst.msk [vmem:[#allocation2 + $0x2d0] sm:$0xff] %vm45, 0.0
    %138 = vst.msk [vmem:[#allocation2 + $0x2d8] sm:$0xff] %vm45, 0.0
    %139 = vst.msk [vmem:[#allocation2 + $0x2e0] sm:$0x3] %vm48, 0.0
    %140 = vst.msk [vmem:[#allocation2 + $0x2e8] sm:$0xff] %vm45, 0.0
    %141 = vst.msk [vmem:[#allocation2 + $0x2f0] sm:$0xff] %vm45, 0.0
    %142 = vst.msk [vmem:[#allocation2 + $0x2f8] sm:$0x3] %vm48, 0.0
    %143 = vst.msk [vmem:[#allocation2 + $0x300] sm:$0xff] %vm45, 0.0
    %144 = vst.msk [vmem:[#allocation2 + $0x308] sm:$0xff] %vm45, 0.0
    %145 = vst.msk [vmem:[#allocation2 + $0x310] sm:$0x3] %vm48, 0.0
    %146 = vst.msk [vmem:[#allocation2 + $0x318] sm:$0xff] %vm45, 0.0
    %147 = vst.msk [vmem:[#allocation2 + $0x320] sm:$0xff] %vm45, 0.0
    %148 = vst.msk [vmem:[#allocation2 + $0x328] sm:$0x3] %vm48, 0.0
    %149 = vst.msk [vmem:[#allocation2 + $0x330] sm:$0xff] %vm45, 0.0
    %150 = vst.msk [vmem:[#allocation2 + $0x338] sm:$0xff] %vm45, 0.0
    %151 = vst.msk [vmem:[#allocation2 + $0x340] sm:$0x3] %vm48, 0.0
    %152 = vst.msk [vmem:[#allocation2 + $0x348] sm:$0xff] %vm45, 0.0
    %153 = vst.msk [vmem:[#allocation2 + $0x350] sm:$0xff] %vm45, 0.0
    %154 = vst.msk [vmem:[#allocation2 + $0x358] sm:$0x3] %vm48, 0.0
    %vm155 = vcmask 261120
    %156 = vst.msk [vmem:[#allocation4] sm:$0xff] %vm155, 0.0
    %157 = vst.msk [vmem:[#allocation4 + $0x8] sm:$0xff] %vm155, 0.0
    %vm158 = vcmask 254976
    %159 = vst.msk [vmem:[#allocation4 + $0x10] sm:$0x3] %vm158, 0.0
    %160 = vst.msk [vmem:[#allocation4 + $0x18] sm:$0xff] %vm155, 0.0
    %161 = vst.msk [vmem:[#allocation4 + $0x20] sm:$0xff] %vm155, 0.0
    %162 = vst.msk [vmem:[#allocation4 + $0x28] sm:$0x3] %vm158, 0.0
    %163 = vst.msk [vmem:[#allocation4 + $0x30] sm:$0xff] %vm155, 0.0
    %164 = vst.msk [vmem:[#allocation4 + $0x38] sm:$0xff] %vm155, 0.0
    %165 = vst.msk [vmem:[#allocation4 + $0x40] sm:$0x3] %vm158, 0.0
    %166 = vst.msk [vmem:[#allocation4 + $0x48] sm:$0xff] %vm155, 0.0
    %167 = vst.msk [vmem:[#allocation4 + $0x50] sm:$0xff] %vm155, 0.0
    %168 = vst.msk [vmem:[#allocation4 + $0x58] sm:$0x3] %vm158, 0.0
    %169 = vst.msk [vmem:[#allocation4 + $0x60] sm:$0xff] %vm155, 0.0
    %170 = vst.msk [vmem:[#allocation4 + $0x68] sm:$0xff] %vm155, 0.0
    %171 = vst.msk [vmem:[#allocation4 + $0x70] sm:$0x3] %vm158, 0.0
    %172 = vst.msk [vmem:[#allocation4 + $0x78] sm:$0xff] %vm155, 0.0
    %173 = vst.msk [vmem:[#allocation4 + $0x80] sm:$0xff] %vm155, 0.0
    %174 = vst.msk [vmem:[#allocation4 + $0x88] sm:$0x3] %vm158, 0.0
    %175 = vst.msk [vmem:[#allocation4 + $0x90] sm:$0xff] %vm155, 0.0
    %176 = vst.msk [vmem:[#allocation4 + $0x98] sm:$0xff] %vm155, 0.0
    %177 = vst.msk [vmem:[#allocation4 + $0xa0] sm:$0x3] %vm158, 0.0
    %178 = vst.msk [vmem:[#allocation4 + $0xa8] sm:$0xff] %vm155, 0.0
    %179 = vst.msk [vmem:[#allocation4 + $0xb0] sm:$0xff] %vm155, 0.0
    %180 = vst.msk [vmem:[#allocation4 + $0xb8] sm:$0x3] %vm158, 0.0
    %181 = vst.msk [vmem:[#allocation4 + $0xc0] sm:$0xff] %vm155, 0.0
    %182 = vst.msk [vmem:[#allocation4 + $0xc8] sm:$0xff] %vm155, 0.0
    %183 = vst.msk [vmem:[#allocation4 + $0xd0] sm:$0x3] %vm158, 0.0
    %184 = vst.msk [vmem:[#allocation4 + $0xd8] sm:$0xff] %vm155, 0.0
    %185 = vst.msk [vmem:[#allocation4 + $0xe0] sm:$0xff] %vm155, 0.0
    %186 = vst.msk [vmem:[#allocation4 + $0xe8] sm:$0x3] %vm158, 0.0
    %187 = vst.msk [vmem:[#allocation4 + $0xf0] sm:$0xff] %vm155, 0.0
    %188 = vst.msk [vmem:[#allocation4 + $0xf8] sm:$0xff] %vm155, 0.0
    %189 = vst.msk [vmem:[#allocation4 + $0x100] sm:$0x3] %vm158, 0.0
    %190 = vst.msk [vmem:[#allocation4 + $0x108] sm:$0xff] %vm155, 0.0
    %191 = vst.msk [vmem:[#allocation4 + $0x110] sm:$0xff] %vm155, 0.0
    %192 = vst.msk [vmem:[#allocation4 + $0x118] sm:$0x3] %vm158, 0.0
    %193 = vst.msk [vmem:[#allocation4 + $0x120] sm:$0xff] %vm155, 0.0
    %194 = vst.msk [vmem:[#allocation4 + $0x128] sm:$0xff] %vm155, 0.0
    %195 = vst.msk [vmem:[#allocation4 + $0x130] sm:$0x3] %vm158, 0.0
    %196 = vst.msk [vmem:[#allocation4 + $0x138] sm:$0xff] %vm155, 0.0
    %197 = vst.msk [vmem:[#allocation4 + $0x140] sm:$0xff] %vm155, 0.0
    %198 = vst.msk [vmem:[#allocation4 + $0x148] sm:$0x3] %vm158, 0.0
    %199 = vst.msk [vmem:[#allocation4 + $0x150] sm:$0xff] %vm155, 0.0
    %200 = vst.msk [vmem:[#allocation4 + $0x158] sm:$0xff] %vm155, 0.0
    %201 = vst.msk [vmem:[#allocation4 + $0x160] sm:$0x3] %vm158, 0.0
    %202 = vst.msk [vmem:[#allocation4 + $0x168] sm:$0xff] %vm155, 0.0
    %203 = vst.msk [vmem:[#allocation4 + $0x170] sm:$0xff] %vm155, 0.0
    %204 = vst.msk [vmem:[#allocation4 + $0x178] sm:$0x3] %vm158, 0.0
    %205 = vst.msk [vmem:[#allocation4 + $0x180] sm:$0xff] %vm155, 0.0
    %206 = vst.msk [vmem:[#allocation4 + $0x188] sm:$0xff] %vm155, 0.0
    %207 = vst.msk [vmem:[#allocation4 + $0x190] sm:$0x3] %vm158, 0.0
    %208 = vst.msk [vmem:[#allocation4 + $0x198] sm:$0xff] %vm155, 0.0
    %209 = vst.msk [vmem:[#allocation4 + $0x1a0] sm:$0xff] %vm155, 0.0
    %210 = vst.msk [vmem:[#allocation4 + $0x1a8] sm:$0x3] %vm158, 0.0
    %211 = vst.msk [vmem:[#allocation4 + $0x1b0] sm:$0xff] %vm155, 0.0
    %212 = vst.msk [vmem:[#allocation4 + $0x1b8] sm:$0xff] %vm155, 0.0
    %213 = vst.msk [vmem:[#allocation4 + $0x1c0] sm:$0x3] %vm158, 0.0
    %214 = vst.msk [vmem:[#allocation4 + $0x1c8] sm:$0xff] %vm155, 0.0
    %215 = vst.msk [vmem:[#allocation4 + $0x1d0] sm:$0xff] %vm155, 0.0
    %216 = vst.msk [vmem:[#allocation4 + $0x1d8] sm:$0x3] %vm158, 0.0
    %217 = vst.msk [vmem:[#allocation4 + $0x1e0] sm:$0xff] %vm155, 0.0
    %218 = vst.msk [vmem:[#allocation4 + $0x1e8] sm:$0xff] %vm155, 0.0
    %219 = vst.msk [vmem:[#allocation4 + $0x1f0] sm:$0x3] %vm158, 0.0
    %220 = vst.msk [vmem:[#allocation4 + $0x1f8] sm:$0xff] %vm155, 0.0
    %221 = vst.msk [vmem:[#allocation4 + $0x200] sm:$0xff] %vm155, 0.0
    %222 = vst.msk [vmem:[#allocation4 + $0x208] sm:$0x3] %vm158, 0.0
    %223 = vst.msk [vmem:[#allocation4 + $0x210] sm:$0xff] %vm155, 0.0
    %224 = vst.msk [vmem:[#allocation4 + $0x218] sm:$0xff] %vm155, 0.0
    %225 = vst.msk [vmem:[#allocation4 + $0x220] sm:$0x3] %vm158, 0.0
    %226 = vst.msk [vmem:[#allocation4 + $0x228] sm:$0xff] %vm155, 0.0
    %227 = vst.msk [vmem:[#allocation4 + $0x230] sm:$0xff] %vm155, 0.0
    %228 = vst.msk [vmem:[#allocation4 + $0x238] sm:$0x3] %vm158, 0.0
    %229 = vst.msk [vmem:[#allocation4 + $0x240] sm:$0xff] %vm155, 0.0
    %230 = vst.msk [vmem:[#allocation4 + $0x248] sm:$0xff] %vm155, 0.0
    %231 = vst.msk [vmem:[#allocation4 + $0x250] sm:$0x3] %vm158, 0.0
    %232 = vst.msk [vmem:[#allocation4 + $0x258] sm:$0xff] %vm155, 0.0
    %233 = vst.msk [vmem:[#allocation4 + $0x260] sm:$0xff] %vm155, 0.0
    %234 = vst.msk [vmem:[#allocation4 + $0x268] sm:$0x3] %vm158, 0.0
    %235 = vst.msk [vmem:[#allocation4 + $0x270] sm:$0xff] %vm155, 0.0
    %236 = vst.msk [vmem:[#allocation4 + $0x278] sm:$0xff] %vm155, 0.0
    %237 = vst.msk [vmem:[#allocation4 + $0x280] sm:$0x3] %vm158, 0.0
    %238 = vst.msk [vmem:[#allocation4 + $0x288] sm:$0xff] %vm155, 0.0
    %239 = vst.msk [vmem:[#allocation4 + $0x290] sm:$0xff] %vm155, 0.0
    %240 = vst.msk [vmem:[#allocation4 + $0x298] sm:$0x3] %vm158, 0.0
    %241 = vst.msk [vmem:[#allocation4 + $0x2a0] sm:$0xff] %vm155, 0.0
    %242 = vst.msk [vmem:[#allocation4 + $0x2a8] sm:$0xff] %vm155, 0.0
    %243 = vst.msk [vmem:[#allocation4 + $0x2b0] sm:$0x3] %vm158, 0.0
    %244 = vst.msk [vmem:[#allocation4 + $0x2b8] sm:$0xff] %vm155, 0.0
    %245 = vst.msk [vmem:[#allocation4 + $0x2c0] sm:$0xff] %vm155, 0.0
    %246 = vst.msk [vmem:[#allocation4 + $0x2c8] sm:$0x3] %vm158, 0.0
    %247 = vst.msk [vmem:[#allocation4 + $0x2d0] sm:$0xff] %vm155, 0.0
    %248 = vst.msk [vmem:[#allocation4 + $0x2d8] sm:$0xff] %vm155, 0.0
    %249 = vst.msk [vmem:[#allocation4 + $0x2e0] sm:$0x3] %vm158, 0.0
    %250 = vst.msk [vmem:[#allocation4 + $0x2e8] sm:$0xff] %vm155, 0.0
    %251 = vst.msk [vmem:[#allocation4 + $0x2f0] sm:$0xff] %vm155, 0.0
    %252 = vst.msk [vmem:[#allocation4 + $0x2f8] sm:$0x3] %vm158, 0.0
    %253 = vst.msk [vmem:[#allocation4 + $0x300] sm:$0xff] %vm155, 0.0
    %254 = vst.msk [vmem:[#allocation4 + $0x308] sm:$0xff] %vm155, 0.0
    %255 = vst.msk [vmem:[#allocation4 + $0x310] sm:$0x3] %vm158, 0.0
    %256 = vst.msk [vmem:[#allocation4 + $0x318] sm:$0xff] %vm155, 0.0
    %257 = vst.msk [vmem:[#allocation4 + $0x320] sm:$0xff] %vm155, 0.0
    %258 = vst.msk [vmem:[#allocation4 + $0x328] sm:$0x3] %vm158, 0.0
    %259 = vst.msk [vmem:[#allocation4 + $0x330] sm:$0xff] %vm155, 0.0
    %260 = vst.msk [vmem:[#allocation4 + $0x338] sm:$0xff] %vm155, 0.0
    %261 = vst.msk [vmem:[#allocation4 + $0x340] sm:$0x3] %vm158, 0.0
    %262 = vst.msk [vmem:[#allocation4 + $0x348] sm:$0xff] %vm155, 0.0
    %263 = vst.msk [vmem:[#allocation4 + $0x350] sm:$0xff] %vm155, 0.0
    %264 = vst.msk [vmem:[#allocation4 + $0x358] sm:$0x3] %vm158, 0.0
    %v265 = vld [vmem:[%s0] sm:$0xff]
    %v266 = vld [vmem:[%s0 + $0x8] sm:$0xff]
    %v267 = vld [vmem:[%s0 + $0x10] sm:$0xff]
    %v268 = vld [vmem:[%s0 + $0x18] sm:$0xff]
    %v269 = vld [vmem:[%s0 + $0x20] sm:$0xff]
    %v270 = vld [vmem:[%s0 + $0x28] sm:$0xff]
    %v271 = vld [vmem:[%s0 + $0x30] sm:$0xff]
    %v272 = vld [vmem:[%s0 + $0x38] sm:$0xff]
    %v273 = vld [vmem:[%s0 + $0x40] sm:$0xff]
    %v274 = vld [vmem:[%s0 + $0x48] sm:$0xff]
    %v275 = vld [vmem:[%s0 + $0x50] sm:$0xff]
    %v276 = vld [vmem:[%s0 + $0x58] sm:$0xff]
    %v277 = vld [vmem:[%s0 + $0x60] sm:$0xff]
    %v278 = vld [vmem:[%s0 + $0x68] sm:$0xff]
    %v279 = vld [vmem:[%s0 + $0x70] sm:$0xff]
    %v280 = vld [vmem:[%s0 + $0x78] sm:$0xff]
    %v281 = vld [vmem:[%s0 + $0x80] sm:$0xff]
    %v282 = vld [vmem:[%s0 + $0x88] sm:$0xff]
    %v283 = vld [vmem:[%s0 + $0x90] sm:$0xff]
    %v284 = vld [vmem:[%s0 + $0x98] sm:$0xff]
    %v285 = vld [vmem:[%s0 + $0xa0] sm:$0xff]
    %v286 = vld [vmem:[%s0 + $0xa8] sm:$0xff]
    %v287 = vld [vmem:[%s0 + $0xb0] sm:$0xff]
    %v288 = vld [vmem:[%s0 + $0xb8] sm:$0xff]
    %v289 = vld [vmem:[%s0 + $0xc0] sm:$0xff]
    %v290 = vld [vmem:[%s0 + $0xc8] sm:$0xff]
    %v291 = vld [vmem:[%s0 + $0xd0] sm:$0xff]
    %v292 = vld [vmem:[%s0 + $0xd8] sm:$0xff]
    %v293 = vld [vmem:[%s0 + $0xe0] sm:$0xff]
    %v294 = vld [vmem:[%s0 + $0xe8] sm:$0xff]
    %v295 = vld [vmem:[%s0 + $0xf0] sm:$0xff]
    %v296 = vld [vmem:[%s0 + $0xf8] sm:$0xff]
    %v297 = vld [vmem:[%s0 + $0x100] sm:$0xff]
    %v298 = vld [vmem:[%s0 + $0x108] sm:$0xff]
    %v299 = vld [vmem:[%s0 + $0x110] sm:$0xff]
    %v300 = vld [vmem:[%s0 + $0x118] sm:$0xff]
    %v301 = vld [vmem:[%s0 + $0x120] sm:$0xff]
    %v302 = vld [vmem:[%s0 + $0x128] sm:$0xff]
    %v303 = vld [vmem:[%s0 + $0x130] sm:$0xff]
    %v304 = vld [vmem:[%s0 + $0x138] sm:$0xff]
    %v305 = vld [vmem:[%s0 + $0x140] sm:$0xff]
    %v306 = vld [vmem:[%s0 + $0x148] sm:$0xff]
    %v307 = vld [vmem:[%s0 + $0x150] sm:$0xff]
    %v308 = vld [vmem:[%s0 + $0x158] sm:$0xff]
    %v309 = vld [vmem:[%s0 + $0x160] sm:$0xff]
    %v310 = vld [vmem:[%s0 + $0x168] sm:$0xff]
    %v311 = vld [vmem:[%s0 + $0x170] sm:$0xff]
    %v312 = vld [vmem:[%s0 + $0x178] sm:$0xff]
    %v313 = vld [vmem:[%s0 + $0x180] sm:$0xff]
    %v314 = vld [vmem:[%s0 + $0x188] sm:$0xff]
    %v315 = vld [vmem:[%s0 + $0x190] sm:$0xff]
    %v316 = vld [vmem:[%s0 + $0x198] sm:$0xff]
    %v317 = vld [vmem:[%s0 + $0x1a0] sm:$0xff]
    %v318 = vld [vmem:[%s0 + $0x1a8] sm:$0xff]
    %v319 = vld [vmem:[%s0 + $0x1b0] sm:$0xff]
    %v320 = vld [vmem:[%s0 + $0x1b8] sm:$0xff]
    %v321 = vld [vmem:[%s0 + $0x1c0] sm:$0xff]
    %v322 = vld [vmem:[%s0 + $0x1c8] sm:$0xff]
    %v323 = vld [vmem:[%s0 + $0x1d0] sm:$0xff]
    %v324 = vld [vmem:[%s0 + $0x1d8] sm:$0xff]
    %v325 = vld [vmem:[%s0 + $0x1e0] sm:$0xff]
    %v326 = vld [vmem:[%s0 + $0x1e8] sm:$0xff]
    %v327 = vld [vmem:[%s0 + $0x1f0] sm:$0xff]
    %v328 = vld [vmem:[%s0 + $0x1f8] sm:$0xff]
    %s329 = scalar_lea.vmem [#allocation2], 24
    %330 = vst.msk [vmem:[%s329 + $0x1] sm:$0xff] %vm45, %v265
    %331 = vst.msk [vmem:[%s329 + $0x9] sm:$0xff] %vm45, %v266
    %332 = vst.msk [vmem:[%s329 + $0x19] sm:$0xff] %vm45, %v267
    %333 = vst.msk [vmem:[%s329 + $0x21] sm:$0xff] %vm45, %v268
    %334 = vst.msk [vmem:[%s329 + $0x31] sm:$0xff] %vm45, %v269
    %335 = vst.msk [vmem:[%s329 + $0x39] sm:$0xff] %vm45, %v270
    %336 = vst.msk [vmem:[%s329 + $0x49] sm:$0xff] %vm45, %v271
    %337 = vst.msk [vmem:[%s329 + $0x51] sm:$0xff] %vm45, %v272
    %338 = vst.msk [vmem:[%s329 + $0x61] sm:$0xff] %vm45, %v273
    %339 = vst.msk [vmem:[%s329 + $0x69] sm:$0xff] %vm45, %v274
    %340 = vst.msk [vmem:[%s329 + $0x79] sm:$0xff] %vm45, %v275
    %341 = vst.msk [vmem:[%s329 + $0x81] sm:$0xff] %vm45, %v276
    %342 = vst.msk [vmem:[%s329 + $0x91] sm:$0xff] %vm45, %v277
    %343 = vst.msk [vmem:[%s329 + $0x99] sm:$0xff] %vm45, %v278
    %344 = vst.msk [vmem:[%s329 + $0xa9] sm:$0xff] %vm45, %v279
    %345 = vst.msk [vmem:[%s329 + $0xb1] sm:$0xff] %vm45, %v280
    %346 = vst.msk [vmem:[%s329 + $0xc1] sm:$0xff] %vm45, %v281
    %347 = vst.msk [vmem:[%s329 + $0xc9] sm:$0xff] %vm45, %v282
    %348 = vst.msk [vmem:[%s329 + $0xd9] sm:$0xff] %vm45, %v283
    %349 = vst.msk [vmem:[%s329 + $0xe1] sm:$0xff] %vm45, %v284
    %350 = vst.msk [vmem:[%s329 + $0xf1] sm:$0xff] %vm45, %v285
    %351 = vst.msk [vmem:[%s329 + $0xf9] sm:$0xff] %vm45, %v286
    %352 = vst.msk [vmem:[%s329 + $0x109] sm:$0xff] %vm45, %v287
    %353 = vst.msk [vmem:[%s329 + $0x111] sm:$0xff] %vm45, %v288
    %354 = vst.msk [vmem:[%s329 + $0x121] sm:$0xff] %vm45, %v289
    %355 = vst.msk [vmem:[%s329 + $0x129] sm:$0xff] %vm45, %v290
    %356 = vst.msk [vmem:[%s329 + $0x139] sm:$0xff] %vm45, %v291
    %357 = vst.msk [vmem:[%s329 + $0x141] sm:$0xff] %vm45, %v292
    %358 = vst.msk [vmem:[%s329 + $0x151] sm:$0xff] %vm45, %v293
    %359 = vst.msk [vmem:[%s329 + $0x159] sm:$0xff] %vm45, %v294
    %360 = vst.msk [vmem:[%s329 + $0x169] sm:$0xff] %vm45, %v295
    %361 = vst.msk [vmem:[%s329 + $0x171] sm:$0xff] %vm45, %v296
    %362 = vst.msk [vmem:[%s329 + $0x1b1] sm:$0xff] %vm45, %v297
    %363 = vst.msk [vmem:[%s329 + $0x1b9] sm:$0xff] %vm45, %v298
    %364 = vst.msk [vmem:[%s329 + $0x1c9] sm:$0xff] %vm45, %v299
    %365 = vst.msk [vmem:[%s329 + $0x1d1] sm:$0xff] %vm45, %v300
    %366 = vst.msk [vmem:[%s329 + $0x1e1] sm:$0xff] %vm45, %v301
    %367 = vst.msk [vmem:[%s329 + $0x1e9] sm:$0xff] %vm45, %v302
    %368 = vst.msk [vmem:[%s329 + $0x1f9] sm:$0xff] %vm45, %v303
    %369 = vst.msk [vmem:[%s329 + $0x201] sm:$0xff] %vm45, %v304
    %370 = vst.msk [vmem:[%s329 + $0x211] sm:$0xff] %vm45, %v305
    %371 = vst.msk [vmem:[%s329 + $0x219] sm:$0xff] %vm45, %v306
    %372 = vst.msk [vmem:[%s329 + $0x229] sm:$0xff] %vm45, %v307
    %373 = vst.msk [vmem:[%s329 + $0x231] sm:$0xff] %vm45, %v308
    %374 = vst.msk [vmem:[%s329 + $0x241] sm:$0xff] %vm45, %v309
    %375 = vst.msk [vmem:[%s329 + $0x249] sm:$0xff] %vm45, %v310
    %376 = vst.msk [vmem:[%s329 + $0x259] sm:$0xff] %vm45, %v311
    %377 = vst.msk [vmem:[%s329 + $0x261] sm:$0xff] %vm45, %v312
    %378 = vst.msk [vmem:[%s329 + $0x271] sm:$0xff] %vm45, %v313
    %379 = vst.msk [vmem:[%s329 + $0x279] sm:$0xff] %vm45, %v314
    %380 = vst.msk [vmem:[%s329 + $0x289] sm:$0xff] %vm45, %v315
    %381 = vst.msk [vmem:[%s329 + $0x291] sm:$0xff] %vm45, %v316
    %382 = vst.msk [vmem:[%s329 + $0x2a1] sm:$0xff] %vm45, %v317
    %383 = vst.msk [vmem:[%s329 + $0x2a9] sm:$0xff] %vm45, %v318
    %384 = vst.msk [vmem:[%s329 + $0x2b9] sm:$0xff] %vm45, %v319
    %385 = vst.msk [vmem:[%s329 + $0x2c1] sm:$0xff] %vm45, %v320
    %386 = vst.msk [vmem:[%s329 + $0x2d1] sm:$0xff] %vm45, %v321
    %387 = vst.msk [vmem:[%s329 + $0x2d9] sm:$0xff] %vm45, %v322
    %388 = vst.msk [vmem:[%s329 + $0x2e9] sm:$0xff] %vm45, %v323
    %389 = vst.msk [vmem:[%s329 + $0x2f1] sm:$0xff] %vm45, %v324
    %390 = vst.msk [vmem:[%s329 + $0x301] sm:$0xff] %vm45, %v325
    %391 = vst.msk [vmem:[%s329 + $0x309] sm:$0xff] %vm45, %v326
    %392 = vst.msk [vmem:[%s329 + $0x319] sm:$0xff] %vm45, %v327
    %393 = vst.msk [vmem:[%s329 + $0x321] sm:$0xff] %vm45, %v328
    %v394 = vld [vmem:[#allocation2] sm:$0xff]
    %v395 = vld [vmem:[#allocation2 + $0x8] sm:$0xff]
    %v396 = vld [vmem:[#allocation2 + $0x18] sm:$0xff]
    %v397 = vld [vmem:[#allocation2 + $0x20] sm:$0xff]
    %v398 = vld [vmem:[#allocation2 + $0x30] sm:$0xff]
    %v399 = vld [vmem:[#allocation2 + $0x38] sm:$0xff]
    %v400 = vld [vmem:[#allocation2 + $0x48] sm:$0xff]
    %v401 = vld [vmem:[#allocation2 + $0x50] sm:$0xff]
    %v402 = vld [vmem:[#allocation2 + $0x60] sm:$0xff]
    %v403 = vld [vmem:[#allocation2 + $0x68] sm:$0xff]
    %v404 = vld [vmem:[#allocation2 + $0x78] sm:$0xff]
    %v405 = vld [vmem:[#allocation2 + $0x80] sm:$0xff]
    %v406 = vld [vmem:[#allocation2 + $0x90] sm:$0xff]
    %v407 = vld [vmem:[#allocation2 + $0x98] sm:$0xff]
    %v408 = vld [vmem:[#allocation2 + $0xa8] sm:$0xff]
    %v409 = vld [vmem:[#allocation2 + $0xb0] sm:$0xff]
    %v410 = vld [vmem:[#allocation2 + $0xc0] sm:$0xff]
    %v411 = vld [vmem:[#allocation2 + $0xc8] sm:$0xff]
    %v412 = vld [vmem:[#allocation2 + $0xd8] sm:$0xff]
    %v413 = vld [vmem:[#allocation2 + $0xe0] sm:$0xff]
    %v414 = vld [vmem:[#allocation2 + $0xf0] sm:$0xff]
    %v415 = vld [vmem:[#allocation2 + $0xf8] sm:$0xff]
    %v416 = vld [vmem:[#allocation2 + $0x108] sm:$0xff]
    %v417 = vld [vmem:[#allocation2 + $0x110] sm:$0xff]
    %v418 = vld [vmem:[#allocation2 + $0x120] sm:$0xff]
    %v419 = vld [vmem:[#allocation2 + $0x128] sm:$0xff]
    %v420 = vld [vmem:[#allocation2 + $0x138] sm:$0xff]
    %v421 = vld [vmem:[#allocation2 + $0x140] sm:$0xff]
    %v422 = vld [vmem:[#allocation2 + $0x150] sm:$0xff]
    %v423 = vld [vmem:[#allocation2 + $0x158] sm:$0xff]
    %v424 = vld [vmem:[#allocation2 + $0x168] sm:$0xff]
    %v425 = vld [vmem:[#allocation2 + $0x170] sm:$0xff]
    %v426 = vld [vmem:[#allocation2 + $0x1b0] sm:$0xff]
    %v427 = vld [vmem:[#allocation2 + $0x1b8] sm:$0xff]
    %v428 = vld [vmem:[#allocation2 + $0x1c8] sm:$0xff]
    %v429 = vld [vmem:[#allocation2 + $0x1d0] sm:$0xff]
    %v430 = vld [vmem:[#allocation2 + $0x1e0] sm:$0xff]
    %v431 = vld [vmem:[#allocation2 + $0x1e8] sm:$0xff]
    %v432 = vld [vmem:[#allocation2 + $0x1f8] sm:$0xff]
    %v433 = vld [vmem:[#allocation2 + $0x200] sm:$0xff]
    %v434 = vld [vmem:[#allocation2 + $0x210] sm:$0xff]
    %v435 = vld [vmem:[#allocation2 + $0x218] sm:$0xff]
    %v436 = vld [vmem:[#allocation2 + $0x228] sm:$0xff]
    %v437 = vld [vmem:[#allocation2 + $0x230] sm:$0xff]
    %v438 = vld [vmem:[#allocation2 + $0x240] sm:$0xff]
    %v439 = vld [vmem:[#allocation2 + $0x248] sm:$0xff]
    %v440 = vld [vmem:[#allocation2 + $0x258] sm:$0xff]
    %v441 = vld [vmem:[#allocation2 + $0x260] sm:$0xff]
    %v442 = vld [vmem:[#allocation2 + $0x270] sm:$0xff]
    %v443 = vld [vmem:[#allocation2 + $0x278] sm:$0xff]
    %v444 = vld [vmem:[#allocation2 + $0x288] sm:$0xff]
    %v445 = vld [vmem:[#allocation2 + $0x290] sm:$0xff]
    %v446 = vld [vmem:[#allocation2 + $0x2a0] sm:$0xff]
    %v447 = vld [vmem:[#allocation2 + $0x2a8] sm:$0xff]
    %v448 = vld [vmem:[#allocation2 + $0x2b8] sm:$0xff]
    %v449 = vld [vmem:[#allocation2 + $0x2c0] sm:$0xff]
    %v450 = vld [vmem:[#allocation2 + $0x2d0] sm:$0xff]
    %v451 = vld [vmem:[#allocation2 + $0x2d8] sm:$0xff]
    %v452 = vld [vmem:[#allocation2 + $0x2e8] sm:$0xff]
    %v453 = vld [vmem:[#allocation2 + $0x2f0] sm:$0xff]
    %v454 = vld [vmem:[#allocation2 + $0x300] sm:$0xff]
    %v455 = vld [vmem:[#allocation2 + $0x308] sm:$0xff]
    %v456 = vld [vmem:[#allocation2 + $0x318] sm:$0xff]
    %v457 = vld [vmem:[#allocation2 + $0x320] sm:$0xff]
    %458 = vst.msk [vmem:[#allocation3] sm:$0xff] %vm45, %v394
    %459 = vst.msk [vmem:[#allocation3 + $0x8] sm:$0xff] %vm45, %v395
    %460 = vst.msk [vmem:[#allocation3 + $0x10] sm:$0xff] %vm45, %v396
    %461 = vst.msk [vmem:[#allocation3 + $0x18] sm:$0xff] %vm45, %v397
    %462 = vst.msk [vmem:[#allocation3 + $0x20] sm:$0xff] %vm45, %v398
    %463 = vst.msk [vmem:[#allocation3 + $0x28] sm:$0xff] %vm45, %v399
    %464 = vst.msk [vmem:[#allocation3 + $0x30] sm:$0xff] %vm45, %v400
    %465 = vst.msk [vmem:[#allocation3 + $0x38] sm:$0xff] %vm45, %v401
    %466 = vst.msk [vmem:[#allocation3 + $0x40] sm:$0xff] %vm45, %v402
    %467 = vst.msk [vmem:[#allocation3 + $0x48] sm:$0xff] %vm45, %v403
    %468 = vst.msk [vmem:[#allocation3 + $0x50] sm:$0xff] %vm45, %v404
    %469 = vst.msk [vmem:[#allocation3 + $0x58] sm:$0xff] %vm45, %v405
    %470 = vst.msk [vmem:[#allocation3 + $0x60] sm:$0xff] %vm45, %v406
    %471 = vst.msk [vmem:[#allocation3 + $0x68] sm:$0xff] %vm45, %v407
    %472 = vst.msk [vmem:[#allocation3 + $0x70] sm:$0xff] %vm45, %v408
    %473 = vst.msk [vmem:[#allocation3 + $0x78] sm:$0xff] %vm45, %v409
    %474 = vst.msk [vmem:[#allocation3 + $0x80] sm:$0xff] %vm45, %v410
    %475 = vst.msk [vmem:[#allocation3 + $0x88] sm:$0xff] %vm45, %v411
    %476 = vst.msk [vmem:[#allocation3 + $0x90] sm:$0xff] %vm45, %v412
    %477 = vst.msk [vmem:[#allocation3 + $0x98] sm:$0xff] %vm45, %v413
    %478 = vst.msk [vmem:[#allocation3 + $0xa0] sm:$0xff] %vm45, %v414
    %479 = vst.msk [vmem:[#allocation3 + $0xa8] sm:$0xff] %vm45, %v415
    %480 = vst.msk [vmem:[#allocation3 + $0xb0] sm:$0xff] %vm45, %v416
    %481 = vst.msk [vmem:[#allocation3 + $0xb8] sm:$0xff] %vm45, %v417
    %482 = vst.msk [vmem:[#allocation3 + $0xc0] sm:$0xff] %vm45, %v418
    %483 = vst.msk [vmem:[#allocation3 + $0xc8] sm:$0xff] %vm45, %v419
    %484 = vst.msk [vmem:[#allocation3 + $0xd0] sm:$0xff] %vm45, %v420
    %485 = vst.msk [vmem:[#allocation3 + $0xd8] sm:$0xff] %vm45, %v421
    %486 = vst.msk [vmem:[#allocation3 + $0xe0] sm:$0xff] %vm45, %v422
    %487 = vst.msk [vmem:[#allocation3 + $0xe8] sm:$0xff] %vm45, %v423
    %488 = vst.msk [vmem:[#allocation3 + $0xf0] sm:$0xff] %vm45, %v424
    %489 = vst.msk [vmem:[#allocation3 + $0xf8] sm:$0xff] %vm45, %v425
    %490 = vst.msk [vmem:[#allocation3 + $0x100] sm:$0xff] %vm45, %v426
    %491 = vst.msk [vmem:[#allocation3 + $0x108] sm:$0xff] %vm45, %v427
    %492 = vst.msk [vmem:[#allocation3 + $0x110] sm:$0xff] %vm45, %v428
    %493 = vst.msk [vmem:[#allocation3 + $0x118] sm:$0xff] %vm45, %v429
    %494 = vst.msk [vmem:[#allocation3 + $0x120] sm:$0xff] %vm45, %v430
    %495 = vst.msk [vmem:[#allocation3 + $0x128] sm:$0xff] %vm45, %v431
    %496 = vst.msk [vmem:[#allocation3 + $0x130] sm:$0xff] %vm45, %v432
    %497 = vst.msk [vmem:[#allocation3 + $0x138] sm:$0xff] %vm45, %v433
    %498 = vst.msk [vmem:[#allocation3 + $0x140] sm:$0xff] %vm45, %v434
    %499 = vst.msk [vmem:[#allocation3 + $0x148] sm:$0xff] %vm45, %v435
    %500 = vst.msk [vmem:[#allocation3 + $0x150] sm:$0xff] %vm45, %v436
    %501 = vst.msk [vmem:[#allocation3 + $0x158] sm:$0xff] %vm45, %v437
    %502 = vst.msk [vmem:[#allocation3 + $0x160] sm:$0xff] %vm45, %v438
    %503 = vst.msk [vmem:[#allocation3 + $0x168] sm:$0xff] %vm45, %v439
    %504 = vst.msk [vmem:[#allocation3 + $0x170] sm:$0xff] %vm45, %v440
    %505 = vst.msk [vmem:[#allocation3 + $0x178] sm:$0xff] %vm45, %v441
    %506 = vst.msk [vmem:[#allocation3 + $0x180] sm:$0xff] %vm45, %v442
    %507 = vst.msk [vmem:[#allocation3 + $0x188] sm:$0xff] %vm45, %v443
    %508 = vst.msk [vmem:[#allocation3 + $0x190] sm:$0xff] %vm45, %v444
    %509 = vst.msk [vmem:[#allocation3 + $0x198] sm:$0xff] %vm45, %v445
    %510 = vst.msk [vmem:[#allocation3 + $0x1a0] sm:$0xff] %vm45, %v446
    %511 = vst.msk [vmem:[#allocation3 + $0x1a8] sm:$0xff] %vm45, %v447
    %512 = vst.msk [vmem:[#allocation3 + $0x1b0] sm:$0xff] %vm45, %v448
    %513 = vst.msk [vmem:[#allocation3 + $0x1b8] sm:$0xff] %vm45, %v449
    %514 = vst.msk [vmem:[#allocation3 + $0x1c0] sm:$0xff] %vm45, %v450
    %515 = vst.msk [vmem:[#allocation3 + $0x1c8] sm:$0xff] %vm45, %v451
    %516 = vst.msk [vmem:[#allocation3 + $0x1d0] sm:$0xff] %vm45, %v452
    %517 = vst.msk [vmem:[#allocation3 + $0x1d8] sm:$0xff] %vm45, %v453
    %518 = vst.msk [vmem:[#allocation3 + $0x1e0] sm:$0xff] %vm45, %v454
    %519 = vst.msk [vmem:[#allocation3 + $0x1e8] sm:$0xff] %vm45, %v455
    %520 = vst.msk [vmem:[#allocation3 + $0x1f0] sm:$0xff] %vm45, %v456
    %521 = vst.msk [vmem:[#allocation3 + $0x1f8] sm:$0xff] %vm45, %v457
    %v522 = vld [vmem:[#allocation2 + $0x1] sm:$0xff]
    %v523 = vld [vmem:[#allocation2 + $0x9] sm:$0xff]
    %v524 = vld [vmem:[#allocation2 + $0x19] sm:$0xff]
    %v525 = vld [vmem:[#allocation2 + $0x21] sm:$0xff]
    %v526 = vld [vmem:[#allocation2 + $0x31] sm:$0xff]
    %v527 = vld [vmem:[#allocation2 + $0x39] sm:$0xff]
    %v528 = vld [vmem:[#allocation2 + $0x49] sm:$0xff]
    %v529 = vld [vmem:[#allocation2 + $0x51] sm:$0xff]
    %v530 = vld [vmem:[#allocation2 + $0x61] sm:$0xff]
    %v531 = vld [vmem:[#allocation2 + $0x69] sm:$0xff]
    %v532 = vld [vmem:[#allocation2 + $0x79] sm:$0xff]
    %v533 = vld [vmem:[#allocation2 + $0x81] sm:$0xff]
    %v534 = vld [vmem:[#allocation2 + $0x91] sm:$0xff]
    %v535 = vld [vmem:[#allocation2 + $0x99] sm:$0xff]
    %v536 = vld [vmem:[#allocation2 + $0xa9] sm:$0xff]
    %v537 = vld [vmem:[#allocation2 + $0xb1] sm:$0xff]
    %v538 = vld [vmem:[#allocation2 + $0xc1] sm:$0xff]
    %v539 = vld [vmem:[#allocation2 + $0xc9] sm:$0xff]
    %v540 = vld [vmem:[#allocation2 + $0xd9] sm:$0xff]
    %v541 = vld [vmem:[#allocation2 + $0xe1] sm:$0xff]
    %v542 = vld [vmem:[#allocation2 + $0xf1] sm:$0xff]
    %v543 = vld [vmem:[#allocation2 + $0xf9] sm:$0xff]
    %v544 = vld [vmem:[#allocation2 + $0x109] sm:$0xff]
    %v545 = vld [vmem:[#allocation2 + $0x111] sm:$0xff]
    %v546 = vld [vmem:[#allocation2 + $0x121] sm:$0xff]
    %v547 = vld [vmem:[#allocation2 + $0x129] sm:$0xff]
    %v548 = vld [vmem:[#allocation2 + $0x139] sm:$0xff]
    %v549 = vld [vmem:[#allocation2 + $0x141] sm:$0xff]
    %v550 = vld [vmem:[#allocation2 + $0x151] sm:$0xff]
    %v551 = vld [vmem:[#allocation2 + $0x159] sm:$0xff]
    %v552 = vld [vmem:[#allocation2 + $0x169] sm:$0xff]
    %v553 = vld [vmem:[#allocation2 + $0x171] sm:$0xff]
    %v554 = vld [vmem:[#allocation2 + $0x1b1] sm:$0xff]
    %v555 = vld [vmem:[#allocation2 + $0x1b9] sm:$0xff]
    %v556 = vld [vmem:[#allocation2 + $0x1c9] sm:$0xff]
    %v557 = vld [vmem:[#allocation2 + $0x1d1] sm:$0xff]
    %v558 = vld [vmem:[#allocation2 + $0x1e1] sm:$0xff]
    %v559 = vld [vmem:[#allocation2 + $0x1e9] sm:$0xff]
    %v560 = vld [vmem:[#allocation2 + $0x1f9] sm:$0xff]
    %v561 = vld [vmem:[#allocation2 + $0x201] sm:$0xff]
    %v562 = vld [vmem:[#allocation2 + $0x211] sm:$0xff]
    %v563 = vld [vmem:[#allocation2 + $0x219] sm:$0xff]
    %v564 = vld [vmem:[#allocation2 + $0x229] sm:$0xff]
    %v565 = vld [vmem:[#allocation2 + $0x231] sm:$0xff]
    %v566 = vld [vmem:[#allocation2 + $0x241] sm:$0xff]
    %v567 = vld [vmem:[#allocation2 + $0x249] sm:$0xff]
    %v568 = vld [vmem:[#allocation2 + $0x259] sm:$0xff]
    %v569 = vld [vmem:[#allocation2 + $0x261] sm:$0xff]
    %v570 = vld [vmem:[#allocation2 + $0x271] sm:$0xff]
    %v571 = vld [vmem:[#allocation2 + $0x279] sm:$0xff]
    %v572 = vld [vmem:[#allocation2 + $0x289] sm:$0xff]
    %v573 = vld [vmem:[#allocation2 + $0x291] sm:$0xff]
    %v574 = vld [vmem:[#allocation2 + $0x2a1] sm:$0xff]
    %v575 = vld [vmem:[#allocation2 + $0x2a9] sm:$0xff]
    %v576 = vld [vmem:[#allocation2 + $0x2b9] sm:$0xff]
    %v577 = vld [vmem:[#allocation2 + $0x2c1] sm:$0xff]
    %v578 = vld [vmem:[#allocation2 + $0x2d1] sm:$0xff]
    %v579 = vld [vmem:[#allocation2 + $0x2d9] sm:$0xff]
    %v580 = vld [vmem:[#allocation2 + $0x2e9] sm:$0xff]
    %v581 = vld [vmem:[#allocation2 + $0x2f1] sm:$0xff]
    %v582 = vld [vmem:[#allocation2 + $0x301] sm:$0xff]
    %v583 = vld [vmem:[#allocation2 + $0x309] sm:$0xff]
    %v584 = vld [vmem:[#allocation2 + $0x319] sm:$0xff]
    %v585 = vld [vmem:[#allocation2 + $0x321] sm:$0xff]
    %650 = vrot.lane.b32.xlu0 %v522, 4
    %v651 = vpop.permute.xlu0 %650
    %652 = vrot.lane.b32.xlu0 %v523, 4
    %v653 = vpop.permute.xlu0 %652
    %654 = vrot.lane.b32.xlu0 %v524, 4
    %v655 = vpop.permute.xlu0 %654
    %656 = vrot.lane.b32.xlu0 %v525, 4
    %v657 = vpop.permute.xlu0 %656
    %658 = vrot.lane.b32.xlu0 %v526, 4
    %v659 = vpop.permute.xlu0 %658
    %660 = vrot.lane.b32.xlu0 %v527, 4
    %v661 = vpop.permute.xlu0 %660
    %662 = vrot.lane.b32.xlu0 %v528, 4
    %v663 = vpop.permute.xlu0 %662
    %664 = vrot.lane.b32.xlu0 %v529, 4
    %v665 = vpop.permute.xlu0 %664
    %666 = vrot.lane.b32.xlu0 %v530, 4
    %v667 = vpop.permute.xlu0 %666
    %668 = vrot.lane.b32.xlu0 %v531, 4
    %v669 = vpop.permute.xlu0 %668
    %670 = vrot.lane.b32.xlu0 %v532, 4
    %v671 = vpop.permute.xlu0 %670
    %672 = vrot.lane.b32.xlu0 %v533, 4
    %v673 = vpop.permute.xlu0 %672
    %674 = vrot.lane.b32.xlu0 %v534, 4
    %v675 = vpop.permute.xlu0 %674
    %676 = vrot.lane.b32.xlu0 %v535, 4
    %v677 = vpop.permute.xlu0 %676
    %678 = vrot.lane.b32.xlu0 %v536, 4
    %v679 = vpop.permute.xlu0 %678
    %680 = vrot.lane.b32.xlu0 %v537, 4
    %v681 = vpop.permute.xlu0 %680
    %682 = vrot.lane.b32.xlu0 %v538, 4
    %v683 = vpop.permute.xlu0 %682
    %684 = vrot.lane.b32.xlu0 %v539, 4
    %v685 = vpop.permute.xlu0 %684
    %686 = vrot.lane.b32.xlu0 %v540, 4
    %v687 = vpop.permute.xlu0 %686
    %688 = vrot.lane.b32.xlu0 %v541, 4
    %v689 = vpop.permute.xlu0 %688
    %690 = vrot.lane.b32.xlu0 %v542, 4
    %v691 = vpop.permute.xlu0 %690
    %692 = vrot.lane.b32.xlu0 %v543, 4
    %v693 = vpop.permute.xlu0 %692
    %694 = vrot.lane.b32.xlu0 %v544, 4
    %v695 = vpop.permute.xlu0 %694
    %696 = vrot.lane.b32.xlu0 %v545, 4
    %v697 = vpop.permute.xlu0 %696
    %698 = vrot.lane.b32.xlu0 %v546, 4
    %v699 = vpop.permute.xlu0 %698
    %700 = vrot.lane.b32.xlu0 %v547, 4
    %v701 = vpop.permute.xlu0 %700
    %702 = vrot.lane.b32.xlu0 %v548, 4
    %v703 = vpop.permute.xlu0 %702
    %704 = vrot.lane.b32.xlu0 %v549, 4
    %v705 = vpop.permute.xlu0 %704
    %706 = vrot.lane.b32.xlu0 %v550, 4
    %v707 = vpop.permute.xlu0 %706
    %708 = vrot.lane.b32.xlu0 %v551, 4
    %v709 = vpop.permute.xlu0 %708
    %710 = vrot.lane.b32.xlu0 %v552, 4
    %v711 = vpop.permute.xlu0 %710
    %712 = vrot.lane.b32.xlu0 %v553, 4
    %v713 = vpop.permute.xlu0 %712
    %714 = vrot.lane.b32.xlu0 %v554, 4
    %v715 = vpop.permute.xlu0 %714
    %716 = vrot.lane.b32.xlu0 %v555, 4
    %v717 = vpop.permute.xlu0 %716
    %718 = vrot.lane.b32.xlu0 %v556, 4
    %v719 = vpop.permute.xlu0 %718
    %720 = vrot.lane.b32.xlu0 %v557, 4
    %v721 = vpop.permute.xlu0 %720
    %722 = vrot.lane.b32.xlu0 %v558, 4
    %v723 = vpop.permute.xlu0 %722
    %724 = vrot.lane.b32.xlu0 %v559, 4
    %v725 = vpop.permute.xlu0 %724
    %726 = vrot.lane.b32.xlu0 %v560, 4
    %v727 = vpop.permute.xlu0 %726
    %728 = vrot.lane.b32.xlu0 %v561, 4
    %v729 = vpop.permute.xlu0 %728
    %730 = vrot.lane.b32.xlu0 %v562, 4
    %v731 = vpop.permute.xlu0 %730
    %732 = vrot.lane.b32.xlu0 %v563, 4
    %v733 = vpop.permute.xlu0 %732
    %734 = vrot.lane.b32.xlu0 %v564, 4
    %v735 = vpop.permute.xlu0 %734
    %736 = vrot.lane.b32.xlu0 %v565, 4
    %v737 = vpop.permute.xlu0 %736
    %738 = vrot.lane.b32.xlu0 %v566, 4
    %v739 = vpop.permute.xlu0 %738
    %740 = vrot.lane.b32.xlu0 %v567, 4
    %v741 = vpop.permute.xlu0 %740
    %742 = vrot.lane.b32.xlu0 %v568, 4
    %v743 = vpop.permute.xlu0 %742
    %744 = vrot.lane.b32.xlu0 %v569, 4
    %v745 = vpop.permute.xlu0 %744
    %746 = vrot.lane.b32.xlu0 %v570, 4
    %v747 = vpop.permute.xlu0 %746
    %748 = vrot.lane.b32.xlu0 %v571, 4
    %v749 = vpop.permute.xlu0 %748
    %750 = vrot.lane.b32.xlu0 %v572, 4
    %v751 = vpop.permute.xlu0 %750
    %752 = vrot.lane.b32.xlu0 %v573, 4
    %v753 = vpop.permute.xlu0 %752
    %754 = vrot.lane.b32.xlu0 %v574, 4
    %v755 = vpop.permute.xlu0 %754
    %756 = vrot.lane.b32.xlu0 %v575, 4
    %v757 = vpop.permute.xlu0 %756
    %758 = vrot.lane.b32.xlu0 %v576, 4
    %v759 = vpop.permute.xlu0 %758
    %760 = vrot.lane.b32.xlu0 %v577, 4
    %v761 = vpop.permute.xlu0 %760
    %762 = vrot.lane.b32.xlu0 %v578, 4
    %v763 = vpop.permute.xlu0 %762
    %764 = vrot.lane.b32.xlu0 %v579, 4
    %v765 = vpop.permute.xlu0 %764
    %766 = vrot.lane.b32.xlu0 %v580, 4
    %v767 = vpop.permute.xlu0 %766
    %768 = vrot.lane.b32.xlu0 %v581, 4
    %v769 = vpop.permute.xlu0 %768
    %770 = vrot.lane.b32.xlu0 %v582, 4
    %v771 = vpop.permute.xlu0 %770
    %772 = vrot.lane.b32.xlu0 %v583, 4
    %v773 = vpop.permute.xlu0 %772
    %774 = vrot.lane.b32.xlu0 %v584, 4
    %v775 = vpop.permute.xlu0 %774
    %776 = vrot.lane.b32.xlu0 %v585, 4
    %v777 = vpop.permute.xlu0 %776
    %vm842 = vcmask 64544
    %843 = vst.msk [vmem:[#allocation3] sm:$0xff] %vm842, %v651
    %844 = vst.msk [vmem:[#allocation3 + $0x8] sm:$0xff] %vm842, %v653
    %845 = vst.msk [vmem:[#allocation3 + $0x10] sm:$0xff] %vm842, %v655
    %846 = vst.msk [vmem:[#allocation3 + $0x18] sm:$0xff] %vm842, %v657
    %847 = vst.msk [vmem:[#allocation3 + $0x20] sm:$0xff] %vm842, %v659
    %848 = vst.msk [vmem:[#allocation3 + $0x28] sm:$0xff] %vm842, %v661
    %849 = vst.msk [vmem:[#allocation3 + $0x30] sm:$0xff] %vm842, %v663
    %850 = vst.msk [vmem:[#allocation3 + $0x38] sm:$0xff] %vm842, %v665
    %851 = vst.msk [vmem:[#allocation3 + $0x40] sm:$0xff] %vm842, %v667
    %852 = vst.msk [vmem:[#allocation3 + $0x48] sm:$0xff] %vm842, %v669
    %853 = vst.msk [vmem:[#allocation3 + $0x50] sm:$0xff] %vm842, %v671
    %854 = vst.msk [vmem:[#allocation3 + $0x58] sm:$0xff] %vm842, %v673
    %855 = vst.msk [vmem:[#allocation3 + $0x60] sm:$0xff] %vm842, %v675
    %856 = vst.msk [vmem:[#allocation3 + $0x68] sm:$0xff] %vm842, %v677
    %857 = vst.msk [vmem:[#allocation3 + $0x70] sm:$0xff] %vm842, %v679
    %858 = vst.msk [vmem:[#allocation3 + $0x78] sm:$0xff] %vm842, %v681
    %859 = vst.msk [vmem:[#allocation3 + $0x80] sm:$0xff] %vm842, %v683
    %860 = vst.msk [vmem:[#allocation3 + $0x88] sm:$0xff] %vm842, %v685
    %861 = vst.msk [vmem:[#allocation3 + $0x90] sm:$0xff] %vm842, %v687
    %862 = vst.msk [vmem:[#allocation3 + $0x98] sm:$0xff] %vm842, %v689
    %863 = vst.msk [vmem:[#allocation3 + $0xa0] sm:$0xff] %vm842, %v691
    %864 = vst.msk [vmem:[#allocation3 + $0xa8] sm:$0xff] %vm842, %v693
    %865 = vst.msk [vmem:[#allocation3 + $0xb0] sm:$0xff] %vm842, %v695
    %866 = vst.msk [vmem:[#allocation3 + $0xb8] sm:$0xff] %vm842, %v697
    %867 = vst.msk [vmem:[#allocation3 + $0xc0] sm:$0xff] %vm842, %v699
    %868 = vst.msk [vmem:[#allocation3 + $0xc8] sm:$0xff] %vm842, %v701
    %869 = vst.msk [vmem:[#allocation3 + $0xd0] sm:$0xff] %vm842, %v703
    %870 = vst.msk [vmem:[#allocation3 + $0xd8] sm:$0xff] %vm842, %v705
    %871 = vst.msk [vmem:[#allocation3 + $0xe0] sm:$0xff] %vm842, %v707
    %872 = vst.msk [vmem:[#allocation3 + $0xe8] sm:$0xff] %vm842, %v709
    %873 = vst.msk [vmem:[#allocation3 + $0xf0] sm:$0xff] %vm842, %v711
    %874 = vst.msk [vmem:[#allocation3 + $0xf8] sm:$0xff] %vm842, %v713
    %875 = vst.msk [vmem:[#allocation3 + $0x100] sm:$0xff] %vm842, %v715
    %876 = vst.msk [vmem:[#allocation3 + $0x108] sm:$0xff] %vm842, %v717
    %877 = vst.msk [vmem:[#allocation3 + $0x110] sm:$0xff] %vm842, %v719
    %878 = vst.msk [vmem:[#allocation3 + $0x118] sm:$0xff] %vm842, %v721
    %879 = vst.msk [vmem:[#allocation3 + $0x120] sm:$0xff] %vm842, %v723
    %880 = vst.msk [vmem:[#allocation3 + $0x128] sm:$0xff] %vm842, %v725
    %881 = vst.msk [vmem:[#allocation3 + $0x130] sm:$0xff] %vm842, %v727
    %882 = vst.msk [vmem:[#allocation3 + $0x138] sm:$0xff] %vm842, %v729
    %883 = vst.msk [vmem:[#allocation3 + $0x140] sm:$0xff] %vm842, %v731
    %884 = vst.msk [vmem:[#allocation3 + $0x148] sm:$0xff] %vm842, %v733
    %885 = vst.msk [vmem:[#allocation3 + $0x150] sm:$0xff] %vm842, %v735
    %886 = vst.msk [vmem:[#allocation3 + $0x158] sm:$0xff] %vm842, %v737
    %887 = vst.msk [vmem:[#allocation3 + $0x160] sm:$0xff] %vm842, %v739
    %888 = vst.msk [vmem:[#allocation3 + $0x168] sm:$0xff] %vm842, %v741
    %889 = vst.msk [vmem:[#allocation3 + $0x170] sm:$0xff] %vm842, %v743
    %890 = vst.msk [vmem:[#allocation3 + $0x178] sm:$0xff] %vm842, %v745
    %891 = vst.msk [vmem:[#allocation3 + $0x180] sm:$0xff] %vm842, %v747
    %892 = vst.msk [vmem:[#allocation3 + $0x188] sm:$0xff] %vm842, %v749
    %893 = vst.msk [vmem:[#allocation3 + $0x190] sm:$0xff] %vm842, %v751
    %894 = vst.msk [vmem:[#allocation3 + $0x198] sm:$0xff] %vm842, %v753
    %895 = vst.msk [vmem:[#allocation3 + $0x1a0] sm:$0xff] %vm842, %v755
    %896 = vst.msk [vmem:[#allocation3 + $0x1a8] sm:$0xff] %vm842, %v757
    %897 = vst.msk [vmem:[#allocation3 + $0x1b0] sm:$0xff] %vm842, %v759
    %898 = vst.msk [vmem:[#allocation3 + $0x1b8] sm:$0xff] %vm842, %v761
    %899 = vst.msk [vmem:[#allocation3 + $0x1c0] sm:$0xff] %vm842, %v763
    %900 = vst.msk [vmem:[#allocation3 + $0x1c8] sm:$0xff] %vm842, %v765
    %901 = vst.msk [vmem:[#allocation3 + $0x1d0] sm:$0xff] %vm842, %v767
    %902 = vst.msk [vmem:[#allocation3 + $0x1d8] sm:$0xff] %vm842, %v769
    %903 = vst.msk [vmem:[#allocation3 + $0x1e0] sm:$0xff] %vm842, %v771
    %904 = vst.msk [vmem:[#allocation3 + $0x1e8] sm:$0xff] %vm842, %v773
    %905 = vst.msk [vmem:[#allocation3 + $0x1f0] sm:$0xff] %vm842, %v775
    %906 = vst.msk [vmem:[#allocation3 + $0x1f8] sm:$0xff] %vm842, %v777
    %v907 = vld [vmem:[#allocation2 + $0x2] sm:$0xff]
    %v908 = vld [vmem:[#allocation2 + $0xa] sm:$0xff]
    %v909 = vld [vmem:[#allocation2 + $0x1a] sm:$0xff]
    %v910 = vld [vmem:[#allocation2 + $0x22] sm:$0xff]
    %v911 = vld [vmem:[#allocation2 + $0x32] sm:$0xff]
    %v912 = vld [vmem:[#allocation2 + $0x3a] sm:$0xff]
    %v913 = vld [vmem:[#allocation2 + $0x4a] sm:$0xff]
    %v914 = vld [vmem:[#allocation2 + $0x52] sm:$0xff]
    %v915 = vld [vmem:[#allocation2 + $0x62] sm:$0xff]
    %v916 = vld [vmem:[#allocation2 + $0x6a] sm:$0xff]
    %v917 = vld [vmem:[#allocation2 + $0x7a] sm:$0xff]
    %v918 = vld [vmem:[#allocation2 + $0x82] sm:$0xff]
    %v919 = vld [vmem:[#allocation2 + $0x92] sm:$0xff]
    %v920 = vld [vmem:[#allocation2 + $0x9a] sm:$0xff]
    %v921 = vld [vmem:[#allocation2 + $0xaa] sm:$0xff]
    %v922 = vld [vmem:[#allocation2 + $0xb2] sm:$0xff]
    %v923 = vld [vmem:[#allocation2 + $0xc2] sm:$0xff]
    %v924 = vld [vmem:[#allocation2 + $0xca] sm:$0xff]
    %v925 = vld [vmem:[#allocation2 + $0xda] sm:$0xff]
    %v926 = vld [vmem:[#allocation2 + $0xe2] sm:$0xff]
    %v927 = vld [vmem:[#allocation2 + $0xf2] sm:$0xff]
    %v928 = vld [vmem:[#allocation2 + $0xfa] sm:$0xff]
    %v929 = vld [vmem:[#allocation2 + $0x10a] sm:$0xff]
    %v930 = vld [vmem:[#allocation2 + $0x112] sm:$0xff]
    %v931 = vld [vmem:[#allocation2 + $0x122] sm:$0xff]
    %v932 = vld [vmem:[#allocation2 + $0x12a] sm:$0xff]
    %v933 = vld [vmem:[#allocation2 + $0x13a] sm:$0xff]
    %v934 = vld [vmem:[#allocation2 + $0x142] sm:$0xff]
    %v935 = vld [vmem:[#allocation2 + $0x152] sm:$0xff]
    %v936 = vld [vmem:[#allocation2 + $0x15a] sm:$0xff]
    %v937 = vld [vmem:[#allocation2 + $0x16a] sm:$0xff]
    %v938 = vld [vmem:[#allocation2 + $0x172] sm:$0xff]
    %v939 = vld [vmem:[#allocation2 + $0x1b2] sm:$0xff]
    %v940 = vld [vmem:[#allocation2 + $0x1ba] sm:$0xff]
    %v941 = vld [vmem:[#allocation2 + $0x1ca] sm:$0xff]
    %v942 = vld [vmem:[#allocation2 + $0x1d2] sm:$0xff]
    %v943 = vld [vmem:[#allocation2 + $0x1e2] sm:$0xff]
    %v944 = vld [vmem:[#allocation2 + $0x1ea] sm:$0xff]
    %v945 = vld [vmem:[#allocation2 + $0x1fa] sm:$0xff]
    %v946 = vld [vmem:[#allocation2 + $0x202] sm:$0xff]
    %v947 = vld [vmem:[#allocation2 + $0x212] sm:$0xff]
    %v948 = vld [vmem:[#allocation2 + $0x21a] sm:$0xff]
    %v949 = vld [vmem:[#allocation2 + $0x22a] sm:$0xff]
    %v950 = vld [vmem:[#allocation2 + $0x232] sm:$0xff]
    %v951 = vld [vmem:[#allocation2 + $0x242] sm:$0xff]
    %v952 = vld [vmem:[#allocation2 + $0x24a] sm:$0xff]
    %v953 = vld [vmem:[#allocation2 + $0x25a] sm:$0xff]
    %v954 = vld [vmem:[#allocation2 + $0x262] sm:$0xff]
    %v955 = vld [vmem:[#allocation2 + $0x272] sm:$0xff]
    %v956 = vld [vmem:[#allocation2 + $0x27a] sm:$0xff]
    %v957 = vld [vmem:[#allocation2 + $0x28a] sm:$0xff]
    %v958 = vld [vmem:[#allocation2 + $0x292] sm:$0xff]
    %v959 = vld [vmem:[#allocation2 + $0x2a2] sm:$0xff]
    %v960 = vld [vmem:[#allocation2 + $0x2aa] sm:$0xff]
    %v961 = vld [vmem:[#allocation2 + $0x2ba] sm:$0xff]
    %v962 = vld [vmem:[#allocation2 + $0x2c2] sm:$0xff]
    %v963 = vld [vmem:[#allocation2 + $0x2d2] sm:$0xff]
    %v964 = vld [vmem:[#allocation2 + $0x2da] sm:$0xff]
    %v965 = vld [vmem:[#allocation2 + $0x2ea] sm:$0xff]
    %v966 = vld [vmem:[#allocation2 + $0x2f2] sm:$0xff]
    %v967 = vld [vmem:[#allocation2 + $0x302] sm:$0xff]
    %v968 = vld [vmem:[#allocation2 + $0x30a] sm:$0xff]
    %v969 = vld [vmem:[#allocation2 + $0x31a] sm:$0xff]
    %v970 = vld [vmem:[#allocation2 + $0x322] sm:$0xff]
    %1035 = vrot.lane.b32.xlu0 %v907, 8
    %v1036 = vpop.permute.xlu0 %1035
    %1037 = vrot.lane.b32.xlu0 %v908, 8
    %v1038 = vpop.permute.xlu0 %1037
    %1039 = vrot.lane.b32.xlu0 %v909, 8
    %v1040 = vpop.permute.xlu0 %1039
    %1041 = vrot.lane.b32.xlu0 %v910, 8
    %v1042 = vpop.permute.xlu0 %1041
    %1043 = vrot.lane.b32.xlu0 %v911, 8
    %v1044 = vpop.permute.xlu0 %1043
    %1045 = vrot.lane.b32.xlu0 %v912, 8
    %v1046 = vpop.permute.xlu0 %1045
    %1047 = vrot.lane.b32.xlu0 %v913, 8
    %v1048 = vpop.permute.xlu0 %1047
    %1049 = vrot.lane.b32.xlu0 %v914, 8
    %v1050 = vpop.permute.xlu0 %1049
    %1051 = vrot.lane.b32.xlu0 %v915, 8
    %v1052 = vpop.permute.xlu0 %1051
    %1053 = vrot.lane.b32.xlu0 %v916, 8
    %v1054 = vpop.permute.xlu0 %1053
    %1055 = vrot.lane.b32.xlu0 %v917, 8
    %v1056 = vpop.permute.xlu0 %1055
    %1057 = vrot.lane.b32.xlu0 %v918, 8
    %v1058 = vpop.permute.xlu0 %1057
    %1059 = vrot.lane.b32.xlu0 %v919, 8
    %v1060 = vpop.permute.xlu0 %1059
    %1061 = vrot.lane.b32.xlu0 %v920, 8
    %v1062 = vpop.permute.xlu0 %1061
    %1063 = vrot.lane.b32.xlu0 %v921, 8
    %v1064 = vpop.permute.xlu0 %1063
    %1065 = vrot.lane.b32.xlu0 %v922, 8
    %v1066 = vpop.permute.xlu0 %1065
    %1067 = vrot.lane.b32.xlu0 %v923, 8
    %v1068 = vpop.permute.xlu0 %1067
    %1069 = vrot.lane.b32.xlu0 %v924, 8
    %v1070 = vpop.permute.xlu0 %1069
    %1071 = vrot.lane.b32.xlu0 %v925, 8
    %v1072 = vpop.permute.xlu0 %1071
    %1073 = vrot.lane.b32.xlu0 %v926, 8
    %v1074 = vpop.permute.xlu0 %1073
    %1075 = vrot.lane.b32.xlu0 %v927, 8
    %v1076 = vpop.permute.xlu0 %1075
    %1077 = vrot.lane.b32.xlu0 %v928, 8
    %v1078 = vpop.permute.xlu0 %1077
    %1079 = vrot.lane.b32.xlu0 %v929, 8
    %v1080 = vpop.permute.xlu0 %1079
    %1081 = vrot.lane.b32.xlu0 %v930, 8
    %v1082 = vpop.permute.xlu0 %1081
    %1083 = vrot.lane.b32.xlu0 %v931, 8
    %v1084 = vpop.permute.xlu0 %1083
    %1085 = vrot.lane.b32.xlu0 %v932, 8
    %v1086 = vpop.permute.xlu0 %1085
    %1087 = vrot.lane.b32.xlu0 %v933, 8
    %v1088 = vpop.permute.xlu0 %1087
    %1089 = vrot.lane.b32.xlu0 %v934, 8
    %v1090 = vpop.permute.xlu0 %1089
    %1091 = vrot.lane.b32.xlu0 %v935, 8
    %v1092 = vpop.permute.xlu0 %1091
    %1093 = vrot.lane.b32.xlu0 %v936, 8
    %v1094 = vpop.permute.xlu0 %1093
    %1095 = vrot.lane.b32.xlu0 %v937, 8
    %v1096 = vpop.permute.xlu0 %1095
    %1097 = vrot.lane.b32.xlu0 %v938, 8
    %v1098 = vpop.permute.xlu0 %1097
    %1099 = vrot.lane.b32.xlu0 %v939, 8
    %v1100 = vpop.permute.xlu0 %1099
    %1101 = vrot.lane.b32.xlu0 %v940, 8
    %v1102 = vpop.permute.xlu0 %1101
    %1103 = vrot.lane.b32.xlu0 %v941, 8
    %v1104 = vpop.permute.xlu0 %1103
    %1105 = vrot.lane.b32.xlu0 %v942, 8
    %v1106 = vpop.permute.xlu0 %1105
    %1107 = vrot.lane.b32.xlu0 %v943, 8
    %v1108 = vpop.permute.xlu0 %1107
    %1109 = vrot.lane.b32.xlu0 %v944, 8
    %v1110 = vpop.permute.xlu0 %1109
    %1111 = vrot.lane.b32.xlu0 %v945, 8
    %v1112 = vpop.permute.xlu0 %1111
    %1113 = vrot.lane.b32.xlu0 %v946, 8
    %v1114 = vpop.permute.xlu0 %1113
    %1115 = vrot.lane.b32.xlu0 %v947, 8
    %v1116 = vpop.permute.xlu0 %1115
    %1117 = vrot.lane.b32.xlu0 %v948, 8
    %v1118 = vpop.permute.xlu0 %1117
    %1119 = vrot.lane.b32.xlu0 %v949, 8
    %v1120 = vpop.permute.xlu0 %1119
    %1121 = vrot.lane.b32.xlu0 %v950, 8
    %v1122 = vpop.permute.xlu0 %1121
    %1123 = vrot.lane.b32.xlu0 %v951, 8
    %v1124 = vpop.permute.xlu0 %1123
    %1125 = vrot.lane.b32.xlu0 %v952, 8
    %v1126 = vpop.permute.xlu0 %1125
    %1127 = vrot.lane.b32.xlu0 %v953, 8
    %v1128 = vpop.permute.xlu0 %1127
    %1129 = vrot.lane.b32.xlu0 %v954, 8
    %v1130 = vpop.permute.xlu0 %1129
    %1131 = vrot.lane.b32.xlu0 %v955, 8
    %v1132 = vpop.permute.xlu0 %1131
    %1133 = vrot.lane.b32.xlu0 %v956, 8
    %v1134 = vpop.permute.xlu0 %1133
    %1135 = vrot.lane.b32.xlu0 %v957, 8
    %v1136 = vpop.permute.xlu0 %1135
    %1137 = vrot.lane.b32.xlu0 %v958, 8
    %v1138 = vpop.permute.xlu0 %1137
    %1139 = vrot.lane.b32.xlu0 %v959, 8
    %v1140 = vpop.permute.xlu0 %1139
    %1141 = vrot.lane.b32.xlu0 %v960, 8
    %v1142 = vpop.permute.xlu0 %1141
    %1143 = vrot.lane.b32.xlu0 %v961, 8
    %v1144 = vpop.permute.xlu0 %1143
    %1145 = vrot.lane.b32.xlu0 %v962, 8
    %v1146 = vpop.permute.xlu0 %1145
    %1147 = vrot.lane.b32.xlu0 %v963, 8
    %v1148 = vpop.permute.xlu0 %1147
    %1149 = vrot.lane.b32.xlu0 %v964, 8
    %v1150 = vpop.permute.xlu0 %1149
    %1151 = vrot.lane.b32.xlu0 %v965, 8
    %v1152 = vpop.permute.xlu0 %1151
    %1153 = vrot.lane.b32.xlu0 %v966, 8
    %v1154 = vpop.permute.xlu0 %1153
    %1155 = vrot.lane.b32.xlu0 %v967, 8
    %v1156 = vpop.permute.xlu0 %1155
    %1157 = vrot.lane.b32.xlu0 %v968, 8
    %v1158 = vpop.permute.xlu0 %1157
    %1159 = vrot.lane.b32.xlu0 %v969, 8
    %v1160 = vpop.permute.xlu0 %1159
    %1161 = vrot.lane.b32.xlu0 %v970, 8
    %v1162 = vpop.permute.xlu0 %1161
    %vm1227 = vcmask 97344
    %1228 = vst.msk [vmem:[#allocation3] sm:$0xff] %vm1227, %v1036
    %1229 = vst.msk [vmem:[#allocation3 + $0x8] sm:$0xff] %vm1227, %v1038
    %1230 = vst.msk [vmem:[#allocation3 + $0x10] sm:$0xff] %vm1227, %v1040
    %1231 = vst.msk [vmem:[#allocation3 + $0x18] sm:$0xff] %vm1227, %v1042
    %1232 = vst.msk [vmem:[#allocation3 + $0x20] sm:$0xff] %vm1227, %v1044
    %1233 = vst.msk [vmem:[#allocation3 + $0x28] sm:$0xff] %vm1227, %v1046
    %1234 = vst.msk [vmem:[#allocation3 + $0x30] sm:$0xff] %vm1227, %v1048
    %1235 = vst.msk [vmem:[#allocation3 + $0x38] sm:$0xff] %vm1227, %v1050
    %1236 = vst.msk [vmem:[#allocation3 + $0x40] sm:$0xff] %vm1227, %v1052
    %1237 = vst.msk [vmem:[#allocation3 + $0x48] sm:$0xff] %vm1227, %v1054
    %1238 = vst.msk [vmem:[#allocation3 + $0x50] sm:$0xff] %vm1227, %v1056
    %1239 = vst.msk [vmem:[#allocation3 + $0x58] sm:$0xff] %vm1227, %v1058
    %1240 = vst.msk [vmem:[#allocation3 + $0x60] sm:$0xff] %vm1227, %v1060
    %1241 = vst.msk [vmem:[#allocation3 + $0x68] sm:$0xff] %vm1227, %v1062
    %1242 = vst.msk [vmem:[#allocation3 + $0x70] sm:$0xff] %vm1227, %v1064
    %1243 = vst.msk [vmem:[#allocation3 + $0x78] sm:$0xff] %vm1227, %v1066
    %1244 = vst.msk [vmem:[#allocation3 + $0x80] sm:$0xff] %vm1227, %v1068
    %1245 = vst.msk [vmem:[#allocation3 + $0x88] sm:$0xff] %vm1227, %v1070
    %1246 = vst.msk [vmem:[#allocation3 + $0x90] sm:$0xff] %vm1227, %v1072
    %1247 = vst.msk [vmem:[#allocation3 + $0x98] sm:$0xff] %vm1227, %v1074
    %1248 = vst.msk [vmem:[#allocation3 + $0xa0] sm:$0xff] %vm1227, %v1076
    %1249 = vst.msk [vmem:[#allocation3 + $0xa8] sm:$0xff] %vm1227, %v1078
    %1250 = vst.msk [vmem:[#allocation3 + $0xb0] sm:$0xff] %vm1227, %v1080
    %1251 = vst.msk [vmem:[#allocation3 + $0xb8] sm:$0xff] %vm1227, %v1082
    %1252 = vst.msk [vmem:[#allocation3 + $0xc0] sm:$0xff] %vm1227, %v1084
    %1253 = vst.msk [vmem:[#allocation3 + $0xc8] sm:$0xff] %vm1227, %v1086
    %1254 = vst.msk [vmem:[#allocation3 + $0xd0] sm:$0xff] %vm1227, %v1088
    %1255 = vst.msk [vmem:[#allocation3 + $0xd8] sm:$0xff] %vm1227, %v1090
    %1256 = vst.msk [vmem:[#allocation3 + $0xe0] sm:$0xff] %vm1227, %v1092
    %1257 = vst.msk [vmem:[#allocation3 + $0xe8] sm:$0xff] %vm1227, %v1094
    %1258 = vst.msk [vmem:[#allocation3 + $0xf0] sm:$0xff] %vm1227, %v1096
    %1259 = vst.msk [vmem:[#allocation3 + $0xf8] sm:$0xff] %vm1227, %v1098
    %1260 = vst.msk [vmem:[#allocation3 + $0x100] sm:$0xff] %vm1227, %v1100
    %1261 = vst.msk [vmem:[#allocation3 + $0x108] sm:$0xff] %vm1227, %v1102
    %1262 = vst.msk [vmem:[#allocation3 + $0x110] sm:$0xff] %vm1227, %v1104
    %1263 = vst.msk [vmem:[#allocation3 + $0x118] sm:$0xff] %vm1227, %v1106
    %1264 = vst.msk [vmem:[#allocation3 + $0x120] sm:$0xff] %vm1227, %v1108
    %1265 = vst.msk [vmem:[#allocation3 + $0x128] sm:$0xff] %vm1227, %v1110
    %1266 = vst.msk [vmem:[#allocation3 + $0x130] sm:$0xff] %vm1227, %v1112
    %1267 = vst.msk [vmem:[#allocation3 + $0x138] sm:$0xff] %vm1227, %v1114
    %1268 = vst.msk [vmem:[#allocation3 + $0x140] sm:$0xff] %vm1227, %v1116
    %1269 = vst.msk [vmem:[#allocation3 + $0x148] sm:$0xff] %vm1227, %v1118
    %1270 = vst.msk [vmem:[#allocation3 + $0x150] sm:$0xff] %vm1227, %v1120
    %1271 = vst.msk [vmem:[#allocation3 + $0x158] sm:$0xff] %vm1227, %v1122
    %1272 = vst.msk [vmem:[#allocation3 + $0x160] sm:$0xff] %vm1227, %v1124
    %1273 = vst.msk [vmem:[#allocation3 + $0x168] sm:$0xff] %vm1227, %v1126
    %1274 = vst.msk [vmem:[#allocation3 + $0x170] sm:$0xff] %vm1227, %v1128
    %1275 = vst.msk [vmem:[#allocation3 + $0x178] sm:$0xff] %vm1227, %v1130
    %1276 = vst.msk [vmem:[#allocation3 + $0x180] sm:$0xff] %vm1227, %v1132
    %1277 = vst.msk [vmem:[#allocation3 + $0x188] sm:$0xff] %vm1227, %v1134
    %1278 = vst.msk [vmem:[#allocation3 + $0x190] sm:$0xff] %vm1227, %v1136
    %1279 = vst.msk [vmem:[#allocation3 + $0x198] sm:$0xff] %vm1227, %v1138
    %1280 = vst.msk [vmem:[#allocation3 + $0x1a0] sm:$0xff] %vm1227, %v1140
    %1281 = vst.msk [vmem:[#allocation3 + $0x1a8] sm:$0xff] %vm1227, %v1142
    %1282 = vst.msk [vmem:[#allocation3 + $0x1b0] sm:$0xff] %vm1227, %v1144
    %1283 = vst.msk [vmem:[#allocation3 + $0x1b8] sm:$0xff] %vm1227, %v1146
    %1284 = vst.msk [vmem:[#allocation3 + $0x1c0] sm:$0xff] %vm1227, %v1148
    %1285 = vst.msk [vmem:[#allocation3 + $0x1c8] sm:$0xff] %vm1227, %v1150
    %1286 = vst.msk [vmem:[#allocation3 + $0x1d0] sm:$0xff] %vm1227, %v1152
    %1287 = vst.msk [vmem:[#allocation3 + $0x1d8] sm:$0xff] %vm1227, %v1154
    %1288 = vst.msk [vmem:[#allocation3 + $0x1e0] sm:$0xff] %vm1227, %v1156
    %1289 = vst.msk [vmem:[#allocation3 + $0x1e8] sm:$0xff] %vm1227, %v1158
    %1290 = vst.msk [vmem:[#allocation3 + $0x1f0] sm:$0xff] %vm1227, %v1160
    %1291 = vst.msk [vmem:[#allocation3 + $0x1f8] sm:$0xff] %vm1227, %v1162
    %v1292 = vld [vmem:[%s329] sm:$0xff]
    %v1293 = vld [vmem:[%s329 + $0x8] sm:$0xff]
    %v1294 = vld [vmem:[%s329 + $0x18] sm:$0xff]
    %v1295 = vld [vmem:[%s329 + $0x20] sm:$0xff]
    %v1296 = vld [vmem:[%s329 + $0x30] sm:$0xff]
    %v1297 = vld [vmem:[%s329 + $0x38] sm:$0xff]
    %v1298 = vld [vmem:[%s329 + $0x48] sm:$0xff]
    %v1299 = vld [vmem:[%s329 + $0x50] sm:$0xff]
    %v1300 = vld [vmem:[%s329 + $0x60] sm:$0xff]
    %v1301 = vld [vmem:[%s329 + $0x68] sm:$0xff]
    %v1302 = vld [vmem:[%s329 + $0x78] sm:$0xff]
    %v1303 = vld [vmem:[%s329 + $0x80] sm:$0xff]
    %v1304 = vld [vmem:[%s329 + $0x90] sm:$0xff]
    %v1305 = vld [vmem:[%s329 + $0x98] sm:$0xff]
    %v1306 = vld [vmem:[%s329 + $0xa8] sm:$0xff]
    %v1307 = vld [vmem:[%s329 + $0xb0] sm:$0xff]
    %v1308 = vld [vmem:[%s329 + $0xc0] sm:$0xff]
    %v1309 = vld [vmem:[%s329 + $0xc8] sm:$0xff]
    %v1310 = vld [vmem:[%s329 + $0xd8] sm:$0xff]
    %v1311 = vld [vmem:[%s329 + $0xe0] sm:$0xff]
    %v1312 = vld [vmem:[%s329 + $0xf0] sm:$0xff]
    %v1313 = vld [vmem:[%s329 + $0xf8] sm:$0xff]
    %v1314 = vld [vmem:[%s329 + $0x108] sm:$0xff]
    %v1315 = vld [vmem:[%s329 + $0x110] sm:$0xff]
    %v1316 = vld [vmem:[%s329 + $0x120] sm:$0xff]
    %v1317 = vld [vmem:[%s329 + $0x128] sm:$0xff]
    %v1318 = vld [vmem:[%s329 + $0x138] sm:$0xff]
    %v1319 = vld [vmem:[%s329 + $0x140] sm:$0xff]
    %v1320 = vld [vmem:[%s329 + $0x150] sm:$0xff]
    %v1321 = vld [vmem:[%s329 + $0x158] sm:$0xff]
    %v1322 = vld [vmem:[%s329 + $0x168] sm:$0xff]
    %v1323 = vld [vmem:[%s329 + $0x170] sm:$0xff]
    %v1324 = vld [vmem:[%s329 + $0x1b0] sm:$0xff]
    %v1325 = vld [vmem:[%s329 + $0x1b8] sm:$0xff]
    %v1326 = vld [vmem:[%s329 + $0x1c8] sm:$0xff]
    %v1327 = vld [vmem:[%s329 + $0x1d0] sm:$0xff]
    %v1328 = vld [vmem:[%s329 + $0x1e0] sm:$0xff]
    %v1329 = vld [vmem:[%s329 + $0x1e8] sm:$0xff]
    %v1330 = vld [vmem:[%s329 + $0x1f8] sm:$0xff]
    %v1331 = vld [vmem:[%s329 + $0x200] sm:$0xff]
    %v1332 = vld [vmem:[%s329 + $0x210] sm:$0xff]
    %v1333 = vld [vmem:[%s329 + $0x218] sm:$0xff]
    %v1334 = vld [vmem:[%s329 + $0x228] sm:$0xff]
    %v1335 = vld [vmem:[%s329 + $0x230] sm:$0xff]
    %v1336 = vld [vmem:[%s329 + $0x240] sm:$0xff]
    %v1337 = vld [vmem:[%s329 + $0x248] sm:$0xff]
    %v1338 = vld [vmem:[%s329 + $0x258] sm:$0xff]
    %v1339 = vld [vmem:[%s329 + $0x260] sm:$0xff]
    %v1340 = vld [vmem:[%s329 + $0x270] sm:$0xff]
    %v1341 = vld [vmem:[%s329 + $0x278] sm:$0xff]
    %v1342 = vld [vmem:[%s329 + $0x288] sm:$0xff]
    %v1343 = vld [vmem:[%s329 + $0x290] sm:$0xff]
    %v1344 = vld [vmem:[%s329 + $0x2a0] sm:$0xff]
    %v1345 = vld [vmem:[%s329 + $0x2a8] sm:$0xff]
    %v1346 = vld [vmem:[%s329 + $0x2b8] sm:$0xff]
    %v1347 = vld [vmem:[%s329 + $0x2c0] sm:$0xff]
    %v1348 = vld [vmem:[%s329 + $0x2d0] sm:$0xff]
    %v1349 = vld [vmem:[%s329 + $0x2d8] sm:$0xff]
    %v1350 = vld [vmem:[%s329 + $0x2e8] sm:$0xff]
    %v1351 = vld [vmem:[%s329 + $0x2f0] sm:$0xff]
    %v1352 = vld [vmem:[%s329 + $0x300] sm:$0xff]
    %v1353 = vld [vmem:[%s329 + $0x308] sm:$0xff]
    %v1354 = vld [vmem:[%s329 + $0x318] sm:$0xff]
    %v1355 = vld [vmem:[%s329 + $0x320] sm:$0xff]
    %1420 = vrot.lane.b32.xlu0 %v1292, 12
    %v1421 = vpop.permute.xlu0 %1420
    %1422 = vrot.lane.b32.xlu0 %v1293, 12
    %v1423 = vpop.permute.xlu0 %1422
    %1424 = vrot.lane.b32.xlu0 %v1294, 12
    %v1425 = vpop.permute.xlu0 %1424
    %1426 = vrot.lane.b32.xlu0 %v1295, 12
    %v1427 = vpop.permute.xlu0 %1426
    %1428 = vrot.lane.b32.xlu0 %v1296, 12
    %v1429 = vpop.permute.xlu0 %1428
    %1430 = vrot.lane.b32.xlu0 %v1297, 12
    %v1431 = vpop.permute.xlu0 %1430
    %1432 = vrot.lane.b32.xlu0 %v1298, 12
    %v1433 = vpop.permute.xlu0 %1432
    %1434 = vrot.lane.b32.xlu0 %v1299, 12
    %v1435 = vpop.permute.xlu0 %1434
    %1436 = vrot.lane.b32.xlu0 %v1300, 12
    %v1437 = vpop.permute.xlu0 %1436
    %1438 = vrot.lane.b32.xlu0 %v1301, 12
    %v1439 = vpop.permute.xlu0 %1438
    %1440 = vrot.lane.b32.xlu0 %v1302, 12
    %v1441 = vpop.permute.xlu0 %1440
    %1442 = vrot.lane.b32.xlu0 %v1303, 12
    %v1443 = vpop.permute.xlu0 %1442
    %1444 = vrot.lane.b32.xlu0 %v1304, 12
    %v1445 = vpop.permute.xlu0 %1444
    %1446 = vrot.lane.b32.xlu0 %v1305, 12
    %v1447 = vpop.permute.xlu0 %1446
    %1448 = vrot.lane.b32.xlu0 %v1306, 12
    %v1449 = vpop.permute.xlu0 %1448
    %1450 = vrot.lane.b32.xlu0 %v1307, 12
    %v1451 = vpop.permute.xlu0 %1450
    %1452 = vrot.lane.b32.xlu0 %v1308, 12
    %v1453 = vpop.permute.xlu0 %1452
    %1454 = vrot.lane.b32.xlu0 %v1309, 12
    %v1455 = vpop.permute.xlu0 %1454
    %1456 = vrot.lane.b32.xlu0 %v1310, 12
    %v1457 = vpop.permute.xlu0 %1456
    %1458 = vrot.lane.b32.xlu0 %v1311, 12
    %v1459 = vpop.permute.xlu0 %1458
    %1460 = vrot.lane.b32.xlu0 %v1312, 12
    %v1461 = vpop.permute.xlu0 %1460
    %1462 = vrot.lane.b32.xlu0 %v1313, 12
    %v1463 = vpop.permute.xlu0 %1462
    %1464 = vrot.lane.b32.xlu0 %v1314, 12
    %v1465 = vpop.permute.xlu0 %1464
    %1466 = vrot.lane.b32.xlu0 %v1315, 12
    %v1467 = vpop.permute.xlu0 %1466
    %1468 = vrot.lane.b32.xlu0 %v1316, 12
    %v1469 = vpop.permute.xlu0 %1468
    %1470 = vrot.lane.b32.xlu0 %v1317, 12
    %v1471 = vpop.permute.xlu0 %1470
    %1472 = vrot.lane.b32.xlu0 %v1318, 12
    %v1473 = vpop.permute.xlu0 %1472
    %1474 = vrot.lane.b32.xlu0 %v1319, 12
    %v1475 = vpop.permute.xlu0 %1474
    %1476 = vrot.lane.b32.xlu0 %v1320, 12
    %v1477 = vpop.permute.xlu0 %1476
    %1478 = vrot.lane.b32.xlu0 %v1321, 12
    %v1479 = vpop.permute.xlu0 %1478
    %1480 = vrot.lane.b32.xlu0 %v1322, 12
    %v1481 = vpop.permute.xlu0 %1480
    %1482 = vrot.lane.b32.xlu0 %v1323, 12
    %v1483 = vpop.permute.xlu0 %1482
    %1484 = vrot.lane.b32.xlu0 %v1324, 12
    %v1485 = vpop.permute.xlu0 %1484
    %1486 = vrot.lane.b32.xlu0 %v1325, 12
    %v1487 = vpop.permute.xlu0 %1486
    %1488 = vrot.lane.b32.xlu0 %v1326, 12
    %v1489 = vpop.permute.xlu0 %1488
    %1490 = vrot.lane.b32.xlu0 %v1327, 12
    %v1491 = vpop.permute.xlu0 %1490
    %1492 = vrot.lane.b32.xlu0 %v1328, 12
    %v1493 = vpop.permute.xlu0 %1492
    %1494 = vrot.lane.b32.xlu0 %v1329, 12
    %v1495 = vpop.permute.xlu0 %1494
    %1496 = vrot.lane.b32.xlu0 %v1330, 12
    %v1497 = vpop.permute.xlu0 %1496
    %1498 = vrot.lane.b32.xlu0 %v1331, 12
    %v1499 = vpop.permute.xlu0 %1498
    %1500 = vrot.lane.b32.xlu0 %v1332, 12
    %v1501 = vpop.permute.xlu0 %1500
    %1502 = vrot.lane.b32.xlu0 %v1333, 12
    %v1503 = vpop.permute.xlu0 %1502
    %1504 = vrot.lane.b32.xlu0 %v1334, 12
    %v1505 = vpop.permute.xlu0 %1504
    %1506 = vrot.lane.b32.xlu0 %v1335, 12
    %v1507 = vpop.permute.xlu0 %1506
    %1508 = vrot.lane.b32.xlu0 %v1336, 12
    %v1509 = vpop.permute.xlu0 %1508
    %1510 = vrot.lane.b32.xlu0 %v1337, 12
    %v1511 = vpop.permute.xlu0 %1510
    %1512 = vrot.lane.b32.xlu0 %v1338, 12
    %v1513 = vpop.permute.xlu0 %1512
    %1514 = vrot.lane.b32.xlu0 %v1339, 12
    %v1515 = vpop.permute.xlu0 %1514
    %1516 = vrot.lane.b32.xlu0 %v1340, 12
    %v1517 = vpop.permute.xlu0 %1516
    %1518 = vrot.lane.b32.xlu0 %v1341, 12
    %v1519 = vpop.permute.xlu0 %1518
    %1520 = vrot.lane.b32.xlu0 %v1342, 12
    %v1521 = vpop.permute.xlu0 %1520
    %1522 = vrot.lane.b32.xlu0 %v1343, 12
    %v1523 = vpop.permute.xlu0 %1522
    %1524 = vrot.lane.b32.xlu0 %v1344, 12
    %v1525 = vpop.permute.xlu0 %1524
    %1526 = vrot.lane.b32.xlu0 %v1345, 12
    %v1527 = vpop.permute.xlu0 %1526
    %1528 = vrot.lane.b32.xlu0 %v1346, 12
    %v1529 = vpop.permute.xlu0 %1528
    %1530 = vrot.lane.b32.xlu0 %v1347, 12
    %v1531 = vpop.permute.xlu0 %1530
    %1532 = vrot.lane.b32.xlu0 %v1348, 12
    %v1533 = vpop.permute.xlu0 %1532
    %1534 = vrot.lane.b32.xlu0 %v1349, 12
    %v1535 = vpop.permute.xlu0 %1534
    %1536 = vrot.lane.b32.xlu0 %v1350, 12
    %v1537 = vpop.permute.xlu0 %1536
    %1538 = vrot.lane.b32.xlu0 %v1351, 12
    %v1539 = vpop.permute.xlu0 %1538
    %1540 = vrot.lane.b32.xlu0 %v1352, 12
    %v1541 = vpop.permute.xlu0 %1540
    %1542 = vrot.lane.b32.xlu0 %v1353, 12
    %v1543 = vpop.permute.xlu0 %1542
    %1544 = vrot.lane.b32.xlu0 %v1354, 12
    %v1545 = vpop.permute.xlu0 %1544
    %1546 = vrot.lane.b32.xlu0 %v1355, 12
    %v1547 = vpop.permute.xlu0 %1546
    %vm1612 = vcmask 130144
    %1613 = vst.msk [vmem:[#allocation3] sm:$0xff] %vm1612, %v1421
    %1614 = vst.msk [vmem:[#allocation3 + $0x8] sm:$0xff] %vm1612, %v1423
    %1615 = vst.msk [vmem:[#allocation3 + $0x10] sm:$0xff] %vm1612, %v1425
    %1616 = vst.msk [vmem:[#allocation3 + $0x18] sm:$0xff] %vm1612, %v1427
    %1617 = vst.msk [vmem:[#allocation3 + $0x20] sm:$0xff] %vm1612, %v1429
    %1618 = vst.msk [vmem:[#allocation3 + $0x28] sm:$0xff] %vm1612, %v1431
    %1619 = vst.msk [vmem:[#allocation3 + $0x30] sm:$0xff] %vm1612, %v1433
    %1620 = vst.msk [vmem:[#allocation3 + $0x38] sm:$0xff] %vm1612, %v1435
    %1621 = vst.msk [vmem:[#allocation3 + $0x40] sm:$0xff] %vm1612, %v1437
    %1622 = vst.msk [vmem:[#allocation3 + $0x48] sm:$0xff] %vm1612, %v1439
    %1623 = vst.msk [vmem:[#allocation3 + $0x50] sm:$0xff] %vm1612, %v1441
    %1624 = vst.msk [vmem:[#allocation3 + $0x58] sm:$0xff] %vm1612, %v1443
    %1625 = vst.msk [vmem:[#allocation3 + $0x60] sm:$0xff] %vm1612, %v1445
    %1626 = vst.msk [vmem:[#allocation3 + $0x68] sm:$0xff] %vm1612, %v1447
    %1627 = vst.msk [vmem:[#allocation3 + $0x70] sm:$0xff] %vm1612, %v1449
    %1628 = vst.msk [vmem:[#allocation3 + $0x78] sm:$0xff] %vm1612, %v1451
    %1629 = vst.msk [vmem:[#allocation3 + $0x80] sm:$0xff] %vm1612, %v1453
    %1630 = vst.msk [vmem:[#allocation3 + $0x88] sm:$0xff] %vm1612, %v1455
    %1631 = vst.msk [vmem:[#allocation3 + $0x90] sm:$0xff] %vm1612, %v1457
    %1632 = vst.msk [vmem:[#allocation3 + $0x98] sm:$0xff] %vm1612, %v1459
    %1633 = vst.msk [vmem:[#allocation3 + $0xa0] sm:$0xff] %vm1612, %v1461
    %1634 = vst.msk [vmem:[#allocation3 + $0xa8] sm:$0xff] %vm1612, %v1463
    %1635 = vst.msk [vmem:[#allocation3 + $0xb0] sm:$0xff] %vm1612, %v1465
    %1636 = vst.msk [vmem:[#allocation3 + $0xb8] sm:$0xff] %vm1612, %v1467
    %1637 = vst.msk [vmem:[#allocation3 + $0xc0] sm:$0xff] %vm1612, %v1469
    %1638 = vst.msk [vmem:[#allocation3 + $0xc8] sm:$0xff] %vm1612, %v1471
    %1639 = vst.msk [vmem:[#allocation3 + $0xd0] sm:$0xff] %vm1612, %v1473
    %1640 = vst.msk [vmem:[#allocation3 + $0xd8] sm:$0xff] %vm1612, %v1475
    %1641 = vst.msk [vmem:[#allocation3 + $0xe0] sm:$0xff] %vm1612, %v1477
    %1642 = vst.msk [vmem:[#allocation3 + $0xe8] sm:$0xff] %vm1612, %v1479
    %1643 = vst.msk [vmem:[#allocation3 + $0xf0] sm:$0xff] %vm1612, %v1481
    %1644 = vst.msk [vmem:[#allocation3 + $0xf8] sm:$0xff] %vm1612, %v1483
    %1645 = vst.msk [vmem:[#allocation3 + $0x100] sm:$0xff] %vm1612, %v1485
    %1646 = vst.msk [vmem:[#allocation3 + $0x108] sm:$0xff] %vm1612, %v1487
    %1647 = vst.msk [vmem:[#allocation3 + $0x110] sm:$0xff] %vm1612, %v1489
    %1648 = vst.msk [vmem:[#allocation3 + $0x118] sm:$0xff] %vm1612, %v1491
    %1649 = vst.msk [vmem:[#allocation3 + $0x120] sm:$0xff] %vm1612, %v1493
    %1650 = vst.msk [vmem:[#allocation3 + $0x128] sm:$0xff] %vm1612, %v1495
    %1651 = vst.msk [vmem:[#allocation3 + $0x130] sm:$0xff] %vm1612, %v1497
    %1652 = vst.msk [vmem:[#allocation3 + $0x138] sm:$0xff] %vm1612, %v1499
    %1653 = vst.msk [vmem:[#allocation3 + $0x140] sm:$0xff] %vm1612, %v1501
    %1654 = vst.msk [vmem:[#allocation3 + $0x148] sm:$0xff] %vm1612, %v1503
    %1655 = vst.msk [vmem:[#allocation3 + $0x150] sm:$0xff] %vm1612, %v1505
    %1656 = vst.msk [vmem:[#allocation3 + $0x158] sm:$0xff] %vm1612, %v1507
    %1657 = vst.msk [vmem:[#allocation3 + $0x160] sm:$0xff] %vm1612, %v1509
    %1658 = vst.msk [vmem:[#allocation3 + $0x168] sm:$0xff] %vm1612, %v1511
    %1659 = vst.msk [vmem:[#allocation3 + $0x170] sm:$0xff] %vm1612, %v1513
    %1660 = vst.msk [vmem:[#allocation3 + $0x178] sm:$0xff] %vm1612, %v1515
    %1661 = vst.msk [vmem:[#allocation3 + $0x180] sm:$0xff] %vm1612, %v1517
    %1662 = vst.msk [vmem:[#allocation3 + $0x188] sm:$0xff] %vm1612, %v1519
    %1663 = vst.msk [vmem:[#allocation3 + $0x190] sm:$0xff] %vm1612, %v1521
    %1664 = vst.msk [vmem:[#allocation3 + $0x198] sm:$0xff] %vm1612, %v1523
    %1665 = vst.msk [vmem:[#allocation3 + $0x1a0] sm:$0xff] %vm1612, %v1525
    %1666 = vst.msk [vmem:[#allocation3 + $0x1a8] sm:$0xff] %vm1612, %v1527
    %1667 = vst.msk [vmem:[#allocation3 + $0x1b0] sm:$0xff] %vm1612, %v1529
    %1668 = vst.msk [vmem:[#allocation3 + $0x1b8] sm:$0xff] %vm1612, %v1531
    %1669 = vst.msk [vmem:[#allocation3 + $0x1c0] sm:$0xff] %vm1612, %v1533
    %1670 = vst.msk [vmem:[#allocation3 + $0x1c8] sm:$0xff] %vm1612, %v1535
    %1671 = vst.msk [vmem:[#allocation3 + $0x1d0] sm:$0xff] %vm1612, %v1537
    %1672 = vst.msk [vmem:[#allocation3 + $0x1d8] sm:$0xff] %vm1612, %v1539
    %1673 = vst.msk [vmem:[#allocation3 + $0x1e0] sm:$0xff] %vm1612, %v1541
    %1674 = vst.msk [vmem:[#allocation3 + $0x1e8] sm:$0xff] %vm1612, %v1543
    %1675 = vst.msk [vmem:[#allocation3 + $0x1f0] sm:$0xff] %vm1612, %v1545
    %1676 = vst.msk [vmem:[#allocation3 + $0x1f8] sm:$0xff] %vm1612, %v1547
    %v1677 = vld [vmem:[%s329 + $0x1] sm:$0xff]
    %v1678 = vld [vmem:[%s329 + $0x9] sm:$0xff]
    %v1679 = vld [vmem:[%s329 + $0x19] sm:$0xff]
    %v1680 = vld [vmem:[%s329 + $0x21] sm:$0xff]
    %v1681 = vld [vmem:[%s329 + $0x31] sm:$0xff]
    %v1682 = vld [vmem:[%s329 + $0x39] sm:$0xff]
    %v1683 = vld [vmem:[%s329 + $0x49] sm:$0xff]
    %v1684 = vld [vmem:[%s329 + $0x51] sm:$0xff]
    %v1685 = vld [vmem:[%s329 + $0x61] sm:$0xff]
    %v1686 = vld [vmem:[%s329 + $0x69] sm:$0xff]
    %v1687 = vld [vmem:[%s329 + $0x79] sm:$0xff]
    %v1688 = vld [vmem:[%s329 + $0x81] sm:$0xff]
    %v1689 = vld [vmem:[%s329 + $0x91] sm:$0xff]
    %v1690 = vld [vmem:[%s329 + $0x99] sm:$0xff]
    %v1691 = vld [vmem:[%s329 + $0xa9] sm:$0xff]
    %v1692 = vld [vmem:[%s329 + $0xb1] sm:$0xff]
    %v1693 = vld [vmem:[%s329 + $0xc1] sm:$0xff]
    %v1694 = vld [vmem:[%s329 + $0xc9] sm:$0xff]
    %v1695 = vld [vmem:[%s329 + $0xd9] sm:$0xff]
    %v1696 = vld [vmem:[%s329 + $0xe1] sm:$0xff]
    %v1697 = vld [vmem:[%s329 + $0xf1] sm:$0xff]
    %v1698 = vld [vmem:[%s329 + $0xf9] sm:$0xff]
    %v1699 = vld [vmem:[%s329 + $0x109] sm:$0xff]
    %v1700 = vld [vmem:[%s329 + $0x111] sm:$0xff]
    %v1701 = vld [vmem:[%s329 + $0x121] sm:$0xff]
    %v1702 = vld [vmem:[%s329 + $0x129] sm:$0xff]
    %v1703 = vld [vmem:[%s329 + $0x139] sm:$0xff]
    %v1704 = vld [vmem:[%s329 + $0x141] sm:$0xff]
    %v1705 = vld [vmem:[%s329 + $0x151] sm:$0xff]
    %v1706 = vld [vmem:[%s329 + $0x159] sm:$0xff]
    %v1707 = vld [vmem:[%s329 + $0x169] sm:$0xff]
    %v1708 = vld [vmem:[%s329 + $0x171] sm:$0xff]
    %v1709 = vld [vmem:[%s329 + $0x1b1] sm:$0xff]
    %v1710 = vld [vmem:[%s329 + $0x1b9] sm:$0xff]
    %v1711 = vld [vmem:[%s329 + $0x1c9] sm:$0xff]
    %v1712 = vld [vmem:[%s329 + $0x1d1] sm:$0xff]
    %v1713 = vld [vmem:[%s329 + $0x1e1] sm:$0xff]
    %v1714 = vld [vmem:[%s329 + $0x1e9] sm:$0xff]
    %v1715 = vld [vmem:[%s329 + $0x1f9] sm:$0xff]
    %v1716 = vld [vmem:[%s329 + $0x201] sm:$0xff]
    %v1717 = vld [vmem:[%s329 + $0x211] sm:$0xff]
    %v1718 = vld [vmem:[%s329 + $0x219] sm:$0xff]
    %v1719 = vld [vmem:[%s329 + $0x229] sm:$0xff]
    %v1720 = vld [vmem:[%s329 + $0x231] sm:$0xff]
    %v1721 = vld [vmem:[%s329 + $0x241] sm:$0xff]
    %v1722 = vld [vmem:[%s329 + $0x249] sm:$0xff]
    %v1723 = vld [vmem:[%s329 + $0x259] sm:$0xff]
    %v1724 = vld [vmem:[%s329 + $0x261] sm:$0xff]
    %v1725 = vld [vmem:[%s329 + $0x271] sm:$0xff]
    %v1726 = vld [vmem:[%s329 + $0x279] sm:$0xff]
    %v1727 = vld [vmem:[%s329 + $0x289] sm:$0xff]
    %v1728 = vld [vmem:[%s329 + $0x291] sm:$0xff]
    %v1729 = vld [vmem:[%s329 + $0x2a1] sm:$0xff]
    %v1730 = vld [vmem:[%s329 + $0x2a9] sm:$0xff]
    %v1731 = vld [vmem:[%s329 + $0x2b9] sm:$0xff]
    %v1732 = vld [vmem:[%s329 + $0x2c1] sm:$0xff]
    %v1733 = vld [vmem:[%s329 + $0x2d1] sm:$0xff]
    %v1734 = vld [vmem:[%s329 + $0x2d9] sm:$0xff]
    %v1735 = vld [vmem:[%s329 + $0x2e9] sm:$0xff]
    %v1736 = vld [vmem:[%s329 + $0x2f1] sm:$0xff]
    %v1737 = vld [vmem:[%s329 + $0x301] sm:$0xff]
    %v1738 = vld [vmem:[%s329 + $0x309] sm:$0xff]
    %v1739 = vld [vmem:[%s329 + $0x319] sm:$0xff]
    %v1740 = vld [vmem:[%s329 + $0x321] sm:$0xff]
    %1805 = vrot.lane.b32.xlu0 %v1677, 16
    %v1806 = vpop.permute.xlu0 %1805
    %1807 = vrot.lane.b32.xlu0 %v1678, 16
    %v1808 = vpop.permute.xlu0 %1807
    %1809 = vrot.lane.b32.xlu0 %v1679, 16
    %v1810 = vpop.permute.xlu0 %1809
    %1811 = vrot.lane.b32.xlu0 %v1680, 16
    %v1812 = vpop.permute.xlu0 %1811
    %1813 = vrot.lane.b32.xlu0 %v1681, 16
    %v1814 = vpop.permute.xlu0 %1813
    %1815 = vrot.lane.b32.xlu0 %v1682, 16
    %v1816 = vpop.permute.xlu0 %1815
    %1817 = vrot.lane.b32.xlu0 %v1683, 16
    %v1818 = vpop.permute.xlu0 %1817
    %1819 = vrot.lane.b32.xlu0 %v1684, 16
    %v1820 = vpop.permute.xlu0 %1819
    %1821 = vrot.lane.b32.xlu0 %v1685, 16
    %v1822 = vpop.permute.xlu0 %1821
    %1823 = vrot.lane.b32.xlu0 %v1686, 16
    %v1824 = vpop.permute.xlu0 %1823
    %1825 = vrot.lane.b32.xlu0 %v1687, 16
    %v1826 = vpop.permute.xlu0 %1825
    %1827 = vrot.lane.b32.xlu0 %v1688, 16
    %v1828 = vpop.permute.xlu0 %1827
    %1829 = vrot.lane.b32.xlu0 %v1689, 16
    %v1830 = vpop.permute.xlu0 %1829
    %1831 = vrot.lane.b32.xlu0 %v1690, 16
    %v1832 = vpop.permute.xlu0 %1831
    %1833 = vrot.lane.b32.xlu0 %v1691, 16
    %v1834 = vpop.permute.xlu0 %1833
    %1835 = vrot.lane.b32.xlu0 %v1692, 16
    %v1836 = vpop.permute.xlu0 %1835
    %1837 = vrot.lane.b32.xlu0 %v1693, 16
    %v1838 = vpop.permute.xlu0 %1837
    %1839 = vrot.lane.b32.xlu0 %v1694, 16
    %v1840 = vpop.permute.xlu0 %1839
    %1841 = vrot.lane.b32.xlu0 %v1695, 16
    %v1842 = vpop.permute.xlu0 %1841
    %1843 = vrot.lane.b32.xlu0 %v1696, 16
    %v1844 = vpop.permute.xlu0 %1843
    %1845 = vrot.lane.b32.xlu0 %v1697, 16
    %v1846 = vpop.permute.xlu0 %1845
    %1847 = vrot.lane.b32.xlu0 %v1698, 16
    %v1848 = vpop.permute.xlu0 %1847
    %1849 = vrot.lane.b32.xlu0 %v1699, 16
    %v1850 = vpop.permute.xlu0 %1849
    %1851 = vrot.lane.b32.xlu0 %v1700, 16
    %v1852 = vpop.permute.xlu0 %1851
    %1853 = vrot.lane.b32.xlu0 %v1701, 16
    %v1854 = vpop.permute.xlu0 %1853
    %1855 = vrot.lane.b32.xlu0 %v1702, 16
    %v1856 = vpop.permute.xlu0 %1855
    %1857 = vrot.lane.b32.xlu0 %v1703, 16
    %v1858 = vpop.permute.xlu0 %1857
    %1859 = vrot.lane.b32.xlu0 %v1704, 16
    %v1860 = vpop.permute.xlu0 %1859
    %1861 = vrot.lane.b32.xlu0 %v1705, 16
    %v1862 = vpop.permute.xlu0 %1861
    %1863 = vrot.lane.b32.xlu0 %v1706, 16
    %v1864 = vpop.permute.xlu0 %1863
    %1865 = vrot.lane.b32.xlu0 %v1707, 16
    %v1866 = vpop.permute.xlu0 %1865
    %1867 = vrot.lane.b32.xlu0 %v1708, 16
    %v1868 = vpop.permute.xlu0 %1867
    %1869 = vrot.lane.b32.xlu0 %v1709, 16
    %v1870 = vpop.permute.xlu0 %1869
    %1871 = vrot.lane.b32.xlu0 %v1710, 16
    %v1872 = vpop.permute.xlu0 %1871
    %1873 = vrot.lane.b32.xlu0 %v1711, 16
    %v1874 = vpop.permute.xlu0 %1873
    %1875 = vrot.lane.b32.xlu0 %v1712, 16
    %v1876 = vpop.permute.xlu0 %1875
    %1877 = vrot.lane.b32.xlu0 %v1713, 16
    %v1878 = vpop.permute.xlu0 %1877
    %1879 = vrot.lane.b32.xlu0 %v1714, 16
    %v1880 = vpop.permute.xlu0 %1879
    %1881 = vrot.lane.b32.xlu0 %v1715, 16
    %v1882 = vpop.permute.xlu0 %1881
    %1883 = vrot.lane.b32.xlu0 %v1716, 16
    %v1884 = vpop.permute.xlu0 %1883
    %1885 = vrot.lane.b32.xlu0 %v1717, 16
    %v1886 = vpop.permute.xlu0 %1885
    %1887 = vrot.lane.b32.xlu0 %v1718, 16
    %v1888 = vpop.permute.xlu0 %1887
    %1889 = vrot.lane.b32.xlu0 %v1719, 16
    %v1890 = vpop.permute.xlu0 %1889
    %1891 = vrot.lane.b32.xlu0 %v1720, 16
    %v1892 = vpop.permute.xlu0 %1891
    %1893 = vrot.lane.b32.xlu0 %v1721, 16
    %v1894 = vpop.permute.xlu0 %1893
    %1895 = vrot.lane.b32.xlu0 %v1722, 16
    %v1896 = vpop.permute.xlu0 %1895
    %1897 = vrot.lane.b32.xlu0 %v1723, 16
    %v1898 = vpop.permute.xlu0 %1897
    %1899 = vrot.lane.b32.xlu0 %v1724, 16
    %v1900 = vpop.permute.xlu0 %1899
    %1901 = vrot.lane.b32.xlu0 %v1725, 16
    %v1902 = vpop.permute.xlu0 %1901
    %1903 = vrot.lane.b32.xlu0 %v1726, 16
    %v1904 = vpop.permute.xlu0 %1903
    %1905 = vrot.lane.b32.xlu0 %v1727, 16
    %v1906 = vpop.permute.xlu0 %1905
    %1907 = vrot.lane.b32.xlu0 %v1728, 16
    %v1908 = vpop.permute.xlu0 %1907
    %1909 = vrot.lane.b32.xlu0 %v1729, 16
    %v1910 = vpop.permute.xlu0 %1909
    %1911 = vrot.lane.b32.xlu0 %v1730, 16
    %v1912 = vpop.permute.xlu0 %1911
    %1913 = vrot.lane.b32.xlu0 %v1731, 16
    %v1914 = vpop.permute.xlu0 %1913
    %1915 = vrot.lane.b32.xlu0 %v1732, 16
    %v1916 = vpop.permute.xlu0 %1915
    %1917 = vrot.lane.b32.xlu0 %v1733, 16
    %v1918 = vpop.permute.xlu0 %1917
    %1919 = vrot.lane.b32.xlu0 %v1734, 16
    %v1920 = vpop.permute.xlu0 %1919
    %1921 = vrot.lane.b32.xlu0 %v1735, 16
    %v1922 = vpop.permute.xlu0 %1921
    %1923 = vrot.lane.b32.xlu0 %v1736, 16
    %v1924 = vpop.permute.xlu0 %1923
    %1925 = vrot.lane.b32.xlu0 %v1737, 16
    %v1926 = vpop.permute.xlu0 %1925
    %1927 = vrot.lane.b32.xlu0 %v1738, 16
    %v1928 = vpop.permute.xlu0 %1927
    %1929 = vrot.lane.b32.xlu0 %v1739, 16
    %v1930 = vpop.permute.xlu0 %1929
    %1931 = vrot.lane.b32.xlu0 %v1740, 16
    %v1932 = vpop.permute.xlu0 %1931
    %vm1997 = vcmask 162944
    %1998 = vst.msk [vmem:[#allocation3] sm:$0xff] %vm1997, %v1806
    %1999 = vst.msk [vmem:[#allocation3 + $0x8] sm:$0xff] %vm1997, %v1808
    %2000 = vst.msk [vmem:[#allocation3 + $0x10] sm:$0xff] %vm1997, %v1810
    %2001 = vst.msk [vmem:[#allocation3 + $0x18] sm:$0xff] %vm1997, %v1812
    %2002 = vst.msk [vmem:[#allocation3 + $0x20] sm:$0xff] %vm1997, %v1814
    %2003 = vst.msk [vmem:[#allocation3 + $0x28] sm:$0xff] %vm1997, %v1816
    %2004 = vst.msk [vmem:[#allocation3 + $0x30] sm:$0xff] %vm1997, %v1818
    %2005 = vst.msk [vmem:[#allocation3 + $0x38] sm:$0xff] %vm1997, %v1820
    %2006 = vst.msk [vmem:[#allocation3 + $0x40] sm:$0xff] %vm1997, %v1822
    %2007 = vst.msk [vmem:[#allocation3 + $0x48] sm:$0xff] %vm1997, %v1824
    %2008 = vst.msk [vmem:[#allocation3 + $0x50] sm:$0xff] %vm1997, %v1826
    %2009 = vst.msk [vmem:[#allocation3 + $0x58] sm:$0xff] %vm1997, %v1828
    %2010 = vst.msk [vmem:[#allocation3 + $0x60] sm:$0xff] %vm1997, %v1830
    %2011 = vst.msk [vmem:[#allocation3 + $0x68] sm:$0xff] %vm1997, %v1832
    %2012 = vst.msk [vmem:[#allocation3 + $0x70] sm:$0xff] %vm1997, %v1834
    %2013 = vst.msk [vmem:[#allocation3 + $0x78] sm:$0xff] %vm1997, %v1836
    %2014 = vst.msk [vmem:[#allocation3 + $0x80] sm:$0xff] %vm1997, %v1838
    %2015 = vst.msk [vmem:[#allocation3 + $0x88] sm:$0xff] %vm1997, %v1840
    %2016 = vst.msk [vmem:[#allocation3 + $0x90] sm:$0xff] %vm1997, %v1842
    %2017 = vst.msk [vmem:[#allocation3 + $0x98] sm:$0xff] %vm1997, %v1844
    %2018 = vst.msk [vmem:[#allocation3 + $0xa0] sm:$0xff] %vm1997, %v1846
    %2019 = vst.msk [vmem:[#allocation3 + $0xa8] sm:$0xff] %vm1997, %v1848
    %2020 = vst.msk [vmem:[#allocation3 + $0xb0] sm:$0xff] %vm1997, %v1850
    %2021 = vst.msk [vmem:[#allocation3 + $0xb8] sm:$0xff] %vm1997, %v1852
    %2022 = vst.msk [vmem:[#allocation3 + $0xc0] sm:$0xff] %vm1997, %v1854
    %2023 = vst.msk [vmem:[#allocation3 + $0xc8] sm:$0xff] %vm1997, %v1856
    %2024 = vst.msk [vmem:[#allocation3 + $0xd0] sm:$0xff] %vm1997, %v1858
    %2025 = vst.msk [vmem:[#allocation3 + $0xd8] sm:$0xff] %vm1997, %v1860
    %2026 = vst.msk [vmem:[#allocation3 + $0xe0] sm:$0xff] %vm1997, %v1862
    %2027 = vst.msk [vmem:[#allocation3 + $0xe8] sm:$0xff] %vm1997, %v1864
    %2028 = vst.msk [vmem:[#allocation3 + $0xf0] sm:$0xff] %vm1997, %v1866
    %2029 = vst.msk [vmem:[#allocation3 + $0xf8] sm:$0xff] %vm1997, %v1868
    %2030 = vst.msk [vmem:[#allocation3 + $0x100] sm:$0xff] %vm1997, %v1870
    %2031 = vst.msk [vmem:[#allocation3 + $0x108] sm:$0xff] %vm1997, %v1872
    %2032 = vst.msk [vmem:[#allocation3 + $0x110] sm:$0xff] %vm1997, %v1874
    %2033 = vst.msk [vmem:[#allocation3 + $0x118] sm:$0xff] %vm1997, %v1876
    %2034 = vst.msk [vmem:[#allocation3 + $0x120] sm:$0xff] %vm1997, %v1878
    %2035 = vst.msk [vmem:[#allocation3 + $0x128] sm:$0xff] %vm1997, %v1880
    %2036 = vst.msk [vmem:[#allocation3 + $0x130] sm:$0xff] %vm1997, %v1882
    %2037 = vst.msk [vmem:[#allocation3 + $0x138] sm:$0xff] %vm1997, %v1884
    %2038 = vst.msk [vmem:[#allocation3 + $0x140] sm:$0xff] %vm1997, %v1886
    %2039 = vst.msk [vmem:[#allocation3 + $0x148] sm:$0xff] %vm1997, %v1888
    %2040 = vst.msk [vmem:[#allocation3 + $0x150] sm:$0xff] %vm1997, %v1890
    %2041 = vst.msk [vmem:[#allocation3 + $0x158] sm:$0xff] %vm1997, %v1892
    %2042 = vst.msk [vmem:[#allocation3 + $0x160] sm:$0xff] %vm1997, %v1894
    %2043 = vst.msk [vmem:[#allocation3 + $0x168] sm:$0xff] %vm1997, %v1896
    %2044 = vst.msk [vmem:[#allocation3 + $0x170] sm:$0xff] %vm1997, %v1898
    %2045 = vst.msk [vmem:[#allocation3 + $0x178] sm:$0xff] %vm1997, %v1900
    %2046 = vst.msk [vmem:[#allocation3 + $0x180] sm:$0xff] %vm1997, %v1902
    %2047 = vst.msk [vmem:[#allocation3 + $0x188] sm:$0xff] %vm1997, %v1904
    %2048 = vst.msk [vmem:[#allocation3 + $0x190] sm:$0xff] %vm1997, %v1906
    %2049 = vst.msk [vmem:[#allocation3 + $0x198] sm:$0xff] %vm1997, %v1908
    %2050 = vst.msk [vmem:[#allocation3 + $0x1a0] sm:$0xff] %vm1997, %v1910
    %2051 = vst.msk [vmem:[#allocation3 + $0x1a8] sm:$0xff] %vm1997, %v1912
    %2052 = vst.msk [vmem:[#allocation3 + $0x1b0] sm:$0xff] %vm1997, %v1914
    %2053 = vst.msk [vmem:[#allocation3 + $0x1b8] sm:$0xff] %vm1997, %v1916
    %2054 = vst.msk [vmem:[#allocation3 + $0x1c0] sm:$0xff] %vm1997, %v1918
    %2055 = vst.msk [vmem:[#allocation3 + $0x1c8] sm:$0xff] %vm1997, %v1920
    %2056 = vst.msk [vmem:[#allocation3 + $0x1d0] sm:$0xff] %vm1997, %v1922
    %2057 = vst.msk [vmem:[#allocation3 + $0x1d8] sm:$0xff] %vm1997, %v1924
    %2058 = vst.msk [vmem:[#allocation3 + $0x1e0] sm:$0xff] %vm1997, %v1926
    %2059 = vst.msk [vmem:[#allocation3 + $0x1e8] sm:$0xff] %vm1997, %v1928
    %2060 = vst.msk [vmem:[#allocation3 + $0x1f0] sm:$0xff] %vm1997, %v1930
    %2061 = vst.msk [vmem:[#allocation3 + $0x1f8] sm:$0xff] %vm1997, %v1932
    %v2062 = vld [vmem:[%s329 + $0x2] sm:$0xff]
    %v2063 = vld [vmem:[%s329 + $0xa] sm:$0xff]
    %v2064 = vld [vmem:[%s329 + $0x1a] sm:$0xff]
    %v2065 = vld [vmem:[%s329 + $0x22] sm:$0xff]
    %v2066 = vld [vmem:[%s329 + $0x32] sm:$0xff]
    %v2067 = vld [vmem:[%s329 + $0x3a] sm:$0xff]
    %v2068 = vld [vmem:[%s329 + $0x4a] sm:$0xff]
    %v2069 = vld [vmem:[%s329 + $0x52] sm:$0xff]
    %v2070 = vld [vmem:[%s329 + $0x62] sm:$0xff]
    %v2071 = vld [vmem:[%s329 + $0x6a] sm:$0xff]
    %v2072 = vld [vmem:[%s329 + $0x7a] sm:$0xff]
    %v2073 = vld [vmem:[%s329 + $0x82] sm:$0xff]
    %v2074 = vld [vmem:[%s329 + $0x92] sm:$0xff]
    %v2075 = vld [vmem:[%s329 + $0x9a] sm:$0xff]
    %v2076 = vld [vmem:[%s329 + $0xaa] sm:$0xff]
    %v2077 = vld [vmem:[%s329 + $0xb2] sm:$0xff]
    %v2078 = vld [vmem:[%s329 + $0xc2] sm:$0xff]
    %v2079 = vld [vmem:[%s329 + $0xca] sm:$0xff]
    %v2080 = vld [vmem:[%s329 + $0xda] sm:$0xff]
    %v2081 = vld [vmem:[%s329 + $0xe2] sm:$0xff]
    %v2082 = vld [vmem:[%s329 + $0xf2] sm:$0xff]
    %v2083 = vld [vmem:[%s329 + $0xfa] sm:$0xff]
    %v2084 = vld [vmem:[%s329 + $0x10a] sm:$0xff]
    %v2085 = vld [vmem:[%s329 + $0x112] sm:$0xff]
    %v2086 = vld [vmem:[%s329 + $0x122] sm:$0xff]
    %v2087 = vld [vmem:[%s329 + $0x12a] sm:$0xff]
    %v2088 = vld [vmem:[%s329 + $0x13a] sm:$0xff]
    %v2089 = vld [vmem:[%s329 + $0x142] sm:$0xff]
    %v2090 = vld [vmem:[%s329 + $0x152] sm:$0xff]
    %v2091 = vld [vmem:[%s329 + $0x15a] sm:$0xff]
    %v2092 = vld [vmem:[%s329 + $0x16a] sm:$0xff]
    %v2093 = vld [vmem:[%s329 + $0x172] sm:$0xff]
    %v2094 = vld [vmem:[%s329 + $0x1b2] sm:$0xff]
    %v2095 = vld [vmem:[%s329 + $0x1ba] sm:$0xff]
    %v2096 = vld [vmem:[%s329 + $0x1ca] sm:$0xff]
    %v2097 = vld [vmem:[%s329 + $0x1d2] sm:$0xff]
    %v2098 = vld [vmem:[%s329 + $0x1e2] sm:$0xff]
    %v2099 = vld [vmem:[%s329 + $0x1ea] sm:$0xff]
    %v2100 = vld [vmem:[%s329 + $0x1fa] sm:$0xff]
    %v2101 = vld [vmem:[%s329 + $0x202] sm:$0xff]
    %v2102 = vld [vmem:[%s329 + $0x212] sm:$0xff]
    %v2103 = vld [vmem:[%s329 + $0x21a] sm:$0xff]
    %v2104 = vld [vmem:[%s329 + $0x22a] sm:$0xff]
    %v2105 = vld [vmem:[%s329 + $0x232] sm:$0xff]
    %v2106 = vld [vmem:[%s329 + $0x242] sm:$0xff]
    %v2107 = vld [vmem:[%s329 + $0x24a] sm:$0xff]
    %v2108 = vld [vmem:[%s329 + $0x25a] sm:$0xff]
    %v2109 = vld [vmem:[%s329 + $0x262] sm:$0xff]
    %v2110 = vld [vmem:[%s329 + $0x272] sm:$0xff]
    %v2111 = vld [vmem:[%s329 + $0x27a] sm:$0xff]
    %v2112 = vld [vmem:[%s329 + $0x28a] sm:$0xff]
    %v2113 = vld [vmem:[%s329 + $0x292] sm:$0xff]
    %v2114 = vld [vmem:[%s329 + $0x2a2] sm:$0xff]
    %v2115 = vld [vmem:[%s329 + $0x2aa] sm:$0xff]
    %v2116 = vld [vmem:[%s329 + $0x2ba] sm:$0xff]
    %v2117 = vld [vmem:[%s329 + $0x2c2] sm:$0xff]
    %v2118 = vld [vmem:[%s329 + $0x2d2] sm:$0xff]
    %v2119 = vld [vmem:[%s329 + $0x2da] sm:$0xff]
    %v2120 = vld [vmem:[%s329 + $0x2ea] sm:$0xff]
    %v2121 = vld [vmem:[%s329 + $0x2f2] sm:$0xff]
    %v2122 = vld [vmem:[%s329 + $0x302] sm:$0xff]
    %v2123 = vld [vmem:[%s329 + $0x30a] sm:$0xff]
    %v2124 = vld [vmem:[%s329 + $0x31a] sm:$0xff]
    %v2125 = vld [vmem:[%s329 + $0x322] sm:$0xff]
    %2190 = vrot.lane.b32.xlu0 %v2062, 20
    %v2191 = vpop.permute.xlu0 %2190
    %2192 = vrot.lane.b32.xlu0 %v2063, 20
    %v2193 = vpop.permute.xlu0 %2192
    %2194 = vrot.lane.b32.xlu0 %v2064, 20
    %v2195 = vpop.permute.xlu0 %2194
    %2196 = vrot.lane.b32.xlu0 %v2065, 20
    %v2197 = vpop.permute.xlu0 %2196
    %2198 = vrot.lane.b32.xlu0 %v2066, 20
    %v2199 = vpop.permute.xlu0 %2198
    %2200 = vrot.lane.b32.xlu0 %v2067, 20
    %v2201 = vpop.permute.xlu0 %2200
    %2202 = vrot.lane.b32.xlu0 %v2068, 20
    %v2203 = vpop.permute.xlu0 %2202
    %2204 = vrot.lane.b32.xlu0 %v2069, 20
    %v2205 = vpop.permute.xlu0 %2204
    %2206 = vrot.lane.b32.xlu0 %v2070, 20
    %v2207 = vpop.permute.xlu0 %2206
    %2208 = vrot.lane.b32.xlu0 %v2071, 20
    %v2209 = vpop.permute.xlu0 %2208
    %2210 = vrot.lane.b32.xlu0 %v2072, 20
    %v2211 = vpop.permute.xlu0 %2210
    %2212 = vrot.lane.b32.xlu0 %v2073, 20
    %v2213 = vpop.permute.xlu0 %2212
    %2214 = vrot.lane.b32.xlu0 %v2074, 20
    %v2215 = vpop.permute.xlu0 %2214
    %2216 = vrot.lane.b32.xlu0 %v2075, 20
    %v2217 = vpop.permute.xlu0 %2216
    %2218 = vrot.lane.b32.xlu0 %v2076, 20
    %v2219 = vpop.permute.xlu0 %2218
    %2220 = vrot.lane.b32.xlu0 %v2077, 20
    %v2221 = vpop.permute.xlu0 %2220
    %2222 = vrot.lane.b32.xlu0 %v2078, 20
    %v2223 = vpop.permute.xlu0 %2222
    %2224 = vrot.lane.b32.xlu0 %v2079, 20
    %v2225 = vpop.permute.xlu0 %2224
    %2226 = vrot.lane.b32.xlu0 %v2080, 20
    %v2227 = vpop.permute.xlu0 %2226
    %2228 = vrot.lane.b32.xlu0 %v2081, 20
    %v2229 = vpop.permute.xlu0 %2228
    %2230 = vrot.lane.b32.xlu0 %v2082, 20
    %v2231 = vpop.permute.xlu0 %2230
    %2232 = vrot.lane.b32.xlu0 %v2083, 20
    %v2233 = vpop.permute.xlu0 %2232
    %2234 = vrot.lane.b32.xlu0 %v2084, 20
    %v2235 = vpop.permute.xlu0 %2234
    %2236 = vrot.lane.b32.xlu0 %v2085, 20
    %v2237 = vpop.permute.xlu0 %2236
    %2238 = vrot.lane.b32.xlu0 %v2086, 20
    %v2239 = vpop.permute.xlu0 %2238
    %2240 = vrot.lane.b32.xlu0 %v2087, 20
    %v2241 = vpop.permute.xlu0 %2240
    %2242 = vrot.lane.b32.xlu0 %v2088, 20
    %v2243 = vpop.permute.xlu0 %2242
    %2244 = vrot.lane.b32.xlu0 %v2089, 20
    %v2245 = vpop.permute.xlu0 %2244
    %2246 = vrot.lane.b32.xlu0 %v2090, 20
    %v2247 = vpop.permute.xlu0 %2246
    %2248 = vrot.lane.b32.xlu0 %v2091, 20
    %v2249 = vpop.permute.xlu0 %2248
    %2250 = vrot.lane.b32.xlu0 %v2092, 20
    %v2251 = vpop.permute.xlu0 %2250
    %2252 = vrot.lane.b32.xlu0 %v2093, 20
    %v2253 = vpop.permute.xlu0 %2252
    %2254 = vrot.lane.b32.xlu0 %v2094, 20
    %v2255 = vpop.permute.xlu0 %2254
    %2256 = vrot.lane.b32.xlu0 %v2095, 20
    %v2257 = vpop.permute.xlu0 %2256
    %2258 = vrot.lane.b32.xlu0 %v2096, 20
    %v2259 = vpop.permute.xlu0 %2258
    %2260 = vrot.lane.b32.xlu0 %v2097, 20
    %v2261 = vpop.permute.xlu0 %2260
    %2262 = vrot.lane.b32.xlu0 %v2098, 20
    %v2263 = vpop.permute.xlu0 %2262
    %2264 = vrot.lane.b32.xlu0 %v2099, 20
    %v2265 = vpop.permute.xlu0 %2264
    %2266 = vrot.lane.b32.xlu0 %v2100, 20
    %v2267 = vpop.permute.xlu0 %2266
    %2268 = vrot.lane.b32.xlu0 %v2101, 20
    %v2269 = vpop.permute.xlu0 %2268
    %2270 = vrot.lane.b32.xlu0 %v2102, 20
    %v2271 = vpop.permute.xlu0 %2270
    %2272 = vrot.lane.b32.xlu0 %v2103, 20
    %v2273 = vpop.permute.xlu0 %2272
    %2274 = vrot.lane.b32.xlu0 %v2104, 20
    %v2275 = vpop.permute.xlu0 %2274
    %2276 = vrot.lane.b32.xlu0 %v2105, 20
    %v2277 = vpop.permute.xlu0 %2276
    %2278 = vrot.lane.b32.xlu0 %v2106, 20
    %v2279 = vpop.permute.xlu0 %2278
    %2280 = vrot.lane.b32.xlu0 %v2107, 20
    %v2281 = vpop.permute.xlu0 %2280
    %2282 = vrot.lane.b32.xlu0 %v2108, 20
    %v2283 = vpop.permute.xlu0 %2282
    %2284 = vrot.lane.b32.xlu0 %v2109, 20
    %v2285 = vpop.permute.xlu0 %2284
    %2286 = vrot.lane.b32.xlu0 %v2110, 20
    %v2287 = vpop.permute.xlu0 %2286
    %2288 = vrot.lane.b32.xlu0 %v2111, 20
    %v2289 = vpop.permute.xlu0 %2288
    %2290 = vrot.lane.b32.xlu0 %v2112, 20
    %v2291 = vpop.permute.xlu0 %2290
    %2292 = vrot.lane.b32.xlu0 %v2113, 20
    %v2293 = vpop.permute.xlu0 %2292
    %2294 = vrot.lane.b32.xlu0 %v2114, 20
    %v2295 = vpop.permute.xlu0 %2294
    %2296 = vrot.lane.b32.xlu0 %v2115, 20
    %v2297 = vpop.permute.xlu0 %2296
    %2298 = vrot.lane.b32.xlu0 %v2116, 20
    %v2299 = vpop.permute.xlu0 %2298
    %2300 = vrot.lane.b32.xlu0 %v2117, 20
    %v2301 = vpop.permute.xlu0 %2300
    %2302 = vrot.lane.b32.xlu0 %v2118, 20
    %v2303 = vpop.permute.xlu0 %2302
    %2304 = vrot.lane.b32.xlu0 %v2119, 20
    %v2305 = vpop.permute.xlu0 %2304
    %2306 = vrot.lane.b32.xlu0 %v2120, 20
    %v2307 = vpop.permute.xlu0 %2306
    %2308 = vrot.lane.b32.xlu0 %v2121, 20
    %v2309 = vpop.permute.xlu0 %2308
    %2310 = vrot.lane.b32.xlu0 %v2122, 20
    %v2311 = vpop.permute.xlu0 %2310
    %2312 = vrot.lane.b32.xlu0 %v2123, 20
    %v2313 = vpop.permute.xlu0 %2312
    %2314 = vrot.lane.b32.xlu0 %v2124, 20
    %v2315 = vpop.permute.xlu0 %2314
    %2316 = vrot.lane.b32.xlu0 %v2125, 20
    %v2317 = vpop.permute.xlu0 %2316
    %vm2382 = vcmask 195744
    %2383 = vst.msk [vmem:[#allocation3] sm:$0xff] %vm2382, %v2191
    %2384 = vst.msk [vmem:[#allocation3 + $0x8] sm:$0xff] %vm2382, %v2193
    %2385 = vst.msk [vmem:[#allocation3 + $0x10] sm:$0xff] %vm2382, %v2195
    %2386 = vst.msk [vmem:[#allocation3 + $0x18] sm:$0xff] %vm2382, %v2197
    %2387 = vst.msk [vmem:[#allocation3 + $0x20] sm:$0xff] %vm2382, %v2199
    %2388 = vst.msk [vmem:[#allocation3 + $0x28] sm:$0xff] %vm2382, %v2201
    %2389 = vst.msk [vmem:[#allocation3 + $0x30] sm:$0xff] %vm2382, %v2203
    %2390 = vst.msk [vmem:[#allocation3 + $0x38] sm:$0xff] %vm2382, %v2205
    %2391 = vst.msk [vmem:[#allocation3 + $0x40] sm:$0xff] %vm2382, %v2207
    %2392 = vst.msk [vmem:[#allocation3 + $0x48] sm:$0xff] %vm2382, %v2209
    %2393 = vst.msk [vmem:[#allocation3 + $0x50] sm:$0xff] %vm2382, %v2211
    %2394 = vst.msk [vmem:[#allocation3 + $0x58] sm:$0xff] %vm2382, %v2213
    %2395 = vst.msk [vmem:[#allocation3 + $0x60] sm:$0xff] %vm2382, %v2215
    %2396 = vst.msk [vmem:[#allocation3 + $0x68] sm:$0xff] %vm2382, %v2217
    %2397 = vst.msk [vmem:[#allocation3 + $0x70] sm:$0xff] %vm2382, %v2219
    %2398 = vst.msk [vmem:[#allocation3 + $0x78] sm:$0xff] %vm2382, %v2221
    %2399 = vst.msk [vmem:[#allocation3 + $0x80] sm:$0xff] %vm2382, %v2223
    %2400 = vst.msk [vmem:[#allocation3 + $0x88] sm:$0xff] %vm2382, %v2225
    %2401 = vst.msk [vmem:[#allocation3 + $0x90] sm:$0xff] %vm2382, %v2227
    %2402 = vst.msk [vmem:[#allocation3 + $0x98] sm:$0xff] %vm2382, %v2229
    %2403 = vst.msk [vmem:[#allocation3 + $0xa0] sm:$0xff] %vm2382, %v2231
    %2404 = vst.msk [vmem:[#allocation3 + $0xa8] sm:$0xff] %vm2382, %v2233
    %2405 = vst.msk [vmem:[#allocation3 + $0xb0] sm:$0xff] %vm2382, %v2235
    %2406 = vst.msk [vmem:[#allocation3 + $0xb8] sm:$0xff] %vm2382, %v2237
    %2407 = vst.msk [vmem:[#allocation3 + $0xc0] sm:$0xff] %vm2382, %v2239
    %2408 = vst.msk [vmem:[#allocation3 + $0xc8] sm:$0xff] %vm2382, %v2241
    %2409 = vst.msk [vmem:[#allocation3 + $0xd0] sm:$0xff] %vm2382, %v2243
    %2410 = vst.msk [vmem:[#allocation3 + $0xd8] sm:$0xff] %vm2382, %v2245
    %2411 = vst.msk [vmem:[#allocation3 + $0xe0] sm:$0xff] %vm2382, %v2247
    %2412 = vst.msk [vmem:[#allocation3 + $0xe8] sm:$0xff] %vm2382, %v2249
    %2413 = vst.msk [vmem:[#allocation3 + $0xf0] sm:$0xff] %vm2382, %v2251
    %2414 = vst.msk [vmem:[#allocation3 + $0xf8] sm:$0xff] %vm2382, %v2253
    %2415 = vst.msk [vmem:[#allocation3 + $0x100] sm:$0xff] %vm2382, %v2255
    %2416 = vst.msk [vmem:[#allocation3 + $0x108] sm:$0xff] %vm2382, %v2257
    %2417 = vst.msk [vmem:[#allocation3 + $0x110] sm:$0xff] %vm2382, %v2259
    %2418 = vst.msk [vmem:[#allocation3 + $0x118] sm:$0xff] %vm2382, %v2261
    %2419 = vst.msk [vmem:[#allocation3 + $0x120] sm:$0xff] %vm2382, %v2263
    %2420 = vst.msk [vmem:[#allocation3 + $0x128] sm:$0xff] %vm2382, %v2265
    %2421 = vst.msk [vmem:[#allocation3 + $0x130] sm:$0xff] %vm2382, %v2267
    %2422 = vst.msk [vmem:[#allocation3 + $0x138] sm:$0xff] %vm2382, %v2269
    %2423 = vst.msk [vmem:[#allocation3 + $0x140] sm:$0xff] %vm2382, %v2271
    %2424 = vst.msk [vmem:[#allocation3 + $0x148] sm:$0xff] %vm2382, %v2273
    %2425 = vst.msk [vmem:[#allocation3 + $0x150] sm:$0xff] %vm2382, %v2275
    %2426 = vst.msk [vmem:[#allocation3 + $0x158] sm:$0xff] %vm2382, %v2277
    %2427 = vst.msk [vmem:[#allocation3 + $0x160] sm:$0xff] %vm2382, %v2279
    %2428 = vst.msk [vmem:[#allocation3 + $0x168] sm:$0xff] %vm2382, %v2281
    %2429 = vst.msk [vmem:[#allocation3 + $0x170] sm:$0xff] %vm2382, %v2283
    %2430 = vst.msk [vmem:[#allocation3 + $0x178] sm:$0xff] %vm2382, %v2285
    %2431 = vst.msk [vmem:[#allocation3 + $0x180] sm:$0xff] %vm2382, %v2287
    %2432 = vst.msk [vmem:[#allocation3 + $0x188] sm:$0xff] %vm2382, %v2289
    %2433 = vst.msk [vmem:[#allocation3 + $0x190] sm:$0xff] %vm2382, %v2291
    %2434 = vst.msk [vmem:[#allocation3 + $0x198] sm:$0xff] %vm2382, %v2293
    %2435 = vst.msk [vmem:[#allocation3 + $0x1a0] sm:$0xff] %vm2382, %v2295
    %2436 = vst.msk [vmem:[#allocation3 + $0x1a8] sm:$0xff] %vm2382, %v2297
    %2437 = vst.msk [vmem:[#allocation3 + $0x1b0] sm:$0xff] %vm2382, %v2299
    %2438 = vst.msk [vmem:[#allocation3 + $0x1b8] sm:$0xff] %vm2382, %v2301
    %2439 = vst.msk [vmem:[#allocation3 + $0x1c0] sm:$0xff] %vm2382, %v2303
    %2440 = vst.msk [vmem:[#allocation3 + $0x1c8] sm:$0xff] %vm2382, %v2305
    %2441 = vst.msk [vmem:[#allocation3 + $0x1d0] sm:$0xff] %vm2382, %v2307
    %2442 = vst.msk [vmem:[#allocation3 + $0x1d8] sm:$0xff] %vm2382, %v2309
    %2443 = vst.msk [vmem:[#allocation3 + $0x1e0] sm:$0xff] %vm2382, %v2311
    %2444 = vst.msk [vmem:[#allocation3 + $0x1e8] sm:$0xff] %vm2382, %v2313
    %2445 = vst.msk [vmem:[#allocation3 + $0x1f0] sm:$0xff] %vm2382, %v2315
    %2446 = vst.msk [vmem:[#allocation3 + $0x1f8] sm:$0xff] %vm2382, %v2317
    %s2447 = scalar_lea.vmem [#allocation2], 48
    %v2448 = vld [vmem:[%s2447] sm:$0xff]
    %v2449 = vld [vmem:[%s2447 + $0x8] sm:$0xff]
    %v2450 = vld [vmem:[%s2447 + $0x18] sm:$0xff]
    %v2451 = vld [vmem:[%s2447 + $0x20] sm:$0xff]
    %v2452 = vld [vmem:[%s2447 + $0x30] sm:$0xff]
    %v2453 = vld [vmem:[%s2447 + $0x38] sm:$0xff]
    %v2454 = vld [vmem:[%s2447 + $0x48] sm:$0xff]
    %v2455 = vld [vmem:[%s2447 + $0x50] sm:$0xff]
    %v2456 = vld [vmem:[%s2447 + $0x60] sm:$0xff]
    %v2457 = vld [vmem:[%s2447 + $0x68] sm:$0xff]
    %v2458 = vld [vmem:[%s2447 + $0x78] sm:$0xff]
    %v2459 = vld [vmem:[%s2447 + $0x80] sm:$0xff]
    %v2460 = vld [vmem:[%s2447 + $0x90] sm:$0xff]
    %v2461 = vld [vmem:[%s2447 + $0x98] sm:$0xff]
    %v2462 = vld [vmem:[%s2447 + $0xa8] sm:$0xff]
    %v2463 = vld [vmem:[%s2447 + $0xb0] sm:$0xff]
    %v2464 = vld [vmem:[%s2447 + $0xc0] sm:$0xff]
    %v2465 = vld [vmem:[%s2447 + $0xc8] sm:$0xff]
    %v2466 = vld [vmem:[%s2447 + $0xd8] sm:$0xff]
    %v2467 = vld [vmem:[%s2447 + $0xe0] sm:$0xff]
    %v2468 = vld [vmem:[%s2447 + $0xf0] sm:$0xff]
    %v2469 = vld [vmem:[%s2447 + $0xf8] sm:$0xff]
    %v2470 = vld [vmem:[%s2447 + $0x108] sm:$0xff]
    %v2471 = vld [vmem:[%s2447 + $0x110] sm:$0xff]
    %v2472 = vld [vmem:[%s2447 + $0x120] sm:$0xff]
    %v2473 = vld [vmem:[%s2447 + $0x128] sm:$0xff]
    %v2474 = vld [vmem:[%s2447 + $0x138] sm:$0xff]
    %v2475 = vld [vmem:[%s2447 + $0x140] sm:$0xff]
    %v2476 = vld [vmem:[%s2447 + $0x150] sm:$0xff]
    %v2477 = vld [vmem:[%s2447 + $0x158] sm:$0xff]
    %v2478 = vld [vmem:[%s2447 + $0x168] sm:$0xff]
    %v2479 = vld [vmem:[%s2447 + $0x170] sm:$0xff]
    %v2480 = vld [vmem:[%s2447 + $0x1b0] sm:$0xff]
    %v2481 = vld [vmem:[%s2447 + $0x1b8] sm:$0xff]
    %v2482 = vld [vmem:[%s2447 + $0x1c8] sm:$0xff]
    %v2483 = vld [vmem:[%s2447 + $0x1d0] sm:$0xff]
    %v2484 = vld [vmem:[%s2447 + $0x1e0] sm:$0xff]
    %v2485 = vld [vmem:[%s2447 + $0x1e8] sm:$0xff]
    %v2486 = vld [vmem:[%s2447 + $0x1f8] sm:$0xff]
    %v2487 = vld [vmem:[%s2447 + $0x200] sm:$0xff]
    %v2488 = vld [vmem:[%s2447 + $0x210] sm:$0xff]
    %v2489 = vld [vmem:[%s2447 + $0x218] sm:$0xff]
    %v2490 = vld [vmem:[%s2447 + $0x228] sm:$0xff]
    %v2491 = vld [vmem:[%s2447 + $0x230] sm:$0xff]
    %v2492 = vld [vmem:[%s2447 + $0x240] sm:$0xff]
    %v2493 = vld [vmem:[%s2447 + $0x248] sm:$0xff]
    %v2494 = vld [vmem:[%s2447 + $0x258] sm:$0xff]
    %v2495 = vld [vmem:[%s2447 + $0x260] sm:$0xff]
    %v2496 = vld [vmem:[%s2447 + $0x270] sm:$0xff]
    %v2497 = vld [vmem:[%s2447 + $0x278] sm:$0xff]
    %v2498 = vld [vmem:[%s2447 + $0x288] sm:$0xff]
    %v2499 = vld [vmem:[%s2447 + $0x290] sm:$0xff]
    %v2500 = vld [vmem:[%s2447 + $0x2a0] sm:$0xff]
    %v2501 = vld [vmem:[%s2447 + $0x2a8] sm:$0xff]
    %v2502 = vld [vmem:[%s2447 + $0x2b8] sm:$0xff]
    %v2503 = vld [vmem:[%s2447 + $0x2c0] sm:$0xff]
    %v2504 = vld [vmem:[%s2447 + $0x2d0] sm:$0xff]
    %v2505 = vld [vmem:[%s2447 + $0x2d8] sm:$0xff]
    %v2506 = vld [vmem:[%s2447 + $0x2e8] sm:$0xff]
    %v2507 = vld [vmem:[%s2447 + $0x2f0] sm:$0xff]
    %v2508 = vld [vmem:[%s2447 + $0x300] sm:$0xff]
    %v2509 = vld [vmem:[%s2447 + $0x308] sm:$0xff]
    %v2510 = vld [vmem:[%s2447 + $0x318] sm:$0xff]
    %v2511 = vld [vmem:[%s2447 + $0x320] sm:$0xff]
    %2576 = vrot.lane.b32.xlu0 %v2448, 24
    %v2577 = vpop.permute.xlu0 %2576
    %2578 = vrot.lane.b32.xlu0 %v2449, 24
    %v2579 = vpop.permute.xlu0 %2578
    %2580 = vrot.lane.b32.xlu0 %v2450, 24
    %v2581 = vpop.permute.xlu0 %2580
    %2582 = vrot.lane.b32.xlu0 %v2451, 24
    %v2583 = vpop.permute.xlu0 %2582
    %2584 = vrot.lane.b32.xlu0 %v2452, 24
    %v2585 = vpop.permute.xlu0 %2584
    %2586 = vrot.lane.b32.xlu0 %v2453, 24
    %v2587 = vpop.permute.xlu0 %2586
    %2588 = vrot.lane.b32.xlu0 %v2454, 24
    %v2589 = vpop.permute.xlu0 %2588
    %2590 = vrot.lane.b32.xlu0 %v2455, 24
    %v2591 = vpop.permute.xlu0 %2590
    %2592 = vrot.lane.b32.xlu0 %v2456, 24
    %v2593 = vpop.permute.xlu0 %2592
    %2594 = vrot.lane.b32.xlu0 %v2457, 24
    %v2595 = vpop.permute.xlu0 %2594
    %2596 = vrot.lane.b32.xlu0 %v2458, 24
    %v2597 = vpop.permute.xlu0 %2596
    %2598 = vrot.lane.b32.xlu0 %v2459, 24
    %v2599 = vpop.permute.xlu0 %2598
    %2600 = vrot.lane.b32.xlu0 %v2460, 24
    %v2601 = vpop.permute.xlu0 %2600
    %2602 = vrot.lane.b32.xlu0 %v2461, 24
    %v2603 = vpop.permute.xlu0 %2602
    %2604 = vrot.lane.b32.xlu0 %v2462, 24
    %v2605 = vpop.permute.xlu0 %2604
    %2606 = vrot.lane.b32.xlu0 %v2463, 24
    %v2607 = vpop.permute.xlu0 %2606
    %2608 = vrot.lane.b32.xlu0 %v2464, 24
    %v2609 = vpop.permute.xlu0 %2608
    %2610 = vrot.lane.b32.xlu0 %v2465, 24
    %v2611 = vpop.permute.xlu0 %2610
    %2612 = vrot.lane.b32.xlu0 %v2466, 24
    %v2613 = vpop.permute.xlu0 %2612
    %2614 = vrot.lane.b32.xlu0 %v2467, 24
    %v2615 = vpop.permute.xlu0 %2614
    %2616 = vrot.lane.b32.xlu0 %v2468, 24
    %v2617 = vpop.permute.xlu0 %2616
    %2618 = vrot.lane.b32.xlu0 %v2469, 24
    %v2619 = vpop.permute.xlu0 %2618
    %2620 = vrot.lane.b32.xlu0 %v2470, 24
    %v2621 = vpop.permute.xlu0 %2620
    %2622 = vrot.lane.b32.xlu0 %v2471, 24
    %v2623 = vpop.permute.xlu0 %2622
    %2624 = vrot.lane.b32.xlu0 %v2472, 24
    %v2625 = vpop.permute.xlu0 %2624
    %2626 = vrot.lane.b32.xlu0 %v2473, 24
    %v2627 = vpop.permute.xlu0 %2626
    %2628 = vrot.lane.b32.xlu0 %v2474, 24
    %v2629 = vpop.permute.xlu0 %2628
    %2630 = vrot.lane.b32.xlu0 %v2475, 24
    %v2631 = vpop.permute.xlu0 %2630
    %2632 = vrot.lane.b32.xlu0 %v2476, 24
    %v2633 = vpop.permute.xlu0 %2632
    %2634 = vrot.lane.b32.xlu0 %v2477, 24
    %v2635 = vpop.permute.xlu0 %2634
    %2636 = vrot.lane.b32.xlu0 %v2478, 24
    %v2637 = vpop.permute.xlu0 %2636
    %2638 = vrot.lane.b32.xlu0 %v2479, 24
    %v2639 = vpop.permute.xlu0 %2638
    %2640 = vrot.lane.b32.xlu0 %v2480, 24
    %v2641 = vpop.permute.xlu0 %2640
    %2642 = vrot.lane.b32.xlu0 %v2481, 24
    %v2643 = vpop.permute.xlu0 %2642
    %2644 = vrot.lane.b32.xlu0 %v2482, 24
    %v2645 = vpop.permute.xlu0 %2644
    %2646 = vrot.lane.b32.xlu0 %v2483, 24
    %v2647 = vpop.permute.xlu0 %2646
    %2648 = vrot.lane.b32.xlu0 %v2484, 24
    %v2649 = vpop.permute.xlu0 %2648
    %2650 = vrot.lane.b32.xlu0 %v2485, 24
    %v2651 = vpop.permute.xlu0 %2650
    %2652 = vrot.lane.b32.xlu0 %v2486, 24
    %v2653 = vpop.permute.xlu0 %2652
    %2654 = vrot.lane.b32.xlu0 %v2487, 24
    %v2655 = vpop.permute.xlu0 %2654
    %2656 = vrot.lane.b32.xlu0 %v2488, 24
    %v2657 = vpop.permute.xlu0 %2656
    %2658 = vrot.lane.b32.xlu0 %v2489, 24
    %v2659 = vpop.permute.xlu0 %2658
    %2660 = vrot.lane.b32.xlu0 %v2490, 24
    %v2661 = vpop.permute.xlu0 %2660
    %2662 = vrot.lane.b32.xlu0 %v2491, 24
    %v2663 = vpop.permute.xlu0 %2662
    %2664 = vrot.lane.b32.xlu0 %v2492, 24
    %v2665 = vpop.permute.xlu0 %2664
    %2666 = vrot.lane.b32.xlu0 %v2493, 24
    %v2667 = vpop.permute.xlu0 %2666
    %2668 = vrot.lane.b32.xlu0 %v2494, 24
    %v2669 = vpop.permute.xlu0 %2668
    %2670 = vrot.lane.b32.xlu0 %v2495, 24
    %v2671 = vpop.permute.xlu0 %2670
    %2672 = vrot.lane.b32.xlu0 %v2496, 24
    %v2673 = vpop.permute.xlu0 %2672
    %2674 = vrot.lane.b32.xlu0 %v2497, 24
    %v2675 = vpop.permute.xlu0 %2674
    %2676 = vrot.lane.b32.xlu0 %v2498, 24
    %v2677 = vpop.permute.xlu0 %2676
    %2678 = vrot.lane.b32.xlu0 %v2499, 24
    %v2679 = vpop.permute.xlu0 %2678
    %2680 = vrot.lane.b32.xlu0 %v2500, 24
    %v2681 = vpop.permute.xlu0 %2680
    %2682 = vrot.lane.b32.xlu0 %v2501, 24
    %v2683 = vpop.permute.xlu0 %2682
    %2684 = vrot.lane.b32.xlu0 %v2502, 24
    %v2685 = vpop.permute.xlu0 %2684
    %2686 = vrot.lane.b32.xlu0 %v2503, 24
    %v2687 = vpop.permute.xlu0 %2686
    %2688 = vrot.lane.b32.xlu0 %v2504, 24
    %v2689 = vpop.permute.xlu0 %2688
    %2690 = vrot.lane.b32.xlu0 %v2505, 24
    %v2691 = vpop.permute.xlu0 %2690
    %2692 = vrot.lane.b32.xlu0 %v2506, 24
    %v2693 = vpop.permute.xlu0 %2692
    %2694 = vrot.lane.b32.xlu0 %v2507, 24
    %v2695 = vpop.permute.xlu0 %2694
    %2696 = vrot.lane.b32.xlu0 %v2508, 24
    %v2697 = vpop.permute.xlu0 %2696
    %2698 = vrot.lane.b32.xlu0 %v2509, 24
    %v2699 = vpop.permute.xlu0 %2698
    %2700 = vrot.lane.b32.xlu0 %v2510, 24
    %v2701 = vpop.permute.xlu0 %2700
    %2702 = vrot.lane.b32.xlu0 %v2511, 24
    %v2703 = vpop.permute.xlu0 %2702
    %vm2768 = vcmask 228544
    %2769 = vst.msk [vmem:[#allocation3] sm:$0xff] %vm2768, %v2577
    %2770 = vst.msk [vmem:[#allocation3 + $0x8] sm:$0xff] %vm2768, %v2579
    %2771 = vst.msk [vmem:[#allocation3 + $0x10] sm:$0xff] %vm2768, %v2581
    %2772 = vst.msk [vmem:[#allocation3 + $0x18] sm:$0xff] %vm2768, %v2583
    %2773 = vst.msk [vmem:[#allocation3 + $0x20] sm:$0xff] %vm2768, %v2585
    %2774 = vst.msk [vmem:[#allocation3 + $0x28] sm:$0xff] %vm2768, %v2587
    %2775 = vst.msk [vmem:[#allocation3 + $0x30] sm:$0xff] %vm2768, %v2589
    %2776 = vst.msk [vmem:[#allocation3 + $0x38] sm:$0xff] %vm2768, %v2591
    %2777 = vst.msk [vmem:[#allocation3 + $0x40] sm:$0xff] %vm2768, %v2593
    %2778 = vst.msk [vmem:[#allocation3 + $0x48] sm:$0xff] %vm2768, %v2595
    %2779 = vst.msk [vmem:[#allocation3 + $0x50] sm:$0xff] %vm2768, %v2597
    %2780 = vst.msk [vmem:[#allocation3 + $0x58] sm:$0xff] %vm2768, %v2599
    %2781 = vst.msk [vmem:[#allocation3 + $0x60] sm:$0xff] %vm2768, %v2601
    %2782 = vst.msk [vmem:[#allocation3 + $0x68] sm:$0xff] %vm2768, %v2603
    %2783 = vst.msk [vmem:[#allocation3 + $0x70] sm:$0xff] %vm2768, %v2605
    %2784 = vst.msk [vmem:[#allocation3 + $0x78] sm:$0xff] %vm2768, %v2607
    %2785 = vst.msk [vmem:[#allocation3 + $0x80] sm:$0xff] %vm2768, %v2609
    %2786 = vst.msk [vmem:[#allocation3 + $0x88] sm:$0xff] %vm2768, %v2611
    %2787 = vst.msk [vmem:[#allocation3 + $0x90] sm:$0xff] %vm2768, %v2613
    %2788 = vst.msk [vmem:[#allocation3 + $0x98] sm:$0xff] %vm2768, %v2615
    %2789 = vst.msk [vmem:[#allocation3 + $0xa0] sm:$0xff] %vm2768, %v2617
    %2790 = vst.msk [vmem:[#allocation3 + $0xa8] sm:$0xff] %vm2768, %v2619
    %2791 = vst.msk [vmem:[#allocation3 + $0xb0] sm:$0xff] %vm2768, %v2621
    %2792 = vst.msk [vmem:[#allocation3 + $0xb8] sm:$0xff] %vm2768, %v2623
    %2793 = vst.msk [vmem:[#allocation3 + $0xc0] sm:$0xff] %vm2768, %v2625
    %2794 = vst.msk [vmem:[#allocation3 + $0xc8] sm:$0xff] %vm2768, %v2627
    %2795 = vst.msk [vmem:[#allocation3 + $0xd0] sm:$0xff] %vm2768, %v2629
    %2796 = vst.msk [vmem:[#allocation3 + $0xd8] sm:$0xff] %vm2768, %v2631
    %2797 = vst.msk [vmem:[#allocation3 + $0xe0] sm:$0xff] %vm2768, %v2633
    %2798 = vst.msk [vmem:[#allocation3 + $0xe8] sm:$0xff] %vm2768, %v2635
    %2799 = vst.msk [vmem:[#allocation3 + $0xf0] sm:$0xff] %vm2768, %v2637
    %2800 = vst.msk [vmem:[#allocation3 + $0xf8] sm:$0xff] %vm2768, %v2639
    %2801 = vst.msk [vmem:[#allocation3 + $0x100] sm:$0xff] %vm2768, %v2641
    %2802 = vst.msk [vmem:[#allocation3 + $0x108] sm:$0xff] %vm2768, %v2643
    %2803 = vst.msk [vmem:[#allocation3 + $0x110] sm:$0xff] %vm2768, %v2645
    %2804 = vst.msk [vmem:[#allocation3 + $0x118] sm:$0xff] %vm2768, %v2647
    %2805 = vst.msk [vmem:[#allocation3 + $0x120] sm:$0xff] %vm2768, %v2649
    %2806 = vst.msk [vmem:[#allocation3 + $0x128] sm:$0xff] %vm2768, %v2651
    %2807 = vst.msk [vmem:[#allocation3 + $0x130] sm:$0xff] %vm2768, %v2653
    %2808 = vst.msk [vmem:[#allocation3 + $0x138] sm:$0xff] %vm2768, %v2655
    %2809 = vst.msk [vmem:[#allocation3 + $0x140] sm:$0xff] %vm2768, %v2657
    %2810 = vst.msk [vmem:[#allocation3 + $0x148] sm:$0xff] %vm2768, %v2659
    %2811 = vst.msk [vmem:[#allocation3 + $0x150] sm:$0xff] %vm2768, %v2661
    %2812 = vst.msk [vmem:[#allocation3 + $0x158] sm:$0xff] %vm2768, %v2663
    %2813 = vst.msk [vmem:[#allocation3 + $0x160] sm:$0xff] %vm2768, %v2665
    %2814 = vst.msk [vmem:[#allocation3 + $0x168] sm:$0xff] %vm2768, %v2667
    %2815 = vst.msk [vmem:[#allocation3 + $0x170] sm:$0xff] %vm2768, %v2669
    %2816 = vst.msk [vmem:[#allocation3 + $0x178] sm:$0xff] %vm2768, %v2671
    %2817 = vst.msk [vmem:[#allocation3 + $0x180] sm:$0xff] %vm2768, %v2673
    %2818 = vst.msk [vmem:[#allocation3 + $0x188] sm:$0xff] %vm2768, %v2675
    %2819 = vst.msk [vmem:[#allocation3 + $0x190] sm:$0xff] %vm2768, %v2677
    %2820 = vst.msk [vmem:[#allocation3 + $0x198] sm:$0xff] %vm2768, %v2679
    %2821 = vst.msk [vmem:[#allocation3 + $0x1a0] sm:$0xff] %vm2768, %v2681
    %2822 = vst.msk [vmem:[#allocation3 + $0x1a8] sm:$0xff] %vm2768, %v2683
    %2823 = vst.msk [vmem:[#allocation3 + $0x1b0] sm:$0xff] %vm2768, %v2685
    %2824 = vst.msk [vmem:[#allocation3 + $0x1b8] sm:$0xff] %vm2768, %v2687
    %2825 = vst.msk [vmem:[#allocation3 + $0x1c0] sm:$0xff] %vm2768, %v2689
    %2826 = vst.msk [vmem:[#allocation3 + $0x1c8] sm:$0xff] %vm2768, %v2691
    %2827 = vst.msk [vmem:[#allocation3 + $0x1d0] sm:$0xff] %vm2768, %v2693
    %2828 = vst.msk [vmem:[#allocation3 + $0x1d8] sm:$0xff] %vm2768, %v2695
    %2829 = vst.msk [vmem:[#allocation3 + $0x1e0] sm:$0xff] %vm2768, %v2697
    %2830 = vst.msk [vmem:[#allocation3 + $0x1e8] sm:$0xff] %vm2768, %v2699
    %2831 = vst.msk [vmem:[#allocation3 + $0x1f0] sm:$0xff] %vm2768, %v2701
    %2832 = vst.msk [vmem:[#allocation3 + $0x1f8] sm:$0xff] %vm2768, %v2703
    %v2833 = vld [vmem:[%s2447 + $0x1] sm:$0xff]
    %v2834 = vld [vmem:[%s2447 + $0x9] sm:$0xff]
    %v2835 = vld [vmem:[%s2447 + $0x19] sm:$0xff]
    %v2836 = vld [vmem:[%s2447 + $0x21] sm:$0xff]
    %v2837 = vld [vmem:[%s2447 + $0x31] sm:$0xff]
    %v2838 = vld [vmem:[%s2447 + $0x39] sm:$0xff]
    %v2839 = vld [vmem:[%s2447 + $0x49] sm:$0xff]
    %v2840 = vld [vmem:[%s2447 + $0x51] sm:$0xff]
    %v2841 = vld [vmem:[%s2447 + $0x61] sm:$0xff]
    %v2842 = vld [vmem:[%s2447 + $0x69] sm:$0xff]
    %v2843 = vld [vmem:[%s2447 + $0x79] sm:$0xff]
    %v2844 = vld [vmem:[%s2447 + $0x81] sm:$0xff]
    %v2845 = vld [vmem:[%s2447 + $0x91] sm:$0xff]
    %v2846 = vld [vmem:[%s2447 + $0x99] sm:$0xff]
    %v2847 = vld [vmem:[%s2447 + $0xa9] sm:$0xff]
    %v2848 = vld [vmem:[%s2447 + $0xb1] sm:$0xff]
    %v2849 = vld [vmem:[%s2447 + $0xc1] sm:$0xff]
    %v2850 = vld [vmem:[%s2447 + $0xc9] sm:$0xff]
    %v2851 = vld [vmem:[%s2447 + $0xd9] sm:$0xff]
    %v2852 = vld [vmem:[%s2447 + $0xe1] sm:$0xff]
    %v2853 = vld [vmem:[%s2447 + $0xf1] sm:$0xff]
    %v2854 = vld [vmem:[%s2447 + $0xf9] sm:$0xff]
    %v2855 = vld [vmem:[%s2447 + $0x109] sm:$0xff]
    %v2856 = vld [vmem:[%s2447 + $0x111] sm:$0xff]
    %v2857 = vld [vmem:[%s2447 + $0x121] sm:$0xff]
    %v2858 = vld [vmem:[%s2447 + $0x129] sm:$0xff]
    %v2859 = vld [vmem:[%s2447 + $0x139] sm:$0xff]
    %v2860 = vld [vmem:[%s2447 + $0x141] sm:$0xff]
    %v2861 = vld [vmem:[%s2447 + $0x151] sm:$0xff]
    %v2862 = vld [vmem:[%s2447 + $0x159] sm:$0xff]
    %v2863 = vld [vmem:[%s2447 + $0x169] sm:$0xff]
    %v2864 = vld [vmem:[%s2447 + $0x171] sm:$0xff]
    %v2865 = vld [vmem:[%s2447 + $0x1b1] sm:$0xff]
    %v2866 = vld [vmem:[%s2447 + $0x1b9] sm:$0xff]
    %v2867 = vld [vmem:[%s2447 + $0x1c9] sm:$0xff]
    %v2868 = vld [vmem:[%s2447 + $0x1d1] sm:$0xff]
    %v2869 = vld [vmem:[%s2447 + $0x1e1] sm:$0xff]
    %v2870 = vld [vmem:[%s2447 + $0x1e9] sm:$0xff]
    %v2871 = vld [vmem:[%s2447 + $0x1f9] sm:$0xff]
    %v2872 = vld [vmem:[%s2447 + $0x201] sm:$0xff]
    %v2873 = vld [vmem:[%s2447 + $0x211] sm:$0xff]
    %v2874 = vld [vmem:[%s2447 + $0x219] sm:$0xff]
    %v2875 = vld [vmem:[%s2447 + $0x229] sm:$0xff]
    %v2876 = vld [vmem:[%s2447 + $0x231] sm:$0xff]
    %v2877 = vld [vmem:[%s2447 + $0x241] sm:$0xff]
    %v2878 = vld [vmem:[%s2447 + $0x249] sm:$0xff]
    %v2879 = vld [vmem:[%s2447 + $0x259] sm:$0xff]
    %v2880 = vld [vmem:[%s2447 + $0x261] sm:$0xff]
    %v2881 = vld [vmem:[%s2447 + $0x271] sm:$0xff]
    %v2882 = vld [vmem:[%s2447 + $0x279] sm:$0xff]
    %v2883 = vld [vmem:[%s2447 + $0x289] sm:$0xff]
    %v2884 = vld [vmem:[%s2447 + $0x291] sm:$0xff]
    %v2885 = vld [vmem:[%s2447 + $0x2a1] sm:$0xff]
    %v2886 = vld [vmem:[%s2447 + $0x2a9] sm:$0xff]
    %v2887 = vld [vmem:[%s2447 + $0x2b9] sm:$0xff]
    %v2888 = vld [vmem:[%s2447 + $0x2c1] sm:$0xff]
    %v2889 = vld [vmem:[%s2447 + $0x2d1] sm:$0xff]
    %v2890 = vld [vmem:[%s2447 + $0x2d9] sm:$0xff]
    %v2891 = vld [vmem:[%s2447 + $0x2e9] sm:$0xff]
    %v2892 = vld [vmem:[%s2447 + $0x2f1] sm:$0xff]
    %v2893 = vld [vmem:[%s2447 + $0x301] sm:$0xff]
    %v2894 = vld [vmem:[%s2447 + $0x309] sm:$0xff]
    %v2895 = vld [vmem:[%s2447 + $0x319] sm:$0xff]
    %v2896 = vld [vmem:[%s2447 + $0x321] sm:$0xff]
    %2961 = vrot.lane.b32.xlu0 %v2833, 28
    %v2962 = vpop.permute.xlu0 %2961
    %2963 = vrot.lane.b32.xlu0 %v2834, 28
    %v2964 = vpop.permute.xlu0 %2963
    %2965 = vrot.lane.b32.xlu0 %v2835, 28
    %v2966 = vpop.permute.xlu0 %2965
    %2967 = vrot.lane.b32.xlu0 %v2836, 28
    %v2968 = vpop.permute.xlu0 %2967
    %2969 = vrot.lane.b32.xlu0 %v2837, 28
    %v2970 = vpop.permute.xlu0 %2969
    %2971 = vrot.lane.b32.xlu0 %v2838, 28
    %v2972 = vpop.permute.xlu0 %2971
    %2973 = vrot.lane.b32.xlu0 %v2839, 28
    %v2974 = vpop.permute.xlu0 %2973
    %2975 = vrot.lane.b32.xlu0 %v2840, 28
    %v2976 = vpop.permute.xlu0 %2975
    %2977 = vrot.lane.b32.xlu0 %v2841, 28
    %v2978 = vpop.permute.xlu0 %2977
    %2979 = vrot.lane.b32.xlu0 %v2842, 28
    %v2980 = vpop.permute.xlu0 %2979
    %2981 = vrot.lane.b32.xlu0 %v2843, 28
    %v2982 = vpop.permute.xlu0 %2981
    %2983 = vrot.lane.b32.xlu0 %v2844, 28
    %v2984 = vpop.permute.xlu0 %2983
    %2985 = vrot.lane.b32.xlu0 %v2845, 28
    %v2986 = vpop.permute.xlu0 %2985
    %2987 = vrot.lane.b32.xlu0 %v2846, 28
    %v2988 = vpop.permute.xlu0 %2987
    %2989 = vrot.lane.b32.xlu0 %v2847, 28
    %v2990 = vpop.permute.xlu0 %2989
    %2991 = vrot.lane.b32.xlu0 %v2848, 28
    %v2992 = vpop.permute.xlu0 %2991
    %2993 = vrot.lane.b32.xlu0 %v2849, 28
    %v2994 = vpop.permute.xlu0 %2993
    %2995 = vrot.lane.b32.xlu0 %v2850, 28
    %v2996 = vpop.permute.xlu0 %2995
    %2997 = vrot.lane.b32.xlu0 %v2851, 28
    %v2998 = vpop.permute.xlu0 %2997
    %2999 = vrot.lane.b32.xlu0 %v2852, 28
    %v3000 = vpop.permute.xlu0 %2999
    %3001 = vrot.lane.b32.xlu0 %v2853, 28
    %v3002 = vpop.permute.xlu0 %3001
    %3003 = vrot.lane.b32.xlu0 %v2854, 28
    %v3004 = vpop.permute.xlu0 %3003
    %3005 = vrot.lane.b32.xlu0 %v2855, 28
    %v3006 = vpop.permute.xlu0 %3005
    %3007 = vrot.lane.b32.xlu0 %v2856, 28
    %v3008 = vpop.permute.xlu0 %3007
    %3009 = vrot.lane.b32.xlu0 %v2857, 28
    %v3010 = vpop.permute.xlu0 %3009
    %3011 = vrot.lane.b32.xlu0 %v2858, 28
    %v3012 = vpop.permute.xlu0 %3011
    %3013 = vrot.lane.b32.xlu0 %v2859, 28
    %v3014 = vpop.permute.xlu0 %3013
    %3015 = vrot.lane.b32.xlu0 %v2860, 28
    %v3016 = vpop.permute.xlu0 %3015
    %3017 = vrot.lane.b32.xlu0 %v2861, 28
    %v3018 = vpop.permute.xlu0 %3017
    %3019 = vrot.lane.b32.xlu0 %v2862, 28
    %v3020 = vpop.permute.xlu0 %3019
    %3021 = vrot.lane.b32.xlu0 %v2863, 28
    %v3022 = vpop.permute.xlu0 %3021
    %3023 = vrot.lane.b32.xlu0 %v2864, 28
    %v3024 = vpop.permute.xlu0 %3023
    %3025 = vrot.lane.b32.xlu0 %v2865, 28
    %v3026 = vpop.permute.xlu0 %3025
    %3027 = vrot.lane.b32.xlu0 %v2866, 28
    %v3028 = vpop.permute.xlu0 %3027
    %3029 = vrot.lane.b32.xlu0 %v2867, 28
    %v3030 = vpop.permute.xlu0 %3029
    %3031 = vrot.lane.b32.xlu0 %v2868, 28
    %v3032 = vpop.permute.xlu0 %3031
    %3033 = vrot.lane.b32.xlu0 %v2869, 28
    %v3034 = vpop.permute.xlu0 %3033
    %3035 = vrot.lane.b32.xlu0 %v2870, 28
    %v3036 = vpop.permute.xlu0 %3035
    %3037 = vrot.lane.b32.xlu0 %v2871, 28
    %v3038 = vpop.permute.xlu0 %3037
    %3039 = vrot.lane.b32.xlu0 %v2872, 28
    %v3040 = vpop.permute.xlu0 %3039
    %3041 = vrot.lane.b32.xlu0 %v2873, 28
    %v3042 = vpop.permute.xlu0 %3041
    %3043 = vrot.lane.b32.xlu0 %v2874, 28
    %v3044 = vpop.permute.xlu0 %3043
    %3045 = vrot.lane.b32.xlu0 %v2875, 28
    %v3046 = vpop.permute.xlu0 %3045
    %3047 = vrot.lane.b32.xlu0 %v2876, 28
    %v3048 = vpop.permute.xlu0 %3047
    %3049 = vrot.lane.b32.xlu0 %v2877, 28
    %v3050 = vpop.permute.xlu0 %3049
    %3051 = vrot.lane.b32.xlu0 %v2878, 28
    %v3052 = vpop.permute.xlu0 %3051
    %3053 = vrot.lane.b32.xlu0 %v2879, 28
    %v3054 = vpop.permute.xlu0 %3053
    %3055 = vrot.lane.b32.xlu0 %v2880, 28
    %v3056 = vpop.permute.xlu0 %3055
    %3057 = vrot.lane.b32.xlu0 %v2881, 28
    %v3058 = vpop.permute.xlu0 %3057
    %3059 = vrot.lane.b32.xlu0 %v2882, 28
    %v3060 = vpop.permute.xlu0 %3059
    %3061 = vrot.lane.b32.xlu0 %v2883, 28
    %v3062 = vpop.permute.xlu0 %3061
    %3063 = vrot.lane.b32.xlu0 %v2884, 28
    %v3064 = vpop.permute.xlu0 %3063
    %3065 = vrot.lane.b32.xlu0 %v2885, 28
    %v3066 = vpop.permute.xlu0 %3065
    %3067 = vrot.lane.b32.xlu0 %v2886, 28
    %v3068 = vpop.permute.xlu0 %3067
    %3069 = vrot.lane.b32.xlu0 %v2887, 28
    %v3070 = vpop.permute.xlu0 %3069
    %3071 = vrot.lane.b32.xlu0 %v2888, 28
    %v3072 = vpop.permute.xlu0 %3071
    %3073 = vrot.lane.b32.xlu0 %v2889, 28
    %v3074 = vpop.permute.xlu0 %3073
    %3075 = vrot.lane.b32.xlu0 %v2890, 28
    %v3076 = vpop.permute.xlu0 %3075
    %3077 = vrot.lane.b32.xlu0 %v2891, 28
    %v3078 = vpop.permute.xlu0 %3077
    %3079 = vrot.lane.b32.xlu0 %v2892, 28
    %v3080 = vpop.permute.xlu0 %3079
    %3081 = vrot.lane.b32.xlu0 %v2893, 28
    %v3082 = vpop.permute.xlu0 %3081
    %3083 = vrot.lane.b32.xlu0 %v2894, 28
    %v3084 = vpop.permute.xlu0 %3083
    %3085 = vrot.lane.b32.xlu0 %v2895, 28
    %v3086 = vpop.permute.xlu0 %3085
    %3087 = vrot.lane.b32.xlu0 %v2896, 28
    %v3088 = vpop.permute.xlu0 %3087
    %vm3153 = vcmask 261344
    %3154 = vst.msk [vmem:[#allocation3] sm:$0xff] %vm3153, %v2962
    %3155 = vst.msk [vmem:[#allocation3 + $0x8] sm:$0xff] %vm3153, %v2964
    %3156 = vst.msk [vmem:[#allocation3 + $0x10] sm:$0xff] %vm3153, %v2966
    %3157 = vst.msk [vmem:[#allocation3 + $0x18] sm:$0xff] %vm3153, %v2968
    %3158 = vst.msk [vmem:[#allocation3 + $0x20] sm:$0xff] %vm3153, %v2970
    %3159 = vst.msk [vmem:[#allocation3 + $0x28] sm:$0xff] %vm3153, %v2972
    %3160 = vst.msk [vmem:[#allocation3 + $0x30] sm:$0xff] %vm3153, %v2974
    %3161 = vst.msk [vmem:[#allocation3 + $0x38] sm:$0xff] %vm3153, %v2976
    %3162 = vst.msk [vmem:[#allocation3 + $0x40] sm:$0xff] %vm3153, %v2978
    %3163 = vst.msk [vmem:[#allocation3 + $0x48] sm:$0xff] %vm3153, %v2980
    %3164 = vst.msk [vmem:[#allocation3 + $0x50] sm:$0xff] %vm3153, %v2982
    %3165 = vst.msk [vmem:[#allocation3 + $0x58] sm:$0xff] %vm3153, %v2984
    %3166 = vst.msk [vmem:[#allocation3 + $0x60] sm:$0xff] %vm3153, %v2986
    %3167 = vst.msk [vmem:[#allocation3 + $0x68] sm:$0xff] %vm3153, %v2988
    %3168 = vst.msk [vmem:[#allocation3 + $0x70] sm:$0xff] %vm3153, %v2990
    %3169 = vst.msk [vmem:[#allocation3 + $0x78] sm:$0xff] %vm3153, %v2992
    %3170 = vst.msk [vmem:[#allocation3 + $0x80] sm:$0xff] %vm3153, %v2994
    %3171 = vst.msk [vmem:[#allocation3 + $0x88] sm:$0xff] %vm3153, %v2996
    %3172 = vst.msk [vmem:[#allocation3 + $0x90] sm:$0xff] %vm3153, %v2998
    %3173 = vst.msk [vmem:[#allocation3 + $0x98] sm:$0xff] %vm3153, %v3000
    %3174 = vst.msk [vmem:[#allocation3 + $0xa0] sm:$0xff] %vm3153, %v3002
    %3175 = vst.msk [vmem:[#allocation3 + $0xa8] sm:$0xff] %vm3153, %v3004
    %3176 = vst.msk [vmem:[#allocation3 + $0xb0] sm:$0xff] %vm3153, %v3006
    %3177 = vst.msk [vmem:[#allocation3 + $0xb8] sm:$0xff] %vm3153, %v3008
    %3178 = vst.msk [vmem:[#allocation3 + $0xc0] sm:$0xff] %vm3153, %v3010
    %3179 = vst.msk [vmem:[#allocation3 + $0xc8] sm:$0xff] %vm3153, %v3012
    %3180 = vst.msk [vmem:[#allocation3 + $0xd0] sm:$0xff] %vm3153, %v3014
    %3181 = vst.msk [vmem:[#allocation3 + $0xd8] sm:$0xff] %vm3153, %v3016
    %3182 = vst.msk [vmem:[#allocation3 + $0xe0] sm:$0xff] %vm3153, %v3018
    %3183 = vst.msk [vmem:[#allocation3 + $0xe8] sm:$0xff] %vm3153, %v3020
    %3184 = vst.msk [vmem:[#allocation3 + $0xf0] sm:$0xff] %vm3153, %v3022
    %3185 = vst.msk [vmem:[#allocation3 + $0xf8] sm:$0xff] %vm3153, %v3024
    %3186 = vst.msk [vmem:[#allocation3 + $0x100] sm:$0xff] %vm3153, %v3026
    %3187 = vst.msk [vmem:[#allocation3 + $0x108] sm:$0xff] %vm3153, %v3028
    %3188 = vst.msk [vmem:[#allocation3 + $0x110] sm:$0xff] %vm3153, %v3030
    %3189 = vst.msk [vmem:[#allocation3 + $0x118] sm:$0xff] %vm3153, %v3032
    %3190 = vst.msk [vmem:[#allocation3 + $0x120] sm:$0xff] %vm3153, %v3034
    %3191 = vst.msk [vmem:[#allocation3 + $0x128] sm:$0xff] %vm3153, %v3036
    %3192 = vst.msk [vmem:[#allocation3 + $0x130] sm:$0xff] %vm3153, %v3038
    %3193 = vst.msk [vmem:[#allocation3 + $0x138] sm:$0xff] %vm3153, %v3040
    %3194 = vst.msk [vmem:[#allocation3 + $0x140] sm:$0xff] %vm3153, %v3042
    %3195 = vst.msk [vmem:[#allocation3 + $0x148] sm:$0xff] %vm3153, %v3044
    %3196 = vst.msk [vmem:[#allocation3 + $0x150] sm:$0xff] %vm3153, %v3046
    %3197 = vst.msk [vmem:[#allocation3 + $0x158] sm:$0xff] %vm3153, %v3048
    %3198 = vst.msk [vmem:[#allocation3 + $0x160] sm:$0xff] %vm3153, %v3050
    %3199 = vst.msk [vmem:[#allocation3 + $0x168] sm:$0xff] %vm3153, %v3052
    %3200 = vst.msk [vmem:[#allocation3 + $0x170] sm:$0xff] %vm3153, %v3054
    %3201 = vst.msk [vmem:[#allocation3 + $0x178] sm:$0xff] %vm3153, %v3056
    %3202 = vst.msk [vmem:[#allocation3 + $0x180] sm:$0xff] %vm3153, %v3058
    %3203 = vst.msk [vmem:[#allocation3 + $0x188] sm:$0xff] %vm3153, %v3060
    %3204 = vst.msk [vmem:[#allocation3 + $0x190] sm:$0xff] %vm3153, %v3062
    %3205 = vst.msk [vmem:[#allocation3 + $0x198] sm:$0xff] %vm3153, %v3064
    %3206 = vst.msk [vmem:[#allocation3 + $0x1a0] sm:$0xff] %vm3153, %v3066
    %3207 = vst.msk [vmem:[#allocation3 + $0x1a8] sm:$0xff] %vm3153, %v3068
    %3208 = vst.msk [vmem:[#allocation3 + $0x1b0] sm:$0xff] %vm3153, %v3070
    %3209 = vst.msk [vmem:[#allocation3 + $0x1b8] sm:$0xff] %vm3153, %v3072
    %3210 = vst.msk [vmem:[#allocation3 + $0x1c0] sm:$0xff] %vm3153, %v3074
    %3211 = vst.msk [vmem:[#allocation3 + $0x1c8] sm:$0xff] %vm3153, %v3076
    %3212 = vst.msk [vmem:[#allocation3 + $0x1d0] sm:$0xff] %vm3153, %v3078
    %3213 = vst.msk [vmem:[#allocation3 + $0x1d8] sm:$0xff] %vm3153, %v3080
    %3214 = vst.msk [vmem:[#allocation3 + $0x1e0] sm:$0xff] %vm3153, %v3082
    %3215 = vst.msk [vmem:[#allocation3 + $0x1e8] sm:$0xff] %vm3153, %v3084
    %3216 = vst.msk [vmem:[#allocation3 + $0x1f0] sm:$0xff] %vm3153, %v3086
    %3217 = vst.msk [vmem:[#allocation3 + $0x1f8] sm:$0xff] %vm3153, %v3088
    %v3218 = vld [vmem:[%s2447 + $0x2] sm:$0xff]
    %v3219 = vld [vmem:[%s2447 + $0xa] sm:$0xff]
    %v3220 = vld [vmem:[%s2447 + $0x1a] sm:$0xff]
    %v3221 = vld [vmem:[%s2447 + $0x22] sm:$0xff]
    %v3222 = vld [vmem:[%s2447 + $0x32] sm:$0xff]
    %v3223 = vld [vmem:[%s2447 + $0x3a] sm:$0xff]
    %v3224 = vld [vmem:[%s2447 + $0x4a] sm:$0xff]
    %v3225 = vld [vmem:[%s2447 + $0x52] sm:$0xff]
    %v3226 = vld [vmem:[%s2447 + $0x62] sm:$0xff]
    %v3227 = vld [vmem:[%s2447 + $0x6a] sm:$0xff]
    %v3228 = vld [vmem:[%s2447 + $0x7a] sm:$0xff]
    %v3229 = vld [vmem:[%s2447 + $0x82] sm:$0xff]
    %v3230 = vld [vmem:[%s2447 + $0x92] sm:$0xff]
    %v3231 = vld [vmem:[%s2447 + $0x9a] sm:$0xff]
    %v3232 = vld [vmem:[%s2447 + $0xaa] sm:$0xff]
    %v3233 = vld [vmem:[%s2447 + $0xb2] sm:$0xff]
    %v3234 = vld [vmem:[%s2447 + $0xc2] sm:$0xff]
    %v3235 = vld [vmem:[%s2447 + $0xca] sm:$0xff]
    %v3236 = vld [vmem:[%s2447 + $0xda] sm:$0xff]
    %v3237 = vld [vmem:[%s2447 + $0xe2] sm:$0xff]
    %v3238 = vld [vmem:[%s2447 + $0xf2] sm:$0xff]
    %v3239 = vld [vmem:[%s2447 + $0xfa] sm:$0xff]
    %v3240 = vld [vmem:[%s2447 + $0x10a] sm:$0xff]
    %v3241 = vld [vmem:[%s2447 + $0x112] sm:$0xff]
    %v3242 = vld [vmem:[%s2447 + $0x122] sm:$0xff]
    %v3243 = vld [vmem:[%s2447 + $0x12a] sm:$0xff]
    %v3244 = vld [vmem:[%s2447 + $0x13a] sm:$0xff]
    %v3245 = vld [vmem:[%s2447 + $0x142] sm:$0xff]
    %v3246 = vld [vmem:[%s2447 + $0x152] sm:$0xff]
    %v3247 = vld [vmem:[%s2447 + $0x15a] sm:$0xff]
    %v3248 = vld [vmem:[%s2447 + $0x16a] sm:$0xff]
    %v3249 = vld [vmem:[%s2447 + $0x172] sm:$0xff]
    %v3250 = vld [vmem:[%s2447 + $0x1b2] sm:$0xff]
    %v3251 = vld [vmem:[%s2447 + $0x1ba] sm:$0xff]
    %v3252 = vld [vmem:[%s2447 + $0x1ca] sm:$0xff]
    %v3253 = vld [vmem:[%s2447 + $0x1d2] sm:$0xff]
    %v3254 = vld [vmem:[%s2447 + $0x1e2] sm:$0xff]
    %v3255 = vld [vmem:[%s2447 + $0x1ea] sm:$0xff]
    %v3256 = vld [vmem:[%s2447 + $0x1fa] sm:$0xff]
    %v3257 = vld [vmem:[%s2447 + $0x202] sm:$0xff]
    %v3258 = vld [vmem:[%s2447 + $0x212] sm:$0xff]
    %v3259 = vld [vmem:[%s2447 + $0x21a] sm:$0xff]
    %v3260 = vld [vmem:[%s2447 + $0x22a] sm:$0xff]
    %v3261 = vld [vmem:[%s2447 + $0x232] sm:$0xff]
    %v3262 = vld [vmem:[%s2447 + $0x242] sm:$0xff]
    %v3263 = vld [vmem:[%s2447 + $0x24a] sm:$0xff]
    %v3264 = vld [vmem:[%s2447 + $0x25a] sm:$0xff]
    %v3265 = vld [vmem:[%s2447 + $0x262] sm:$0xff]
    %v3266 = vld [vmem:[%s2447 + $0x272] sm:$0xff]
    %v3267 = vld [vmem:[%s2447 + $0x27a] sm:$0xff]
    %v3268 = vld [vmem:[%s2447 + $0x28a] sm:$0xff]
    %v3269 = vld [vmem:[%s2447 + $0x292] sm:$0xff]
    %v3270 = vld [vmem:[%s2447 + $0x2a2] sm:$0xff]
    %v3271 = vld [vmem:[%s2447 + $0x2aa] sm:$0xff]
    %v3272 = vld [vmem:[%s2447 + $0x2ba] sm:$0xff]
    %v3273 = vld [vmem:[%s2447 + $0x2c2] sm:$0xff]
    %v3274 = vld [vmem:[%s2447 + $0x2d2] sm:$0xff]
    %v3275 = vld [vmem:[%s2447 + $0x2da] sm:$0xff]
    %v3276 = vld [vmem:[%s2447 + $0x2ea] sm:$0xff]
    %v3277 = vld [vmem:[%s2447 + $0x2f2] sm:$0xff]
    %v3278 = vld [vmem:[%s2447 + $0x302] sm:$0xff]
    %v3279 = vld [vmem:[%s2447 + $0x30a] sm:$0xff]
    %v3280 = vld [vmem:[%s2447 + $0x31a] sm:$0xff]
    %v3281 = vld [vmem:[%s2447 + $0x322] sm:$0xff]
    %3346 = vrot.lane.b32.xlu0 %v3218, 32
    %v3347 = vpop.permute.xlu0 %3346
    %3348 = vrot.lane.b32.xlu0 %v3219, 32
    %v3349 = vpop.permute.xlu0 %3348
    %3350 = vrot.lane.b32.xlu0 %v3220, 32
    %v3351 = vpop.permute.xlu0 %3350
    %3352 = vrot.lane.b32.xlu0 %v3221, 32
    %v3353 = vpop.permute.xlu0 %3352
    %3354 = vrot.lane.b32.xlu0 %v3222, 32
    %v3355 = vpop.permute.xlu0 %3354
    %3356 = vrot.lane.b32.xlu0 %v3223, 32
    %v3357 = vpop.permute.xlu0 %3356
    %3358 = vrot.lane.b32.xlu0 %v3224, 32
    %v3359 = vpop.permute.xlu0 %3358
    %3360 = vrot.lane.b32.xlu0 %v3225, 32
    %v3361 = vpop.permute.xlu0 %3360
    %3362 = vrot.lane.b32.xlu0 %v3226, 32
    %v3363 = vpop.permute.xlu0 %3362
    %3364 = vrot.lane.b32.xlu0 %v3227, 32
    %v3365 = vpop.permute.xlu0 %3364
    %3366 = vrot.lane.b32.xlu0 %v3228, 32
    %v3367 = vpop.permute.xlu0 %3366
    %3368 = vrot.lane.b32.xlu0 %v3229, 32
    %v3369 = vpop.permute.xlu0 %3368
    %3370 = vrot.lane.b32.xlu0 %v3230, 32
    %v3371 = vpop.permute.xlu0 %3370
    %3372 = vrot.lane.b32.xlu0 %v3231, 32
    %v3373 = vpop.permute.xlu0 %3372
    %3374 = vrot.lane.b32.xlu0 %v3232, 32
    %v3375 = vpop.permute.xlu0 %3374
    %3376 = vrot.lane.b32.xlu0 %v3233, 32
    %v3377 = vpop.permute.xlu0 %3376
    %3378 = vrot.lane.b32.xlu0 %v3234, 32
    %v3379 = vpop.permute.xlu0 %3378
    %3380 = vrot.lane.b32.xlu0 %v3235, 32
    %v3381 = vpop.permute.xlu0 %3380
    %3382 = vrot.lane.b32.xlu0 %v3236, 32
    %v3383 = vpop.permute.xlu0 %3382
    %3384 = vrot.lane.b32.xlu0 %v3237, 32
    %v3385 = vpop.permute.xlu0 %3384
    %3386 = vrot.lane.b32.xlu0 %v3238, 32
    %v3387 = vpop.permute.xlu0 %3386
    %3388 = vrot.lane.b32.xlu0 %v3239, 32
    %v3389 = vpop.permute.xlu0 %3388
    %3390 = vrot.lane.b32.xlu0 %v3240, 32
    %v3391 = vpop.permute.xlu0 %3390
    %3392 = vrot.lane.b32.xlu0 %v3241, 32
    %v3393 = vpop.permute.xlu0 %3392
    %3394 = vrot.lane.b32.xlu0 %v3242, 32
    %v3395 = vpop.permute.xlu0 %3394
    %3396 = vrot.lane.b32.xlu0 %v3243, 32
    %v3397 = vpop.permute.xlu0 %3396
    %3398 = vrot.lane.b32.xlu0 %v3244, 32
    %v3399 = vpop.permute.xlu0 %3398
    %3400 = vrot.lane.b32.xlu0 %v3245, 32
    %v3401 = vpop.permute.xlu0 %3400
    %3402 = vrot.lane.b32.xlu0 %v3246, 32
    %v3403 = vpop.permute.xlu0 %3402
    %3404 = vrot.lane.b32.xlu0 %v3247, 32
    %v3405 = vpop.permute.xlu0 %3404
    %3406 = vrot.lane.b32.xlu0 %v3248, 32
    %v3407 = vpop.permute.xlu0 %3406
    %3408 = vrot.lane.b32.xlu0 %v3249, 32
    %v3409 = vpop.permute.xlu0 %3408
    %3410 = vrot.lane.b32.xlu0 %v3250, 32
    %v3411 = vpop.permute.xlu0 %3410
    %3412 = vrot.lane.b32.xlu0 %v3251, 32
    %v3413 = vpop.permute.xlu0 %3412
    %3414 = vrot.lane.b32.xlu0 %v3252, 32
    %v3415 = vpop.permute.xlu0 %3414
    %3416 = vrot.lane.b32.xlu0 %v3253, 32
    %v3417 = vpop.permute.xlu0 %3416
    %3418 = vrot.lane.b32.xlu0 %v3254, 32
    %v3419 = vpop.permute.xlu0 %3418
    %3420 = vrot.lane.b32.xlu0 %v3255, 32
    %v3421 = vpop.permute.xlu0 %3420
    %3422 = vrot.lane.b32.xlu0 %v3256, 32
    %v3423 = vpop.permute.xlu0 %3422
    %3424 = vrot.lane.b32.xlu0 %v3257, 32
    %v3425 = vpop.permute.xlu0 %3424
    %3426 = vrot.lane.b32.xlu0 %v3258, 32
    %v3427 = vpop.permute.xlu0 %3426
    %3428 = vrot.lane.b32.xlu0 %v3259, 32
    %v3429 = vpop.permute.xlu0 %3428
    %3430 = vrot.lane.b32.xlu0 %v3260, 32
    %v3431 = vpop.permute.xlu0 %3430
    %3432 = vrot.lane.b32.xlu0 %v3261, 32
    %v3433 = vpop.permute.xlu0 %3432
    %3434 = vrot.lane.b32.xlu0 %v3262, 32
    %v3435 = vpop.permute.xlu0 %3434
    %3436 = vrot.lane.b32.xlu0 %v3263, 32
    %v3437 = vpop.permute.xlu0 %3436
    %3438 = vrot.lane.b32.xlu0 %v3264, 32
    %v3439 = vpop.permute.xlu0 %3438
    %3440 = vrot.lane.b32.xlu0 %v3265, 32
    %v3441 = vpop.permute.xlu0 %3440
    %3442 = vrot.lane.b32.xlu0 %v3266, 32
    %v3443 = vpop.permute.xlu0 %3442
    %3444 = vrot.lane.b32.xlu0 %v3267, 32
    %v3445 = vpop.permute.xlu0 %3444
    %3446 = vrot.lane.b32.xlu0 %v3268, 32
    %v3447 = vpop.permute.xlu0 %3446
    %3448 = vrot.lane.b32.xlu0 %v3269, 32
    %v3449 = vpop.permute.xlu0 %3448
    %3450 = vrot.lane.b32.xlu0 %v3270, 32
    %v3451 = vpop.permute.xlu0 %3450
    %3452 = vrot.lane.b32.xlu0 %v3271, 32
    %v3453 = vpop.permute.xlu0 %3452
    %3454 = vrot.lane.b32.xlu0 %v3272, 32
    %v3455 = vpop.permute.xlu0 %3454
    %3456 = vrot.lane.b32.xlu0 %v3273, 32
    %v3457 = vpop.permute.xlu0 %3456
    %3458 = vrot.lane.b32.xlu0 %v3274, 32
    %v3459 = vpop.permute.xlu0 %3458
    %3460 = vrot.lane.b32.xlu0 %v3275, 32
    %v3461 = vpop.permute.xlu0 %3460
    %3462 = vrot.lane.b32.xlu0 %v3276, 32
    %v3463 = vpop.permute.xlu0 %3462
    %3464 = vrot.lane.b32.xlu0 %v3277, 32
    %v3465 = vpop.permute.xlu0 %3464
    %3466 = vrot.lane.b32.xlu0 %v3278, 32
    %v3467 = vpop.permute.xlu0 %3466
    %3468 = vrot.lane.b32.xlu0 %v3279, 32
    %v3469 = vpop.permute.xlu0 %3468
    %3470 = vrot.lane.b32.xlu0 %v3280, 32
    %v3471 = vpop.permute.xlu0 %3470
    %3472 = vrot.lane.b32.xlu0 %v3281, 32
    %v3473 = vpop.permute.xlu0 %3472
    %vm3538 = vcmask 294144
    %3539 = vst.msk [vmem:[#allocation3] sm:$0xff] %vm3538, %v3347
    %3540 = vst.msk [vmem:[#allocation3 + $0x8] sm:$0xff] %vm3538, %v3349
    %3541 = vst.msk [vmem:[#allocation3 + $0x10] sm:$0xff] %vm3538, %v3351
    %3542 = vst.msk [vmem:[#allocation3 + $0x18] sm:$0xff] %vm3538, %v3353
    %3543 = vst.msk [vmem:[#allocation3 + $0x20] sm:$0xff] %vm3538, %v3355
    %3544 = vst.msk [vmem:[#allocation3 + $0x28] sm:$0xff] %vm3538, %v3357
    %3545 = vst.msk [vmem:[#allocation3 + $0x30] sm:$0xff] %vm3538, %v3359
    %3546 = vst.msk [vmem:[#allocation3 + $0x38] sm:$0xff] %vm3538, %v3361
    %3547 = vst.msk [vmem:[#allocation3 + $0x40] sm:$0xff] %vm3538, %v3363
    %3548 = vst.msk [vmem:[#allocation3 + $0x48] sm:$0xff] %vm3538, %v3365
    %3549 = vst.msk [vmem:[#allocation3 + $0x50] sm:$0xff] %vm3538, %v3367
    %3550 = vst.msk [vmem:[#allocation3 + $0x58] sm:$0xff] %vm3538, %v3369
    %3551 = vst.msk [vmem:[#allocation3 + $0x60] sm:$0xff] %vm3538, %v3371
    %3552 = vst.msk [vmem:[#allocation3 + $0x68] sm:$0xff] %vm3538, %v3373
    %3553 = vst.msk [vmem:[#allocation3 + $0x70] sm:$0xff] %vm3538, %v3375
    %3554 = vst.msk [vmem:[#allocation3 + $0x78] sm:$0xff] %vm3538, %v3377
    %3555 = vst.msk [vmem:[#allocation3 + $0x80] sm:$0xff] %vm3538, %v3379
    %3556 = vst.msk [vmem:[#allocation3 + $0x88] sm:$0xff] %vm3538, %v3381
    %3557 = vst.msk [vmem:[#allocation3 + $0x90] sm:$0xff] %vm3538, %v3383
    %3558 = vst.msk [vmem:[#allocation3 + $0x98] sm:$0xff] %vm3538, %v3385
    %3559 = vst.msk [vmem:[#allocation3 + $0xa0] sm:$0xff] %vm3538, %v3387
    %3560 = vst.msk [vmem:[#allocation3 + $0xa8] sm:$0xff] %vm3538, %v3389
    %3561 = vst.msk [vmem:[#allocation3 + $0xb0] sm:$0xff] %vm3538, %v3391
    %3562 = vst.msk [vmem:[#allocation3 + $0xb8] sm:$0xff] %vm3538, %v3393
    %3563 = vst.msk [vmem:[#allocation3 + $0xc0] sm:$0xff] %vm3538, %v3395
    %3564 = vst.msk [vmem:[#allocation3 + $0xc8] sm:$0xff] %vm3538, %v3397
    %3565 = vst.msk [vmem:[#allocation3 + $0xd0] sm:$0xff] %vm3538, %v3399
    %3566 = vst.msk [vmem:[#allocation3 + $0xd8] sm:$0xff] %vm3538, %v3401
    %3567 = vst.msk [vmem:[#allocation3 + $0xe0] sm:$0xff] %vm3538, %v3403
    %3568 = vst.msk [vmem:[#allocation3 + $0xe8] sm:$0xff] %vm3538, %v3405
    %3569 = vst.msk [vmem:[#allocation3 + $0xf0] sm:$0xff] %vm3538, %v3407
    %3570 = vst.msk [vmem:[#allocation3 + $0xf8] sm:$0xff] %vm3538, %v3409
    %3571 = vst.msk [vmem:[#allocation3 + $0x100] sm:$0xff] %vm3538, %v3411
    %3572 = vst.msk [vmem:[#allocation3 + $0x108] sm:$0xff] %vm3538, %v3413
    %3573 = vst.msk [vmem:[#allocation3 + $0x110] sm:$0xff] %vm3538, %v3415
    %3574 = vst.msk [vmem:[#allocation3 + $0x118] sm:$0xff] %vm3538, %v3417
    %3575 = vst.msk [vmem:[#allocation3 + $0x120] sm:$0xff] %vm3538, %v3419
    %3576 = vst.msk [vmem:[#allocation3 + $0x128] sm:$0xff] %vm3538, %v3421
    %3577 = vst.msk [vmem:[#allocation3 + $0x130] sm:$0xff] %vm3538, %v3423
    %3578 = vst.msk [vmem:[#allocation3 + $0x138] sm:$0xff] %vm3538, %v3425
    %3579 = vst.msk [vmem:[#allocation3 + $0x140] sm:$0xff] %vm3538, %v3427
    %3580 = vst.msk [vmem:[#allocation3 + $0x148] sm:$0xff] %vm3538, %v3429
    %3581 = vst.msk [vmem:[#allocation3 + $0x150] sm:$0xff] %vm3538, %v3431
    %3582 = vst.msk [vmem:[#allocation3 + $0x158] sm:$0xff] %vm3538, %v3433
    %3583 = vst.msk [vmem:[#allocation3 + $0x160] sm:$0xff] %vm3538, %v3435
    %3584 = vst.msk [vmem:[#allocation3 + $0x168] sm:$0xff] %vm3538, %v3437
    %3585 = vst.msk [vmem:[#allocation3 + $0x170] sm:$0xff] %vm3538, %v3439
    %3586 = vst.msk [vmem:[#allocation3 + $0x178] sm:$0xff] %vm3538, %v3441
    %3587 = vst.msk [vmem:[#allocation3 + $0x180] sm:$0xff] %vm3538, %v3443
    %3588 = vst.msk [vmem:[#allocation3 + $0x188] sm:$0xff] %vm3538, %v3445
    %3589 = vst.msk [vmem:[#allocation3 + $0x190] sm:$0xff] %vm3538, %v3447
    %3590 = vst.msk [vmem:[#allocation3 + $0x198] sm:$0xff] %vm3538, %v3449
    %3591 = vst.msk [vmem:[#allocation3 + $0x1a0] sm:$0xff] %vm3538, %v3451
    %3592 = vst.msk [vmem:[#allocation3 + $0x1a8] sm:$0xff] %vm3538, %v3453
    %3593 = vst.msk [vmem:[#allocation3 + $0x1b0] sm:$0xff] %vm3538, %v3455
    %3594 = vst.msk [vmem:[#allocation3 + $0x1b8] sm:$0xff] %vm3538, %v3457
    %3595 = vst.msk [vmem:[#allocation3 + $0x1c0] sm:$0xff] %vm3538, %v3459
    %3596 = vst.msk [vmem:[#allocation3 + $0x1c8] sm:$0xff] %vm3538, %v3461
    %3597 = vst.msk [vmem:[#allocation3 + $0x1d0] sm:$0xff] %vm3538, %v3463
    %3598 = vst.msk [vmem:[#allocation3 + $0x1d8] sm:$0xff] %vm3538, %v3465
    %3599 = vst.msk [vmem:[#allocation3 + $0x1e0] sm:$0xff] %vm3538, %v3467
    %3600 = vst.msk [vmem:[#allocation3 + $0x1e8] sm:$0xff] %vm3538, %v3469
    %3601 = vst.msk [vmem:[#allocation3 + $0x1f0] sm:$0xff] %vm3538, %v3471
    %3602 = vst.msk [vmem:[#allocation3 + $0x1f8] sm:$0xff] %vm3538, %v3473
    %v3603 = vld [vmem:[#allocation3] sm:$0xff]
    %v3604 = vld [vmem:[#allocation3 + $0x8] sm:$0xff]
    %v3605 = vld [vmem:[#allocation3 + $0x10] sm:$0xff]
    %v3606 = vld [vmem:[#allocation3 + $0x18] sm:$0xff]
    %v3607 = vld [vmem:[#allocation3 + $0x20] sm:$0xff]
    %v3608 = vld [vmem:[#allocation3 + $0x28] sm:$0xff]
    %v3609 = vld [vmem:[#allocation3 + $0x30] sm:$0xff]
    %v3610 = vld [vmem:[#allocation3 + $0x38] sm:$0xff]
    %v3611 = vld [vmem:[#allocation3 + $0x40] sm:$0xff]
    %v3612 = vld [vmem:[#allocation3 + $0x48] sm:$0xff]
    %v3613 = vld [vmem:[#allocation3 + $0x50] sm:$0xff]
    %v3614 = vld [vmem:[#allocation3 + $0x58] sm:$0xff]
    %v3615 = vld [vmem:[#allocation3 + $0x60] sm:$0xff]
    %v3616 = vld [vmem:[#allocation3 + $0x68] sm:$0xff]
    %v3617 = vld [vmem:[#allocation3 + $0x70] sm:$0xff]
    %v3618 = vld [vmem:[#allocation3 + $0x78] sm:$0xff]
    %v3619 = vld [vmem:[#allocation3 + $0x80] sm:$0xff]
    %v3620 = vld [vmem:[#allocation3 + $0x88] sm:$0xff]
    %v3621 = vld [vmem:[#allocation3 + $0x90] sm:$0xff]
    %v3622 = vld [vmem:[#allocation3 + $0x98] sm:$0xff]
    %v3623 = vld [vmem:[#allocation3 + $0xa0] sm:$0xff]
    %v3624 = vld [vmem:[#allocation3 + $0xa8] sm:$0xff]
    %v3625 = vld [vmem:[#allocation3 + $0xb0] sm:$0xff]
    %v3626 = vld [vmem:[#allocation3 + $0xb8] sm:$0xff]
    %v3627 = vld [vmem:[#allocation3 + $0xc0] sm:$0xff]
    %v3628 = vld [vmem:[#allocation3 + $0xc8] sm:$0xff]
    %v3629 = vld [vmem:[#allocation3 + $0xd0] sm:$0xff]
    %v3630 = vld [vmem:[#allocation3 + $0xd8] sm:$0xff]
    %v3631 = vld [vmem:[#allocation3 + $0xe0] sm:$0xff]
    %v3632 = vld [vmem:[#allocation3 + $0xe8] sm:$0xff]
    %v3633 = vld [vmem:[#allocation3 + $0xf0] sm:$0xff]
    %v3634 = vld [vmem:[#allocation3 + $0xf8] sm:$0xff]
    %v3635 = vld [vmem:[#allocation3 + $0x100] sm:$0xff]
    %v3636 = vld [vmem:[#allocation3 + $0x108] sm:$0xff]
    %v3637 = vld [vmem:[#allocation3 + $0x110] sm:$0xff]
    %v3638 = vld [vmem:[#allocation3 + $0x118] sm:$0xff]
    %v3639 = vld [vmem:[#allocation3 + $0x120] sm:$0xff]
    %v3640 = vld [vmem:[#allocation3 + $0x128] sm:$0xff]
    %v3641 = vld [vmem:[#allocation3 + $0x130] sm:$0xff]
    %v3642 = vld [vmem:[#allocation3 + $0x138] sm:$0xff]
    %v3643 = vld [vmem:[#allocation3 + $0x140] sm:$0xff]
    %v3644 = vld [vmem:[#allocation3 + $0x148] sm:$0xff]
    %v3645 = vld [vmem:[#allocation3 + $0x150] sm:$0xff]
    %v3646 = vld [vmem:[#allocation3 + $0x158] sm:$0xff]
    %v3647 = vld [vmem:[#allocation3 + $0x160] sm:$0xff]
    %v3648 = vld [vmem:[#allocation3 + $0x168] sm:$0xff]
    %v3649 = vld [vmem:[#allocation3 + $0x170] sm:$0xff]
    %v3650 = vld [vmem:[#allocation3 + $0x178] sm:$0xff]
    %v3651 = vld [vmem:[#allocation3 + $0x180] sm:$0xff]
    %v3652 = vld [vmem:[#allocation3 + $0x188] sm:$0xff]
    %v3653 = vld [vmem:[#allocation3 + $0x190] sm:$0xff]
    %v3654 = vld [vmem:[#allocation3 + $0x198] sm:$0xff]
    %v3655 = vld [vmem:[#allocation3 + $0x1a0] sm:$0xff]
    %v3656 = vld [vmem:[#allocation3 + $0x1a8] sm:$0xff]
    %v3657 = vld [vmem:[#allocation3 + $0x1b0] sm:$0xff]
    %v3658 = vld [vmem:[#allocation3 + $0x1b8] sm:$0xff]
    %v3659 = vld [vmem:[#allocation3 + $0x1c0] sm:$0xff]
    %v3660 = vld [vmem:[#allocation3 + $0x1c8] sm:$0xff]
    %v3661 = vld [vmem:[#allocation3 + $0x1d0] sm:$0xff]
    %v3662 = vld [vmem:[#allocation3 + $0x1d8] sm:$0xff]
    %v3663 = vld [vmem:[#allocation3 + $0x1e0] sm:$0xff]
    %v3664 = vld [vmem:[#allocation3 + $0x1e8] sm:$0xff]
    %v3665 = vld [vmem:[#allocation3 + $0x1f0] sm:$0xff]
    %v3666 = vld [vmem:[#allocation3 + $0x1f8] sm:$0xff]
    %v3667 = vld [vmem:[%s1] sm:$0xff]
    %v3668 = vld [vmem:[%s1 + $0x8] sm:$0xff]
    %v3669 = vld [vmem:[%s1 + $0x10] sm:$0xff]
    %v3670 = vld [vmem:[%s1 + $0x18] sm:$0xff]
    %v3671 = vld [vmem:[%s1 + $0x20] sm:$0xf]
    %v3672 = vld [vmem:[%s2] sm:$0x1]
    %v3674 = vlaneseq
    %v3675 = vshrl.u32 %v3674, 7
    %v3676 = vsub.s32 0, %v3675
    %v3677 = vrot.slane %v3672, %v3676
    %vm3679 = vcmask 293888
    %v3681 = vsel %vm3679, %v3603, 0
    %v3684 = vsel %vm3679, %v3604, 0
    %v3687 = vsel %vm3679, %v3605, 0
    %v3690 = vsel %vm3679, %v3606, 0
    %v3693 = vsel %vm3679, %v3607, 0
    %v3696 = vsel %vm3679, %v3608, 0
    %v3699 = vsel %vm3679, %v3609, 0
    %v3702 = vsel %vm3679, %v3610, 0
    %v3705 = vsel %vm3679, %v3611, 0
    %v3708 = vsel %vm3679, %v3612, 0
    %v3711 = vsel %vm3679, %v3613, 0
    %v3714 = vsel %vm3679, %v3614, 0
    %v3717 = vsel %vm3679, %v3615, 0
    %v3720 = vsel %vm3679, %v3616, 0
    %v3723 = vsel %vm3679, %v3617, 0
    %v3726 = vsel %vm3679, %v3618, 0
    %v3729 = vsel %vm3679, %v3619, 0
    %v3732 = vsel %vm3679, %v3620, 0
    %v3735 = vsel %vm3679, %v3621, 0
    %v3738 = vsel %vm3679, %v3622, 0
    %v3741 = vsel %vm3679, %v3623, 0
    %v3744 = vsel %vm3679, %v3624, 0
    %v3747 = vsel %vm3679, %v3625, 0
    %v3750 = vsel %vm3679, %v3626, 0
    %v3753 = vsel %vm3679, %v3627, 0
    %v3756 = vsel %vm3679, %v3628, 0
    %v3759 = vsel %vm3679, %v3629, 0
    %v3762 = vsel %vm3679, %v3630, 0
    %v3765 = vsel %vm3679, %v3631, 0
    %v3768 = vsel %vm3679, %v3632, 0
    %v3771 = vsel %vm3679, %v3633, 0
    %v3774 = vsel %vm3679, %v3634, 0
    %v3777 = vsel %vm3679, %v3635, 0
    %v3780 = vsel %vm3679, %v3636, 0
    %v3783 = vsel %vm3679, %v3637, 0
    %v3786 = vsel %vm3679, %v3638, 0
    %v3789 = vsel %vm3679, %v3639, 0
    %v3792 = vsel %vm3679, %v3640, 0
    %v3795 = vsel %vm3679, %v3641, 0
    %v3798 = vsel %vm3679, %v3642, 0
    %v3801 = vsel %vm3679, %v3643, 0
    %v3804 = vsel %vm3679, %v3644, 0
    %v3807 = vsel %vm3679, %v3645, 0
    %v3810 = vsel %vm3679, %v3646, 0
    %v3813 = vsel %vm3679, %v3647, 0
    %v3816 = vsel %vm3679, %v3648, 0
    %v3819 = vsel %vm3679, %v3649, 0
    %v3822 = vsel %vm3679, %v3650, 0
    %v3825 = vsel %vm3679, %v3651, 0
    %v3828 = vsel %vm3679, %v3652, 0
    %v3831 = vsel %vm3679, %v3653, 0
    %v3834 = vsel %vm3679, %v3654, 0
    %v3837 = vsel %vm3679, %v3655, 0
    %v3840 = vsel %vm3679, %v3656, 0
    %v3843 = vsel %vm3679, %v3657, 0
    %v3846 = vsel %vm3679, %v3658, 0
    %v3849 = vsel %vm3679, %v3659, 0
    %v3852 = vsel %vm3679, %v3660, 0
    %v3855 = vsel %vm3679, %v3661, 0
    %v3858 = vsel %vm3679, %v3662, 0
    %v3861 = vsel %vm3679, %v3663, 0
    %v3864 = vsel %vm3679, %v3664, 0
    %v3867 = vsel %vm3679, %v3665, 0
    %v3870 = vsel %vm3679, %v3666, 0
    %vm3872 = vcmask 1043456
    %v3874 = vsel %vm3872, %v3671, 0
    %3876 = vmatprep.subr.mxu0 0.0
    %3877 = vmatpush1.msra.mxu0 %v3667
    %3878 = vmatprep.subr.mxu0 0.0
    %3879 = vmatpush1.msra.mxu0 %v3668
    %3880 = vmatprep.subr.mxu0 0.0
    %3881 = vmatpush1.msra.mxu0 %v3669
    %3882 = vmatprep.subr.mxu0 0.0
    %3883 = vmatpush1.msra.mxu0 %v3670
    %3884 = vmatprep.subr.mxu0 0.0
    %3885 = vmatpush1.msra.mxu0 %v3874
    %3886 = vmatprep.subr.mxu0 0.0
    %3887 = vmatpush1.msra.mxu0 0.0
    %3888 = vmatprep.subr.mxu0 0.0
    %3889 = vmatpush1.msra.mxu0 0.0
    %3890 = vmatprep.subr.mxu0 0.0
    %3891 = vmatpush1.msra.mxu0 0.0
    %3892 = vmatprep.subr.mxu0 0.0
    %3893 = vmatpush1.msra.mxu0 0.0
    %3894 = vmatprep.subr.mxu0 0.0
    %3895 = vmatpush1.msra.mxu0 0.0
    %3896 = vmatprep.subr.mxu0 0.0
    %3897 = vmatpush1.msra.mxu0 0.0
    %3898 = vmatprep.subr.mxu0 0.0
    %3899 = vmatpush1.msra.mxu0 0.0
    %3900 = vmatprep.subr.mxu0 0.0
    %3901 = vmatpush1.msra.mxu0 0.0
    %3902 = vmatprep.subr.mxu0 0.0
    %3903 = vmatpush1.msra.mxu0 0.0
    %3904 = vmatprep.subr.mxu0 0.0
    %3905 = vmatpush1.msra.mxu0 0.0
    %3906 = vmatprep.subr.mxu0 0.0
    %3907 = vmatpush1.msra.mxu0 0.0
    %3908 = vmatprep.subr.mxu0 0.0
    %3909 = vmatpush1.msra.mxu0 0.0
    %3910 = vmatprep.subr.mxu0 0.0
    %3911 = vmatpush1.msra.mxu0 0.0
    %3912 = vmatprep.subr.mxu0 0.0
    %3913 = vmatpush1.msra.mxu0 0.0
    %3914 = vmatprep.subr.mxu0 0.0
    %3915 = vmatpush1.msra.mxu0 0.0
    %3916 = vmatprep.subr.mxu0 0.0
    %3917 = vmatpush1.msra.mxu0 0.0
    %3918 = vmatprep.subr.mxu0 0.0
    %3919 = vmatpush1.msra.mxu0 0.0
    %3920 = vmatprep.subr.mxu0 0.0
    %3921 = vmatpush1.msra.mxu0 0.0
    %3922 = vmatprep.subr.mxu0 0.0
    %3923 = vmatpush1.msra.mxu0 0.0
    %3924 = vmatprep.subr.mxu0 0.0
    %3925 = vmatpush1.msra.mxu0 0.0
    %3926 = vmatprep.subr.mxu0 0.0
    %3927 = vmatpush1.msra.mxu0 0.0
    %3928 = vmatprep.subr.mxu0 0.0
    %3929 = vmatpush1.msra.mxu0 0.0
    %3930 = vmatprep.subr.mxu0 0.0
    %3931 = vmatpush1.msra.mxu0 0.0
    %3932 = vmatprep.subr.mxu0 0.0
    %3933 = vmatpush1.msra.mxu0 0.0
    %3934 = vmatprep.subr.mxu0 0.0
    %3935 = vmatpush1.msra.mxu0 0.0
    %3936 = vmatprep.subr.mxu0 0.0
    %3937 = vmatpush1.msra.mxu0 0.0
    %3938 = vmatprep.subr.mxu0 0.0
    %3939 = vmatpush1.msra.mxu0 0.0
    %3940 = vmatprep.mubr.f32.mxu0 0.0
    %3941 = vmatmul.mubr.f32.gmra.mrb[0].mxu0 %v3681
    %v3942 = vpop.f32.mrb[0].mxu0
    %v3943 = vadd.f32 %v3677, %v3942
    %v3944 = vpop.f32.mrb[0].mxu0
    %3945 = vmatprep.mubr.f32.mxu0 0.0
    %3946 = vmatmul.mubr.f32.gmra.mrb[0].mxu0 %v3684
    %v3947 = vpop.f32.mrb[0].mxu0
    %v3948 = vadd.f32 %v3677, %v3947
    %v3949 = vpop.f32.mrb[0].mxu0
    %3950 = vmatprep.mubr.f32.mxu0 0.0
    %3951 = vmatmul.mubr.f32.gmra.mrb[0].mxu0 %v3687
    %v3952 = vpop.f32.mrb[0].mxu0
    %v3953 = vadd.f32 %v3677, %v3952
    %v3954 = vpop.f32.mrb[0].mxu0
    %3955 = vmatprep.mubr.f32.mxu0 0.0
    %3956 = vmatmul.mubr.f32.gmra.mrb[0].mxu0 %v3690
    %v3957 = vpop.f32.mrb[0].mxu0
    %v3958 = vadd.f32 %v3677, %v3957
    %v3959 = vpop.f32.mrb[0].mxu0
    %3960 = vmatprep.mubr.f32.mxu0 0.0
    %3961 = vmatmul.mubr.f32.gmra.mrb[0].mxu0 %v3693
    %v3962 = vpop.f32.mrb[0].mxu0
    %v3963 = vadd.f32 %v3677, %v3962
    %v3964 = vpop.f32.mrb[0].mxu0
    %3965 = vmatprep.mubr.f32.mxu0 0.0
    %3966 = vmatmul.mubr.f32.gmra.mrb[0].mxu0 %v3696
    %v3967 = vpop.f32.mrb[0].mxu0
    %v3968 = vadd.f32 %v3677, %v3967
    %v3969 = vpop.f32.mrb[0].mxu0
    %3970 = vmatprep.mubr.f32.mxu0 0.0
    %3971 = vmatmul.mubr.f32.gmra.mrb[0].mxu0 %v3699
    %v3972 = vpop.f32.mrb[0].mxu0
    %v3973 = vadd.f32 %v3677, %v3972
    %v3974 = vpop.f32.mrb[0].mxu0
    %3975 = vmatprep.mubr.f32.mxu0 0.0
    %3976 = vmatmul.mubr.f32.gmra.mrb[0].mxu0 %v3702
    %v3977 = vpop.f32.mrb[0].mxu0
    %v3978 = vadd.f32 %v3677, %v3977
    %v3979 = vpop.f32.mrb[0].mxu0
    %3980 = vmatprep.mubr.f32.mxu0 0.0
    %3981 = vmatmul.mubr.f32.gmra.mrb[0].mxu0 %v3705
    %v3982 = vpop.f32.mrb[0].mxu0
    %v3983 = vadd.f32 %v3677, %v3982
    %v3984 = vpop.f32.mrb[0].mxu0
    %3985 = vmatprep.mubr.f32.mxu0 0.0
    %3986 = vmatmul.mubr.f32.gmra.mrb[0].mxu0 %v3708
    %v3987 = vpop.f32.mrb[0].mxu0
    %v3988 = vadd.f32 %v3677, %v3987
    %v3989 = vpop.f32.mrb[0].mxu0
    %3990 = vmatprep.mubr.f32.mxu0 0.0
    %3991 = vmatmul.mubr.f32.gmra.mrb[0].mxu0 %v3711
    %v3992 = vpop.f32.mrb[0].mxu0
    %v3993 = vadd.f32 %v3677, %v3992
    %v3994 = vpop.f32.mrb[0].mxu0
    %3995 = vmatprep.mubr.f32.mxu0 0.0
    %3996 = vmatmul.mubr.f32.gmra.mrb[0].mxu0 %v3714
    %v3997 = vpop.f32.mrb[0].mxu0
    %v3998 = vadd.f32 %v3677, %v3997
    %v3999 = vpop.f32.mrb[0].mxu0
    %4000 = vmatprep.mubr.f32.mxu0 0.0
    %4001 = vmatmul.mubr.f32.gmra.mrb[0].mxu0 %v3717
    %v4002 = vpop.f32.mrb[0].mxu0
    %v4003 = vadd.f32 %v3677, %v4002
    %v4004 = vpop.f32.mrb[0].mxu0
    %4005 = vmatprep.mubr.f32.mxu0 0.0
    %4006 = vmatmul.mubr.f32.gmra.mrb[0].mxu0 %v3720
    %v4007 = vpop.f32.mrb[0].mxu0
    %v4008 = vadd.f32 %v3677, %v4007
    %v4009 = vpop.f32.mrb[0].mxu0
    %4010 = vmatprep.mubr.f32.mxu0 0.0
    %4011 = vmatmul.mubr.f32.gmra.mrb[0].mxu0 %v3723
    %v4012 = vpop.f32.mrb[0].mxu0
    %v4013 = vadd.f32 %v3677, %v4012
    %v4014 = vpop.f32.mrb[0].mxu0
    %4015 = vmatprep.mubr.f32.mxu0 0.0
    %4016 = vmatmul.mubr.f32.gmra.mrb[0].mxu0 %v3726
    %v4017 = vpop.f32.mrb[0].mxu0
    %v4018 = vadd.f32 %v3677, %v4017
    %v4019 = vpop.f32.mrb[0].mxu0
    %4020 = vmatprep.mubr.f32.mxu0 0.0
    %4021 = vmatmul.mubr.f32.gmra.mrb[0].mxu0 %v3729
    %v4022 = vpop.f32.mrb[0].mxu0
    %v4023 = vadd.f32 %v3677, %v4022
    %v4024 = vpop.f32.mrb[0].mxu0
    %4025 = vmatprep.mubr.f32.mxu0 0.0
    %4026 = vmatmul.mubr.f32.gmra.mrb[0].mxu0 %v3732
    %v4027 = vpop.f32.mrb[0].mxu0
    %v4028 = vadd.f32 %v3677, %v4027
    %v4029 = vpop.f32.mrb[0].mxu0
    %4030 = vmatprep.mubr.f32.mxu0 0.0
    %4031 = vmatmul.mubr.f32.gmra.mrb[0].mxu0 %v3735
    %v4032 = vpop.f32.mrb[0].mxu0
    %v4033 = vadd.f32 %v3677, %v4032
    %v4034 = vpop.f32.mrb[0].mxu0
    %4035 = vmatprep.mubr.f32.mxu0 0.0
    %4036 = vmatmul.mubr.f32.gmra.mrb[0].mxu0 %v3738
    %v4037 = vpop.f32.mrb[0].mxu0
    %v4038 = vadd.f32 %v3677, %v4037
    %v4039 = vpop.f32.mrb[0].mxu0
    %4040 = vmatprep.mubr.f32.mxu0 0.0
    %4041 = vmatmul.mubr.f32.gmra.mrb[0].mxu0 %v3741
    %v4042 = vpop.f32.mrb[0].mxu0
    %v4043 = vadd.f32 %v3677, %v4042
    %v4044 = vpop.f32.mrb[0].mxu0
    %4045 = vmatprep.mubr.f32.mxu0 0.0
    %4046 = vmatmul.mubr.f32.gmra.mrb[0].mxu0 %v3744
    %v4047 = vpop.f32.mrb[0].mxu0
    %v4048 = vadd.f32 %v3677, %v4047
    %v4049 = vpop.f32.mrb[0].mxu0
    %4050 = vmatprep.mubr.f32.mxu0 0.0
    %4051 = vmatmul.mubr.f32.gmra.mrb[0].mxu0 %v3747
    %v4052 = vpop.f32.mrb[0].mxu0
    %v4053 = vadd.f32 %v3677, %v4052
    %v4054 = vpop.f32.mrb[0].mxu0
    %4055 = vmatprep.mubr.f32.mxu0 0.0
    %4056 = vmatmul.mubr.f32.gmra.mrb[0].mxu0 %v3750
    %v4057 = vpop.f32.mrb[0].mxu0
    %v4058 = vadd.f32 %v3677, %v4057
    %v4059 = vpop.f32.mrb[0].mxu0
    %4060 = vmatprep.mubr.f32.mxu0 0.0
    %4061 = vmatmul.mubr.f32.gmra.mrb[0].mxu0 %v3753
    %v4062 = vpop.f32.mrb[0].mxu0
    %v4063 = vadd.f32 %v3677, %v4062
    %v4064 = vpop.f32.mrb[0].mxu0
    %4065 = vmatprep.mubr.f32.mxu0 0.0
    %4066 = vmatmul.mubr.f32.gmra.mrb[0].mxu0 %v3756
    %v4067 = vpop.f32.mrb[0].mxu0
    %v4068 = vadd.f32 %v3677, %v4067
    %v4069 = vpop.f32.mrb[0].mxu0
    %4070 = vmatprep.mubr.f32.mxu0 0.0
    %4071 = vmatmul.mubr.f32.gmra.mrb[0].mxu0 %v3759
    %v4072 = vpop.f32.mrb[0].mxu0
    %v4073 = vadd.f32 %v3677, %v4072
    %v4074 = vpop.f32.mrb[0].mxu0
    %4075 = vmatprep.mubr.f32.mxu0 0.0
    %4076 = vmatmul.mubr.f32.gmra.mrb[0].mxu0 %v3762
    %v4077 = vpop.f32.mrb[0].mxu0
    %v4078 = vadd.f32 %v3677, %v4077
    %v4079 = vpop.f32.mrb[0].mxu0
    %4080 = vmatprep.mubr.f32.mxu0 0.0
    %4081 = vmatmul.mubr.f32.gmra.mrb[0].mxu0 %v3765
    %v4082 = vpop.f32.mrb[0].mxu0
    %v4083 = vadd.f32 %v3677, %v4082
    %v4084 = vpop.f32.mrb[0].mxu0
    %4085 = vmatprep.mubr.f32.mxu0 0.0
    %4086 = vmatmul.mubr.f32.gmra.mrb[0].mxu0 %v3768
    %v4087 = vpop.f32.mrb[0].mxu0
    %v4088 = vadd.f32 %v3677, %v4087
    %v4089 = vpop.f32.mrb[0].mxu0
    %4090 = vmatprep.mubr.f32.mxu0 0.0
    %4091 = vmatmul.mubr.f32.gmra.mrb[0].mxu0 %v3771
    %v4092 = vpop.f32.mrb[0].mxu0
    %v4093 = vadd.f32 %v3677, %v4092
    %v4094 = vpop.f32.mrb[0].mxu0
    %4095 = vmatprep.mubr.f32.mxu0 0.0
    %4096 = vmatmul.mubr.f32.gmra.mrb[0].mxu0 %v3774
    %v4097 = vpop.f32.mrb[0].mxu0
    %v4098 = vadd.f32 %v3677, %v4097
    %v4099 = vpop.f32.mrb[0].mxu0
    %4100 = vmatprep.mubr.f32.mxu0 0.0
    %4101 = vmatmul.mubr.f32.gmra.mrb[0].mxu0 %v3777
    %v4102 = vpop.f32.mrb[0].mxu0
    %v4103 = vadd.f32 %v3677, %v4102
    %v4104 = vpop.f32.mrb[0].mxu0
    %4105 = vmatprep.mubr.f32.mxu0 0.0
    %4106 = vmatmul.mubr.f32.gmra.mrb[0].mxu0 %v3780
    %v4107 = vpop.f32.mrb[0].mxu0
    %v4108 = vadd.f32 %v3677, %v4107
    %v4109 = vpop.f32.mrb[0].mxu0
    %4110 = vmatprep.mubr.f32.mxu0 0.0
    %4111 = vmatmul.mubr.f32.gmra.mrb[0].mxu0 %v3783
    %v4112 = vpop.f32.mrb[0].mxu0
    %v4113 = vadd.f32 %v3677, %v4112
    %v4114 = vpop.f32.mrb[0].mxu0
    %4115 = vmatprep.mubr.f32.mxu0 0.0
    %4116 = vmatmul.mubr.f32.gmra.mrb[0].mxu0 %v3786
    %v4117 = vpop.f32.mrb[0].mxu0
    %v4118 = vadd.f32 %v3677, %v4117
    %v4119 = vpop.f32.mrb[0].mxu0
    %4120 = vmatprep.mubr.f32.mxu0 0.0
    %4121 = vmatmul.mubr.f32.gmra.mrb[0].mxu0 %v3789
    %v4122 = vpop.f32.mrb[0].mxu0
    %v4123 = vadd.f32 %v3677, %v4122
    %v4124 = vpop.f32.mrb[0].mxu0
    %4125 = vmatprep.mubr.f32.mxu0 0.0
    %4126 = vmatmul.mubr.f32.gmra.mrb[0].mxu0 %v3792
    %v4127 = vpop.f32.mrb[0].mxu0
    %v4128 = vadd.f32 %v3677, %v4127
    %v4129 = vpop.f32.mrb[0].mxu0
    %4130 = vmatprep.mubr.f32.mxu0 0.0
    %4131 = vmatmul.mubr.f32.gmra.mrb[0].mxu0 %v3795
    %v4132 = vpop.f32.mrb[0].mxu0
    %v4133 = vadd.f32 %v3677, %v4132
    %v4134 = vpop.f32.mrb[0].mxu0
    %4135 = vmatprep.mubr.f32.mxu0 0.0
    %4136 = vmatmul.mubr.f32.gmra.mrb[0].mxu0 %v3798
    %v4137 = vpop.f32.mrb[0].mxu0
    %v4138 = vadd.f32 %v3677, %v4137
    %v4139 = vpop.f32.mrb[0].mxu0
    %4140 = vmatprep.mubr.f32.mxu0 0.0
    %4141 = vmatmul.mubr.f32.gmra.mrb[0].mxu0 %v3801
    %v4142 = vpop.f32.mrb[0].mxu0
    %v4143 = vadd.f32 %v3677, %v4142
    %v4144 = vpop.f32.mrb[0].mxu0
    %4145 = vmatprep.mubr.f32.mxu0 0.0
    %4146 = vmatmul.mubr.f32.gmra.mrb[0].mxu0 %v3804
    %v4147 = vpop.f32.mrb[0].mxu0
    %v4148 = vadd.f32 %v3677, %v4147
    %v4149 = vpop.f32.mrb[0].mxu0
    %4150 = vmatprep.mubr.f32.mxu0 0.0
    %4151 = vmatmul.mubr.f32.gmra.mrb[0].mxu0 %v3807
    %v4152 = vpop.f32.mrb[0].mxu0
    %v4153 = vadd.f32 %v3677, %v4152
    %v4154 = vpop.f32.mrb[0].mxu0
    %4155 = vmatprep.mubr.f32.mxu0 0.0
    %4156 = vmatmul.mubr.f32.gmra.mrb[0].mxu0 %v3810
    %v4157 = vpop.f32.mrb[0].mxu0
    %v4158 = vadd.f32 %v3677, %v4157
    %v4159 = vpop.f32.mrb[0].mxu0
    %4160 = vmatprep.mubr.f32.mxu0 0.0
    %4161 = vmatmul.mubr.f32.gmra.mrb[0].mxu0 %v3813
    %v4162 = vpop.f32.mrb[0].mxu0
    %v4163 = vadd.f32 %v3677, %v4162
    %v4164 = vpop.f32.mrb[0].mxu0
    %4165 = vmatprep.mubr.f32.mxu0 0.0
    %4166 = vmatmul.mubr.f32.gmra.mrb[0].mxu0 %v3816
    %v4167 = vpop.f32.mrb[0].mxu0
    %v4168 = vadd.f32 %v3677, %v4167
    %v4169 = vpop.f32.mrb[0].mxu0
    %4170 = vmatprep.mubr.f32.mxu0 0.0
    %4171 = vmatmul.mubr.f32.gmra.mrb[0].mxu0 %v3819
    %v4172 = vpop.f32.mrb[0].mxu0
    %v4173 = vadd.f32 %v3677, %v4172
    %v4174 = vpop.f32.mrb[0].mxu0
    %4175 = vmatprep.mubr.f32.mxu0 0.0
    %4176 = vmatmul.mubr.f32.gmra.mrb[0].mxu0 %v3822
    %v4177 = vpop.f32.mrb[0].mxu0
    %v4178 = vadd.f32 %v3677, %v4177
    %v4179 = vpop.f32.mrb[0].mxu0
    %4180 = vmatprep.mubr.f32.mxu0 0.0
    %4181 = vmatmul.mubr.f32.gmra.mrb[0].mxu0 %v3825
    %v4182 = vpop.f32.mrb[0].mxu0
    %v4183 = vadd.f32 %v3677, %v4182
    %v4184 = vpop.f32.mrb[0].mxu0
    %4185 = vmatprep.mubr.f32.mxu0 0.0
    %4186 = vmatmul.mubr.f32.gmra.mrb[0].mxu0 %v3828
    %v4187 = vpop.f32.mrb[0].mxu0
    %v4188 = vadd.f32 %v3677, %v4187
    %v4189 = vpop.f32.mrb[0].mxu0
    %4190 = vmatprep.mubr.f32.mxu0 0.0
    %4191 = vmatmul.mubr.f32.gmra.mrb[0].mxu0 %v3831
    %v4192 = vpop.f32.mrb[0].mxu0
    %v4193 = vadd.f32 %v3677, %v4192
    %v4194 = vpop.f32.mrb[0].mxu0
    %4195 = vmatprep.mubr.f32.mxu0 0.0
    %4196 = vmatmul.mubr.f32.gmra.mrb[0].mxu0 %v3834
    %v4197 = vpop.f32.mrb[0].mxu0
    %v4198 = vadd.f32 %v3677, %v4197
    %v4199 = vpop.f32.mrb[0].mxu0
    %4200 = vmatprep.mubr.f32.mxu0 0.0
    %4201 = vmatmul.mubr.f32.gmra.mrb[0].mxu0 %v3837
    %v4202 = vpop.f32.mrb[0].mxu0
    %v4203 = vadd.f32 %v3677, %v4202
    %v4204 = vpop.f32.mrb[0].mxu0
    %4205 = vmatprep.mubr.f32.mxu0 0.0
    %4206 = vmatmul.mubr.f32.gmra.mrb[0].mxu0 %v3840
    %v4207 = vpop.f32.mrb[0].mxu0
    %v4208 = vadd.f32 %v3677, %v4207
    %v4209 = vpop.f32.mrb[0].mxu0
    %4210 = vmatprep.mubr.f32.mxu0 0.0
    %4211 = vmatmul.mubr.f32.gmra.mrb[0].mxu0 %v3843
    %v4212 = vpop.f32.mrb[0].mxu0
    %v4213 = vadd.f32 %v3677, %v4212
    %v4214 = vpop.f32.mrb[0].mxu0
    %4215 = vmatprep.mubr.f32.mxu0 0.0
    %4216 = vmatmul.mubr.f32.gmra.mrb[0].mxu0 %v3846
    %v4217 = vpop.f32.mrb[0].mxu0
    %v4218 = vadd.f32 %v3677, %v4217
    %v4219 = vpop.f32.mrb[0].mxu0
    %4220 = vmatprep.mubr.f32.mxu0 0.0
    %4221 = vmatmul.mubr.f32.gmra.mrb[0].mxu0 %v3849
    %v4222 = vpop.f32.mrb[0].mxu0
    %v4223 = vadd.f32 %v3677, %v4222
    %v4224 = vpop.f32.mrb[0].mxu0
    %4225 = vmatprep.mubr.f32.mxu0 0.0
    %4226 = vmatmul.mubr.f32.gmra.mrb[0].mxu0 %v3852
    %v4227 = vpop.f32.mrb[0].mxu0
    %v4228 = vadd.f32 %v3677, %v4227
    %v4229 = vpop.f32.mrb[0].mxu0
    %4230 = vmatprep.mubr.f32.mxu0 0.0
    %4231 = vmatmul.mubr.f32.gmra.mrb[0].mxu0 %v3855
    %v4232 = vpop.f32.mrb[0].mxu0
    %v4233 = vadd.f32 %v3677, %v4232
    %v4234 = vpop.f32.mrb[0].mxu0
    %4235 = vmatprep.mubr.f32.mxu0 0.0
    %4236 = vmatmul.mubr.f32.gmra.mrb[0].mxu0 %v3858
    %v4237 = vpop.f32.mrb[0].mxu0
    %v4238 = vadd.f32 %v3677, %v4237
    %v4239 = vpop.f32.mrb[0].mxu0
    %4240 = vmatprep.mubr.f32.mxu0 0.0
    %4241 = vmatmul.mubr.f32.gmra.mrb[0].mxu0 %v3861
    %v4242 = vpop.f32.mrb[0].mxu0
    %v4243 = vadd.f32 %v3677, %v4242
    %v4244 = vpop.f32.mrb[0].mxu0
    %4245 = vmatprep.mubr.f32.mxu0 0.0
    %4246 = vmatmul.mubr.f32.gmra.mrb[0].mxu0 %v3864
    %v4247 = vpop.f32.mrb[0].mxu0
    %v4248 = vadd.f32 %v3677, %v4247
    %v4249 = vpop.f32.mrb[0].mxu0
    %4250 = vmatprep.mubr.f32.mxu0 0.0
    %4251 = vmatmul.mubr.f32.gmra.mrb[0].mxu0 %v3867
    %v4252 = vpop.f32.mrb[0].mxu0
    %v4253 = vadd.f32 %v3677, %v4252
    %v4254 = vpop.f32.mrb[0].mxu0
    %4255 = vmatprep.mubr.f32.mxu0 0.0
    %4256 = vmatmul.mubr.f32.gmra.mrb[0].mxu0 %v3870
    %v4257 = vpop.f32.mrb[0].mxu0
    %v4258 = vadd.f32 %v3677, %v4257
    %v4259 = vpop.f32.mrb[0].mxu0
    %4260 = vdwg.mxu0
    %v4261 = vmax.f32 %v3943, 0.0
    %v4262 = vmax.f32 %v3948, 0.0
    %v4263 = vmax.f32 %v3953, 0.0
    %v4264 = vmax.f32 %v3958, 0.0
    %v4265 = vmax.f32 %v3963, 0.0
    %v4266 = vmax.f32 %v3968, 0.0
    %v4267 = vmax.f32 %v3973, 0.0
    %v4268 = vmax.f32 %v3978, 0.0
    %v4269 = vmax.f32 %v3983, 0.0
    %v4270 = vmax.f32 %v3988, 0.0
    %v4271 = vmax.f32 %v3993, 0.0
    %v4272 = vmax.f32 %v3998, 0.0
    %v4273 = vmax.f32 %v4003, 0.0
    %v4274 = vmax.f32 %v4008, 0.0
    %v4275 = vmax.f32 %v4013, 0.0
    %v4276 = vmax.f32 %v4018, 0.0
    %v4277 = vmax.f32 %v4023, 0.0
    %v4278 = vmax.f32 %v4028, 0.0
    %v4279 = vmax.f32 %v4033, 0.0
    %v4280 = vmax.f32 %v4038, 0.0
    %v4281 = vmax.f32 %v4043, 0.0
    %v4282 = vmax.f32 %v4048, 0.0
    %v4283 = vmax.f32 %v4053, 0.0
    %v4284 = vmax.f32 %v4058, 0.0
    %v4285 = vmax.f32 %v4063, 0.0
    %v4286 = vmax.f32 %v4068, 0.0
    %v4287 = vmax.f32 %v4073, 0.0
    %v4288 = vmax.f32 %v4078, 0.0
    %v4289 = vmax.f32 %v4083, 0.0
    %v4290 = vmax.f32 %v4088, 0.0
    %v4291 = vmax.f32 %v4093, 0.0
    %v4292 = vmax.f32 %v4098, 0.0
    %v4293 = vmax.f32 %v4103, 0.0
    %v4294 = vmax.f32 %v4108, 0.0
    %v4295 = vmax.f32 %v4113, 0.0
    %v4296 = vmax.f32 %v4118, 0.0
    %v4297 = vmax.f32 %v4123, 0.0
    %v4298 = vmax.f32 %v4128, 0.0
    %v4299 = vmax.f32 %v4133, 0.0
    %v4300 = vmax.f32 %v4138, 0.0
    %v4301 = vmax.f32 %v4143, 0.0
    %v4302 = vmax.f32 %v4148, 0.0
    %v4303 = vmax.f32 %v4153, 0.0
    %v4304 = vmax.f32 %v4158, 0.0
    %v4305 = vmax.f32 %v4163, 0.0
    %v4306 = vmax.f32 %v4168, 0.0
    %v4307 = vmax.f32 %v4173, 0.0
    %v4308 = vmax.f32 %v4178, 0.0
    %v4309 = vmax.f32 %v4183, 0.0
    %v4310 = vmax.f32 %v4188, 0.0
    %v4311 = vmax.f32 %v4193, 0.0
    %v4312 = vmax.f32 %v4198, 0.0
    %v4313 = vmax.f32 %v4203, 0.0
    %v4314 = vmax.f32 %v4208, 0.0
    %v4315 = vmax.f32 %v4213, 0.0
    %v4316 = vmax.f32 %v4218, 0.0
    %v4317 = vmax.f32 %v4223, 0.0
    %v4318 = vmax.f32 %v4228, 0.0
    %v4319 = vmax.f32 %v4233, 0.0
    %v4320 = vmax.f32 %v4238, 0.0
    %v4321 = vmax.f32 %v4243, 0.0
    %v4322 = vmax.f32 %v4248, 0.0
    %v4323 = vmax.f32 %v4253, 0.0
    %v4324 = vmax.f32 %v4258, 0.0
    %s4325 = scalar_lea.vmem [#allocation4], 24
    %4326 = vst.msk [vmem:[%s4325 + $0x1] sm:$0xff] %vm155, %v4261
    %4327 = vst.msk [vmem:[%s4325 + $0x9] sm:$0xff] %vm155, %v4262
    %4328 = vst.msk [vmem:[%s4325 + $0x19] sm:$0xff] %vm155, %v4263
    %4329 = vst.msk [vmem:[%s4325 + $0x21] sm:$0xff] %vm155, %v4264
    %4330 = vst.msk [vmem:[%s4325 + $0x31] sm:$0xff] %vm155, %v4265
    %4331 = vst.msk [vmem:[%s4325 + $0x39] sm:$0xff] %vm155, %v4266
    %4332 = vst.msk [vmem:[%s4325 + $0x49] sm:$0xff] %vm155, %v4267
    %4333 = vst.msk [vmem:[%s4325 + $0x51] sm:$0xff] %vm155, %v4268
    %4334 = vst.msk [vmem:[%s4325 + $0x61] sm:$0xff] %vm155, %v4269
    %4335 = vst.msk [vmem:[%s4325 + $0x69] sm:$0xff] %vm155, %v4270
    %4336 = vst.msk [vmem:[%s4325 + $0x79] sm:$0xff] %vm155, %v4271
    %4337 = vst.msk [vmem:[%s4325 + $0x81] sm:$0xff] %vm155, %v4272
    %4338 = vst.msk [vmem:[%s4325 + $0x91] sm:$0xff] %vm155, %v4273
    %4339 = vst.msk [vmem:[%s4325 + $0x99] sm:$0xff] %vm155, %v4274
    %4340 = vst.msk [vmem:[%s4325 + $0xa9] sm:$0xff] %vm155, %v4275
    %4341 = vst.msk [vmem:[%s4325 + $0xb1] sm:$0xff] %vm155, %v4276
    %4342 = vst.msk [vmem:[%s4325 + $0xc1] sm:$0xff] %vm155, %v4277
    %4343 = vst.msk [vmem:[%s4325 + $0xc9] sm:$0xff] %vm155, %v4278
    %4344 = vst.msk [vmem:[%s4325 + $0xd9] sm:$0xff] %vm155, %v4279
    %4345 = vst.msk [vmem:[%s4325 + $0xe1] sm:$0xff] %vm155, %v4280
    %4346 = vst.msk [vmem:[%s4325 + $0xf1] sm:$0xff] %vm155, %v4281
    %4347 = vst.msk [vmem:[%s4325 + $0xf9] sm:$0xff] %vm155, %v4282
    %4348 = vst.msk [vmem:[%s4325 + $0x109] sm:$0xff] %vm155, %v4283
    %4349 = vst.msk [vmem:[%s4325 + $0x111] sm:$0xff] %vm155, %v4284
    %4350 = vst.msk [vmem:[%s4325 + $0x121] sm:$0xff] %vm155, %v4285
    %4351 = vst.msk [vmem:[%s4325 + $0x129] sm:$0xff] %vm155, %v4286
    %4352 = vst.msk [vmem:[%s4325 + $0x139] sm:$0xff] %vm155, %v4287
    %4353 = vst.msk [vmem:[%s4325 + $0x141] sm:$0xff] %vm155, %v4288
    %4354 = vst.msk [vmem:[%s4325 + $0x151] sm:$0xff] %vm155, %v4289
    %4355 = vst.msk [vmem:[%s4325 + $0x159] sm:$0xff] %vm155, %v4290
    %4356 = vst.msk [vmem:[%s4325 + $0x169] sm:$0xff] %vm155, %v4291
    %4357 = vst.msk [vmem:[%s4325 + $0x171] sm:$0xff] %vm155, %v4292
    %4358 = vst.msk [vmem:[%s4325 + $0x1b1] sm:$0xff] %vm155, %v4293
    %4359 = vst.msk [vmem:[%s4325 + $0x1b9] sm:$0xff] %vm155, %v4294
    %4360 = vst.msk [vmem:[%s4325 + $0x1c9] sm:$0xff] %vm155, %v4295
    %4361 = vst.msk [vmem:[%s4325 + $0x1d1] sm:$0xff] %vm155, %v4296
    %4362 = vst.msk [vmem:[%s4325 + $0x1e1] sm:$0xff] %vm155, %v4297
    %4363 = vst.msk [vmem:[%s4325 + $0x1e9] sm:$0xff] %vm155, %v4298
    %4364 = vst.msk [vmem:[%s4325 + $0x1f9] sm:$0xff] %vm155, %v4299
    %4365 = vst.msk [vmem:[%s4325 + $0x201] sm:$0xff] %vm155, %v4300
    %4366 = vst.msk [vmem:[%s4325 + $0x211] sm:$0xff] %vm155, %v4301
    %4367 = vst.msk [vmem:[%s4325 + $0x219] sm:$0xff] %vm155, %v4302
    %4368 = vst.msk [vmem:[%s4325 + $0x229] sm:$0xff] %vm155, %v4303
    %4369 = vst.msk [vmem:[%s4325 + $0x231] sm:$0xff] %vm155, %v4304
    %4370 = vst.msk [vmem:[%s4325 + $0x241] sm:$0xff] %vm155, %v4305
    %4371 = vst.msk [vmem:[%s4325 + $0x249] sm:$0xff] %vm155, %v4306
    %4372 = vst.msk [vmem:[%s4325 + $0x259] sm:$0xff] %vm155, %v4307
    %4373 = vst.msk [vmem:[%s4325 + $0x261] sm:$0xff] %vm155, %v4308
    %4374 = vst.msk [vmem:[%s4325 + $0x271] sm:$0xff] %vm155, %v4309
    %4375 = vst.msk [vmem:[%s4325 + $0x279] sm:$0xff] %vm155, %v4310
    %4376 = vst.msk [vmem:[%s4325 + $0x289] sm:$0xff] %vm155, %v4311
    %4377 = vst.msk [vmem:[%s4325 + $0x291] sm:$0xff] %vm155, %v4312
    %4378 = vst.msk [vmem:[%s4325 + $0x2a1] sm:$0xff] %vm155, %v4313
    %4379 = vst.msk [vmem:[%s4325 + $0x2a9] sm:$0xff] %vm155, %v4314
    %4380 = vst.msk [vmem:[%s4325 + $0x2b9] sm:$0xff] %vm155, %v4315
    %4381 = vst.msk [vmem:[%s4325 + $0x2c1] sm:$0xff] %vm155, %v4316
    %4382 = vst.msk [vmem:[%s4325 + $0x2d1] sm:$0xff] %vm155, %v4317
    %4383 = vst.msk [vmem:[%s4325 + $0x2d9] sm:$0xff] %vm155, %v4318
    %4384 = vst.msk [vmem:[%s4325 + $0x2e9] sm:$0xff] %vm155, %v4319
    %4385 = vst.msk [vmem:[%s4325 + $0x2f1] sm:$0xff] %vm155, %v4320
    %4386 = vst.msk [vmem:[%s4325 + $0x301] sm:$0xff] %vm155, %v4321
    %4387 = vst.msk [vmem:[%s4325 + $0x309] sm:$0xff] %vm155, %v4322
    %4388 = vst.msk [vmem:[%s4325 + $0x319] sm:$0xff] %vm155, %v4323
    %4389 = vst.msk [vmem:[%s4325 + $0x321] sm:$0xff] %vm155, %v4324
    %v4390 = vld [vmem:[#allocation4] sm:$0xff]
    %v4391 = vld [vmem:[#allocation4 + $0x8] sm:$0xff]
    %v4392 = vld [vmem:[#allocation4 + $0x18] sm:$0xff]
    %v4393 = vld [vmem:[#allocation4 + $0x20] sm:$0xff]
    %v4394 = vld [vmem:[#allocation4 + $0x30] sm:$0xff]
    %v4395 = vld [vmem:[#allocation4 + $0x38] sm:$0xff]
    %v4396 = vld [vmem:[#allocation4 + $0x48] sm:$0xff]
    %v4397 = vld [vmem:[#allocation4 + $0x50] sm:$0xff]
    %v4398 = vld [vmem:[#allocation4 + $0x60] sm:$0xff]
    %v4399 = vld [vmem:[#allocation4 + $0x68] sm:$0xff]
    %v4400 = vld [vmem:[#allocation4 + $0x78] sm:$0xff]
    %v4401 = vld [vmem:[#allocation4 + $0x80] sm:$0xff]
    %v4402 = vld [vmem:[#allocation4 + $0x90] sm:$0xff]
    %v4403 = vld [vmem:[#allocation4 + $0x98] sm:$0xff]
    %v4404 = vld [vmem:[#allocation4 + $0xa8] sm:$0xff]
    %v4405 = vld [vmem:[#allocation4 + $0xb0] sm:$0xff]
    %v4406 = vld [vmem:[#allocation4 + $0xc0] sm:$0xff]
    %v4407 = vld [vmem:[#allocation4 + $0xc8] sm:$0xff]
    %v4408 = vld [vmem:[#allocation4 + $0xd8] sm:$0xff]
    %v4409 = vld [vmem:[#allocation4 + $0xe0] sm:$0xff]
    %v4410 = vld [vmem:[#allocation4 + $0xf0] sm:$0xff]
    %v4411 = vld [vmem:[#allocation4 + $0xf8] sm:$0xff]
    %v4412 = vld [vmem:[#allocation4 + $0x108] sm:$0xff]
    %v4413 = vld [vmem:[#allocation4 + $0x110] sm:$0xff]
    %v4414 = vld [vmem:[#allocation4 + $0x120] sm:$0xff]
    %v4415 = vld [vmem:[#allocation4 + $0x128] sm:$0xff]
    %v4416 = vld [vmem:[#allocation4 + $0x138] sm:$0xff]
    %v4417 = vld [vmem:[#allocation4 + $0x140] sm:$0xff]
    %v4418 = vld [vmem:[#allocation4 + $0x150] sm:$0xff]
    %v4419 = vld [vmem:[#allocation4 + $0x158] sm:$0xff]
    %v4420 = vld [vmem:[#allocation4 + $0x168] sm:$0xff]
    %v4421 = vld [vmem:[#allocation4 + $0x170] sm:$0xff]
    %v4422 = vld [vmem:[#allocation4 + $0x1b0] sm:$0xff]
    %v4423 = vld [vmem:[#allocation4 + $0x1b8] sm:$0xff]
    %v4424 = vld [vmem:[#allocation4 + $0x1c8] sm:$0xff]
    %v4425 = vld [vmem:[#allocation4 + $0x1d0] sm:$0xff]
    %v4426 = vld [vmem:[#allocation4 + $0x1e0] sm:$0xff]
    %v4427 = vld [vmem:[#allocation4 + $0x1e8] sm:$0xff]
    %v4428 = vld [vmem:[#allocation4 + $0x1f8] sm:$0xff]
    %v4429 = vld [vmem:[#allocation4 + $0x200] sm:$0xff]
    %v4430 = vld [vmem:[#allocation4 + $0x210] sm:$0xff]
    %v4431 = vld [vmem:[#allocation4 + $0x218] sm:$0xff]
    %v4432 = vld [vmem:[#allocation4 + $0x228] sm:$0xff]
    %v4433 = vld [vmem:[#allocation4 + $0x230] sm:$0xff]
    %v4434 = vld [vmem:[#allocation4 + $0x240] sm:$0xff]
    %v4435 = vld [vmem:[#allocation4 + $0x248] sm:$0xff]
    %v4436 = vld [vmem:[#allocation4 + $0x258] sm:$0xff]
    %v4437 = vld [vmem:[#allocation4 + $0x260] sm:$0xff]
    %v4438 = vld [vmem:[#allocation4 + $0x270] sm:$0xff]
    %v4439 = vld [vmem:[#allocation4 + $0x278] sm:$0xff]
    %v4440 = vld [vmem:[#allocation4 + $0x288] sm:$0xff]
    %v4441 = vld [vmem:[#allocation4 + $0x290] sm:$0xff]
    %v4442 = vld [vmem:[#allocation4 + $0x2a0] sm:$0xff]
    %v4443 = vld [vmem:[#allocation4 + $0x2a8] sm:$0xff]
    %v4444 = vld [vmem:[#allocation4 + $0x2b8] sm:$0xff]
    %v4445 = vld [vmem:[#allocation4 + $0x2c0] sm:$0xff]
    %v4446 = vld [vmem:[#allocation4 + $0x2d0] sm:$0xff]
    %v4447 = vld [vmem:[#allocation4 + $0x2d8] sm:$0xff]
    %v4448 = vld [vmem:[#allocation4 + $0x2e8] sm:$0xff]
    %v4449 = vld [vmem:[#allocation4 + $0x2f0] sm:$0xff]
    %v4450 = vld [vmem:[#allocation4 + $0x300] sm:$0xff]
    %v4451 = vld [vmem:[#allocation4 + $0x308] sm:$0xff]
    %v4452 = vld [vmem:[#allocation4 + $0x318] sm:$0xff]
    %v4453 = vld [vmem:[#allocation4 + $0x320] sm:$0xff]
    %v4454 = vld [vmem:[%s3] sm:$0x1]
    %v4455 = vlaneseq
    %v4456 = vshrl.u32 %v4455, 7
    %v4457 = vsub.s32 0, %v4456
    %v4458 = vrot.slane %v4454, %v4457
    %v4459 = vmul.f32 %v4390, %v4458
    %v4460 = vmul.f32 %v4391, %v4458
    %v4461 = vmul.f32 %v4392, %v4458
    %v4462 = vmul.f32 %v4393, %v4458
    %v4463 = vmul.f32 %v4394, %v4458
    %v4464 = vmul.f32 %v4395, %v4458
    %v4465 = vmul.f32 %v4396, %v4458
    %v4466 = vmul.f32 %v4397, %v4458
    %v4467 = vmul.f32 %v4398, %v4458
    %v4468 = vmul.f32 %v4399, %v4458
    %v4469 = vmul.f32 %v4400, %v4458
    %v4470 = vmul.f32 %v4401, %v4458
    %v4471 = vmul.f32 %v4402, %v4458
    %v4472 = vmul.f32 %v4403, %v4458
    %v4473 = vmul.f32 %v4404, %v4458
    %v4474 = vmul.f32 %v4405, %v4458
    %v4475 = vmul.f32 %v4406, %v4458
    %v4476 = vmul.f32 %v4407, %v4458
    %v4477 = vmul.f32 %v4408, %v4458
    %v4478 = vmul.f32 %v4409, %v4458
    %v4479 = vmul.f32 %v4410, %v4458
    %v4480 = vmul.f32 %v4411, %v4458
    %v4481 = vmul.f32 %v4412, %v4458
    %v4482 = vmul.f32 %v4413, %v4458
    %v4483 = vmul.f32 %v4414, %v4458
    %v4484 = vmul.f32 %v4415, %v4458
    %v4485 = vmul.f32 %v4416, %v4458
    %v4486 = vmul.f32 %v4417, %v4458
    %v4487 = vmul.f32 %v4418, %v4458
    %v4488 = vmul.f32 %v4419, %v4458
    %v4489 = vmul.f32 %v4420, %v4458
    %v4490 = vmul.f32 %v4421, %v4458
    %v4491 = vmul.f32 %v4422, %v4458
    %v4492 = vmul.f32 %v4423, %v4458
    %v4493 = vmul.f32 %v4424, %v4458
    %v4494 = vmul.f32 %v4425, %v4458
    %v4495 = vmul.f32 %v4426, %v4458
    %v4496 = vmul.f32 %v4427, %v4458
    %v4497 = vmul.f32 %v4428, %v4458
    %v4498 = vmul.f32 %v4429, %v4458
    %v4499 = vmul.f32 %v4430, %v4458
    %v4500 = vmul.f32 %v4431, %v4458
    %v4501 = vmul.f32 %v4432, %v4458
    %v4502 = vmul.f32 %v4433, %v4458
    %v4503 = vmul.f32 %v4434, %v4458
    %v4504 = vmul.f32 %v4435, %v4458
    %v4505 = vmul.f32 %v4436, %v4458
    %v4506 = vmul.f32 %v4437, %v4458
    %v4507 = vmul.f32 %v4438, %v4458
    %v4508 = vmul.f32 %v4439, %v4458
    %v4509 = vmul.f32 %v4440, %v4458
    %v4510 = vmul.f32 %v4441, %v4458
    %v4511 = vmul.f32 %v4442, %v4458
    %v4512 = vmul.f32 %v4443, %v4458
    %v4513 = vmul.f32 %v4444, %v4458
    %v4514 = vmul.f32 %v4445, %v4458
    %v4515 = vmul.f32 %v4446, %v4458
    %v4516 = vmul.f32 %v4447, %v4458
    %v4517 = vmul.f32 %v4448, %v4458
    %v4518 = vmul.f32 %v4449, %v4458
    %v4519 = vmul.f32 %v4450, %v4458
    %v4520 = vmul.f32 %v4451, %v4458
    %v4521 = vmul.f32 %v4452, %v4458
    %v4522 = vmul.f32 %v4453, %v4458
    %v4523 = vadd.f32 %v4459, 0.0
    %v4524 = vadd.f32 %v4460, 0.0
    %v4525 = vadd.f32 %v4461, 0.0
    %v4526 = vadd.f32 %v4462, 0.0
    %v4527 = vadd.f32 %v4463, 0.0
    %v4528 = vadd.f32 %v4464, 0.0
    %v4529 = vadd.f32 %v4465, 0.0
    %v4530 = vadd.f32 %v4466, 0.0
    %v4531 = vadd.f32 %v4467, 0.0
    %v4532 = vadd.f32 %v4468, 0.0
    %v4533 = vadd.f32 %v4469, 0.0
    %v4534 = vadd.f32 %v4470, 0.0
    %v4535 = vadd.f32 %v4471, 0.0
    %v4536 = vadd.f32 %v4472, 0.0
    %v4537 = vadd.f32 %v4473, 0.0
    %v4538 = vadd.f32 %v4474, 0.0
    %v4539 = vadd.f32 %v4475, 0.0
    %v4540 = vadd.f32 %v4476, 0.0
    %v4541 = vadd.f32 %v4477, 0.0
    %v4542 = vadd.f32 %v4478, 0.0
    %v4543 = vadd.f32 %v4479, 0.0
    %v4544 = vadd.f32 %v4480, 0.0
    %v4545 = vadd.f32 %v4481, 0.0
    %v4546 = vadd.f32 %v4482, 0.0
    %v4547 = vadd.f32 %v4483, 0.0
    %v4548 = vadd.f32 %v4484, 0.0
    %v4549 = vadd.f32 %v4485, 0.0
    %v4550 = vadd.f32 %v4486, 0.0
    %v4551 = vadd.f32 %v4487, 0.0
    %v4552 = vadd.f32 %v4488, 0.0
    %v4553 = vadd.f32 %v4489, 0.0
    %v4554 = vadd.f32 %v4490, 0.0
    %v4555 = vadd.f32 %v4491, 0.0
    %v4556 = vadd.f32 %v4492, 0.0
    %v4557 = vadd.f32 %v4493, 0.0
    %v4558 = vadd.f32 %v4494, 0.0
    %v4559 = vadd.f32 %v4495, 0.0
    %v4560 = vadd.f32 %v4496, 0.0
    %v4561 = vadd.f32 %v4497, 0.0
    %v4562 = vadd.f32 %v4498, 0.0
    %v4563 = vadd.f32 %v4499, 0.0
    %v4564 = vadd.f32 %v4500, 0.0
    %v4565 = vadd.f32 %v4501, 0.0
    %v4566 = vadd.f32 %v4502, 0.0
    %v4567 = vadd.f32 %v4503, 0.0
    %v4568 = vadd.f32 %v4504, 0.0
    %v4569 = vadd.f32 %v4505, 0.0
    %v4570 = vadd.f32 %v4506, 0.0
    %v4571 = vadd.f32 %v4507, 0.0
    %v4572 = vadd.f32 %v4508, 0.0
    %v4573 = vadd.f32 %v4509, 0.0
    %v4574 = vadd.f32 %v4510, 0.0
    %v4575 = vadd.f32 %v4511, 0.0
    %v4576 = vadd.f32 %v4512, 0.0
    %v4577 = vadd.f32 %v4513, 0.0
    %v4578 = vadd.f32 %v4514, 0.0
    %v4579 = vadd.f32 %v4515, 0.0
    %v4580 = vadd.f32 %v4516, 0.0
    %v4581 = vadd.f32 %v4517, 0.0
    %v4582 = vadd.f32 %v4518, 0.0
    %v4583 = vadd.f32 %v4519, 0.0
    %v4584 = vadd.f32 %v4520, 0.0
    %v4585 = vadd.f32 %v4521, 0.0
    %v4586 = vadd.f32 %v4522, 0.0
    %v4587 = vld [vmem:[#allocation4 + $0x1] sm:$0xff]
    %v4588 = vld [vmem:[#allocation4 + $0x9] sm:$0xff]
    %v4589 = vld [vmem:[#allocation4 + $0x19] sm:$0xff]
    %v4590 = vld [vmem:[#allocation4 + $0x21] sm:$0xff]
    %v4591 = vld [vmem:[#allocation4 + $0x31] sm:$0xff]
    %v4592 = vld [vmem:[#allocation4 + $0x39] sm:$0xff]
    %v4593 = vld [vmem:[#allocation4 + $0x49] sm:$0xff]
    %v4594 = vld [vmem:[#allocation4 + $0x51] sm:$0xff]
    %v4595 = vld [vmem:[#allocation4 + $0x61] sm:$0xff]
    %v4596 = vld [vmem:[#allocation4 + $0x69] sm:$0xff]
    %v4597 = vld [vmem:[#allocation4 + $0x79] sm:$0xff]
    %v4598 = vld [vmem:[#allocation4 + $0x81] sm:$0xff]
    %v4599 = vld [vmem:[#allocation4 + $0x91] sm:$0xff]
    %v4600 = vld [vmem:[#allocation4 + $0x99] sm:$0xff]
    %v4601 = vld [vmem:[#allocation4 + $0xa9] sm:$0xff]
    %v4602 = vld [vmem:[#allocation4 + $0xb1] sm:$0xff]
    %v4603 = vld [vmem:[#allocation4 + $0xc1] sm:$0xff]
    %v4604 = vld [vmem:[#allocation4 + $0xc9] sm:$0xff]
    %v4605 = vld [vmem:[#allocation4 + $0xd9] sm:$0xff]
    %v4606 = vld [vmem:[#allocation4 + $0xe1] sm:$0xff]
    %v4607 = vld [vmem:[#allocation4 + $0xf1] sm:$0xff]
    %v4608 = vld [vmem:[#allocation4 + $0xf9] sm:$0xff]
    %v4609 = vld [vmem:[#allocation4 + $0x109] sm:$0xff]
    %v4610 = vld [vmem:[#allocation4 + $0x111] sm:$0xff]
    %v4611 = vld [vmem:[#allocation4 + $0x121] sm:$0xff]
    %v4612 = vld [vmem:[#allocation4 + $0x129] sm:$0xff]
    %v4613 = vld [vmem:[#allocation4 + $0x139] sm:$0xff]
    %v4614 = vld [vmem:[#allocation4 + $0x141] sm:$0xff]
    %v4615 = vld [vmem:[#allocation4 + $0x151] sm:$0xff]
    %v4616 = vld [vmem:[#allocation4 + $0x159] sm:$0xff]
    %v4617 = vld [vmem:[#allocation4 + $0x169] sm:$0xff]
    %v4618 = vld [vmem:[#allocation4 + $0x171] sm:$0xff]
    %v4619 = vld [vmem:[#allocation4 + $0x1b1] sm:$0xff]
    %v4620 = vld [vmem:[#allocation4 + $0x1b9] sm:$0xff]
    %v4621 = vld [vmem:[#allocation4 + $0x1c9] sm:$0xff]
    %v4622 = vld [vmem:[#allocation4 + $0x1d1] sm:$0xff]
    %v4623 = vld [vmem:[#allocation4 + $0x1e1] sm:$0xff]
    %v4624 = vld [vmem:[#allocation4 + $0x1e9] sm:$0xff]
    %v4625 = vld [vmem:[#allocation4 + $0x1f9] sm:$0xff]
    %v4626 = vld [vmem:[#allocation4 + $0x201] sm:$0xff]
    %v4627 = vld [vmem:[#allocation4 + $0x211] sm:$0xff]
    %v4628 = vld [vmem:[#allocation4 + $0x219] sm:$0xff]
    %v4629 = vld [vmem:[#allocation4 + $0x229] sm:$0xff]
    %v4630 = vld [vmem:[#allocation4 + $0x231] sm:$0xff]
    %v4631 = vld [vmem:[#allocation4 + $0x241] sm:$0xff]
    %v4632 = vld [vmem:[#allocation4 + $0x249] sm:$0xff]
    %v4633 = vld [vmem:[#allocation4 + $0x259] sm:$0xff]
    %v4634 = vld [vmem:[#allocation4 + $0x261] sm:$0xff]
    %v4635 = vld [vmem:[#allocation4 + $0x271] sm:$0xff]
    %v4636 = vld [vmem:[#allocation4 + $0x279] sm:$0xff]
    %v4637 = vld [vmem:[#allocation4 + $0x289] sm:$0xff]
    %v4638 = vld [vmem:[#allocation4 + $0x291] sm:$0xff]
    %v4639 = vld [vmem:[#allocation4 + $0x2a1] sm:$0xff]
    %v4640 = vld [vmem:[#allocation4 + $0x2a9] sm:$0xff]
    %v4641 = vld [vmem:[#allocation4 + $0x2b9] sm:$0xff]
    %v4642 = vld [vmem:[#allocation4 + $0x2c1] sm:$0xff]
    %v4643 = vld [vmem:[#allocation4 + $0x2d1] sm:$0xff]
    %v4644 = vld [vmem:[#allocation4 + $0x2d9] sm:$0xff]
    %v4645 = vld [vmem:[#allocation4 + $0x2e9] sm:$0xff]
    %v4646 = vld [vmem:[#allocation4 + $0x2f1] sm:$0xff]
    %v4647 = vld [vmem:[#allocation4 + $0x301] sm:$0xff]
    %v4648 = vld [vmem:[#allocation4 + $0x309] sm:$0xff]
    %v4649 = vld [vmem:[#allocation4 + $0x319] sm:$0xff]
    %v4650 = vld [vmem:[#allocation4 + $0x321] sm:$0xff]
    %v4651 = vld [vmem:[%s3 + $0x1] sm:$0x1]
    %v4652 = vlaneseq
    %v4653 = vshrl.u32 %v4652, 7
    %v4654 = vsub.s32 0, %v4653
    %v4655 = vrot.slane %v4651, %v4654
    %v4656 = vmul.f32 %v4587, %v4655
    %v4657 = vmul.f32 %v4588, %v4655
    %v4658 = vmul.f32 %v4589, %v4655
    %v4659 = vmul.f32 %v4590, %v4655
    %v4660 = vmul.f32 %v4591, %v4655
    %v4661 = vmul.f32 %v4592, %v4655
    %v4662 = vmul.f32 %v4593, %v4655
    %v4663 = vmul.f32 %v4594, %v4655
    %v4664 = vmul.f32 %v4595, %v4655
    %v4665 = vmul.f32 %v4596, %v4655
    %v4666 = vmul.f32 %v4597, %v4655
    %v4667 = vmul.f32 %v4598, %v4655
    %v4668 = vmul.f32 %v4599, %v4655
    %v4669 = vmul.f32 %v4600, %v4655
    %v4670 = vmul.f32 %v4601, %v4655
    %v4671 = vmul.f32 %v4602, %v4655
    %v4672 = vmul.f32 %v4603, %v4655
    %v4673 = vmul.f32 %v4604, %v4655
    %v4674 = vmul.f32 %v4605, %v4655
    %v4675 = vmul.f32 %v4606, %v4655
    %v4676 = vmul.f32 %v4607, %v4655
    %v4677 = vmul.f32 %v4608, %v4655
    %v4678 = vmul.f32 %v4609, %v4655
    %v4679 = vmul.f32 %v4610, %v4655
    %v4680 = vmul.f32 %v4611, %v4655
    %v4681 = vmul.f32 %v4612, %v4655
    %v4682 = vmul.f32 %v4613, %v4655
    %v4683 = vmul.f32 %v4614, %v4655
    %v4684 = vmul.f32 %v4615, %v4655
    %v4685 = vmul.f32 %v4616, %v4655
    %v4686 = vmul.f32 %v4617, %v4655
    %v4687 = vmul.f32 %v4618, %v4655
    %v4688 = vmul.f32 %v4619, %v4655
    %v4689 = vmul.f32 %v4620, %v4655
    %v4690 = vmul.f32 %v4621, %v4655
    %v4691 = vmul.f32 %v4622, %v4655
    %v4692 = vmul.f32 %v4623, %v4655
    %v4693 = vmul.f32 %v4624, %v4655
    %v4694 = vmul.f32 %v4625, %v4655
    %v4695 = vmul.f32 %v4626, %v4655
    %v4696 = vmul.f32 %v4627, %v4655
    %v4697 = vmul.f32 %v4628, %v4655
    %v4698 = vmul.f32 %v4629, %v4655
    %v4699 = vmul.f32 %v4630, %v4655
    %v4700 = vmul.f32 %v4631, %v4655
    %v4701 = vmul.f32 %v4632, %v4655
    %v4702 = vmul.f32 %v4633, %v4655
    %v4703 = vmul.f32 %v4634, %v4655
    %v4704 = vmul.f32 %v4635, %v4655
    %v4705 = vmul.f32 %v4636, %v4655
    %v4706 = vmul.f32 %v4637, %v4655
    %v4707 = vmul.f32 %v4638, %v4655
    %v4708 = vmul.f32 %v4639, %v4655
    %v4709 = vmul.f32 %v4640, %v4655
    %v4710 = vmul.f32 %v4641, %v4655
    %v4711 = vmul.f32 %v4642, %v4655
    %v4712 = vmul.f32 %v4643, %v4655
    %v4713 = vmul.f32 %v4644, %v4655
    %v4714 = vmul.f32 %v4645, %v4655
    %v4715 = vmul.f32 %v4646, %v4655
    %v4716 = vmul.f32 %v4647, %v4655
    %v4717 = vmul.f32 %v4648, %v4655
    %v4718 = vmul.f32 %v4649, %v4655
    %v4719 = vmul.f32 %v4650, %v4655
    %v4720 = vadd.f32 %v4523, %v4656
    %v4721 = vadd.f32 %v4524, %v4657
    %v4722 = vadd.f32 %v4525, %v4658
    %v4723 = vadd.f32 %v4526, %v4659
    %v4724 = vadd.f32 %v4527, %v4660
    %v4725 = vadd.f32 %v4528, %v4661
    %v4726 = vadd.f32 %v4529, %v4662
    %v4727 = vadd.f32 %v4530, %v4663
    %v4728 = vadd.f32 %v4531, %v4664
    %v4729 = vadd.f32 %v4532, %v4665
    %v4730 = vadd.f32 %v4533, %v4666
    %v4731 = vadd.f32 %v4534, %v4667
    %v4732 = vadd.f32 %v4535, %v4668
    %v4733 = vadd.f32 %v4536, %v4669
    %v4734 = vadd.f32 %v4537, %v4670
    %v4735 = vadd.f32 %v4538, %v4671
    %v4736 = vadd.f32 %v4539, %v4672
    %v4737 = vadd.f32 %v4540, %v4673
    %v4738 = vadd.f32 %v4541, %v4674
    %v4739 = vadd.f32 %v4542, %v4675
    %v4740 = vadd.f32 %v4543, %v4676
    %v4741 = vadd.f32 %v4544, %v4677
    %v4742 = vadd.f32 %v4545, %v4678
    %v4743 = vadd.f32 %v4546, %v4679
    %v4744 = vadd.f32 %v4547, %v4680
    %v4745 = vadd.f32 %v4548, %v4681
    %v4746 = vadd.f32 %v4549, %v4682
    %v4747 = vadd.f32 %v4550, %v4683
    %v4748 = vadd.f32 %v4551, %v4684
    %v4749 = vadd.f32 %v4552, %v4685
    %v4750 = vadd.f32 %v4553, %v4686
    %v4751 = vadd.f32 %v4554, %v4687
    %v4752 = vadd.f32 %v4555, %v4688
    %v4753 = vadd.f32 %v4556, %v4689
    %v4754 = vadd.f32 %v4557, %v4690
    %v4755 = vadd.f32 %v4558, %v4691
    %v4756 = vadd.f32 %v4559, %v4692
    %v4757 = vadd.f32 %v4560, %v4693
    %v4758 = vadd.f32 %v4561, %v4694
    %v4759 = vadd.f32 %v4562, %v4695
    %v4760 = vadd.f32 %v4563, %v4696
    %v4761 = vadd.f32 %v4564, %v4697
    %v4762 = vadd.f32 %v4565, %v4698
    %v4763 = vadd.f32 %v4566, %v4699
    %v4764 = vadd.f32 %v4567, %v4700
    %v4765 = vadd.f32 %v4568, %v4701
    %v4766 = vadd.f32 %v4569, %v4702
    %v4767 = vadd.f32 %v4570, %v4703
    %v4768 = vadd.f32 %v4571, %v4704
    %v4769 = vadd.f32 %v4572, %v4705
    %v4770 = vadd.f32 %v4573, %v4706
    %v4771 = vadd.f32 %v4574, %v4707
    %v4772 = vadd.f32 %v4575, %v4708
    %v4773 = vadd.f32 %v4576, %v4709
    %v4774 = vadd.f32 %v4577, %v4710
    %v4775 = vadd.f32 %v4578, %v4711
    %v4776 = vadd.f32 %v4579, %v4712
    %v4777 = vadd.f32 %v4580, %v4713
    %v4778 = vadd.f32 %v4581, %v4714
    %v4779 = vadd.f32 %v4582, %v4715
    %v4780 = vadd.f32 %v4583, %v4716
    %v4781 = vadd.f32 %v4584, %v4717
    %v4782 = vadd.f32 %v4585, %v4718
    %v4783 = vadd.f32 %v4586, %v4719
    %v4784 = vld [vmem:[#allocation4 + $0x2] sm:$0xff]
    %v4785 = vld [vmem:[#allocation4 + $0xa] sm:$0xff]
    %v4786 = vld [vmem:[#allocation4 + $0x1a] sm:$0xff]
    %v4787 = vld [vmem:[#allocation4 + $0x22] sm:$0xff]
    %v4788 = vld [vmem:[#allocation4 + $0x32] sm:$0xff]
    %v4789 = vld [vmem:[#allocation4 + $0x3a] sm:$0xff]
    %v4790 = vld [vmem:[#allocation4 + $0x4a] sm:$0xff]
    %v4791 = vld [vmem:[#allocation4 + $0x52] sm:$0xff]
    %v4792 = vld [vmem:[#allocation4 + $0x62] sm:$0xff]
    %v4793 = vld [vmem:[#allocation4 + $0x6a] sm:$0xff]
    %v4794 = vld [vmem:[#allocation4 + $0x7a] sm:$0xff]
    %v4795 = vld [vmem:[#allocation4 + $0x82] sm:$0xff]
    %v4796 = vld [vmem:[#allocation4 + $0x92] sm:$0xff]
    %v4797 = vld [vmem:[#allocation4 + $0x9a] sm:$0xff]
    %v4798 = vld [vmem:[#allocation4 + $0xaa] sm:$0xff]
    %v4799 = vld [vmem:[#allocation4 + $0xb2] sm:$0xff]
    %v4800 = vld [vmem:[#allocation4 + $0xc2] sm:$0xff]
    %v4801 = vld [vmem:[#allocation4 + $0xca] sm:$0xff]
    %v4802 = vld [vmem:[#allocation4 + $0xda] sm:$0xff]
    %v4803 = vld [vmem:[#allocation4 + $0xe2] sm:$0xff]
    %v4804 = vld [vmem:[#allocation4 + $0xf2] sm:$0xff]
    %v4805 = vld [vmem:[#allocation4 + $0xfa] sm:$0xff]
    %v4806 = vld [vmem:[#allocation4 + $0x10a] sm:$0xff]
    %v4807 = vld [vmem:[#allocation4 + $0x112] sm:$0xff]
    %v4808 = vld [vmem:[#allocation4 + $0x122] sm:$0xff]
    %v4809 = vld [vmem:[#allocation4 + $0x12a] sm:$0xff]
    %v4810 = vld [vmem:[#allocation4 + $0x13a] sm:$0xff]
    %v4811 = vld [vmem:[#allocation4 + $0x142] sm:$0xff]
    %v4812 = vld [vmem:[#allocation4 + $0x152] sm:$0xff]
    %v4813 = vld [vmem:[#allocation4 + $0x15a] sm:$0xff]
    %v4814 = vld [vmem:[#allocation4 + $0x16a] sm:$0xff]
    %v4815 = vld [vmem:[#allocation4 + $0x172] sm:$0xff]
    %v4816 = vld [vmem:[#allocation4 + $0x1b2] sm:$0xff]
    %v4817 = vld [vmem:[#allocation4 + $0x1ba] sm:$0xff]
    %v4818 = vld [vmem:[#allocation4 + $0x1ca] sm:$0xff]
    %v4819 = vld [vmem:[#allocation4 + $0x1d2] sm:$0xff]
    %v4820 = vld [vmem:[#allocation4 + $0x1e2] sm:$0xff]
    %v4821 = vld [vmem:[#allocation4 + $0x1ea] sm:$0xff]
    %v4822 = vld [vmem:[#allocation4 + $0x1fa] sm:$0xff]
    %v4823 = vld [vmem:[#allocation4 + $0x202] sm:$0xff]
    %v4824 = vld [vmem:[#allocation4 + $0x212] sm:$0xff]
    %v4825 = vld [vmem:[#allocation4 + $0x21a] sm:$0xff]
    %v4826 = vld [vmem:[#allocation4 + $0x22a] sm:$0xff]
    %v4827 = vld [vmem:[#allocation4 + $0x232] sm:$0xff]
    %v4828 = vld [vmem:[#allocation4 + $0x242] sm:$0xff]
    %v4829 = vld [vmem:[#allocation4 + $0x24a] sm:$0xff]
    %v4830 = vld [vmem:[#allocation4 + $0x25a] sm:$0xff]
    %v4831 = vld [vmem:[#allocation4 + $0x262] sm:$0xff]
    %v4832 = vld [vmem:[#allocation4 + $0x272] sm:$0xff]
    %v4833 = vld [vmem:[#allocation4 + $0x27a] sm:$0xff]
    %v4834 = vld [vmem:[#allocation4 + $0x28a] sm:$0xff]
    %v4835 = vld [vmem:[#allocation4 + $0x292] sm:$0xff]
    %v4836 = vld [vmem:[#allocation4 + $0x2a2] sm:$0xff]
    %v4837 = vld [vmem:[#allocation4 + $0x2aa] sm:$0xff]
    %v4838 = vld [vmem:[#allocation4 + $0x2ba] sm:$0xff]
    %v4839 = vld [vmem:[#allocation4 + $0x2c2] sm:$0xff]
    %v4840 = vld [vmem:[#allocation4 + $0x2d2] sm:$0xff]
    %v4841 = vld [vmem:[#allocation4 + $0x2da] sm:$0xff]
    %v4842 = vld [vmem:[#allocation4 + $0x2ea] sm:$0xff]
    %v4843 = vld [vmem:[#allocation4 + $0x2f2] sm:$0xff]
    %v4844 = vld [vmem:[#allocation4 + $0x302] sm:$0xff]
    %v4845 = vld [vmem:[#allocation4 + $0x30a] sm:$0xff]
    %v4846 = vld [vmem:[#allocation4 + $0x31a] sm:$0xff]
    %v4847 = vld [vmem:[#allocation4 + $0x322] sm:$0xff]
    %v4848 = vld [vmem:[%s3 + $0x2] sm:$0x1]
    %v4849 = vlaneseq
    %v4850 = vshrl.u32 %v4849, 7
    %v4851 = vsub.s32 0, %v4850
    %v4852 = vrot.slane %v4848, %v4851
    %v4853 = vmul.f32 %v4784, %v4852
    %v4854 = vmul.f32 %v4785, %v4852
    %v4855 = vmul.f32 %v4786, %v4852
    %v4856 = vmul.f32 %v4787, %v4852
    %v4857 = vmul.f32 %v4788, %v4852
    %v4858 = vmul.f32 %v4789, %v4852
    %v4859 = vmul.f32 %v4790, %v4852
    %v4860 = vmul.f32 %v4791, %v4852
    %v4861 = vmul.f32 %v4792, %v4852
    %v4862 = vmul.f32 %v4793, %v4852
    %v4863 = vmul.f32 %v4794, %v4852
    %v4864 = vmul.f32 %v4795, %v4852
    %v4865 = vmul.f32 %v4796, %v4852
    %v4866 = vmul.f32 %v4797, %v4852
    %v4867 = vmul.f32 %v4798, %v4852
    %v4868 = vmul.f32 %v4799, %v4852
    %v4869 = vmul.f32 %v4800, %v4852
    %v4870 = vmul.f32 %v4801, %v4852
    %v4871 = vmul.f32 %v4802, %v4852
    %v4872 = vmul.f32 %v4803, %v4852
    %v4873 = vmul.f32 %v4804, %v4852
    %v4874 = vmul.f32 %v4805, %v4852
    %v4875 = vmul.f32 %v4806, %v4852
    %v4876 = vmul.f32 %v4807, %v4852
    %v4877 = vmul.f32 %v4808, %v4852
    %v4878 = vmul.f32 %v4809, %v4852
    %v4879 = vmul.f32 %v4810, %v4852
    %v4880 = vmul.f32 %v4811, %v4852
    %v4881 = vmul.f32 %v4812, %v4852
    %v4882 = vmul.f32 %v4813, %v4852
    %v4883 = vmul.f32 %v4814, %v4852
    %v4884 = vmul.f32 %v4815, %v4852
    %v4885 = vmul.f32 %v4816, %v4852
    %v4886 = vmul.f32 %v4817, %v4852
    %v4887 = vmul.f32 %v4818, %v4852
    %v4888 = vmul.f32 %v4819, %v4852
    %v4889 = vmul.f32 %v4820, %v4852
    %v4890 = vmul.f32 %v4821, %v4852
    %v4891 = vmul.f32 %v4822, %v4852
    %v4892 = vmul.f32 %v4823, %v4852
    %v4893 = vmul.f32 %v4824, %v4852
    %v4894 = vmul.f32 %v4825, %v4852
    %v4895 = vmul.f32 %v4826, %v4852
    %v4896 = vmul.f32 %v4827, %v4852
    %v4897 = vmul.f32 %v4828, %v4852
    %v4898 = vmul.f32 %v4829, %v4852
    %v4899 = vmul.f32 %v4830, %v4852
    %v4900 = vmul.f32 %v4831, %v4852
    %v4901 = vmul.f32 %v4832, %v4852
    %v4902 = vmul.f32 %v4833, %v4852
    %v4903 = vmul.f32 %v4834, %v4852
    %v4904 = vmul.f32 %v4835, %v4852
    %v4905 = vmul.f32 %v4836, %v4852
    %v4906 = vmul.f32 %v4837, %v4852
    %v4907 = vmul.f32 %v4838, %v4852
    %v4908 = vmul.f32 %v4839, %v4852
    %v4909 = vmul.f32 %v4840, %v4852
    %v4910 = vmul.f32 %v4841, %v4852
    %v4911 = vmul.f32 %v4842, %v4852
    %v4912 = vmul.f32 %v4843, %v4852
    %v4913 = vmul.f32 %v4844, %v4852
    %v4914 = vmul.f32 %v4845, %v4852
    %v4915 = vmul.f32 %v4846, %v4852
    %v4916 = vmul.f32 %v4847, %v4852
    %v4917 = vadd.f32 %v4720, %v4853
    %v4918 = vadd.f32 %v4721, %v4854
    %v4919 = vadd.f32 %v4722, %v4855
    %v4920 = vadd.f32 %v4723, %v4856
    %v4921 = vadd.f32 %v4724, %v4857
    %v4922 = vadd.f32 %v4725, %v4858
    %v4923 = vadd.f32 %v4726, %v4859
    %v4924 = vadd.f32 %v4727, %v4860
    %v4925 = vadd.f32 %v4728, %v4861
    %v4926 = vadd.f32 %v4729, %v4862
    %v4927 = vadd.f32 %v4730, %v4863
    %v4928 = vadd.f32 %v4731, %v4864
    %v4929 = vadd.f32 %v4732, %v4865
    %v4930 = vadd.f32 %v4733, %v4866
    %v4931 = vadd.f32 %v4734, %v4867
    %v4932 = vadd.f32 %v4735, %v4868
    %v4933 = vadd.f32 %v4736, %v4869
    %v4934 = vadd.f32 %v4737, %v4870
    %v4935 = vadd.f32 %v4738, %v4871
    %v4936 = vadd.f32 %v4739, %v4872
    %v4937 = vadd.f32 %v4740, %v4873
    %v4938 = vadd.f32 %v4741, %v4874
    %v4939 = vadd.f32 %v4742, %v4875
    %v4940 = vadd.f32 %v4743, %v4876
    %v4941 = vadd.f32 %v4744, %v4877
    %v4942 = vadd.f32 %v4745, %v4878
    %v4943 = vadd.f32 %v4746, %v4879
    %v4944 = vadd.f32 %v4747, %v4880
    %v4945 = vadd.f32 %v4748, %v4881
    %v4946 = vadd.f32 %v4749, %v4882
    %v4947 = vadd.f32 %v4750, %v4883
    %v4948 = vadd.f32 %v4751, %v4884
    %v4949 = vadd.f32 %v4752, %v4885
    %v4950 = vadd.f32 %v4753, %v4886
    %v4951 = vadd.f32 %v4754, %v4887
    %v4952 = vadd.f32 %v4755, %v4888
    %v4953 = vadd.f32 %v4756, %v4889
    %v4954 = vadd.f32 %v4757, %v4890
    %v4955 = vadd.f32 %v4758, %v4891
    %v4956 = vadd.f32 %v4759, %v4892
    %v4957 = vadd.f32 %v4760, %v4893
    %v4958 = vadd.f32 %v4761, %v4894
    %v4959 = vadd.f32 %v4762, %v4895
    %v4960 = vadd.f32 %v4763, %v4896
    %v4961 = vadd.f32 %v4764, %v4897
    %v4962 = vadd.f32 %v4765, %v4898
    %v4963 = vadd.f32 %v4766, %v4899
    %v4964 = vadd.f32 %v4767, %v4900
    %v4965 = vadd.f32 %v4768, %v4901
    %v4966 = vadd.f32 %v4769, %v4902
    %v4967 = vadd.f32 %v4770, %v4903
    %v4968 = vadd.f32 %v4771, %v4904
    %v4969 = vadd.f32 %v4772, %v4905
    %v4970 = vadd.f32 %v4773, %v4906
    %v4971 = vadd.f32 %v4774, %v4907
    %v4972 = vadd.f32 %v4775, %v4908
    %v4973 = vadd.f32 %v4776, %v4909
    %v4974 = vadd.f32 %v4777, %v4910
    %v4975 = vadd.f32 %v4778, %v4911
    %v4976 = vadd.f32 %v4779, %v4912
    %v4977 = vadd.f32 %v4780, %v4913
    %v4978 = vadd.f32 %v4781, %v4914
    %v4979 = vadd.f32 %v4782, %v4915
    %v4980 = vadd.f32 %v4783, %v4916
    %v4981 = vld [vmem:[%s4325] sm:$0xff]
    %v4982 = vld [vmem:[%s4325 + $0x8] sm:$0xff]
    %v4983 = vld [vmem:[%s4325 + $0x18] sm:$0xff]
    %v4984 = vld [vmem:[%s4325 + $0x20] sm:$0xff]
    %v4985 = vld [vmem:[%s4325 + $0x30] sm:$0xff]
    %v4986 = vld [vmem:[%s4325 + $0x38] sm:$0xff]
    %v4987 = vld [vmem:[%s4325 + $0x48] sm:$0xff]
    %v4988 = vld [vmem:[%s4325 + $0x50] sm:$0xff]
    %v4989 = vld [vmem:[%s4325 + $0x60] sm:$0xff]
    %v4990 = vld [vmem:[%s4325 + $0x68] sm:$0xff]
    %v4991 = vld [vmem:[%s4325 + $0x78] sm:$0xff]
    %v4992 = vld [vmem:[%s4325 + $0x80] sm:$0xff]
    %v4993 = vld [vmem:[%s4325 + $0x90] sm:$0xff]
    %v4994 = vld [vmem:[%s4325 + $0x98] sm:$0xff]
    %v4995 = vld [vmem:[%s4325 + $0xa8] sm:$0xff]
    %v4996 = vld [vmem:[%s4325 + $0xb0] sm:$0xff]
    %v4997 = vld [vmem:[%s4325 + $0xc0] sm:$0xff]
    %v4998 = vld [vmem:[%s4325 + $0xc8] sm:$0xff]
    %v4999 = vld [vmem:[%s4325 + $0xd8] sm:$0xff]
    %v5000 = vld [vmem:[%s4325 + $0xe0] sm:$0xff]
    %v5001 = vld [vmem:[%s4325 + $0xf0] sm:$0xff]
    %v5002 = vld [vmem:[%s4325 + $0xf8] sm:$0xff]
    %v5003 = vld [vmem:[%s4325 + $0x108] sm:$0xff]
    %v5004 = vld [vmem:[%s4325 + $0x110] sm:$0xff]
    %v5005 = vld [vmem:[%s4325 + $0x120] sm:$0xff]
    %v5006 = vld [vmem:[%s4325 + $0x128] sm:$0xff]
    %v5007 = vld [vmem:[%s4325 + $0x138] sm:$0xff]
    %v5008 = vld [vmem:[%s4325 + $0x140] sm:$0xff]
    %v5009 = vld [vmem:[%s4325 + $0x150] sm:$0xff]
    %v5010 = vld [vmem:[%s4325 + $0x158] sm:$0xff]
    %v5011 = vld [vmem:[%s4325 + $0x168] sm:$0xff]
    %v5012 = vld [vmem:[%s4325 + $0x170] sm:$0xff]
    %v5013 = vld [vmem:[%s4325 + $0x1b0] sm:$0xff]
    %v5014 = vld [vmem:[%s4325 + $0x1b8] sm:$0xff]
    %v5015 = vld [vmem:[%s4325 + $0x1c8] sm:$0xff]
    %v5016 = vld [vmem:[%s4325 + $0x1d0] sm:$0xff]
    %v5017 = vld [vmem:[%s4325 + $0x1e0] sm:$0xff]
    %v5018 = vld [vmem:[%s4325 + $0x1e8] sm:$0xff]
    %v5019 = vld [vmem:[%s4325 + $0x1f8] sm:$0xff]
    %v5020 = vld [vmem:[%s4325 + $0x200] sm:$0xff]
    %v5021 = vld [vmem:[%s4325 + $0x210] sm:$0xff]
    %v5022 = vld [vmem:[%s4325 + $0x218] sm:$0xff]
    %v5023 = vld [vmem:[%s4325 + $0x228] sm:$0xff]
    %v5024 = vld [vmem:[%s4325 + $0x230] sm:$0xff]
    %v5025 = vld [vmem:[%s4325 + $0x240] sm:$0xff]
    %v5026 = vld [vmem:[%s4325 + $0x248] sm:$0xff]
    %v5027 = vld [vmem:[%s4325 + $0x258] sm:$0xff]
    %v5028 = vld [vmem:[%s4325 + $0x260] sm:$0xff]
    %v5029 = vld [vmem:[%s4325 + $0x270] sm:$0xff]
    %v5030 = vld [vmem:[%s4325 + $0x278] sm:$0xff]
    %v5031 = vld [vmem:[%s4325 + $0x288] sm:$0xff]
    %v5032 = vld [vmem:[%s4325 + $0x290] sm:$0xff]
    %v5033 = vld [vmem:[%s4325 + $0x2a0] sm:$0xff]
    %v5034 = vld [vmem:[%s4325 + $0x2a8] sm:$0xff]
    %v5035 = vld [vmem:[%s4325 + $0x2b8] sm:$0xff]
    %v5036 = vld [vmem:[%s4325 + $0x2c0] sm:$0xff]
    %v5037 = vld [vmem:[%s4325 + $0x2d0] sm:$0xff]
    %v5038 = vld [vmem:[%s4325 + $0x2d8] sm:$0xff]
    %v5039 = vld [vmem:[%s4325 + $0x2e8] sm:$0xff]
    %v5040 = vld [vmem:[%s4325 + $0x2f0] sm:$0xff]
    %v5041 = vld [vmem:[%s4325 + $0x300] sm:$0xff]
    %v5042 = vld [vmem:[%s4325 + $0x308] sm:$0xff]
    %v5043 = vld [vmem:[%s4325 + $0x318] sm:$0xff]
    %v5044 = vld [vmem:[%s4325 + $0x320] sm:$0xff]
    %s5045 = scalar_lea.vmem %s3, 4
    %v5046 = vld [vmem:[%s5045] sm:$0x1]
    %v5047 = vlaneseq
    %v5048 = vshrl.u32 %v5047, 7
    %v5049 = vsub.s32 0, %v5048
    %v5050 = vrot.slane %v5046, %v5049
    %v5051 = vmul.f32 %v4981, %v5050
    %v5052 = vmul.f32 %v4982, %v5050
    %v5053 = vmul.f32 %v4983, %v5050
    %v5054 = vmul.f32 %v4984, %v5050
    %v5055 = vmul.f32 %v4985, %v5050
    %v5056 = vmul.f32 %v4986, %v5050
    %v5057 = vmul.f32 %v4987, %v5050
    %v5058 = vmul.f32 %v4988, %v5050
    %v5059 = vmul.f32 %v4989, %v5050
    %v5060 = vmul.f32 %v4990, %v5050
    %v5061 = vmul.f32 %v4991, %v5050
    %v5062 = vmul.f32 %v4992, %v5050
    %v5063 = vmul.f32 %v4993, %v5050
    %v5064 = vmul.f32 %v4994, %v5050
    %v5065 = vmul.f32 %v4995, %v5050
    %v5066 = vmul.f32 %v4996, %v5050
    %v5067 = vmul.f32 %v4997, %v5050
    %v5068 = vmul.f32 %v4998, %v5050
    %v5069 = vmul.f32 %v4999, %v5050
    %v5070 = vmul.f32 %v5000, %v5050
    %v5071 = vmul.f32 %v5001, %v5050
    %v5072 = vmul.f32 %v5002, %v5050
    %v5073 = vmul.f32 %v5003, %v5050
    %v5074 = vmul.f32 %v5004, %v5050
    %v5075 = vmul.f32 %v5005, %v5050
    %v5076 = vmul.f32 %v5006, %v5050
    %v5077 = vmul.f32 %v5007, %v5050
    %v5078 = vmul.f32 %v5008, %v5050
    %v5079 = vmul.f32 %v5009, %v5050
    %v5080 = vmul.f32 %v5010, %v5050
    %v5081 = vmul.f32 %v5011, %v5050
    %v5082 = vmul.f32 %v5012, %v5050
    %v5083 = vmul.f32 %v5013, %v5050
    %v5084 = vmul.f32 %v5014, %v5050
    %v5085 = vmul.f32 %v5015, %v5050
    %v5086 = vmul.f32 %v5016, %v5050
    %v5087 = vmul.f32 %v5017, %v5050
    %v5088 = vmul.f32 %v5018, %v5050
    %v5089 = vmul.f32 %v5019, %v5050
    %v5090 = vmul.f32 %v5020, %v5050
    %v5091 = vmul.f32 %v5021, %v5050
    %v5092 = vmul.f32 %v5022, %v5050
    %v5093 = vmul.f32 %v5023, %v5050
    %v5094 = vmul.f32 %v5024, %v5050
    %v5095 = vmul.f32 %v5025, %v5050
    %v5096 = vmul.f32 %v5026, %v5050
    %v5097 = vmul.f32 %v5027, %v5050
    %v5098 = vmul.f32 %v5028, %v5050
    %v5099 = vmul.f32 %v5029, %v5050
    %v5100 = vmul.f32 %v5030, %v5050
    %v5101 = vmul.f32 %v5031, %v5050
    %v5102 = vmul.f32 %v5032, %v5050
    %v5103 = vmul.f32 %v5033, %v5050
    %v5104 = vmul.f32 %v5034, %v5050
    %v5105 = vmul.f32 %v5035, %v5050
    %v5106 = vmul.f32 %v5036, %v5050
    %v5107 = vmul.f32 %v5037, %v5050
    %v5108 = vmul.f32 %v5038, %v5050
    %v5109 = vmul.f32 %v5039, %v5050
    %v5110 = vmul.f32 %v5040, %v5050
    %v5111 = vmul.f32 %v5041, %v5050
    %v5112 = vmul.f32 %v5042, %v5050
    %v5113 = vmul.f32 %v5043, %v5050
    %v5114 = vmul.f32 %v5044, %v5050
    %v5115 = vadd.f32 %v4917, %v5051
    %v5116 = vadd.f32 %v4918, %v5052
    %v5117 = vadd.f32 %v4919, %v5053
    %v5118 = vadd.f32 %v4920, %v5054
    %v5119 = vadd.f32 %v4921, %v5055
    %v5120 = vadd.f32 %v4922, %v5056
    %v5121 = vadd.f32 %v4923, %v5057
    %v5122 = vadd.f32 %v4924, %v5058
    %v5123 = vadd.f32 %v4925, %v5059
    %v5124 = vadd.f32 %v4926, %v5060
    %v5125 = vadd.f32 %v4927, %v5061
    %v5126 = vadd.f32 %v4928, %v5062
    %v5127 = vadd.f32 %v4929, %v5063
    %v5128 = vadd.f32 %v4930, %v5064
    %v5129 = vadd.f32 %v4931, %v5065
    %v5130 = vadd.f32 %v4932, %v5066
    %v5131 = vadd.f32 %v4933, %v5067
    %v5132 = vadd.f32 %v4934, %v5068
    %v5133 = vadd.f32 %v4935, %v5069
    %v5134 = vadd.f32 %v4936, %v5070
    %v5135 = vadd.f32 %v4937, %v5071
    %v5136 = vadd.f32 %v4938, %v5072
    %v5137 = vadd.f32 %v4939, %v5073
    %v5138 = vadd.f32 %v4940, %v5074
    %v5139 = vadd.f32 %v4941, %v5075
    %v5140 = vadd.f32 %v4942, %v5076
    %v5141 = vadd.f32 %v4943, %v5077
    %v5142 = vadd.f32 %v4944, %v5078
    %v5143 = vadd.f32 %v4945, %v5079
    %v5144 = vadd.f32 %v4946, %v5080
    %v5145 = vadd.f32 %v4947, %v5081
    %v5146 = vadd.f32 %v4948, %v5082
    %v5147 = vadd.f32 %v4949, %v5083
    %v5148 = vadd.f32 %v4950, %v5084
    %v5149 = vadd.f32 %v4951, %v5085
    %v5150 = vadd.f32 %v4952, %v5086
    %v5151 = vadd.f32 %v4953, %v5087
    %v5152 = vadd.f32 %v4954, %v5088
    %v5153 = vadd.f32 %v4955, %v5089
    %v5154 = vadd.f32 %v4956, %v5090
    %v5155 = vadd.f32 %v4957, %v5091
    %v5156 = vadd.f32 %v4958, %v5092
    %v5157 = vadd.f32 %v4959, %v5093
    %v5158 = vadd.f32 %v4960, %v5094
    %v5159 = vadd.f32 %v4961, %v5095
    %v5160 = vadd.f32 %v4962, %v5096
    %v5161 = vadd.f32 %v4963, %v5097
    %v5162 = vadd.f32 %v4964, %v5098
    %v5163 = vadd.f32 %v4965, %v5099
    %v5164 = vadd.f32 %v4966, %v5100
    %v5165 = vadd.f32 %v4967, %v5101
    %v5166 = vadd.f32 %v4968, %v5102
    %v5167 = vadd.f32 %v4969, %v5103
    %v5168 = vadd.f32 %v4970, %v5104
    %v5169 = vadd.f32 %v4971, %v5105
    %v5170 = vadd.f32 %v4972, %v5106
    %v5171 = vadd.f32 %v4973, %v5107
    %v5172 = vadd.f32 %v4974, %v5108
    %v5173 = vadd.f32 %v4975, %v5109
    %v5174 = vadd.f32 %v4976, %v5110
    %v5175 = vadd.f32 %v4977, %v5111
    %v5176 = vadd.f32 %v4978, %v5112
    %v5177 = vadd.f32 %v4979, %v5113
    %v5178 = vadd.f32 %v4980, %v5114
    %v5179 = vld [vmem:[%s4325 + $0x1] sm:$0xff]
    %v5180 = vld [vmem:[%s4325 + $0x9] sm:$0xff]
    %v5181 = vld [vmem:[%s4325 + $0x19] sm:$0xff]
    %v5182 = vld [vmem:[%s4325 + $0x21] sm:$0xff]
    %v5183 = vld [vmem:[%s4325 + $0x31] sm:$0xff]
    %v5184 = vld [vmem:[%s4325 + $0x39] sm:$0xff]
    %v5185 = vld [vmem:[%s4325 + $0x49] sm:$0xff]
    %v5186 = vld [vmem:[%s4325 + $0x51] sm:$0xff]
    %v5187 = vld [vmem:[%s4325 + $0x61] sm:$0xff]
    %v5188 = vld [vmem:[%s4325 + $0x69] sm:$0xff]
    %v5189 = vld [vmem:[%s4325 + $0x79] sm:$0xff]
    %v5190 = vld [vmem:[%s4325 + $0x81] sm:$0xff]
    %v5191 = vld [vmem:[%s4325 + $0x91] sm:$0xff]
    %v5192 = vld [vmem:[%s4325 + $0x99] sm:$0xff]
    %v5193 = vld [vmem:[%s4325 + $0xa9] sm:$0xff]
    %v5194 = vld [vmem:[%s4325 + $0xb1] sm:$0xff]
    %v5195 = vld [vmem:[%s4325 + $0xc1] sm:$0xff]
    %v5196 = vld [vmem:[%s4325 + $0xc9] sm:$0xff]
    %v5197 = vld [vmem:[%s4325 + $0xd9] sm:$0xff]
    %v5198 = vld [vmem:[%s4325 + $0xe1] sm:$0xff]
    %v5199 = vld [vmem:[%s4325 + $0xf1] sm:$0xff]
    %v5200 = vld [vmem:[%s4325 + $0xf9] sm:$0xff]
    %v5201 = vld [vmem:[%s4325 + $0x109] sm:$0xff]
    %v5202 = vld [vmem:[%s4325 + $0x111] sm:$0xff]
    %v5203 = vld [vmem:[%s4325 + $0x121] sm:$0xff]
    %v5204 = vld [vmem:[%s4325 + $0x129] sm:$0xff]
    %v5205 = vld [vmem:[%s4325 + $0x139] sm:$0xff]
    %v5206 = vld [vmem:[%s4325 + $0x141] sm:$0xff]
    %v5207 = vld [vmem:[%s4325 + $0x151] sm:$0xff]
    %v5208 = vld [vmem:[%s4325 + $0x159] sm:$0xff]
    %v5209 = vld [vmem:[%s4325 + $0x169] sm:$0xff]
    %v5210 = vld [vmem:[%s4325 + $0x171] sm:$0xff]
    %v5211 = vld [vmem:[%s4325 + $0x1b1] sm:$0xff]
    %v5212 = vld [vmem:[%s4325 + $0x1b9] sm:$0xff]
    %v5213 = vld [vmem:[%s4325 + $0x1c9] sm:$0xff]
    %v5214 = vld [vmem:[%s4325 + $0x1d1] sm:$0xff]
    %v5215 = vld [vmem:[%s4325 + $0x1e1] sm:$0xff]
    %v5216 = vld [vmem:[%s4325 + $0x1e9] sm:$0xff]
    %v5217 = vld [vmem:[%s4325 + $0x1f9] sm:$0xff]
    %v5218 = vld [vmem:[%s4325 + $0x201] sm:$0xff]
    %v5219 = vld [vmem:[%s4325 + $0x211] sm:$0xff]
    %v5220 = vld [vmem:[%s4325 + $0x219] sm:$0xff]
    %v5221 = vld [vmem:[%s4325 + $0x229] sm:$0xff]
    %v5222 = vld [vmem:[%s4325 + $0x231] sm:$0xff]
    %v5223 = vld [vmem:[%s4325 + $0x241] sm:$0xff]
    %v5224 = vld [vmem:[%s4325 + $0x249] sm:$0xff]
    %v5225 = vld [vmem:[%s4325 + $0x259] sm:$0xff]
    %v5226 = vld [vmem:[%s4325 + $0x261] sm:$0xff]
    %v5227 = vld [vmem:[%s4325 + $0x271] sm:$0xff]
    %v5228 = vld [vmem:[%s4325 + $0x279] sm:$0xff]
    %v5229 = vld [vmem:[%s4325 + $0x289] sm:$0xff]
    %v5230 = vld [vmem:[%s4325 + $0x291] sm:$0xff]
    %v5231 = vld [vmem:[%s4325 + $0x2a1] sm:$0xff]
    %v5232 = vld [vmem:[%s4325 + $0x2a9] sm:$0xff]
    %v5233 = vld [vmem:[%s4325 + $0x2b9] sm:$0xff]
    %v5234 = vld [vmem:[%s4325 + $0x2c1] sm:$0xff]
    %v5235 = vld [vmem:[%s4325 + $0x2d1] sm:$0xff]
    %v5236 = vld [vmem:[%s4325 + $0x2d9] sm:$0xff]
    %v5237 = vld [vmem:[%s4325 + $0x2e9] sm:$0xff]
    %v5238 = vld [vmem:[%s4325 + $0x2f1] sm:$0xff]
    %v5239 = vld [vmem:[%s4325 + $0x301] sm:$0xff]
    %v5240 = vld [vmem:[%s4325 + $0x309] sm:$0xff]
    %v5241 = vld [vmem:[%s4325 + $0x319] sm:$0xff]
    %v5242 = vld [vmem:[%s4325 + $0x321] sm:$0xff]
    %v5243 = vld [vmem:[%s5045 + $0x1] sm:$0x1]
    %v5244 = vlaneseq
    %v5245 = vshrl.u32 %v5244, 7
    %v5246 = vsub.s32 0, %v5245
    %v5247 = vrot.slane %v5243, %v5246
    %v5248 = vmul.f32 %v5179, %v5247
    %v5249 = vmul.f32 %v5180, %v5247
    %v5250 = vmul.f32 %v5181, %v5247
    %v5251 = vmul.f32 %v5182, %v5247
    %v5252 = vmul.f32 %v5183, %v5247
    %v5253 = vmul.f32 %v5184, %v5247
    %v5254 = vmul.f32 %v5185, %v5247
    %v5255 = vmul.f32 %v5186, %v5247
    %v5256 = vmul.f32 %v5187, %v5247
    %v5257 = vmul.f32 %v5188, %v5247
    %v5258 = vmul.f32 %v5189, %v5247
    %v5259 = vmul.f32 %v5190, %v5247
    %v5260 = vmul.f32 %v5191, %v5247
    %v5261 = vmul.f32 %v5192, %v5247
    %v5262 = vmul.f32 %v5193, %v5247
    %v5263 = vmul.f32 %v5194, %v5247
    %v5264 = vmul.f32 %v5195, %v5247
    %v5265 = vmul.f32 %v5196, %v5247
    %v5266 = vmul.f32 %v5197, %v5247
    %v5267 = vmul.f32 %v5198, %v5247
    %v5268 = vmul.f32 %v5199, %v5247
    %v5269 = vmul.f32 %v5200, %v5247
    %v5270 = vmul.f32 %v5201, %v5247
    %v5271 = vmul.f32 %v5202, %v5247
    %v5272 = vmul.f32 %v5203, %v5247
    %v5273 = vmul.f32 %v5204, %v5247
    %v5274 = vmul.f32 %v5205, %v5247
    %v5275 = vmul.f32 %v5206, %v5247
    %v5276 = vmul.f32 %v5207, %v5247
    %v5277 = vmul.f32 %v5208, %v5247
    %v5278 = vmul.f32 %v5209, %v5247
    %v5279 = vmul.f32 %v5210, %v5247
    %v5280 = vmul.f32 %v5211, %v5247
    %v5281 = vmul.f32 %v5212, %v5247
    %v5282 = vmul.f32 %v5213, %v5247
    %v5283 = vmul.f32 %v5214, %v5247
    %v5284 = vmul.f32 %v5215, %v5247
    %v5285 = vmul.f32 %v5216, %v5247
    %v5286 = vmul.f32 %v5217, %v5247
    %v5287 = vmul.f32 %v5218, %v5247
    %v5288 = vmul.f32 %v5219, %v5247
    %v5289 = vmul.f32 %v5220, %v5247
    %v5290 = vmul.f32 %v5221, %v5247
    %v5291 = vmul.f32 %v5222, %v5247
    %v5292 = vmul.f32 %v5223, %v5247
    %v5293 = vmul.f32 %v5224, %v5247
    %v5294 = vmul.f32 %v5225, %v5247
    %v5295 = vmul.f32 %v5226, %v5247
    %v5296 = vmul.f32 %v5227, %v5247
    %v5297 = vmul.f32 %v5228, %v5247
    %v5298 = vmul.f32 %v5229, %v5247
    %v5299 = vmul.f32 %v5230, %v5247
    %v5300 = vmul.f32 %v5231, %v5247
    %v5301 = vmul.f32 %v5232, %v5247
    %v5302 = vmul.f32 %v5233, %v5247
    %v5303 = vmul.f32 %v5234, %v5247
    %v5304 = vmul.f32 %v5235, %v5247
    %v5305 = vmul.f32 %v5236, %v5247
    %v5306 = vmul.f32 %v5237, %v5247
    %v5307 = vmul.f32 %v5238, %v5247
    %v5308 = vmul.f32 %v5239, %v5247
    %v5309 = vmul.f32 %v5240, %v5247
    %v5310 = vmul.f32 %v5241, %v5247
    %v5311 = vmul.f32 %v5242, %v5247
    %v5312 = vadd.f32 %v5115, %v5248
    %v5313 = vadd.f32 %v5116, %v5249
    %v5314 = vadd.f32 %v5117, %v5250
    %v5315 = vadd.f32 %v5118, %v5251
    %v5316 = vadd.f32 %v5119, %v5252
    %v5317 = vadd.f32 %v5120, %v5253
    %v5318 = vadd.f32 %v5121, %v5254
    %v5319 = vadd.f32 %v5122, %v5255
    %v5320 = vadd.f32 %v5123, %v5256
    %v5321 = vadd.f32 %v5124, %v5257
    %v5322 = vadd.f32 %v5125, %v5258
    %v5323 = vadd.f32 %v5126, %v5259
    %v5324 = vadd.f32 %v5127, %v5260
    %v5325 = vadd.f32 %v5128, %v5261
    %v5326 = vadd.f32 %v5129, %v5262
    %v5327 = vadd.f32 %v5130, %v5263
    %v5328 = vadd.f32 %v5131, %v5264
    %v5329 = vadd.f32 %v5132, %v5265
    %v5330 = vadd.f32 %v5133, %v5266
    %v5331 = vadd.f32 %v5134, %v5267
    %v5332 = vadd.f32 %v5135, %v5268
    %v5333 = vadd.f32 %v5136, %v5269
    %v5334 = vadd.f32 %v5137, %v5270
    %v5335 = vadd.f32 %v5138, %v5271
    %v5336 = vadd.f32 %v5139, %v5272
    %v5337 = vadd.f32 %v5140, %v5273
    %v5338 = vadd.f32 %v5141, %v5274
    %v5339 = vadd.f32 %v5142, %v5275
    %v5340 = vadd.f32 %v5143, %v5276
    %v5341 = vadd.f32 %v5144, %v5277
    %v5342 = vadd.f32 %v5145, %v5278
    %v5343 = vadd.f32 %v5146, %v5279
    %v5344 = vadd.f32 %v5147, %v5280
    %v5345 = vadd.f32 %v5148, %v5281
    %v5346 = vadd.f32 %v5149, %v5282
    %v5347 = vadd.f32 %v5150, %v5283
    %v5348 = vadd.f32 %v5151, %v5284
    %v5349 = vadd.f32 %v5152, %v5285
    %v5350 = vadd.f32 %v5153, %v5286
    %v5351 = vadd.f32 %v5154, %v5287
    %v5352 = vadd.f32 %v5155, %v5288
    %v5353 = vadd.f32 %v5156, %v5289
    %v5354 = vadd.f32 %v5157, %v5290
    %v5355 = vadd.f32 %v5158, %v5291
    %v5356 = vadd.f32 %v5159, %v5292
    %v5357 = vadd.f32 %v5160, %v5293
    %v5358 = vadd.f32 %v5161, %v5294
    %v5359 = vadd.f32 %v5162, %v5295
    %v5360 = vadd.f32 %v5163, %v5296
    %v5361 = vadd.f32 %v5164, %v5297
    %v5362 = vadd.f32 %v5165, %v5298
    %v5363 = vadd.f32 %v5166, %v5299
    %v5364 = vadd.f32 %v5167, %v5300
    %v5365 = vadd.f32 %v5168, %v5301
    %v5366 = vadd.f32 %v5169, %v5302
    %v5367 = vadd.f32 %v5170, %v5303
    %v5368 = vadd.f32 %v5171, %v5304
    %v5369 = vadd.f32 %v5172, %v5305
    %v5370 = vadd.f32 %v5173, %v5306
    %v5371 = vadd.f32 %v5174, %v5307
    %v5372 = vadd.f32 %v5175, %v5308
    %v5373 = vadd.f32 %v5176, %v5309
    %v5374 = vadd.f32 %v5177, %v5310
    %v5375 = vadd.f32 %v5178, %v5311
    %v5376 = vld [vmem:[%s4325 + $0x2] sm:$0xff]
    %v5377 = vld [vmem:[%s4325 + $0xa] sm:$0xff]
    %v5378 = vld [vmem:[%s4325 + $0x1a] sm:$0xff]
    %v5379 = vld [vmem:[%s4325 + $0x22] sm:$0xff]
    %v5380 = vld [vmem:[%s4325 + $0x32] sm:$0xff]
    %v5381 = vld [vmem:[%s4325 + $0x3a] sm:$0xff]
    %v5382 = vld [vmem:[%s4325 + $0x4a] sm:$0xff]
    %v5383 = vld [vmem:[%s4325 + $0x52] sm:$0xff]
    %v5384 = vld [vmem:[%s4325 + $0x62] sm:$0xff]
    %v5385 = vld [vmem:[%s4325 + $0x6a] sm:$0xff]
    %v5386 = vld [vmem:[%s4325 + $0x7a] sm:$0xff]
    %v5387 = vld [vmem:[%s4325 + $0x82] sm:$0xff]
    %v5388 = vld [vmem:[%s4325 + $0x92] sm:$0xff]
    %v5389 = vld [vmem:[%s4325 + $0x9a] sm:$0xff]
    %v5390 = vld [vmem:[%s4325 + $0xaa] sm:$0xff]
    %v5391 = vld [vmem:[%s4325 + $0xb2] sm:$0xff]
    %v5392 = vld [vmem:[%s4325 + $0xc2] sm:$0xff]
    %v5393 = vld [vmem:[%s4325 + $0xca] sm:$0xff]
    %v5394 = vld [vmem:[%s4325 + $0xda] sm:$0xff]
    %v5395 = vld [vmem:[%s4325 + $0xe2] sm:$0xff]
    %v5396 = vld [vmem:[%s4325 + $0xf2] sm:$0xff]
    %v5397 = vld [vmem:[%s4325 + $0xfa] sm:$0xff]
    %v5398 = vld [vmem:[%s4325 + $0x10a] sm:$0xff]
    %v5399 = vld [vmem:[%s4325 + $0x112] sm:$0xff]
    %v5400 = vld [vmem:[%s4325 + $0x122] sm:$0xff]
    %v5401 = vld [vmem:[%s4325 + $0x12a] sm:$0xff]
    %v5402 = vld [vmem:[%s4325 + $0x13a] sm:$0xff]
    %v5403 = vld [vmem:[%s4325 + $0x142] sm:$0xff]
    %v5404 = vld [vmem:[%s4325 + $0x152] sm:$0xff]
    %v5405 = vld [vmem:[%s4325 + $0x15a] sm:$0xff]
    %v5406 = vld [vmem:[%s4325 + $0x16a] sm:$0xff]
    %v5407 = vld [vmem:[%s4325 + $0x172] sm:$0xff]
    %v5408 = vld [vmem:[%s4325 + $0x1b2] sm:$0xff]
    %v5409 = vld [vmem:[%s4325 + $0x1ba] sm:$0xff]
    %v5410 = vld [vmem:[%s4325 + $0x1ca] sm:$0xff]
    %v5411 = vld [vmem:[%s4325 + $0x1d2] sm:$0xff]
    %v5412 = vld [vmem:[%s4325 + $0x1e2] sm:$0xff]
    %v5413 = vld [vmem:[%s4325 + $0x1ea] sm:$0xff]
    %v5414 = vld [vmem:[%s4325 + $0x1fa] sm:$0xff]
    %v5415 = vld [vmem:[%s4325 + $0x202] sm:$0xff]
    %v5416 = vld [vmem:[%s4325 + $0x212] sm:$0xff]
    %v5417 = vld [vmem:[%s4325 + $0x21a] sm:$0xff]
    %v5418 = vld [vmem:[%s4325 + $0x22a] sm:$0xff]
    %v5419 = vld [vmem:[%s4325 + $0x232] sm:$0xff]
    %v5420 = vld [vmem:[%s4325 + $0x242] sm:$0xff]
    %v5421 = vld [vmem:[%s4325 + $0x24a] sm:$0xff]
    %v5422 = vld [vmem:[%s4325 + $0x25a] sm:$0xff]
    %v5423 = vld [vmem:[%s4325 + $0x262] sm:$0xff]
    %v5424 = vld [vmem:[%s4325 + $0x272] sm:$0xff]
    %v5425 = vld [vmem:[%s4325 + $0x27a] sm:$0xff]
    %v5426 = vld [vmem:[%s4325 + $0x28a] sm:$0xff]
    %v5427 = vld [vmem:[%s4325 + $0x292] sm:$0xff]
    %v5428 = vld [vmem:[%s4325 + $0x2a2] sm:$0xff]
    %v5429 = vld [vmem:[%s4325 + $0x2aa] sm:$0xff]
    %v5430 = vld [vmem:[%s4325 + $0x2ba] sm:$0xff]
    %v5431 = vld [vmem:[%s4325 + $0x2c2] sm:$0xff]
    %v5432 = vld [vmem:[%s4325 + $0x2d2] sm:$0xff]
    %v5433 = vld [vmem:[%s4325 + $0x2da] sm:$0xff]
    %v5434 = vld [vmem:[%s4325 + $0x2ea] sm:$0xff]
    %v5435 = vld [vmem:[%s4325 + $0x2f2] sm:$0xff]
    %v5436 = vld [vmem:[%s4325 + $0x302] sm:$0xff]
    %v5437 = vld [vmem:[%s4325 + $0x30a] sm:$0xff]
    %v5438 = vld [vmem:[%s4325 + $0x31a] sm:$0xff]
    %v5439 = vld [vmem:[%s4325 + $0x322] sm:$0xff]
    %v5440 = vld [vmem:[%s5045 + $0x2] sm:$0x1]
    %v5441 = vlaneseq
    %v5442 = vshrl.u32 %v5441, 7
    %v5443 = vsub.s32 0, %v5442
    %v5444 = vrot.slane %v5440, %v5443
    %v5445 = vmul.f32 %v5376, %v5444
    %v5446 = vmul.f32 %v5377, %v5444
    %v5447 = vmul.f32 %v5378, %v5444
    %v5448 = vmul.f32 %v5379, %v5444
    %v5449 = vmul.f32 %v5380, %v5444
    %v5450 = vmul.f32 %v5381, %v5444
    %v5451 = vmul.f32 %v5382, %v5444
    %v5452 = vmul.f32 %v5383, %v5444
    %v5453 = vmul.f32 %v5384, %v5444
    %v5454 = vmul.f32 %v5385, %v5444
    %v5455 = vmul.f32 %v5386, %v5444
    %v5456 = vmul.f32 %v5387, %v5444
    %v5457 = vmul.f32 %v5388, %v5444
    %v5458 = vmul.f32 %v5389, %v5444
    %v5459 = vmul.f32 %v5390, %v5444
    %v5460 = vmul.f32 %v5391, %v5444
    %v5461 = vmul.f32 %v5392, %v5444
    %v5462 = vmul.f32 %v5393, %v5444
    %v5463 = vmul.f32 %v5394, %v5444
    %v5464 = vmul.f32 %v5395, %v5444
    %v5465 = vmul.f32 %v5396, %v5444
    %v5466 = vmul.f32 %v5397, %v5444
    %v5467 = vmul.f32 %v5398, %v5444
    %v5468 = vmul.f32 %v5399, %v5444
    %v5469 = vmul.f32 %v5400, %v5444
    %v5470 = vmul.f32 %v5401, %v5444
    %v5471 = vmul.f32 %v5402, %v5444
    %v5472 = vmul.f32 %v5403, %v5444
    %v5473 = vmul.f32 %v5404, %v5444
    %v5474 = vmul.f32 %v5405, %v5444
    %v5475 = vmul.f32 %v5406, %v5444
    %v5476 = vmul.f32 %v5407, %v5444
    %v5477 = vmul.f32 %v5408, %v5444
    %v5478 = vmul.f32 %v5409, %v5444
    %v5479 = vmul.f32 %v5410, %v5444
    %v5480 = vmul.f32 %v5411, %v5444
    %v5481 = vmul.f32 %v5412, %v5444
    %v5482 = vmul.f32 %v5413, %v5444
    %v5483 = vmul.f32 %v5414, %v5444
    %v5484 = vmul.f32 %v5415, %v5444
    %v5485 = vmul.f32 %v5416, %v5444
    %v5486 = vmul.f32 %v5417, %v5444
    %v5487 = vmul.f32 %v5418, %v5444
    %v5488 = vmul.f32 %v5419, %v5444
    %v5489 = vmul.f32 %v5420, %v5444
    %v5490 = vmul.f32 %v5421, %v5444
    %v5491 = vmul.f32 %v5422, %v5444
    %v5492 = vmul.f32 %v5423, %v5444
    %v5493 = vmul.f32 %v5424, %v5444
    %v5494 = vmul.f32 %v5425, %v5444
    %v5495 = vmul.f32 %v5426, %v5444
    %v5496 = vmul.f32 %v5427, %v5444
    %v5497 = vmul.f32 %v5428, %v5444
    %v5498 = vmul.f32 %v5429, %v5444
    %v5499 = vmul.f32 %v5430, %v5444
    %v5500 = vmul.f32 %v5431, %v5444
    %v5501 = vmul.f32 %v5432, %v5444
    %v5502 = vmul.f32 %v5433, %v5444
    %v5503 = vmul.f32 %v5434, %v5444
    %v5504 = vmul.f32 %v5435, %v5444
    %v5505 = vmul.f32 %v5436, %v5444
    %v5506 = vmul.f32 %v5437, %v5444
    %v5507 = vmul.f32 %v5438, %v5444
    %v5508 = vmul.f32 %v5439, %v5444
    %v5509 = vadd.f32 %v5312, %v5445
    %v5510 = vadd.f32 %v5313, %v5446
    %v5511 = vadd.f32 %v5314, %v5447
    %v5512 = vadd.f32 %v5315, %v5448
    %v5513 = vadd.f32 %v5316, %v5449
    %v5514 = vadd.f32 %v5317, %v5450
    %v5515 = vadd.f32 %v5318, %v5451
    %v5516 = vadd.f32 %v5319, %v5452
    %v5517 = vadd.f32 %v5320, %v5453
    %v5518 = vadd.f32 %v5321, %v5454
    %v5519 = vadd.f32 %v5322, %v5455
    %v5520 = vadd.f32 %v5323, %v5456
    %v5521 = vadd.f32 %v5324, %v5457
    %v5522 = vadd.f32 %v5325, %v5458
    %v5523 = vadd.f32 %v5326, %v5459
    %v5524 = vadd.f32 %v5327, %v5460
    %v5525 = vadd.f32 %v5328, %v5461
    %v5526 = vadd.f32 %v5329, %v5462
    %v5527 = vadd.f32 %v5330, %v5463
    %v5528 = vadd.f32 %v5331, %v5464
    %v5529 = vadd.f32 %v5332, %v5465
    %v5530 = vadd.f32 %v5333, %v5466
    %v5531 = vadd.f32 %v5334, %v5467
    %v5532 = vadd.f32 %v5335, %v5468
    %v5533 = vadd.f32 %v5336, %v5469
    %v5534 = vadd.f32 %v5337, %v5470
    %v5535 = vadd.f32 %v5338, %v5471
    %v5536 = vadd.f32 %v5339, %v5472
    %v5537 = vadd.f32 %v5340, %v5473
    %v5538 = vadd.f32 %v5341, %v5474
    %v5539 = vadd.f32 %v5342, %v5475
    %v5540 = vadd.f32 %v5343, %v5476
    %v5541 = vadd.f32 %v5344, %v5477
    %v5542 = vadd.f32 %v5345, %v5478
    %v5543 = vadd.f32 %v5346, %v5479
    %v5544 = vadd.f32 %v5347, %v5480
    %v5545 = vadd.f32 %v5348, %v5481
    %v5546 = vadd.f32 %v5349, %v5482
    %v5547 = vadd.f32 %v5350, %v5483
    %v5548 = vadd.f32 %v5351, %v5484
    %v5549 = vadd.f32 %v5352, %v5485
    %v5550 = vadd.f32 %v5353, %v5486
    %v5551 = vadd.f32 %v5354, %v5487
    %v5552 = vadd.f32 %v5355, %v5488
    %v5553 = vadd.f32 %v5356, %v5489
    %v5554 = vadd.f32 %v5357, %v5490
    %v5555 = vadd.f32 %v5358, %v5491
    %v5556 = vadd.f32 %v5359, %v5492
    %v5557 = vadd.f32 %v5360, %v5493
    %v5558 = vadd.f32 %v5361, %v5494
    %v5559 = vadd.f32 %v5362, %v5495
    %v5560 = vadd.f32 %v5363, %v5496
    %v5561 = vadd.f32 %v5364, %v5497
    %v5562 = vadd.f32 %v5365, %v5498
    %v5563 = vadd.f32 %v5366, %v5499
    %v5564 = vadd.f32 %v5367, %v5500
    %v5565 = vadd.f32 %v5368, %v5501
    %v5566 = vadd.f32 %v5369, %v5502
    %v5567 = vadd.f32 %v5370, %v5503
    %v5568 = vadd.f32 %v5371, %v5504
    %v5569 = vadd.f32 %v5372, %v5505
    %v5570 = vadd.f32 %v5373, %v5506
    %v5571 = vadd.f32 %v5374, %v5507
    %v5572 = vadd.f32 %v5375, %v5508
    %s5573 = scalar_lea.vmem [#allocation4], 48
    %v5574 = vld [vmem:[%s5573] sm:$0xff]
    %v5575 = vld [vmem:[%s5573 + $0x8] sm:$0xff]
    %v5576 = vld [vmem:[%s5573 + $0x18] sm:$0xff]
    %v5577 = vld [vmem:[%s5573 + $0x20] sm:$0xff]
    %v5578 = vld [vmem:[%s5573 + $0x30] sm:$0xff]
    %v5579 = vld [vmem:[%s5573 + $0x38] sm:$0xff]
    %v5580 = vld [vmem:[%s5573 + $0x48] sm:$0xff]
    %v5581 = vld [vmem:[%s5573 + $0x50] sm:$0xff]
    %v5582 = vld [vmem:[%s5573 + $0x60] sm:$0xff]
    %v5583 = vld [vmem:[%s5573 + $0x68] sm:$0xff]
    %v5584 = vld [vmem:[%s5573 + $0x78] sm:$0xff]
    %v5585 = vld [vmem:[%s5573 + $0x80] sm:$0xff]
    %v5586 = vld [vmem:[%s5573 + $0x90] sm:$0xff]
    %v5587 = vld [vmem:[%s5573 + $0x98] sm:$0xff]
    %v5588 = vld [vmem:[%s5573 + $0xa8] sm:$0xff]
    %v5589 = vld [vmem:[%s5573 + $0xb0] sm:$0xff]
    %v5590 = vld [vmem:[%s5573 + $0xc0] sm:$0xff]
    %v5591 = vld [vmem:[%s5573 + $0xc8] sm:$0xff]
    %v5592 = vld [vmem:[%s5573 + $0xd8] sm:$0xff]
    %v5593 = vld [vmem:[%s5573 + $0xe0] sm:$0xff]
    %v5594 = vld [vmem:[%s5573 + $0xf0] sm:$0xff]
    %v5595 = vld [vmem:[%s5573 + $0xf8] sm:$0xff]
    %v5596 = vld [vmem:[%s5573 + $0x108] sm:$0xff]
    %v5597 = vld [vmem:[%s5573 + $0x110] sm:$0xff]
    %v5598 = vld [vmem:[%s5573 + $0x120] sm:$0xff]
    %v5599 = vld [vmem:[%s5573 + $0x128] sm:$0xff]
    %v5600 = vld [vmem:[%s5573 + $0x138] sm:$0xff]
    %v5601 = vld [vmem:[%s5573 + $0x140] sm:$0xff]
    %v5602 = vld [vmem:[%s5573 + $0x150] sm:$0xff]
    %v5603 = vld [vmem:[%s5573 + $0x158] sm:$0xff]
    %v5604 = vld [vmem:[%s5573 + $0x168] sm:$0xff]
    %v5605 = vld [vmem:[%s5573 + $0x170] sm:$0xff]
    %v5606 = vld [vmem:[%s5573 + $0x1b0] sm:$0xff]
    %v5607 = vld [vmem:[%s5573 + $0x1b8] sm:$0xff]
    %v5608 = vld [vmem:[%s5573 + $0x1c8] sm:$0xff]
    %v5609 = vld [vmem:[%s5573 + $0x1d0] sm:$0xff]
    %v5610 = vld [vmem:[%s5573 + $0x1e0] sm:$0xff]
    %v5611 = vld [vmem:[%s5573 + $0x1e8] sm:$0xff]
    %v5612 = vld [vmem:[%s5573 + $0x1f8] sm:$0xff]
    %v5613 = vld [vmem:[%s5573 + $0x200] sm:$0xff]
    %v5614 = vld [vmem:[%s5573 + $0x210] sm:$0xff]
    %v5615 = vld [vmem:[%s5573 + $0x218] sm:$0xff]
    %v5616 = vld [vmem:[%s5573 + $0x228] sm:$0xff]
    %v5617 = vld [vmem:[%s5573 + $0x230] sm:$0xff]
    %v5618 = vld [vmem:[%s5573 + $0x240] sm:$0xff]
    %v5619 = vld [vmem:[%s5573 + $0x248] sm:$0xff]
    %v5620 = vld [vmem:[%s5573 + $0x258] sm:$0xff]
    %v5621 = vld [vmem:[%s5573 + $0x260] sm:$0xff]
    %v5622 = vld [vmem:[%s5573 + $0x270] sm:$0xff]
    %v5623 = vld [vmem:[%s5573 + $0x278] sm:$0xff]
    %v5624 = vld [vmem:[%s5573 + $0x288] sm:$0xff]
    %v5625 = vld [vmem:[%s5573 + $0x290] sm:$0xff]
    %v5626 = vld [vmem:[%s5573 + $0x2a0] sm:$0xff]
    %v5627 = vld [vmem:[%s5573 + $0x2a8] sm:$0xff]
    %v5628 = vld [vmem:[%s5573 + $0x2b8] sm:$0xff]
    %v5629 = vld [vmem:[%s5573 + $0x2c0] sm:$0xff]
    %v5630 = vld [vmem:[%s5573 + $0x2d0] sm:$0xff]
    %v5631 = vld [vmem:[%s5573 + $0x2d8] sm:$0xff]
    %v5632 = vld [vmem:[%s5573 + $0x2e8] sm:$0xff]
    %v5633 = vld [vmem:[%s5573 + $0x2f0] sm:$0xff]
    %v5634 = vld [vmem:[%s5573 + $0x300] sm:$0xff]
    %v5635 = vld [vmem:[%s5573 + $0x308] sm:$0xff]
    %v5636 = vld [vmem:[%s5573 + $0x318] sm:$0xff]
    %v5637 = vld [vmem:[%s5573 + $0x320] sm:$0xff]
    %s5638 = scalar_lea.vmem %s3, 8
    %v5639 = vld [vmem:[%s5638] sm:$0x1]
    %v5640 = vlaneseq
    %v5641 = vshrl.u32 %v5640, 7
    %v5642 = vsub.s32 0, %v5641
    %v5643 = vrot.slane %v5639, %v5642
    %v5644 = vmul.f32 %v5574, %v5643
    %v5645 = vmul.f32 %v5575, %v5643
    %v5646 = vmul.f32 %v5576, %v5643
    %v5647 = vmul.f32 %v5577, %v5643
    %v5648 = vmul.f32 %v5578, %v5643
    %v5649 = vmul.f32 %v5579, %v5643
    %v5650 = vmul.f32 %v5580, %v5643
    %v5651 = vmul.f32 %v5581, %v5643
    %v5652 = vmul.f32 %v5582, %v5643
    %v5653 = vmul.f32 %v5583, %v5643
    %v5654 = vmul.f32 %v5584, %v5643
    %v5655 = vmul.f32 %v5585, %v5643
    %v5656 = vmul.f32 %v5586, %v5643
    %v5657 = vmul.f32 %v5587, %v5643
    %v5658 = vmul.f32 %v5588, %v5643
    %v5659 = vmul.f32 %v5589, %v5643
    %v5660 = vmul.f32 %v5590, %v5643
    %v5661 = vmul.f32 %v5591, %v5643
    %v5662 = vmul.f32 %v5592, %v5643
    %v5663 = vmul.f32 %v5593, %v5643
    %v5664 = vmul.f32 %v5594, %v5643
    %v5665 = vmul.f32 %v5595, %v5643
    %v5666 = vmul.f32 %v5596, %v5643
    %v5667 = vmul.f32 %v5597, %v5643
    %v5668 = vmul.f32 %v5598, %v5643
    %v5669 = vmul.f32 %v5599, %v5643
    %v5670 = vmul.f32 %v5600, %v5643
    %v5671 = vmul.f32 %v5601, %v5643
    %v5672 = vmul.f32 %v5602, %v5643
    %v5673 = vmul.f32 %v5603, %v5643
    %v5674 = vmul.f32 %v5604, %v5643
    %v5675 = vmul.f32 %v5605, %v5643
    %v5676 = vmul.f32 %v5606, %v5643
    %v5677 = vmul.f32 %v5607, %v5643
    %v5678 = vmul.f32 %v5608, %v5643
    %v5679 = vmul.f32 %v5609, %v5643
    %v5680 = vmul.f32 %v5610, %v5643
    %v5681 = vmul.f32 %v5611, %v5643
    %v5682 = vmul.f32 %v5612, %v5643
    %v5683 = vmul.f32 %v5613, %v5643
    %v5684 = vmul.f32 %v5614, %v5643
    %v5685 = vmul.f32 %v5615, %v5643
    %v5686 = vmul.f32 %v5616, %v5643
    %v5687 = vmul.f32 %v5617, %v5643
    %v5688 = vmul.f32 %v5618, %v5643
    %v5689 = vmul.f32 %v5619, %v5643
    %v5690 = vmul.f32 %v5620, %v5643
    %v5691 = vmul.f32 %v5621, %v5643
    %v5692 = vmul.f32 %v5622, %v5643
    %v5693 = vmul.f32 %v5623, %v5643
    %v5694 = vmul.f32 %v5624, %v5643
    %v5695 = vmul.f32 %v5625, %v5643
    %v5696 = vmul.f32 %v5626, %v5643
    %v5697 = vmul.f32 %v5627, %v5643
    %v5698 = vmul.f32 %v5628, %v5643
    %v5699 = vmul.f32 %v5629, %v5643
    %v5700 = vmul.f32 %v5630, %v5643
    %v5701 = vmul.f32 %v5631, %v5643
    %v5702 = vmul.f32 %v5632, %v5643
    %v5703 = vmul.f32 %v5633, %v5643
    %v5704 = vmul.f32 %v5634, %v5643
    %v5705 = vmul.f32 %v5635, %v5643
    %v5706 = vmul.f32 %v5636, %v5643
    %v5707 = vmul.f32 %v5637, %v5643
    %v5708 = vadd.f32 %v5509, %v5644
    %v5709 = vadd.f32 %v5510, %v5645
    %v5710 = vadd.f32 %v5511, %v5646
    %v5711 = vadd.f32 %v5512, %v5647
    %v5712 = vadd.f32 %v5513, %v5648
    %v5713 = vadd.f32 %v5514, %v5649
    %v5714 = vadd.f32 %v5515, %v5650
    %v5715 = vadd.f32 %v5516, %v5651
    %v5716 = vadd.f32 %v5517, %v5652
    %v5717 = vadd.f32 %v5518, %v5653
    %v5718 = vadd.f32 %v5519, %v5654
    %v5719 = vadd.f32 %v5520, %v5655
    %v5720 = vadd.f32 %v5521, %v5656
    %v5721 = vadd.f32 %v5522, %v5657
    %v5722 = vadd.f32 %v5523, %v5658
    %v5723 = vadd.f32 %v5524, %v5659
    %v5724 = vadd.f32 %v5525, %v5660
    %v5725 = vadd.f32 %v5526, %v5661
    %v5726 = vadd.f32 %v5527, %v5662
    %v5727 = vadd.f32 %v5528, %v5663
    %v5728 = vadd.f32 %v5529, %v5664
    %v5729 = vadd.f32 %v5530, %v5665
    %v5730 = vadd.f32 %v5531, %v5666
    %v5731 = vadd.f32 %v5532, %v5667
    %v5732 = vadd.f32 %v5533, %v5668
    %v5733 = vadd.f32 %v5534, %v5669
    %v5734 = vadd.f32 %v5535, %v5670
    %v5735 = vadd.f32 %v5536, %v5671
    %v5736 = vadd.f32 %v5537, %v5672
    %v5737 = vadd.f32 %v5538, %v5673
    %v5738 = vadd.f32 %v5539, %v5674
    %v5739 = vadd.f32 %v5540, %v5675
    %v5740 = vadd.f32 %v5541, %v5676
    %v5741 = vadd.f32 %v5542, %v5677
    %v5742 = vadd.f32 %v5543, %v5678
    %v5743 = vadd.f32 %v5544, %v5679
    %v5744 = vadd.f32 %v5545, %v5680
    %v5745 = vadd.f32 %v5546, %v5681
    %v5746 = vadd.f32 %v5547, %v5682
    %v5747 = vadd.f32 %v5548, %v5683
    %v5748 = vadd.f32 %v5549, %v5684
    %v5749 = vadd.f32 %v5550, %v5685
    %v5750 = vadd.f32 %v5551, %v5686
    %v5751 = vadd.f32 %v5552, %v5687
    %v5752 = vadd.f32 %v5553, %v5688
    %v5753 = vadd.f32 %v5554, %v5689
    %v5754 = vadd.f32 %v5555, %v5690
    %v5755 = vadd.f32 %v5556, %v5691
    %v5756 = vadd.f32 %v5557, %v5692
    %v5757 = vadd.f32 %v5558, %v5693
    %v5758 = vadd.f32 %v5559, %v5694
    %v5759 = vadd.f32 %v5560, %v5695
    %v5760 = vadd.f32 %v5561, %v5696
    %v5761 = vadd.f32 %v5562, %v5697
    %v5762 = vadd.f32 %v5563, %v5698
    %v5763 = vadd.f32 %v5564, %v5699
    %v5764 = vadd.f32 %v5565, %v5700
    %v5765 = vadd.f32 %v5566, %v5701
    %v5766 = vadd.f32 %v5567, %v5702
    %v5767 = vadd.f32 %v5568, %v5703
    %v5768 = vadd.f32 %v5569, %v5704
    %v5769 = vadd.f32 %v5570, %v5705
    %v5770 = vadd.f32 %v5571, %v5706
    %v5771 = vadd.f32 %v5572, %v5707
    %v5772 = vld [vmem:[%s5573 + $0x1] sm:$0xff]
    %v5773 = vld [vmem:[%s5573 + $0x9] sm:$0xff]
    %v5774 = vld [vmem:[%s5573 + $0x19] sm:$0xff]
    %v5775 = vld [vmem:[%s5573 + $0x21] sm:$0xff]
    %v5776 = vld [vmem:[%s5573 + $0x31] sm:$0xff]
    %v5777 = vld [vmem:[%s5573 + $0x39] sm:$0xff]
    %v5778 = vld [vmem:[%s5573 + $0x49] sm:$0xff]
    %v5779 = vld [vmem:[%s5573 + $0x51] sm:$0xff]
    %v5780 = vld [vmem:[%s5573 + $0x61] sm:$0xff]
    %v5781 = vld [vmem:[%s5573 + $0x69] sm:$0xff]
    %v5782 = vld [vmem:[%s5573 + $0x79] sm:$0xff]
    %v5783 = vld [vmem:[%s5573 + $0x81] sm:$0xff]
    %v5784 = vld [vmem:[%s5573 + $0x91] sm:$0xff]
    %v5785 = vld [vmem:[%s5573 + $0x99] sm:$0xff]
    %v5786 = vld [vmem:[%s5573 + $0xa9] sm:$0xff]
    %v5787 = vld [vmem:[%s5573 + $0xb1] sm:$0xff]
    %v5788 = vld [vmem:[%s5573 + $0xc1] sm:$0xff]
    %v5789 = vld [vmem:[%s5573 + $0xc9] sm:$0xff]
    %v5790 = vld [vmem:[%s5573 + $0xd9] sm:$0xff]
    %v5791 = vld [vmem:[%s5573 + $0xe1] sm:$0xff]
    %v5792 = vld [vmem:[%s5573 + $0xf1] sm:$0xff]
    %v5793 = vld [vmem:[%s5573 + $0xf9] sm:$0xff]
    %v5794 = vld [vmem:[%s5573 + $0x109] sm:$0xff]
    %v5795 = vld [vmem:[%s5573 + $0x111] sm:$0xff]
    %v5796 = vld [vmem:[%s5573 + $0x121] sm:$0xff]
    %v5797 = vld [vmem:[%s5573 + $0x129] sm:$0xff]
    %v5798 = vld [vmem:[%s5573 + $0x139] sm:$0xff]
    %v5799 = vld [vmem:[%s5573 + $0x141] sm:$0xff]
    %v5800 = vld [vmem:[%s5573 + $0x151] sm:$0xff]
    %v5801 = vld [vmem:[%s5573 + $0x159] sm:$0xff]
    %v5802 = vld [vmem:[%s5573 + $0x169] sm:$0xff]
    %v5803 = vld [vmem:[%s5573 + $0x171] sm:$0xff]
    %v5804 = vld [vmem:[%s5573 + $0x1b1] sm:$0xff]
    %v5805 = vld [vmem:[%s5573 + $0x1b9] sm:$0xff]
    %v5806 = vld [vmem:[%s5573 + $0x1c9] sm:$0xff]
    %v5807 = vld [vmem:[%s5573 + $0x1d1] sm:$0xff]
    %v5808 = vld [vmem:[%s5573 + $0x1e1] sm:$0xff]
    %v5809 = vld [vmem:[%s5573 + $0x1e9] sm:$0xff]
    %v5810 = vld [vmem:[%s5573 + $0x1f9] sm:$0xff]
    %v5811 = vld [vmem:[%s5573 + $0x201] sm:$0xff]
    %v5812 = vld [vmem:[%s5573 + $0x211] sm:$0xff]
    %v5813 = vld [vmem:[%s5573 + $0x219] sm:$0xff]
    %v5814 = vld [vmem:[%s5573 + $0x229] sm:$0xff]
    %v5815 = vld [vmem:[%s5573 + $0x231] sm:$0xff]
    %v5816 = vld [vmem:[%s5573 + $0x241] sm:$0xff]
    %v5817 = vld [vmem:[%s5573 + $0x249] sm:$0xff]
    %v5818 = vld [vmem:[%s5573 + $0x259] sm:$0xff]
    %v5819 = vld [vmem:[%s5573 + $0x261] sm:$0xff]
    %v5820 = vld [vmem:[%s5573 + $0x271] sm:$0xff]
    %v5821 = vld [vmem:[%s5573 + $0x279] sm:$0xff]
    %v5822 = vld [vmem:[%s5573 + $0x289] sm:$0xff]
    %v5823 = vld [vmem:[%s5573 + $0x291] sm:$0xff]
    %v5824 = vld [vmem:[%s5573 + $0x2a1] sm:$0xff]
    %v5825 = vld [vmem:[%s5573 + $0x2a9] sm:$0xff]
    %v5826 = vld [vmem:[%s5573 + $0x2b9] sm:$0xff]
    %v5827 = vld [vmem:[%s5573 + $0x2c1] sm:$0xff]
    %v5828 = vld [vmem:[%s5573 + $0x2d1] sm:$0xff]
    %v5829 = vld [vmem:[%s5573 + $0x2d9] sm:$0xff]
    %v5830 = vld [vmem:[%s5573 + $0x2e9] sm:$0xff]
    %v5831 = vld [vmem:[%s5573 + $0x2f1] sm:$0xff]
    %v5832 = vld [vmem:[%s5573 + $0x301] sm:$0xff]
    %v5833 = vld [vmem:[%s5573 + $0x309] sm:$0xff]
    %v5834 = vld [vmem:[%s5573 + $0x319] sm:$0xff]
    %v5835 = vld [vmem:[%s5573 + $0x321] sm:$0xff]
    %v5836 = vld [vmem:[%s5638 + $0x1] sm:$0x1]
    %v5837 = vlaneseq
    %v5838 = vshrl.u32 %v5837, 7
    %v5839 = vsub.s32 0, %v5838
    %v5840 = vrot.slane %v5836, %v5839
    %v5841 = vmul.f32 %v5772, %v5840
    %v5842 = vmul.f32 %v5773, %v5840
    %v5843 = vmul.f32 %v5774, %v5840
    %v5844 = vmul.f32 %v5775, %v5840
    %v5845 = vmul.f32 %v5776, %v5840
    %v5846 = vmul.f32 %v5777, %v5840
    %v5847 = vmul.f32 %v5778, %v5840
    %v5848 = vmul.f32 %v5779, %v5840
    %v5849 = vmul.f32 %v5780, %v5840
    %v5850 = vmul.f32 %v5781, %v5840
    %v5851 = vmul.f32 %v5782, %v5840
    %v5852 = vmul.f32 %v5783, %v5840
    %v5853 = vmul.f32 %v5784, %v5840
    %v5854 = vmul.f32 %v5785, %v5840
    %v5855 = vmul.f32 %v5786, %v5840
    %v5856 = vmul.f32 %v5787, %v5840
    %v5857 = vmul.f32 %v5788, %v5840
    %v5858 = vmul.f32 %v5789, %v5840
    %v5859 = vmul.f32 %v5790, %v5840
    %v5860 = vmul.f32 %v5791, %v5840
    %v5861 = vmul.f32 %v5792, %v5840
    %v5862 = vmul.f32 %v5793, %v5840
    %v5863 = vmul.f32 %v5794, %v5840
    %v5864 = vmul.f32 %v5795, %v5840
    %v5865 = vmul.f32 %v5796, %v5840
    %v5866 = vmul.f32 %v5797, %v5840
    %v5867 = vmul.f32 %v5798, %v5840
    %v5868 = vmul.f32 %v5799, %v5840
    %v5869 = vmul.f32 %v5800, %v5840
    %v5870 = vmul.f32 %v5801, %v5840
    %v5871 = vmul.f32 %v5802, %v5840
    %v5872 = vmul.f32 %v5803, %v5840
    %v5873 = vmul.f32 %v5804, %v5840
    %v5874 = vmul.f32 %v5805, %v5840
    %v5875 = vmul.f32 %v5806, %v5840
    %v5876 = vmul.f32 %v5807, %v5840
    %v5877 = vmul.f32 %v5808, %v5840
    %v5878 = vmul.f32 %v5809, %v5840
    %v5879 = vmul.f32 %v5810, %v5840
    %v5880 = vmul.f32 %v5811, %v5840
    %v5881 = vmul.f32 %v5812, %v5840
    %v5882 = vmul.f32 %v5813, %v5840
    %v5883 = vmul.f32 %v5814, %v5840
    %v5884 = vmul.f32 %v5815, %v5840
    %v5885 = vmul.f32 %v5816, %v5840
    %v5886 = vmul.f32 %v5817, %v5840
    %v5887 = vmul.f32 %v5818, %v5840
    %v5888 = vmul.f32 %v5819, %v5840
    %v5889 = vmul.f32 %v5820, %v5840
    %v5890 = vmul.f32 %v5821, %v5840
    %v5891 = vmul.f32 %v5822, %v5840
    %v5892 = vmul.f32 %v5823, %v5840
    %v5893 = vmul.f32 %v5824, %v5840
    %v5894 = vmul.f32 %v5825, %v5840
    %v5895 = vmul.f32 %v5826, %v5840
    %v5896 = vmul.f32 %v5827, %v5840
    %v5897 = vmul.f32 %v5828, %v5840
    %v5898 = vmul.f32 %v5829, %v5840
    %v5899 = vmul.f32 %v5830, %v5840
    %v5900 = vmul.f32 %v5831, %v5840
    %v5901 = vmul.f32 %v5832, %v5840
    %v5902 = vmul.f32 %v5833, %v5840
    %v5903 = vmul.f32 %v5834, %v5840
    %v5904 = vmul.f32 %v5835, %v5840
    %v5905 = vadd.f32 %v5708, %v5841
    %v5906 = vadd.f32 %v5709, %v5842
    %v5907 = vadd.f32 %v5710, %v5843
    %v5908 = vadd.f32 %v5711, %v5844
    %v5909 = vadd.f32 %v5712, %v5845
    %v5910 = vadd.f32 %v5713, %v5846
    %v5911 = vadd.f32 %v5714, %v5847
    %v5912 = vadd.f32 %v5715, %v5848
    %v5913 = vadd.f32 %v5716, %v5849
    %v5914 = vadd.f32 %v5717, %v5850
    %v5915 = vadd.f32 %v5718, %v5851
    %v5916 = vadd.f32 %v5719, %v5852
    %v5917 = vadd.f32 %v5720, %v5853
    %v5918 = vadd.f32 %v5721, %v5854
    %v5919 = vadd.f32 %v5722, %v5855
    %v5920 = vadd.f32 %v5723, %v5856
    %v5921 = vadd.f32 %v5724, %v5857
    %v5922 = vadd.f32 %v5725, %v5858
    %v5923 = vadd.f32 %v5726, %v5859
    %v5924 = vadd.f32 %v5727, %v5860
    %v5925 = vadd.f32 %v5728, %v5861
    %v5926 = vadd.f32 %v5729, %v5862
    %v5927 = vadd.f32 %v5730, %v5863
    %v5928 = vadd.f32 %v5731, %v5864
    %v5929 = vadd.f32 %v5732, %v5865
    %v5930 = vadd.f32 %v5733, %v5866
    %v5931 = vadd.f32 %v5734, %v5867
    %v5932 = vadd.f32 %v5735, %v5868
    %v5933 = vadd.f32 %v5736, %v5869
    %v5934 = vadd.f32 %v5737, %v5870
    %v5935 = vadd.f32 %v5738, %v5871
    %v5936 = vadd.f32 %v5739, %v5872
    %v5937 = vadd.f32 %v5740, %v5873
    %v5938 = vadd.f32 %v5741, %v5874
    %v5939 = vadd.f32 %v5742, %v5875
    %v5940 = vadd.f32 %v5743, %v5876
    %v5941 = vadd.f32 %v5744, %v5877
    %v5942 = vadd.f32 %v5745, %v5878
    %v5943 = vadd.f32 %v5746, %v5879
    %v5944 = vadd.f32 %v5747, %v5880
    %v5945 = vadd.f32 %v5748, %v5881
    %v5946 = vadd.f32 %v5749, %v5882
    %v5947 = vadd.f32 %v5750, %v5883
    %v5948 = vadd.f32 %v5751, %v5884
    %v5949 = vadd.f32 %v5752, %v5885
    %v5950 = vadd.f32 %v5753, %v5886
    %v5951 = vadd.f32 %v5754, %v5887
    %v5952 = vadd.f32 %v5755, %v5888
    %v5953 = vadd.f32 %v5756, %v5889
    %v5954 = vadd.f32 %v5757, %v5890
    %v5955 = vadd.f32 %v5758, %v5891
    %v5956 = vadd.f32 %v5759, %v5892
    %v5957 = vadd.f32 %v5760, %v5893
    %v5958 = vadd.f32 %v5761, %v5894
    %v5959 = vadd.f32 %v5762, %v5895
    %v5960 = vadd.f32 %v5763, %v5896
    %v5961 = vadd.f32 %v5764, %v5897
    %v5962 = vadd.f32 %v5765, %v5898
    %v5963 = vadd.f32 %v5766, %v5899
    %v5964 = vadd.f32 %v5767, %v5900
    %v5965 = vadd.f32 %v5768, %v5901
    %v5966 = vadd.f32 %v5769, %v5902
    %v5967 = vadd.f32 %v5770, %v5903
    %v5968 = vadd.f32 %v5771, %v5904
    %v5969 = vld [vmem:[%s5573 + $0x2] sm:$0xff]
    %v5970 = vld [vmem:[%s5573 + $0xa] sm:$0xff]
    %v5971 = vld [vmem:[%s5573 + $0x1a] sm:$0xff]
    %v5972 = vld [vmem:[%s5573 + $0x22] sm:$0xff]
    %v5973 = vld [vmem:[%s5573 + $0x32] sm:$0xff]
    %v5974 = vld [vmem:[%s5573 + $0x3a] sm:$0xff]
    %v5975 = vld [vmem:[%s5573 + $0x4a] sm:$0xff]
    %v5976 = vld [vmem:[%s5573 + $0x52] sm:$0xff]
    %v5977 = vld [vmem:[%s5573 + $0x62] sm:$0xff]
    %v5978 = vld [vmem:[%s5573 + $0x6a] sm:$0xff]
    %v5979 = vld [vmem:[%s5573 + $0x7a] sm:$0xff]
    %v5980 = vld [vmem:[%s5573 + $0x82] sm:$0xff]
    %v5981 = vld [vmem:[%s5573 + $0x92] sm:$0xff]
    %v5982 = vld [vmem:[%s5573 + $0x9a] sm:$0xff]
    %v5983 = vld [vmem:[%s5573 + $0xaa] sm:$0xff]
    %v5984 = vld [vmem:[%s5573 + $0xb2] sm:$0xff]
    %v5985 = vld [vmem:[%s5573 + $0xc2] sm:$0xff]
    %v5986 = vld [vmem:[%s5573 + $0xca] sm:$0xff]
    %v5987 = vld [vmem:[%s5573 + $0xda] sm:$0xff]
    %v5988 = vld [vmem:[%s5573 + $0xe2] sm:$0xff]
    %v5989 = vld [vmem:[%s5573 + $0xf2] sm:$0xff]
    %v5990 = vld [vmem:[%s5573 + $0xfa] sm:$0xff]
    %v5991 = vld [vmem:[%s5573 + $0x10a] sm:$0xff]
    %v5992 = vld [vmem:[%s5573 + $0x112] sm:$0xff]
    %v5993 = vld [vmem:[%s5573 + $0x122] sm:$0xff]
    %v5994 = vld [vmem:[%s5573 + $0x12a] sm:$0xff]
    %v5995 = vld [vmem:[%s5573 + $0x13a] sm:$0xff]
    %v5996 = vld [vmem:[%s5573 + $0x142] sm:$0xff]
    %v5997 = vld [vmem:[%s5573 + $0x152] sm:$0xff]
    %v5998 = vld [vmem:[%s5573 + $0x15a] sm:$0xff]
    %v5999 = vld [vmem:[%s5573 + $0x16a] sm:$0xff]
    %v6000 = vld [vmem:[%s5573 + $0x172] sm:$0xff]
    %v6001 = vld [vmem:[%s5573 + $0x1b2] sm:$0xff]
    %v6002 = vld [vmem:[%s5573 + $0x1ba] sm:$0xff]
    %v6003 = vld [vmem:[%s5573 + $0x1ca] sm:$0xff]
    %v6004 = vld [vmem:[%s5573 + $0x1d2] sm:$0xff]
    %v6005 = vld [vmem:[%s5573 + $0x1e2] sm:$0xff]
    %v6006 = vld [vmem:[%s5573 + $0x1ea] sm:$0xff]
    %v6007 = vld [vmem:[%s5573 + $0x1fa] sm:$0xff]
    %v6008 = vld [vmem:[%s5573 + $0x202] sm:$0xff]
    %v6009 = vld [vmem:[%s5573 + $0x212] sm:$0xff]
    %v6010 = vld [vmem:[%s5573 + $0x21a] sm:$0xff]
    %v6011 = vld [vmem:[%s5573 + $0x22a] sm:$0xff]
    %v6012 = vld [vmem:[%s5573 + $0x232] sm:$0xff]
    %v6013 = vld [vmem:[%s5573 + $0x242] sm:$0xff]
    %v6014 = vld [vmem:[%s5573 + $0x24a] sm:$0xff]
    %v6015 = vld [vmem:[%s5573 + $0x25a] sm:$0xff]
    %v6016 = vld [vmem:[%s5573 + $0x262] sm:$0xff]
    %v6017 = vld [vmem:[%s5573 + $0x272] sm:$0xff]
    %v6018 = vld [vmem:[%s5573 + $0x27a] sm:$0xff]
    %v6019 = vld [vmem:[%s5573 + $0x28a] sm:$0xff]
    %v6020 = vld [vmem:[%s5573 + $0x292] sm:$0xff]
    %v6021 = vld [vmem:[%s5573 + $0x2a2] sm:$0xff]
    %v6022 = vld [vmem:[%s5573 + $0x2aa] sm:$0xff]
    %v6023 = vld [vmem:[%s5573 + $0x2ba] sm:$0xff]
    %v6024 = vld [vmem:[%s5573 + $0x2c2] sm:$0xff]
    %v6025 = vld [vmem:[%s5573 + $0x2d2] sm:$0xff]
    %v6026 = vld [vmem:[%s5573 + $0x2da] sm:$0xff]
    %v6027 = vld [vmem:[%s5573 + $0x2ea] sm:$0xff]
    %v6028 = vld [vmem:[%s5573 + $0x2f2] sm:$0xff]
    %v6029 = vld [vmem:[%s5573 + $0x302] sm:$0xff]
    %v6030 = vld [vmem:[%s5573 + $0x30a] sm:$0xff]
    %v6031 = vld [vmem:[%s5573 + $0x31a] sm:$0xff]
    %v6032 = vld [vmem:[%s5573 + $0x322] sm:$0xff]
    %v6033 = vld [vmem:[%s5638 + $0x2] sm:$0x1]
    %v6034 = vlaneseq
    %v6035 = vshrl.u32 %v6034, 7
    %v6036 = vsub.s32 0, %v6035
    %v6037 = vrot.slane %v6033, %v6036
    %v6038 = vmul.f32 %v5969, %v6037
    %v6039 = vmul.f32 %v5970, %v6037
    %v6040 = vmul.f32 %v5971, %v6037
    %v6041 = vmul.f32 %v5972, %v6037
    %v6042 = vmul.f32 %v5973, %v6037
    %v6043 = vmul.f32 %v5974, %v6037
    %v6044 = vmul.f32 %v5975, %v6037
    %v6045 = vmul.f32 %v5976, %v6037
    %v6046 = vmul.f32 %v5977, %v6037
    %v6047 = vmul.f32 %v5978, %v6037
    %v6048 = vmul.f32 %v5979, %v6037
    %v6049 = vmul.f32 %v5980, %v6037
    %v6050 = vmul.f32 %v5981, %v6037
    %v6051 = vmul.f32 %v5982, %v6037
    %v6052 = vmul.f32 %v5983, %v6037
    %v6053 = vmul.f32 %v5984, %v6037
    %v6054 = vmul.f32 %v5985, %v6037
    %v6055 = vmul.f32 %v5986, %v6037
    %v6056 = vmul.f32 %v5987, %v6037
    %v6057 = vmul.f32 %v5988, %v6037
    %v6058 = vmul.f32 %v5989, %v6037
    %v6059 = vmul.f32 %v5990, %v6037
    %v6060 = vmul.f32 %v5991, %v6037
    %v6061 = vmul.f32 %v5992, %v6037
    %v6062 = vmul.f32 %v5993, %v6037
    %v6063 = vmul.f32 %v5994, %v6037
    %v6064 = vmul.f32 %v5995, %v6037
    %v6065 = vmul.f32 %v5996, %v6037
    %v6066 = vmul.f32 %v5997, %v6037
    %v6067 = vmul.f32 %v5998, %v6037
    %v6068 = vmul.f32 %v5999, %v6037
    %v6069 = vmul.f32 %v6000, %v6037
    %v6070 = vmul.f32 %v6001, %v6037
    %v6071 = vmul.f32 %v6002, %v6037
    %v6072 = vmul.f32 %v6003, %v6037
    %v6073 = vmul.f32 %v6004, %v6037
    %v6074 = vmul.f32 %v6005, %v6037
    %v6075 = vmul.f32 %v6006, %v6037
    %v6076 = vmul.f32 %v6007, %v6037
    %v6077 = vmul.f32 %v6008, %v6037
    %v6078 = vmul.f32 %v6009, %v6037
    %v6079 = vmul.f32 %v6010, %v6037
    %v6080 = vmul.f32 %v6011, %v6037
    %v6081 = vmul.f32 %v6012, %v6037
    %v6082 = vmul.f32 %v6013, %v6037
    %v6083 = vmul.f32 %v6014, %v6037
    %v6084 = vmul.f32 %v6015, %v6037
    %v6085 = vmul.f32 %v6016, %v6037
    %v6086 = vmul.f32 %v6017, %v6037
    %v6087 = vmul.f32 %v6018, %v6037
    %v6088 = vmul.f32 %v6019, %v6037
    %v6089 = vmul.f32 %v6020, %v6037
    %v6090 = vmul.f32 %v6021, %v6037
    %v6091 = vmul.f32 %v6022, %v6037
    %v6092 = vmul.f32 %v6023, %v6037
    %v6093 = vmul.f32 %v6024, %v6037
    %v6094 = vmul.f32 %v6025, %v6037
    %v6095 = vmul.f32 %v6026, %v6037
    %v6096 = vmul.f32 %v6027, %v6037
    %v6097 = vmul.f32 %v6028, %v6037
    %v6098 = vmul.f32 %v6029, %v6037
    %v6099 = vmul.f32 %v6030, %v6037
    %v6100 = vmul.f32 %v6031, %v6037
    %v6101 = vmul.f32 %v6032, %v6037
    %v6102 = vadd.f32 %v5905, %v6038
    %v6103 = vadd.f32 %v5906, %v6039
    %v6104 = vadd.f32 %v5907, %v6040
    %v6105 = vadd.f32 %v5908, %v6041
    %v6106 = vadd.f32 %v5909, %v6042
    %v6107 = vadd.f32 %v5910, %v6043
    %v6108 = vadd.f32 %v5911, %v6044
    %v6109 = vadd.f32 %v5912, %v6045
    %v6110 = vadd.f32 %v5913, %v6046
    %v6111 = vadd.f32 %v5914, %v6047
    %v6112 = vadd.f32 %v5915, %v6048
    %v6113 = vadd.f32 %v5916, %v6049
    %v6114 = vadd.f32 %v5917, %v6050
    %v6115 = vadd.f32 %v5918, %v6051
    %v6116 = vadd.f32 %v5919, %v6052
    %v6117 = vadd.f32 %v5920, %v6053
    %v6118 = vadd.f32 %v5921, %v6054
    %v6119 = vadd.f32 %v5922, %v6055
    %v6120 = vadd.f32 %v5923, %v6056
    %v6121 = vadd.f32 %v5924, %v6057
    %v6122 = vadd.f32 %v5925, %v6058
    %v6123 = vadd.f32 %v5926, %v6059
    %v6124 = vadd.f32 %v5927, %v6060
    %v6125 = vadd.f32 %v5928, %v6061
    %v6126 = vadd.f32 %v5929, %v6062
    %v6127 = vadd.f32 %v5930, %v6063
    %v6128 = vadd.f32 %v5931, %v6064
    %v6129 = vadd.f32 %v5932, %v6065
    %v6130 = vadd.f32 %v5933, %v6066
    %v6131 = vadd.f32 %v5934, %v6067
    %v6132 = vadd.f32 %v5935, %v6068
    %v6133 = vadd.f32 %v5936, %v6069
    %v6134 = vadd.f32 %v5937, %v6070
    %v6135 = vadd.f32 %v5938, %v6071
    %v6136 = vadd.f32 %v5939, %v6072
    %v6137 = vadd.f32 %v5940, %v6073
    %v6138 = vadd.f32 %v5941, %v6074
    %v6139 = vadd.f32 %v5942, %v6075
    %v6140 = vadd.f32 %v5943, %v6076
    %v6141 = vadd.f32 %v5944, %v6077
    %v6142 = vadd.f32 %v5945, %v6078
    %v6143 = vadd.f32 %v5946, %v6079
    %v6144 = vadd.f32 %v5947, %v6080
    %v6145 = vadd.f32 %v5948, %v6081
    %v6146 = vadd.f32 %v5949, %v6082
    %v6147 = vadd.f32 %v5950, %v6083
    %v6148 = vadd.f32 %v5951, %v6084
    %v6149 = vadd.f32 %v5952, %v6085
    %v6150 = vadd.f32 %v5953, %v6086
    %v6151 = vadd.f32 %v5954, %v6087
    %v6152 = vadd.f32 %v5955, %v6088
    %v6153 = vadd.f32 %v5956, %v6089
    %v6154 = vadd.f32 %v5957, %v6090
    %v6155 = vadd.f32 %v5958, %v6091
    %v6156 = vadd.f32 %v5959, %v6092
    %v6157 = vadd.f32 %v5960, %v6093
    %v6158 = vadd.f32 %v5961, %v6094
    %v6159 = vadd.f32 %v5962, %v6095
    %v6160 = vadd.f32 %v5963, %v6096
    %v6161 = vadd.f32 %v5964, %v6097
    %v6162 = vadd.f32 %v5965, %v6098
    %v6163 = vadd.f32 %v5966, %v6099
    %v6164 = vadd.f32 %v5967, %v6100
    %v6165 = vadd.f32 %v5968, %v6101
    %v6166 = vld [vmem:[%s4] sm:$0x1]
    %v6168 = vlaneseq
    %v6169 = vshrl.u32 %v6168, 7
    %v6170 = vsub.s32 0, %v6169
    %v6171 = vrot.slane %v6166, %v6170
    %v6173 = vadd.f32 %v6102, %v6171
    %v6174 = vadd.f32 %v6103, %v6171
    %v6175 = vadd.f32 %v6104, %v6171
    %v6176 = vadd.f32 %v6105, %v6171
    %v6177 = vadd.f32 %v6106, %v6171
    %v6178 = vadd.f32 %v6107, %v6171
    %v6179 = vadd.f32 %v6108, %v6171
    %v6180 = vadd.f32 %v6109, %v6171
    %v6181 = vadd.f32 %v6110, %v6171
    %v6182 = vadd.f32 %v6111, %v6171
    %v6183 = vadd.f32 %v6112, %v6171
    %v6184 = vadd.f32 %v6113, %v6171
    %v6185 = vadd.f32 %v6114, %v6171
    %v6186 = vadd.f32 %v6115, %v6171
    %v6187 = vadd.f32 %v6116, %v6171
    %v6188 = vadd.f32 %v6117, %v6171
    %v6189 = vadd.f32 %v6118, %v6171
    %v6190 = vadd.f32 %v6119, %v6171
    %v6191 = vadd.f32 %v6120, %v6171
    %v6192 = vadd.f32 %v6121, %v6171
    %v6193 = vadd.f32 %v6122, %v6171
    %v6194 = vadd.f32 %v6123, %v6171
    %v6195 = vadd.f32 %v6124, %v6171
    %v6196 = vadd.f32 %v6125, %v6171
    %v6197 = vadd.f32 %v6126, %v6171
    %v6198 = vadd.f32 %v6127, %v6171
    %v6199 = vadd.f32 %v6128, %v6171
    %v6200 = vadd.f32 %v6129, %v6171
    %v6201 = vadd.f32 %v6130, %v6171
    %v6202 = vadd.f32 %v6131, %v6171
    %v6203 = vadd.f32 %v6132, %v6171
    %v6204 = vadd.f32 %v6133, %v6171
    %v6205 = vadd.f32 %v6134, %v6171
    %v6206 = vadd.f32 %v6135, %v6171
    %v6207 = vadd.f32 %v6136, %v6171
    %v6208 = vadd.f32 %v6137, %v6171
    %v6209 = vadd.f32 %v6138, %v6171
    %v6210 = vadd.f32 %v6139, %v6171
    %v6211 = vadd.f32 %v6140, %v6171
    %v6212 = vadd.f32 %v6141, %v6171
    %v6213 = vadd.f32 %v6142, %v6171
    %v6214 = vadd.f32 %v6143, %v6171
    %v6215 = vadd.f32 %v6144, %v6171
    %v6216 = vadd.f32 %v6145, %v6171
    %v6217 = vadd.f32 %v6146, %v6171
    %v6218 = vadd.f32 %v6147, %v6171
    %v6219 = vadd.f32 %v6148, %v6171
    %v6220 = vadd.f32 %v6149, %v6171
    %v6221 = vadd.f32 %v6150, %v6171
    %v6222 = vadd.f32 %v6151, %v6171
    %v6223 = vadd.f32 %v6152, %v6171
    %v6224 = vadd.f32 %v6153, %v6171
    %v6225 = vadd.f32 %v6154, %v6171
    %v6226 = vadd.f32 %v6155, %v6171
    %v6227 = vadd.f32 %v6156, %v6171
    %v6228 = vadd.f32 %v6157, %v6171
    %v6229 = vadd.f32 %v6158, %v6171
    %v6230 = vadd.f32 %v6159, %v6171
    %v6231 = vadd.f32 %v6160, %v6171
    %v6232 = vadd.f32 %v6161, %v6171
    %v6233 = vadd.f32 %v6162, %v6171
    %v6234 = vadd.f32 %v6163, %v6171
    %v6235 = vadd.f32 %v6164, %v6171
    %v6236 = vadd.f32 %v6165, %v6171
    %v6237 = vmax.f32 %v6173, 0.0
    %v6238 = vmax.f32 %v6174, 0.0
    %v6239 = vmax.f32 %v6175, 0.0
    %v6240 = vmax.f32 %v6176, 0.0
    %v6241 = vmax.f32 %v6177, 0.0
    %v6242 = vmax.f32 %v6178, 0.0
    %v6243 = vmax.f32 %v6179, 0.0
    %v6244 = vmax.f32 %v6180, 0.0
    %v6245 = vmax.f32 %v6181, 0.0
    %v6246 = vmax.f32 %v6182, 0.0
    %v6247 = vmax.f32 %v6183, 0.0
    %v6248 = vmax.f32 %v6184, 0.0
    %v6249 = vmax.f32 %v6185, 0.0
    %v6250 = vmax.f32 %v6186, 0.0
    %v6251 = vmax.f32 %v6187, 0.0
    %v6252 = vmax.f32 %v6188, 0.0
    %v6253 = vmax.f32 %v6189, 0.0
    %v6254 = vmax.f32 %v6190, 0.0
    %v6255 = vmax.f32 %v6191, 0.0
    %v6256 = vmax.f32 %v6192, 0.0
    %v6257 = vmax.f32 %v6193, 0.0
    %v6258 = vmax.f32 %v6194, 0.0
    %v6259 = vmax.f32 %v6195, 0.0
    %v6260 = vmax.f32 %v6196, 0.0
    %v6261 = vmax.f32 %v6197, 0.0
    %v6262 = vmax.f32 %v6198, 0.0
    %v6263 = vmax.f32 %v6199, 0.0
    %v6264 = vmax.f32 %v6200, 0.0
    %v6265 = vmax.f32 %v6201, 0.0
    %v6266 = vmax.f32 %v6202, 0.0
    %v6267 = vmax.f32 %v6203, 0.0
    %v6268 = vmax.f32 %v6204, 0.0
    %v6269 = vmax.f32 %v6205, 0.0
    %v6270 = vmax.f32 %v6206, 0.0
    %v6271 = vmax.f32 %v6207, 0.0
    %v6272 = vmax.f32 %v6208, 0.0
    %v6273 = vmax.f32 %v6209, 0.0
    %v6274 = vmax.f32 %v6210, 0.0
    %v6275 = vmax.f32 %v6211, 0.0
    %v6276 = vmax.f32 %v6212, 0.0
    %v6277 = vmax.f32 %v6213, 0.0
    %v6278 = vmax.f32 %v6214, 0.0
    %v6279 = vmax.f32 %v6215, 0.0
    %v6280 = vmax.f32 %v6216, 0.0
    %v6281 = vmax.f32 %v6217, 0.0
    %v6282 = vmax.f32 %v6218, 0.0
    %v6283 = vmax.f32 %v6219, 0.0
    %v6284 = vmax.f32 %v6220, 0.0
    %v6285 = vmax.f32 %v6221, 0.0
    %v6286 = vmax.f32 %v6222, 0.0
    %v6287 = vmax.f32 %v6223, 0.0
    %v6288 = vmax.f32 %v6224, 0.0
    %v6289 = vmax.f32 %v6225, 0.0
    %v6290 = vmax.f32 %v6226, 0.0
    %v6291 = vmax.f32 %v6227, 0.0
    %v6292 = vmax.f32 %v6228, 0.0
    %v6293 = vmax.f32 %v6229, 0.0
    %v6294 = vmax.f32 %v6230, 0.0
    %v6295 = vmax.f32 %v6231, 0.0
    %v6296 = vmax.f32 %v6232, 0.0
    %v6297 = vmax.f32 %v6233, 0.0
    %v6298 = vmax.f32 %v6234, 0.0
    %v6299 = vmax.f32 %v6235, 0.0
    %v6300 = vmax.f32 %v6236, 0.0
    %v6301 = vld [vmem:[%s5] sm:$0xff]
    %v6302 = vld [vmem:[%s5 + $0x8] sm:$0xff]
    %v6303 = vld [vmem:[%s5 + $0x10] sm:$0xff]
    %v6304 = vld [vmem:[%s5 + $0x18] sm:$0xff]
    %v6305 = vld [vmem:[%s6] sm:$0x1]
    %v6307 = vlaneseq
    %v6308 = vshrl.u32 %v6307, 7
    %v6309 = vsub.s32 0, %v6308
    %v6310 = vrot.slane %v6305, %v6309
    %v6313 = vsel %vm155, %v6237, 0
    %v6316 = vsel %vm155, %v6238, 0
    %v6319 = vsel %vm155, %v6239, 0
    %v6322 = vsel %vm155, %v6240, 0
    %v6325 = vsel %vm155, %v6241, 0
    %v6328 = vsel %vm155, %v6242, 0
    %v6331 = vsel %vm155, %v6243, 0
    %v6334 = vsel %vm155, %v6244, 0
    %v6337 = vsel %vm155, %v6245, 0
    %v6340 = vsel %vm155, %v6246, 0
    %v6343 = vsel %vm155, %v6247, 0
    %v6346 = vsel %vm155, %v6248, 0
    %v6349 = vsel %vm155, %v6249, 0
    %v6352 = vsel %vm155, %v6250, 0
    %v6355 = vsel %vm155, %v6251, 0
    %v6358 = vsel %vm155, %v6252, 0
    %v6361 = vsel %vm155, %v6253, 0
    %v6364 = vsel %vm155, %v6254, 0
    %v6367 = vsel %vm155, %v6255, 0
    %v6370 = vsel %vm155, %v6256, 0
    %v6373 = vsel %vm155, %v6257, 0
    %v6376 = vsel %vm155, %v6258, 0
    %v6379 = vsel %vm155, %v6259, 0
    %v6382 = vsel %vm155, %v6260, 0
    %v6385 = vsel %vm155, %v6261, 0
    %v6388 = vsel %vm155, %v6262, 0
    %v6391 = vsel %vm155, %v6263, 0
    %v6394 = vsel %vm155, %v6264, 0
    %v6397 = vsel %vm155, %v6265, 0
    %v6400 = vsel %vm155, %v6266, 0
    %v6403 = vsel %vm155, %v6267, 0
    %v6406 = vsel %vm155, %v6268, 0
    %v6409 = vsel %vm155, %v6269, 0
    %v6412 = vsel %vm155, %v6270, 0
    %v6415 = vsel %vm155, %v6271, 0
    %v6418 = vsel %vm155, %v6272, 0
    %v6421 = vsel %vm155, %v6273, 0
    %v6424 = vsel %vm155, %v6274, 0
    %v6427 = vsel %vm155, %v6275, 0
    %v6430 = vsel %vm155, %v6276, 0
    %v6433 = vsel %vm155, %v6277, 0
    %v6436 = vsel %vm155, %v6278, 0
    %v6439 = vsel %vm155, %v6279, 0
    %v6442 = vsel %vm155, %v6280, 0
    %v6445 = vsel %vm155, %v6281, 0
    %v6448 = vsel %vm155, %v6282, 0
    %v6451 = vsel %vm155, %v6283, 0
    %v6454 = vsel %vm155, %v6284, 0
    %v6457 = vsel %vm155, %v6285, 0
    %v6460 = vsel %vm155, %v6286, 0
    %v6463 = vsel %vm155, %v6287, 0
    %v6466 = vsel %vm155, %v6288, 0
    %v6469 = vsel %vm155, %v6289, 0
    %v6472 = vsel %vm155, %v6290, 0
    %v6475 = vsel %vm155, %v6291, 0
    %v6478 = vsel %vm155, %v6292, 0
    %v6481 = vsel %vm155, %v6293, 0
    %v6484 = vsel %vm155, %v6294, 0
    %v6487 = vsel %vm155, %v6295, 0
    %v6490 = vsel %vm155, %v6296, 0
    %v6493 = vsel %vm155, %v6297, 0
    %v6496 = vsel %vm155, %v6298, 0
    %v6499 = vsel %vm155, %v6299, 0
    %v6502 = vsel %vm155, %v6300, 0
    %6504 = vmatprep.subr.mxu0 0.0
    %6505 = vmatpush1.msra.mxu0 %v6301
    %6506 = vmatprep.subr.mxu0 0.0
    %6507 = vmatpush1.msra.mxu0 %v6302
    %6508 = vmatprep.subr.mxu0 0.0
    %6509 = vmatpush1.msra.mxu0 %v6303
    %6510 = vmatprep.subr.mxu0 0.0
    %6511 = vmatpush1.msra.mxu0 %v6304
    %6512 = vmatprep.subr.mxu0 0.0
    %6513 = vmatpush1.msra.mxu0 0.0
    %6514 = vmatprep.subr.mxu0 0.0
    %6515 = vmatpush1.msra.mxu0 0.0
    %6516 = vmatprep.subr.mxu0 0.0
    %6517 = vmatpush1.msra.mxu0 0.0
    %6518 = vmatprep.subr.mxu0 0.0
    %6519 = vmatpush1.msra.mxu0 0.0
    %6520 = vmatprep.subr.mxu0 0.0
    %6521 = vmatpush1.msra.mxu0 0.0
    %6522 = vmatprep.subr.mxu0 0.0
    %6523 = vmatpush1.msra.mxu0 0.0
    %6524 = vmatprep.subr.mxu0 0.0
    %6525 = vmatpush1.msra.mxu0 0.0
    %6526 = vmatprep.subr.mxu0 0.0
    %6527 = vmatpush1.msra.mxu0 0.0
    %6528 = vmatprep.subr.mxu0 0.0
    %6529 = vmatpush1.msra.mxu0 0.0
    %6530 = vmatprep.subr.mxu0 0.0
    %6531 = vmatpush1.msra.mxu0 0.0
    %6532 = vmatprep.subr.mxu0 0.0
    %6533 = vmatpush1.msra.mxu0 0.0
    %6534 = vmatprep.subr.mxu0 0.0
    %6535 = vmatpush1.msra.mxu0 0.0
    %6536 = vmatprep.subr.mxu0 0.0
    %6537 = vmatpush1.msra.mxu0 0.0
    %6538 = vmatprep.subr.mxu0 0.0
    %6539 = vmatpush1.msra.mxu0 0.0
    %6540 = vmatprep.subr.mxu0 0.0
    %6541 = vmatpush1.msra.mxu0 0.0
    %6542 = vmatprep.subr.mxu0 0.0
    %6543 = vmatpush1.msra.mxu0 0.0
    %6544 = vmatprep.subr.mxu0 0.0
    %6545 = vmatpush1.msra.mxu0 0.0
    %6546 = vmatprep.subr.mxu0 0.0
    %6547 = vmatpush1.msra.mxu0 0.0
    %6548 = vmatprep.subr.mxu0 0.0
    %6549 = vmatpush1.msra.mxu0 0.0
    %6550 = vmatprep.subr.mxu0 0.0
    %6551 = vmatpush1.msra.mxu0 0.0
    %6552 = vmatprep.subr.mxu0 0.0
    %6553 = vmatpush1.msra.mxu0 0.0
    %6554 = vmatprep.subr.mxu0 0.0
    %6555 = vmatpush1.msra.mxu0 0.0
    %6556 = vmatprep.subr.mxu0 0.0
    %6557 = vmatpush1.msra.mxu0 0.0
    %6558 = vmatprep.subr.mxu0 0.0
    %6559 = vmatpush1.msra.mxu0 0.0
    %6560 = vmatprep.subr.mxu0 0.0
    %6561 = vmatpush1.msra.mxu0 0.0
    %6562 = vmatprep.subr.mxu0 0.0
    %6563 = vmatpush1.msra.mxu0 0.0
    %6564 = vmatprep.subr.mxu0 0.0
    %6565 = vmatpush1.msra.mxu0 0.0
    %6566 = vmatprep.subr.mxu0 0.0
    %6567 = vmatpush1.msra.mxu0 0.0
    %6568 = vmatprep.mubr.f32.mxu0 0.0
    %6569 = vmatmul.mubr.f32.gmra.mrb[0].mxu0 %v6313
    %v6570 = vpop.f32.mrb[0].mxu0
    %v6571 = vadd.f32 %v6310, %v6570
    %v6572 = vpop.f32.mrb[0].mxu0
    %6573 = vmatprep.mubr.f32.mxu0 0.0
    %6574 = vmatmul.mubr.f32.gmra.mrb[0].mxu0 %v6316
    %v6575 = vpop.f32.mrb[0].mxu0
    %v6576 = vadd.f32 %v6310, %v6575
    %v6577 = vpop.f32.mrb[0].mxu0
    %6578 = vmatprep.mubr.f32.mxu0 0.0
    %6579 = vmatmul.mubr.f32.gmra.mrb[0].mxu0 %v6319
    %v6580 = vpop.f32.mrb[0].mxu0
    %v6581 = vadd.f32 %v6310, %v6580
    %v6582 = vpop.f32.mrb[0].mxu0
    %6583 = vmatprep.mubr.f32.mxu0 0.0
    %6584 = vmatmul.mubr.f32.gmra.mrb[0].mxu0 %v6322
    %v6585 = vpop.f32.mrb[0].mxu0
    %v6586 = vadd.f32 %v6310, %v6585
    %v6587 = vpop.f32.mrb[0].mxu0
    %6588 = vmatprep.mubr.f32.mxu0 0.0
    %6589 = vmatmul.mubr.f32.gmra.mrb[0].mxu0 %v6325
    %v6590 = vpop.f32.mrb[0].mxu0
    %v6591 = vadd.f32 %v6310, %v6590
    %v6592 = vpop.f32.mrb[0].mxu0
    %6593 = vmatprep.mubr.f32.mxu0 0.0
    %6594 = vmatmul.mubr.f32.gmra.mrb[0].mxu0 %v6328
    %v6595 = vpop.f32.mrb[0].mxu0
    %v6596 = vadd.f32 %v6310, %v6595
    %v6597 = vpop.f32.mrb[0].mxu0
    %6598 = vmatprep.mubr.f32.mxu0 0.0
    %6599 = vmatmul.mubr.f32.gmra.mrb[0].mxu0 %v6331
    %v6600 = vpop.f32.mrb[0].mxu0
    %v6601 = vadd.f32 %v6310, %v6600
    %v6602 = vpop.f32.mrb[0].mxu0
    %6603 = vmatprep.mubr.f32.mxu0 0.0
    %6604 = vmatmul.mubr.f32.gmra.mrb[0].mxu0 %v6334
    %v6605 = vpop.f32.mrb[0].mxu0
    %v6606 = vadd.f32 %v6310, %v6605
    %v6607 = vpop.f32.mrb[0].mxu0
    %6608 = vmatprep.mubr.f32.mxu0 0.0
    %6609 = vmatmul.mubr.f32.gmra.mrb[0].mxu0 %v6337
    %v6610 = vpop.f32.mrb[0].mxu0
    %v6611 = vadd.f32 %v6310, %v6610
    %v6612 = vpop.f32.mrb[0].mxu0
    %6613 = vmatprep.mubr.f32.mxu0 0.0
    %6614 = vmatmul.mubr.f32.gmra.mrb[0].mxu0 %v6340
    %v6615 = vpop.f32.mrb[0].mxu0
    %v6616 = vadd.f32 %v6310, %v6615
    %v6617 = vpop.f32.mrb[0].mxu0
    %6618 = vmatprep.mubr.f32.mxu0 0.0
    %6619 = vmatmul.mubr.f32.gmra.mrb[0].mxu0 %v6343
    %v6620 = vpop.f32.mrb[0].mxu0
    %v6621 = vadd.f32 %v6310, %v6620
    %v6622 = vpop.f32.mrb[0].mxu0
    %6623 = vmatprep.mubr.f32.mxu0 0.0
    %6624 = vmatmul.mubr.f32.gmra.mrb[0].mxu0 %v6346
    %v6625 = vpop.f32.mrb[0].mxu0
    %v6626 = vadd.f32 %v6310, %v6625
    %v6627 = vpop.f32.mrb[0].mxu0
    %6628 = vmatprep.mubr.f32.mxu0 0.0
    %6629 = vmatmul.mubr.f32.gmra.mrb[0].mxu0 %v6349
    %v6630 = vpop.f32.mrb[0].mxu0
    %v6631 = vadd.f32 %v6310, %v6630
    %v6632 = vpop.f32.mrb[0].mxu0
    %6633 = vmatprep.mubr.f32.mxu0 0.0
    %6634 = vmatmul.mubr.f32.gmra.mrb[0].mxu0 %v6352
    %v6635 = vpop.f32.mrb[0].mxu0
    %v6636 = vadd.f32 %v6310, %v6635
    %v6637 = vpop.f32.mrb[0].mxu0
    %6638 = vmatprep.mubr.f32.mxu0 0.0
    %6639 = vmatmul.mubr.f32.gmra.mrb[0].mxu0 %v6355
    %v6640 = vpop.f32.mrb[0].mxu0
    %v6641 = vadd.f32 %v6310, %v6640
    %v6642 = vpop.f32.mrb[0].mxu0
    %6643 = vmatprep.mubr.f32.mxu0 0.0
    %6644 = vmatmul.mubr.f32.gmra.mrb[0].mxu0 %v6358
    %v6645 = vpop.f32.mrb[0].mxu0
    %v6646 = vadd.f32 %v6310, %v6645
    %v6647 = vpop.f32.mrb[0].mxu0
    %6648 = vmatprep.mubr.f32.mxu0 0.0
    %6649 = vmatmul.mubr.f32.gmra.mrb[0].mxu0 %v6361
    %v6650 = vpop.f32.mrb[0].mxu0
    %v6651 = vadd.f32 %v6310, %v6650
    %v6652 = vpop.f32.mrb[0].mxu0
    %6653 = vmatprep.mubr.f32.mxu0 0.0
    %6654 = vmatmul.mubr.f32.gmra.mrb[0].mxu0 %v6364
    %v6655 = vpop.f32.mrb[0].mxu0
    %v6656 = vadd.f32 %v6310, %v6655
    %v6657 = vpop.f32.mrb[0].mxu0
    %6658 = vmatprep.mubr.f32.mxu0 0.0
    %6659 = vmatmul.mubr.f32.gmra.mrb[0].mxu0 %v6367
    %v6660 = vpop.f32.mrb[0].mxu0
    %v6661 = vadd.f32 %v6310, %v6660
    %v6662 = vpop.f32.mrb[0].mxu0
    %6663 = vmatprep.mubr.f32.mxu0 0.0
    %6664 = vmatmul.mubr.f32.gmra.mrb[0].mxu0 %v6370
    %v6665 = vpop.f32.mrb[0].mxu0
    %v6666 = vadd.f32 %v6310, %v6665
    %v6667 = vpop.f32.mrb[0].mxu0
    %6668 = vmatprep.mubr.f32.mxu0 0.0
    %6669 = vmatmul.mubr.f32.gmra.mrb[0].mxu0 %v6373
    %v6670 = vpop.f32.mrb[0].mxu0
    %v6671 = vadd.f32 %v6310, %v6670
    %v6672 = vpop.f32.mrb[0].mxu0
    %6673 = vmatprep.mubr.f32.mxu0 0.0
    %6674 = vmatmul.mubr.f32.gmra.mrb[0].mxu0 %v6376
    %v6675 = vpop.f32.mrb[0].mxu0
    %v6676 = vadd.f32 %v6310, %v6675
    %v6677 = vpop.f32.mrb[0].mxu0
    %6678 = vmatprep.mubr.f32.mxu0 0.0
    %6679 = vmatmul.mubr.f32.gmra.mrb[0].mxu0 %v6379
    %v6680 = vpop.f32.mrb[0].mxu0
    %v6681 = vadd.f32 %v6310, %v6680
    %v6682 = vpop.f32.mrb[0].mxu0
    %6683 = vmatprep.mubr.f32.mxu0 0.0
    %6684 = vmatmul.mubr.f32.gmra.mrb[0].mxu0 %v6382
    %v6685 = vpop.f32.mrb[0].mxu0
    %v6686 = vadd.f32 %v6310, %v6685
    %v6687 = vpop.f32.mrb[0].mxu0
    %6688 = vmatprep.mubr.f32.mxu0 0.0
    %6689 = vmatmul.mubr.f32.gmra.mrb[0].mxu0 %v6385
    %v6690 = vpop.f32.mrb[0].mxu0
    %v6691 = vadd.f32 %v6310, %v6690
    %v6692 = vpop.f32.mrb[0].mxu0
    %6693 = vmatprep.mubr.f32.mxu0 0.0
    %6694 = vmatmul.mubr.f32.gmra.mrb[0].mxu0 %v6388
    %v6695 = vpop.f32.mrb[0].mxu0
    %v6696 = vadd.f32 %v6310, %v6695
    %v6697 = vpop.f32.mrb[0].mxu0
    %6698 = vmatprep.mubr.f32.mxu0 0.0
    %6699 = vmatmul.mubr.f32.gmra.mrb[0].mxu0 %v6391
    %v6700 = vpop.f32.mrb[0].mxu0
    %v6701 = vadd.f32 %v6310, %v6700
    %v6702 = vpop.f32.mrb[0].mxu0
    %6703 = vmatprep.mubr.f32.mxu0 0.0
    %6704 = vmatmul.mubr.f32.gmra.mrb[0].mxu0 %v6394
    %v6705 = vpop.f32.mrb[0].mxu0
    %v6706 = vadd.f32 %v6310, %v6705
    %v6707 = vpop.f32.mrb[0].mxu0
    %6708 = vmatprep.mubr.f32.mxu0 0.0
    %6709 = vmatmul.mubr.f32.gmra.mrb[0].mxu0 %v6397
    %v6710 = vpop.f32.mrb[0].mxu0
    %v6711 = vadd.f32 %v6310, %v6710
    %v6712 = vpop.f32.mrb[0].mxu0
    %6713 = vmatprep.mubr.f32.mxu0 0.0
    %6714 = vmatmul.mubr.f32.gmra.mrb[0].mxu0 %v6400
    %v6715 = vpop.f32.mrb[0].mxu0
    %v6716 = vadd.f32 %v6310, %v6715
    %v6717 = vpop.f32.mrb[0].mxu0
    %6718 = vmatprep.mubr.f32.mxu0 0.0
    %6719 = vmatmul.mubr.f32.gmra.mrb[0].mxu0 %v6403
    %v6720 = vpop.f32.mrb[0].mxu0
    %v6721 = vadd.f32 %v6310, %v6720
    %v6722 = vpop.f32.mrb[0].mxu0
    %6723 = vmatprep.mubr.f32.mxu0 0.0
    %6724 = vmatmul.mubr.f32.gmra.mrb[0].mxu0 %v6406
    %v6725 = vpop.f32.mrb[0].mxu0
    %v6726 = vadd.f32 %v6310, %v6725
    %v6727 = vpop.f32.mrb[0].mxu0
    %6728 = vmatprep.mubr.f32.mxu0 0.0
    %6729 = vmatmul.mubr.f32.gmra.mrb[0].mxu0 %v6409
    %v6730 = vpop.f32.mrb[0].mxu0
    %v6731 = vadd.f32 %v6310, %v6730
    %v6732 = vpop.f32.mrb[0].mxu0
    %6733 = vmatprep.mubr.f32.mxu0 0.0
    %6734 = vmatmul.mubr.f32.gmra.mrb[0].mxu0 %v6412
    %v6735 = vpop.f32.mrb[0].mxu0
    %v6736 = vadd.f32 %v6310, %v6735
    %v6737 = vpop.f32.mrb[0].mxu0
    %6738 = vmatprep.mubr.f32.mxu0 0.0
    %6739 = vmatmul.mubr.f32.gmra.mrb[0].mxu0 %v6415
    %v6740 = vpop.f32.mrb[0].mxu0
    %v6741 = vadd.f32 %v6310, %v6740
    %v6742 = vpop.f32.mrb[0].mxu0
    %6743 = vmatprep.mubr.f32.mxu0 0.0
    %6744 = vmatmul.mubr.f32.gmra.mrb[0].mxu0 %v6418
    %v6745 = vpop.f32.mrb[0].mxu0
    %v6746 = vadd.f32 %v6310, %v6745
    %v6747 = vpop.f32.mrb[0].mxu0
    %6748 = vmatprep.mubr.f32.mxu0 0.0
    %6749 = vmatmul.mubr.f32.gmra.mrb[0].mxu0 %v6421
    %v6750 = vpop.f32.mrb[0].mxu0
    %v6751 = vadd.f32 %v6310, %v6750
    %v6752 = vpop.f32.mrb[0].mxu0
    %6753 = vmatprep.mubr.f32.mxu0 0.0
    %6754 = vmatmul.mubr.f32.gmra.mrb[0].mxu0 %v6424
    %v6755 = vpop.f32.mrb[0].mxu0
    %v6756 = vadd.f32 %v6310, %v6755
    %v6757 = vpop.f32.mrb[0].mxu0
    %6758 = vmatprep.mubr.f32.mxu0 0.0
    %6759 = vmatmul.mubr.f32.gmra.mrb[0].mxu0 %v6427
    %v6760 = vpop.f32.mrb[0].mxu0
    %v6761 = vadd.f32 %v6310, %v6760
    %v6762 = vpop.f32.mrb[0].mxu0
    %6763 = vmatprep.mubr.f32.mxu0 0.0
    %6764 = vmatmul.mubr.f32.gmra.mrb[0].mxu0 %v6430
    %v6765 = vpop.f32.mrb[0].mxu0
    %v6766 = vadd.f32 %v6310, %v6765
    %v6767 = vpop.f32.mrb[0].mxu0
    %6768 = vmatprep.mubr.f32.mxu0 0.0
    %6769 = vmatmul.mubr.f32.gmra.mrb[0].mxu0 %v6433
    %v6770 = vpop.f32.mrb[0].mxu0
    %v6771 = vadd.f32 %v6310, %v6770
    %v6772 = vpop.f32.mrb[0].mxu0
    %6773 = vmatprep.mubr.f32.mxu0 0.0
    %6774 = vmatmul.mubr.f32.gmra.mrb[0].mxu0 %v6436
    %v6775 = vpop.f32.mrb[0].mxu0
    %v6776 = vadd.f32 %v6310, %v6775
    %v6777 = vpop.f32.mrb[0].mxu0
    %6778 = vmatprep.mubr.f32.mxu0 0.0
    %6779 = vmatmul.mubr.f32.gmra.mrb[0].mxu0 %v6439
    %v6780 = vpop.f32.mrb[0].mxu0
    %v6781 = vadd.f32 %v6310, %v6780
    %v6782 = vpop.f32.mrb[0].mxu0
    %6783 = vmatprep.mubr.f32.mxu0 0.0
    %6784 = vmatmul.mubr.f32.gmra.mrb[0].mxu0 %v6442
    %v6785 = vpop.f32.mrb[0].mxu0
    %v6786 = vadd.f32 %v6310, %v6785
    %v6787 = vpop.f32.mrb[0].mxu0
    %6788 = vmatprep.mubr.f32.mxu0 0.0
    %6789 = vmatmul.mubr.f32.gmra.mrb[0].mxu0 %v6445
    %v6790 = vpop.f32.mrb[0].mxu0
    %v6791 = vadd.f32 %v6310, %v6790
    %v6792 = vpop.f32.mrb[0].mxu0
    %6793 = vmatprep.mubr.f32.mxu0 0.0
    %6794 = vmatmul.mubr.f32.gmra.mrb[0].mxu0 %v6448
    %v6795 = vpop.f32.mrb[0].mxu0
    %v6796 = vadd.f32 %v6310, %v6795
    %v6797 = vpop.f32.mrb[0].mxu0
    %6798 = vmatprep.mubr.f32.mxu0 0.0
    %6799 = vmatmul.mubr.f32.gmra.mrb[0].mxu0 %v6451
    %v6800 = vpop.f32.mrb[0].mxu0
    %v6801 = vadd.f32 %v6310, %v6800
    %v6802 = vpop.f32.mrb[0].mxu0
    %6803 = vmatprep.mubr.f32.mxu0 0.0
    %6804 = vmatmul.mubr.f32.gmra.mrb[0].mxu0 %v6454
    %v6805 = vpop.f32.mrb[0].mxu0
    %v6806 = vadd.f32 %v6310, %v6805
    %v6807 = vpop.f32.mrb[0].mxu0
    %6808 = vmatprep.mubr.f32.mxu0 0.0
    %6809 = vmatmul.mubr.f32.gmra.mrb[0].mxu0 %v6457
    %v6810 = vpop.f32.mrb[0].mxu0
    %v6811 = vadd.f32 %v6310, %v6810
    %v6812 = vpop.f32.mrb[0].mxu0
    %6813 = vmatprep.mubr.f32.mxu0 0.0
    %6814 = vmatmul.mubr.f32.gmra.mrb[0].mxu0 %v6460
    %v6815 = vpop.f32.mrb[0].mxu0
    %v6816 = vadd.f32 %v6310, %v6815
    %v6817 = vpop.f32.mrb[0].mxu0
    %6818 = vmatprep.mubr.f32.mxu0 0.0
    %6819 = vmatmul.mubr.f32.gmra.mrb[0].mxu0 %v6463
    %v6820 = vpop.f32.mrb[0].mxu0
    %v6821 = vadd.f32 %v6310, %v6820
    %v6822 = vpop.f32.mrb[0].mxu0
    %6823 = vmatprep.mubr.f32.mxu0 0.0
    %6824 = vmatmul.mubr.f32.gmra.mrb[0].mxu0 %v6466
    %v6825 = vpop.f32.mrb[0].mxu0
    %v6826 = vadd.f32 %v6310, %v6825
    %v6827 = vpop.f32.mrb[0].mxu0
    %6828 = vmatprep.mubr.f32.mxu0 0.0
    %6829 = vmatmul.mubr.f32.gmra.mrb[0].mxu0 %v6469
    %v6830 = vpop.f32.mrb[0].mxu0
    %v6831 = vadd.f32 %v6310, %v6830
    %v6832 = vpop.f32.mrb[0].mxu0
    %6833 = vmatprep.mubr.f32.mxu0 0.0
    %6834 = vmatmul.mubr.f32.gmra.mrb[0].mxu0 %v6472
    %v6835 = vpop.f32.mrb[0].mxu0
    %v6836 = vadd.f32 %v6310, %v6835
    %v6837 = vpop.f32.mrb[0].mxu0
    %6838 = vmatprep.mubr.f32.mxu0 0.0
    %6839 = vmatmul.mubr.f32.gmra.mrb[0].mxu0 %v6475
    %v6840 = vpop.f32.mrb[0].mxu0
    %v6841 = vadd.f32 %v6310, %v6840
    %v6842 = vpop.f32.mrb[0].mxu0
    %6843 = vmatprep.mubr.f32.mxu0 0.0
    %6844 = vmatmul.mubr.f32.gmra.mrb[0].mxu0 %v6478
    %v6845 = vpop.f32.mrb[0].mxu0
    %v6846 = vadd.f32 %v6310, %v6845
    %v6847 = vpop.f32.mrb[0].mxu0
    %6848 = vmatprep.mubr.f32.mxu0 0.0
    %6849 = vmatmul.mubr.f32.gmra.mrb[0].mxu0 %v6481
    %v6850 = vpop.f32.mrb[0].mxu0
    %v6851 = vadd.f32 %v6310, %v6850
    %v6852 = vpop.f32.mrb[0].mxu0
    %6853 = vmatprep.mubr.f32.mxu0 0.0
    %6854 = vmatmul.mubr.f32.gmra.mrb[0].mxu0 %v6484
    %v6855 = vpop.f32.mrb[0].mxu0
    %v6856 = vadd.f32 %v6310, %v6855
    %v6857 = vpop.f32.mrb[0].mxu0
    %6858 = vmatprep.mubr.f32.mxu0 0.0
    %6859 = vmatmul.mubr.f32.gmra.mrb[0].mxu0 %v6487
    %v6860 = vpop.f32.mrb[0].mxu0
    %v6861 = vadd.f32 %v6310, %v6860
    %v6862 = vpop.f32.mrb[0].mxu0
    %6863 = vmatprep.mubr.f32.mxu0 0.0
    %6864 = vmatmul.mubr.f32.gmra.mrb[0].mxu0 %v6490
    %v6865 = vpop.f32.mrb[0].mxu0
    %v6866 = vadd.f32 %v6310, %v6865
    %v6867 = vpop.f32.mrb[0].mxu0
    %6868 = vmatprep.mubr.f32.mxu0 0.0
    %6869 = vmatmul.mubr.f32.gmra.mrb[0].mxu0 %v6493
    %v6870 = vpop.f32.mrb[0].mxu0
    %v6871 = vadd.f32 %v6310, %v6870
    %v6872 = vpop.f32.mrb[0].mxu0
    %6873 = vmatprep.mubr.f32.mxu0 0.0
    %6874 = vmatmul.mubr.f32.gmra.mrb[0].mxu0 %v6496
    %v6875 = vpop.f32.mrb[0].mxu0
    %v6876 = vadd.f32 %v6310, %v6875
    %v6877 = vpop.f32.mrb[0].mxu0
    %6878 = vmatprep.mubr.f32.mxu0 0.0
    %6879 = vmatmul.mubr.f32.gmra.mrb[0].mxu0 %v6499
    %v6880 = vpop.f32.mrb[0].mxu0
    %v6881 = vadd.f32 %v6310, %v6880
    %v6882 = vpop.f32.mrb[0].mxu0
    %6883 = vmatprep.mubr.f32.mxu0 0.0
    %6884 = vmatmul.mubr.f32.gmra.mrb[0].mxu0 %v6502
    %v6885 = vpop.f32.mrb[0].mxu0
    %v6886 = vadd.f32 %v6310, %v6885
    %v6887 = vpop.f32.mrb[0].mxu0
    %6888 = vdwg.mxu0
    %v6889 = vmax.f32 %v6571, 0.0
    %v6890 = vmax.f32 %v6576, 0.0
    %v6891 = vmax.f32 %v6581, 0.0
    %v6892 = vmax.f32 %v6586, 0.0
    %v6893 = vmax.f32 %v6591, 0.0
    %v6894 = vmax.f32 %v6596, 0.0
    %v6895 = vmax.f32 %v6601, 0.0
    %v6896 = vmax.f32 %v6606, 0.0
    %v6897 = vmax.f32 %v6611, 0.0
    %v6898 = vmax.f32 %v6616, 0.0
    %v6899 = vmax.f32 %v6621, 0.0
    %v6900 = vmax.f32 %v6626, 0.0
    %v6901 = vmax.f32 %v6631, 0.0
    %v6902 = vmax.f32 %v6636, 0.0
    %v6903 = vmax.f32 %v6641, 0.0
    %v6904 = vmax.f32 %v6646, 0.0
    %v6905 = vmax.f32 %v6651, 0.0
    %v6906 = vmax.f32 %v6656, 0.0
    %v6907 = vmax.f32 %v6661, 0.0
    %v6908 = vmax.f32 %v6666, 0.0
    %v6909 = vmax.f32 %v6671, 0.0
    %v6910 = vmax.f32 %v6676, 0.0
    %v6911 = vmax.f32 %v6681, 0.0
    %v6912 = vmax.f32 %v6686, 0.0
    %v6913 = vmax.f32 %v6691, 0.0
    %v6914 = vmax.f32 %v6696, 0.0
    %v6915 = vmax.f32 %v6701, 0.0
    %v6916 = vmax.f32 %v6706, 0.0
    %v6917 = vmax.f32 %v6711, 0.0
    %v6918 = vmax.f32 %v6716, 0.0
    %v6919 = vmax.f32 %v6721, 0.0
    %v6920 = vmax.f32 %v6726, 0.0
    %v6921 = vmax.f32 %v6731, 0.0
    %v6922 = vmax.f32 %v6736, 0.0
    %v6923 = vmax.f32 %v6741, 0.0
    %v6924 = vmax.f32 %v6746, 0.0
    %v6925 = vmax.f32 %v6751, 0.0
    %v6926 = vmax.f32 %v6756, 0.0
    %v6927 = vmax.f32 %v6761, 0.0
    %v6928 = vmax.f32 %v6766, 0.0
    %v6929 = vmax.f32 %v6771, 0.0
    %v6930 = vmax.f32 %v6776, 0.0
    %v6931 = vmax.f32 %v6781, 0.0
    %v6932 = vmax.f32 %v6786, 0.0
    %v6933 = vmax.f32 %v6791, 0.0
    %v6934 = vmax.f32 %v6796, 0.0
    %v6935 = vmax.f32 %v6801, 0.0
    %v6936 = vmax.f32 %v6806, 0.0
    %v6937 = vmax.f32 %v6811, 0.0
    %v6938 = vmax.f32 %v6816, 0.0
    %v6939 = vmax.f32 %v6821, 0.0
    %v6940 = vmax.f32 %v6826, 0.0
    %v6941 = vmax.f32 %v6831, 0.0
    %v6942 = vmax.f32 %v6836, 0.0
    %v6943 = vmax.f32 %v6841, 0.0
    %v6944 = vmax.f32 %v6846, 0.0
    %v6945 = vmax.f32 %v6851, 0.0
    %v6946 = vmax.f32 %v6856, 0.0
    %v6947 = vmax.f32 %v6861, 0.0
    %v6948 = vmax.f32 %v6866, 0.0
    %v6949 = vmax.f32 %v6871, 0.0
    %v6950 = vmax.f32 %v6876, 0.0
    %v6951 = vmax.f32 %v6881, 0.0
    %v6952 = vmax.f32 %v6886, 0.0
    %6953 = vst.msk [vmem:[%s4325 + $0x1] sm:$0xff] %vm155, %v6889
    %6954 = vst.msk [vmem:[%s4325 + $0x9] sm:$0xff] %vm155, %v6890
    %6955 = vst.msk [vmem:[%s4325 + $0x19] sm:$0xff] %vm155, %v6891
    %6956 = vst.msk [vmem:[%s4325 + $0x21] sm:$0xff] %vm155, %v6892
    %6957 = vst.msk [vmem:[%s4325 + $0x31] sm:$0xff] %vm155, %v6893
    %6958 = vst.msk [vmem:[%s4325 + $0x39] sm:$0xff] %vm155, %v6894
    %6959 = vst.msk [vmem:[%s4325 + $0x49] sm:$0xff] %vm155, %v6895
    %6960 = vst.msk [vmem:[%s4325 + $0x51] sm:$0xff] %vm155, %v6896
    %6961 = vst.msk [vmem:[%s4325 + $0x61] sm:$0xff] %vm155, %v6897
    %6962 = vst.msk [vmem:[%s4325 + $0x69] sm:$0xff] %vm155, %v6898
    %6963 = vst.msk [vmem:[%s4325 + $0x79] sm:$0xff] %vm155, %v6899
    %6964 = vst.msk [vmem:[%s4325 + $0x81] sm:$0xff] %vm155, %v6900
    %6965 = vst.msk [vmem:[%s4325 + $0x91] sm:$0xff] %vm155, %v6901
    %6966 = vst.msk [vmem:[%s4325 + $0x99] sm:$0xff] %vm155, %v6902
    %6967 = vst.msk [vmem:[%s4325 + $0xa9] sm:$0xff] %vm155, %v6903
    %6968 = vst.msk [vmem:[%s4325 + $0xb1] sm:$0xff] %vm155, %v6904
    %6969 = vst.msk [vmem:[%s4325 + $0xc1] sm:$0xff] %vm155, %v6905
    %6970 = vst.msk [vmem:[%s4325 + $0xc9] sm:$0xff] %vm155, %v6906
    %6971 = vst.msk [vmem:[%s4325 + $0xd9] sm:$0xff] %vm155, %v6907
    %6972 = vst.msk [vmem:[%s4325 + $0xe1] sm:$0xff] %vm155, %v6908
    %6973 = vst.msk [vmem:[%s4325 + $0xf1] sm:$0xff] %vm155, %v6909
    %6974 = vst.msk [vmem:[%s4325 + $0xf9] sm:$0xff] %vm155, %v6910
    %6975 = vst.msk [vmem:[%s4325 + $0x109] sm:$0xff] %vm155, %v6911
    %6976 = vst.msk [vmem:[%s4325 + $0x111] sm:$0xff] %vm155, %v6912
    %6977 = vst.msk [vmem:[%s4325 + $0x121] sm:$0xff] %vm155, %v6913
    %6978 = vst.msk [vmem:[%s4325 + $0x129] sm:$0xff] %vm155, %v6914
    %6979 = vst.msk [vmem:[%s4325 + $0x139] sm:$0xff] %vm155, %v6915
    %6980 = vst.msk [vmem:[%s4325 + $0x141] sm:$0xff] %vm155, %v6916
    %6981 = vst.msk [vmem:[%s4325 + $0x151] sm:$0xff] %vm155, %v6917
    %6982 = vst.msk [vmem:[%s4325 + $0x159] sm:$0xff] %vm155, %v6918
    %6983 = vst.msk [vmem:[%s4325 + $0x169] sm:$0xff] %vm155, %v6919
    %6984 = vst.msk [vmem:[%s4325 + $0x171] sm:$0xff] %vm155, %v6920
    %6985 = vst.msk [vmem:[%s4325 + $0x1b1] sm:$0xff] %vm155, %v6921
    %6986 = vst.msk [vmem:[%s4325 + $0x1b9] sm:$0xff] %vm155, %v6922
    %6987 = vst.msk [vmem:[%s4325 + $0x1c9] sm:$0xff] %vm155, %v6923
    %6988 = vst.msk [vmem:[%s4325 + $0x1d1] sm:$0xff] %vm155, %v6924
    %6989 = vst.msk [vmem:[%s4325 + $0x1e1] sm:$0xff] %vm155, %v6925
    %6990 = vst.msk [vmem:[%s4325 + $0x1e9] sm:$0xff] %vm155, %v6926
    %6991 = vst.msk [vmem:[%s4325 + $0x1f9] sm:$0xff] %vm155, %v6927
    %6992 = vst.msk [vmem:[%s4325 + $0x201] sm:$0xff] %vm155, %v6928
    %6993 = vst.msk [vmem:[%s4325 + $0x211] sm:$0xff] %vm155, %v6929
    %6994 = vst.msk [vmem:[%s4325 + $0x219] sm:$0xff] %vm155, %v6930
    %6995 = vst.msk [vmem:[%s4325 + $0x229] sm:$0xff] %vm155, %v6931
    %6996 = vst.msk [vmem:[%s4325 + $0x231] sm:$0xff] %vm155, %v6932
    %6997 = vst.msk [vmem:[%s4325 + $0x241] sm:$0xff] %vm155, %v6933
    %6998 = vst.msk [vmem:[%s4325 + $0x249] sm:$0xff] %vm155, %v6934
    %6999 = vst.msk [vmem:[%s4325 + $0x259] sm:$0xff] %vm155, %v6935
    %7000 = vst.msk [vmem:[%s4325 + $0x261] sm:$0xff] %vm155, %v6936
    %7001 = vst.msk [vmem:[%s4325 + $0x271] sm:$0xff] %vm155, %v6937
    %7002 = vst.msk [vmem:[%s4325 + $0x279] sm:$0xff] %vm155, %v6938
    %7003 = vst.msk [vmem:[%s4325 + $0x289] sm:$0xff] %vm155, %v6939
    %7004 = vst.msk [vmem:[%s4325 + $0x291] sm:$0xff] %vm155, %v6940
    %7005 = vst.msk [vmem:[%s4325 + $0x2a1] sm:$0xff] %vm155, %v6941
    %7006 = vst.msk [vmem:[%s4325 + $0x2a9] sm:$0xff] %vm155, %v6942
    %7007 = vst.msk [vmem:[%s4325 + $0x2b9] sm:$0xff] %vm155, %v6943
    %7008 = vst.msk [vmem:[%s4325 + $0x2c1] sm:$0xff] %vm155, %v6944
    %7009 = vst.msk [vmem:[%s4325 + $0x2d1] sm:$0xff] %vm155, %v6945
    %7010 = vst.msk [vmem:[%s4325 + $0x2d9] sm:$0xff] %vm155, %v6946
    %7011 = vst.msk [vmem:[%s4325 + $0x2e9] sm:$0xff] %vm155, %v6947
    %7012 = vst.msk [vmem:[%s4325 + $0x2f1] sm:$0xff] %vm155, %v6948
    %7013 = vst.msk [vmem:[%s4325 + $0x301] sm:$0xff] %vm155, %v6949
    %7014 = vst.msk [vmem:[%s4325 + $0x309] sm:$0xff] %vm155, %v6950
    %7015 = vst.msk [vmem:[%s4325 + $0x319] sm:$0xff] %vm155, %v6951
    %7016 = vst.msk [vmem:[%s4325 + $0x321] sm:$0xff] %vm155, %v6952
    %v7017 = vld [vmem:[#allocation4] sm:$0xff]
    %v7018 = vld [vmem:[#allocation4 + $0x8] sm:$0xff]
    %v7019 = vld [vmem:[#allocation4 + $0x18] sm:$0xff]
    %v7020 = vld [vmem:[#allocation4 + $0x20] sm:$0xff]
    %v7021 = vld [vmem:[#allocation4 + $0x30] sm:$0xff]
    %v7022 = vld [vmem:[#allocation4 + $0x38] sm:$0xff]
    %v7023 = vld [vmem:[#allocation4 + $0x48] sm:$0xff]
    %v7024 = vld [vmem:[#allocation4 + $0x50] sm:$0xff]
    %v7025 = vld [vmem:[#allocation4 + $0x60] sm:$0xff]
    %v7026 = vld [vmem:[#allocation4 + $0x68] sm:$0xff]
    %v7027 = vld [vmem:[#allocation4 + $0x78] sm:$0xff]
    %v7028 = vld [vmem:[#allocation4 + $0x80] sm:$0xff]
    %v7029 = vld [vmem:[#allocation4 + $0x90] sm:$0xff]
    %v7030 = vld [vmem:[#allocation4 + $0x98] sm:$0xff]
    %v7031 = vld [vmem:[#allocation4 + $0xa8] sm:$0xff]
    %v7032 = vld [vmem:[#allocation4 + $0xb0] sm:$0xff]
    %v7033 = vld [vmem:[#allocation4 + $0xc0] sm:$0xff]
    %v7034 = vld [vmem:[#allocation4 + $0xc8] sm:$0xff]
    %v7035 = vld [vmem:[#allocation4 + $0xd8] sm:$0xff]
    %v7036 = vld [vmem:[#allocation4 + $0xe0] sm:$0xff]
    %v7037 = vld [vmem:[#allocation4 + $0xf0] sm:$0xff]
    %v7038 = vld [vmem:[#allocation4 + $0xf8] sm:$0xff]
    %v7039 = vld [vmem:[#allocation4 + $0x108] sm:$0xff]
    %v7040 = vld [vmem:[#allocation4 + $0x110] sm:$0xff]
    %v7041 = vld [vmem:[#allocation4 + $0x120] sm:$0xff]
    %v7042 = vld [vmem:[#allocation4 + $0x128] sm:$0xff]
    %v7043 = vld [vmem:[#allocation4 + $0x138] sm:$0xff]
    %v7044 = vld [vmem:[#allocation4 + $0x140] sm:$0xff]
    %v7045 = vld [vmem:[#allocation4 + $0x150] sm:$0xff]
    %v7046 = vld [vmem:[#allocation4 + $0x158] sm:$0xff]
    %v7047 = vld [vmem:[#allocation4 + $0x168] sm:$0xff]
    %v7048 = vld [vmem:[#allocation4 + $0x170] sm:$0xff]
    %v7049 = vld [vmem:[#allocation4 + $0x1b0] sm:$0xff]
    %v7050 = vld [vmem:[#allocation4 + $0x1b8] sm:$0xff]
    %v7051 = vld [vmem:[#allocation4 + $0x1c8] sm:$0xff]
    %v7052 = vld [vmem:[#allocation4 + $0x1d0] sm:$0xff]
    %v7053 = vld [vmem:[#allocation4 + $0x1e0] sm:$0xff]
    %v7054 = vld [vmem:[#allocation4 + $0x1e8] sm:$0xff]
    %v7055 = vld [vmem:[#allocation4 + $0x1f8] sm:$0xff]
    %v7056 = vld [vmem:[#allocation4 + $0x200] sm:$0xff]
    %v7057 = vld [vmem:[#allocation4 + $0x210] sm:$0xff]
    %v7058 = vld [vmem:[#allocation4 + $0x218] sm:$0xff]
    %v7059 = vld [vmem:[#allocation4 + $0x228] sm:$0xff]
    %v7060 = vld [vmem:[#allocation4 + $0x230] sm:$0xff]
    %v7061 = vld [vmem:[#allocation4 + $0x240] sm:$0xff]
    %v7062 = vld [vmem:[#allocation4 + $0x248] sm:$0xff]
    %v7063 = vld [vmem:[#allocation4 + $0x258] sm:$0xff]
    %v7064 = vld [vmem:[#allocation4 + $0x260] sm:$0xff]
    %v7065 = vld [vmem:[#allocation4 + $0x270] sm:$0xff]
    %v7066 = vld [vmem:[#allocation4 + $0x278] sm:$0xff]
    %v7067 = vld [vmem:[#allocation4 + $0x288] sm:$0xff]
    %v7068 = vld [vmem:[#allocation4 + $0x290] sm:$0xff]
    %v7069 = vld [vmem:[#allocation4 + $0x2a0] sm:$0xff]
    %v7070 = vld [vmem:[#allocation4 + $0x2a8] sm:$0xff]
    %v7071 = vld [vmem:[#allocation4 + $0x2b8] sm:$0xff]
    %v7072 = vld [vmem:[#allocation4 + $0x2c0] sm:$0xff]
    %v7073 = vld [vmem:[#allocation4 + $0x2d0] sm:$0xff]
    %v7074 = vld [vmem:[#allocation4 + $0x2d8] sm:$0xff]
    %v7075 = vld [vmem:[#allocation4 + $0x2e8] sm:$0xff]
    %v7076 = vld [vmem:[#allocation4 + $0x2f0] sm:$0xff]
    %v7077 = vld [vmem:[#allocation4 + $0x300] sm:$0xff]
    %v7078 = vld [vmem:[#allocation4 + $0x308] sm:$0xff]
    %v7079 = vld [vmem:[#allocation4 + $0x318] sm:$0xff]
    %v7080 = vld [vmem:[#allocation4 + $0x320] sm:$0xff]
    %v7081 = vld [vmem:[%s7] sm:$0x1]
    %v7082 = vlaneseq
    %v7083 = vshrl.u32 %v7082, 7
    %v7084 = vsub.s32 0, %v7083
    %v7085 = vrot.slane %v7081, %v7084
    %v7086 = vmul.f32 %v7017, %v7085
    %v7087 = vmul.f32 %v7018, %v7085
    %v7088 = vmul.f32 %v7019, %v7085
    %v7089 = vmul.f32 %v7020, %v7085
    %v7090 = vmul.f32 %v7021, %v7085
    %v7091 = vmul.f32 %v7022, %v7085
    %v7092 = vmul.f32 %v7023, %v7085
    %v7093 = vmul.f32 %v7024, %v7085
    %v7094 = vmul.f32 %v7025, %v7085
    %v7095 = vmul.f32 %v7026, %v7085
    %v7096 = vmul.f32 %v7027, %v7085
    %v7097 = vmul.f32 %v7028, %v7085
    %v7098 = vmul.f32 %v7029, %v7085
    %v7099 = vmul.f32 %v7030, %v7085
    %v7100 = vmul.f32 %v7031, %v7085
    %v7101 = vmul.f32 %v7032, %v7085
    %v7102 = vmul.f32 %v7033, %v7085
    %v7103 = vmul.f32 %v7034, %v7085
    %v7104 = vmul.f32 %v7035, %v7085
    %v7105 = vmul.f32 %v7036, %v7085
    %v7106 = vmul.f32 %v7037, %v7085
    %v7107 = vmul.f32 %v7038, %v7085
    %v7108 = vmul.f32 %v7039, %v7085
    %v7109 = vmul.f32 %v7040, %v7085
    %v7110 = vmul.f32 %v7041, %v7085
    %v7111 = vmul.f32 %v7042, %v7085
    %v7112 = vmul.f32 %v7043, %v7085
    %v7113 = vmul.f32 %v7044, %v7085
    %v7114 = vmul.f32 %v7045, %v7085
    %v7115 = vmul.f32 %v7046, %v7085
    %v7116 = vmul.f32 %v7047, %v7085
    %v7117 = vmul.f32 %v7048, %v7085
    %v7118 = vmul.f32 %v7049, %v7085
    %v7119 = vmul.f32 %v7050, %v7085
    %v7120 = vmul.f32 %v7051, %v7085
    %v7121 = vmul.f32 %v7052, %v7085
    %v7122 = vmul.f32 %v7053, %v7085
    %v7123 = vmul.f32 %v7054, %v7085
    %v7124 = vmul.f32 %v7055, %v7085
    %v7125 = vmul.f32 %v7056, %v7085
    %v7126 = vmul.f32 %v7057, %v7085
    %v7127 = vmul.f32 %v7058, %v7085
    %v7128 = vmul.f32 %v7059, %v7085
    %v7129 = vmul.f32 %v7060, %v7085
    %v7130 = vmul.f32 %v7061, %v7085
    %v7131 = vmul.f32 %v7062, %v7085
    %v7132 = vmul.f32 %v7063, %v7085
    %v7133 = vmul.f32 %v7064, %v7085
    %v7134 = vmul.f32 %v7065, %v7085
    %v7135 = vmul.f32 %v7066, %v7085
    %v7136 = vmul.f32 %v7067, %v7085
    %v7137 = vmul.f32 %v7068, %v7085
    %v7138 = vmul.f32 %v7069, %v7085
    %v7139 = vmul.f32 %v7070, %v7085
    %v7140 = vmul.f32 %v7071, %v7085
    %v7141 = vmul.f32 %v7072, %v7085
    %v7142 = vmul.f32 %v7073, %v7085
    %v7143 = vmul.f32 %v7074, %v7085
    %v7144 = vmul.f32 %v7075, %v7085
    %v7145 = vmul.f32 %v7076, %v7085
    %v7146 = vmul.f32 %v7077, %v7085
    %v7147 = vmul.f32 %v7078, %v7085
    %v7148 = vmul.f32 %v7079, %v7085
    %v7149 = vmul.f32 %v7080, %v7085
    %v7150 = vadd.f32 %v7086, 0.0
    %v7151 = vadd.f32 %v7087, 0.0
    %v7152 = vadd.f32 %v7088, 0.0
    %v7153 = vadd.f32 %v7089, 0.0
    %v7154 = vadd.f32 %v7090, 0.0
    %v7155 = vadd.f32 %v7091, 0.0
    %v7156 = vadd.f32 %v7092, 0.0
    %v7157 = vadd.f32 %v7093, 0.0
    %v7158 = vadd.f32 %v7094, 0.0
    %v7159 = vadd.f32 %v7095, 0.0
    %v7160 = vadd.f32 %v7096, 0.0
    %v7161 = vadd.f32 %v7097, 0.0
    %v7162 = vadd.f32 %v7098, 0.0
    %v7163 = vadd.f32 %v7099, 0.0
    %v7164 = vadd.f32 %v7100, 0.0
    %v7165 = vadd.f32 %v7101, 0.0
    %v7166 = vadd.f32 %v7102, 0.0
    %v7167 = vadd.f32 %v7103, 0.0
    %v7168 = vadd.f32 %v7104, 0.0
    %v7169 = vadd.f32 %v7105, 0.0
    %v7170 = vadd.f32 %v7106, 0.0
    %v7171 = vadd.f32 %v7107, 0.0
    %v7172 = vadd.f32 %v7108, 0.0
    %v7173 = vadd.f32 %v7109, 0.0
    %v7174 = vadd.f32 %v7110, 0.0
    %v7175 = vadd.f32 %v7111, 0.0
    %v7176 = vadd.f32 %v7112, 0.0
    %v7177 = vadd.f32 %v7113, 0.0
    %v7178 = vadd.f32 %v7114, 0.0
    %v7179 = vadd.f32 %v7115, 0.0
    %v7180 = vadd.f32 %v7116, 0.0
    %v7181 = vadd.f32 %v7117, 0.0
    %v7182 = vadd.f32 %v7118, 0.0
    %v7183 = vadd.f32 %v7119, 0.0
    %v7184 = vadd.f32 %v7120, 0.0
    %v7185 = vadd.f32 %v7121, 0.0
    %v7186 = vadd.f32 %v7122, 0.0
    %v7187 = vadd.f32 %v7123, 0.0
    %v7188 = vadd.f32 %v7124, 0.0
    %v7189 = vadd.f32 %v7125, 0.0
    %v7190 = vadd.f32 %v7126, 0.0
    %v7191 = vadd.f32 %v7127, 0.0
    %v7192 = vadd.f32 %v7128, 0.0
    %v7193 = vadd.f32 %v7129, 0.0
    %v7194 = vadd.f32 %v7130, 0.0
    %v7195 = vadd.f32 %v7131, 0.0
    %v7196 = vadd.f32 %v7132, 0.0
    %v7197 = vadd.f32 %v7133, 0.0
    %v7198 = vadd.f32 %v7134, 0.0
    %v7199 = vadd.f32 %v7135, 0.0
    %v7200 = vadd.f32 %v7136, 0.0
    %v7201 = vadd.f32 %v7137, 0.0
    %v7202 = vadd.f32 %v7138, 0.0
    %v7203 = vadd.f32 %v7139, 0.0
    %v7204 = vadd.f32 %v7140, 0.0
    %v7205 = vadd.f32 %v7141, 0.0
    %v7206 = vadd.f32 %v7142, 0.0
    %v7207 = vadd.f32 %v7143, 0.0
    %v7208 = vadd.f32 %v7144, 0.0
    %v7209 = vadd.f32 %v7145, 0.0
    %v7210 = vadd.f32 %v7146, 0.0
    %v7211 = vadd.f32 %v7147, 0.0
    %v7212 = vadd.f32 %v7148, 0.0
    %v7213 = vadd.f32 %v7149, 0.0
    %v7214 = vld [vmem:[#allocation4 + $0x1] sm:$0xff]
    %v7215 = vld [vmem:[#allocation4 + $0x9] sm:$0xff]
    %v7216 = vld [vmem:[#allocation4 + $0x19] sm:$0xff]
    %v7217 = vld [vmem:[#allocation4 + $0x21] sm:$0xff]
    %v7218 = vld [vmem:[#allocation4 + $0x31] sm:$0xff]
    %v7219 = vld [vmem:[#allocation4 + $0x39] sm:$0xff]
    %v7220 = vld [vmem:[#allocation4 + $0x49] sm:$0xff]
    %v7221 = vld [vmem:[#allocation4 + $0x51] sm:$0xff]
    %v7222 = vld [vmem:[#allocation4 + $0x61] sm:$0xff]
    %v7223 = vld [vmem:[#allocation4 + $0x69] sm:$0xff]
    %v7224 = vld [vmem:[#allocation4 + $0x79] sm:$0xff]
    %v7225 = vld [vmem:[#allocation4 + $0x81] sm:$0xff]
    %v7226 = vld [vmem:[#allocation4 + $0x91] sm:$0xff]
    %v7227 = vld [vmem:[#allocation4 + $0x99] sm:$0xff]
    %v7228 = vld [vmem:[#allocation4 + $0xa9] sm:$0xff]
    %v7229 = vld [vmem:[#allocation4 + $0xb1] sm:$0xff]
    %v7230 = vld [vmem:[#allocation4 + $0xc1] sm:$0xff]
    %v7231 = vld [vmem:[#allocation4 + $0xc9] sm:$0xff]
    %v7232 = vld [vmem:[#allocation4 + $0xd9] sm:$0xff]
    %v7233 = vld [vmem:[#allocation4 + $0xe1] sm:$0xff]
    %v7234 = vld [vmem:[#allocation4 + $0xf1] sm:$0xff]
    %v7235 = vld [vmem:[#allocation4 + $0xf9] sm:$0xff]
    %v7236 = vld [vmem:[#allocation4 + $0x109] sm:$0xff]
    %v7237 = vld [vmem:[#allocation4 + $0x111] sm:$0xff]
    %v7238 = vld [vmem:[#allocation4 + $0x121] sm:$0xff]
    %v7239 = vld [vmem:[#allocation4 + $0x129] sm:$0xff]
    %v7240 = vld [vmem:[#allocation4 + $0x139] sm:$0xff]
    %v7241 = vld [vmem:[#allocation4 + $0x141] sm:$0xff]
    %v7242 = vld [vmem:[#allocation4 + $0x151] sm:$0xff]
    %v7243 = vld [vmem:[#allocation4 + $0x159] sm:$0xff]
    %v7244 = vld [vmem:[#allocation4 + $0x169] sm:$0xff]
    %v7245 = vld [vmem:[#allocation4 + $0x171] sm:$0xff]
    %v7246 = vld [vmem:[#allocation4 + $0x1b1] sm:$0xff]
    %v7247 = vld [vmem:[#allocation4 + $0x1b9] sm:$0xff]
    %v7248 = vld [vmem:[#allocation4 + $0x1c9] sm:$0xff]
    %v7249 = vld [vmem:[#allocation4 + $0x1d1] sm:$0xff]
    %v7250 = vld [vmem:[#allocation4 + $0x1e1] sm:$0xff]
    %v7251 = vld [vmem:[#allocation4 + $0x1e9] sm:$0xff]
    %v7252 = vld [vmem:[#allocation4 + $0x1f9] sm:$0xff]
    %v7253 = vld [vmem:[#allocation4 + $0x201] sm:$0xff]
    %v7254 = vld [vmem:[#allocation4 + $0x211] sm:$0xff]
    %v7255 = vld [vmem:[#allocation4 + $0x219] sm:$0xff]
    %v7256 = vld [vmem:[#allocation4 + $0x229] sm:$0xff]
    %v7257 = vld [vmem:[#allocation4 + $0x231] sm:$0xff]
    %v7258 = vld [vmem:[#allocation4 + $0x241] sm:$0xff]
    %v7259 = vld [vmem:[#allocation4 + $0x249] sm:$0xff]
    %v7260 = vld [vmem:[#allocation4 + $0x259] sm:$0xff]
    %v7261 = vld [vmem:[#allocation4 + $0x261] sm:$0xff]
    %v7262 = vld [vmem:[#allocation4 + $0x271] sm:$0xff]
    %v7263 = vld [vmem:[#allocation4 + $0x279] sm:$0xff]
    %v7264 = vld [vmem:[#allocation4 + $0x289] sm:$0xff]
    %v7265 = vld [vmem:[#allocation4 + $0x291] sm:$0xff]
    %v7266 = vld [vmem:[#allocation4 + $0x2a1] sm:$0xff]
    %v7267 = vld [vmem:[#allocation4 + $0x2a9] sm:$0xff]
    %v7268 = vld [vmem:[#allocation4 + $0x2b9] sm:$0xff]
    %v7269 = vld [vmem:[#allocation4 + $0x2c1] sm:$0xff]
    %v7270 = vld [vmem:[#allocation4 + $0x2d1] sm:$0xff]
    %v7271 = vld [vmem:[#allocation4 + $0x2d9] sm:$0xff]
    %v7272 = vld [vmem:[#allocation4 + $0x2e9] sm:$0xff]
    %v7273 = vld [vmem:[#allocation4 + $0x2f1] sm:$0xff]
    %v7274 = vld [vmem:[#allocation4 + $0x301] sm:$0xff]
    %v7275 = vld [vmem:[#allocation4 + $0x309] sm:$0xff]
    %v7276 = vld [vmem:[#allocation4 + $0x319] sm:$0xff]
    %v7277 = vld [vmem:[#allocation4 + $0x321] sm:$0xff]
    %v7278 = vld [vmem:[%s7 + $0x1] sm:$0x1]
    %v7279 = vlaneseq
    %v7280 = vshrl.u32 %v7279, 7
    %v7281 = vsub.s32 0, %v7280
    %v7282 = vrot.slane %v7278, %v7281
    %v7283 = vmul.f32 %v7214, %v7282
    %v7284 = vmul.f32 %v7215, %v7282
    %v7285 = vmul.f32 %v7216, %v7282
    %v7286 = vmul.f32 %v7217, %v7282
    %v7287 = vmul.f32 %v7218, %v7282
    %v7288 = vmul.f32 %v7219, %v7282
    %v7289 = vmul.f32 %v7220, %v7282
    %v7290 = vmul.f32 %v7221, %v7282
    %v7291 = vmul.f32 %v7222, %v7282
    %v7292 = vmul.f32 %v7223, %v7282
    %v7293 = vmul.f32 %v7224, %v7282
    %v7294 = vmul.f32 %v7225, %v7282
    %v7295 = vmul.f32 %v7226, %v7282
    %v7296 = vmul.f32 %v7227, %v7282
    %v7297 = vmul.f32 %v7228, %v7282
    %v7298 = vmul.f32 %v7229, %v7282
    %v7299 = vmul.f32 %v7230, %v7282
    %v7300 = vmul.f32 %v7231, %v7282
    %v7301 = vmul.f32 %v7232, %v7282
    %v7302 = vmul.f32 %v7233, %v7282
    %v7303 = vmul.f32 %v7234, %v7282
    %v7304 = vmul.f32 %v7235, %v7282
    %v7305 = vmul.f32 %v7236, %v7282
    %v7306 = vmul.f32 %v7237, %v7282
    %v7307 = vmul.f32 %v7238, %v7282
    %v7308 = vmul.f32 %v7239, %v7282
    %v7309 = vmul.f32 %v7240, %v7282
    %v7310 = vmul.f32 %v7241, %v7282
    %v7311 = vmul.f32 %v7242, %v7282
    %v7312 = vmul.f32 %v7243, %v7282
    %v7313 = vmul.f32 %v7244, %v7282
    %v7314 = vmul.f32 %v7245, %v7282
    %v7315 = vmul.f32 %v7246, %v7282
    %v7316 = vmul.f32 %v7247, %v7282
    %v7317 = vmul.f32 %v7248, %v7282
    %v7318 = vmul.f32 %v7249, %v7282
    %v7319 = vmul.f32 %v7250, %v7282
    %v7320 = vmul.f32 %v7251, %v7282
    %v7321 = vmul.f32 %v7252, %v7282
    %v7322 = vmul.f32 %v7253, %v7282
    %v7323 = vmul.f32 %v7254, %v7282
    %v7324 = vmul.f32 %v7255, %v7282
    %v7325 = vmul.f32 %v7256, %v7282
    %v7326 = vmul.f32 %v7257, %v7282
    %v7327 = vmul.f32 %v7258, %v7282
    %v7328 = vmul.f32 %v7259, %v7282
    %v7329 = vmul.f32 %v7260, %v7282
    %v7330 = vmul.f32 %v7261, %v7282
    %v7331 = vmul.f32 %v7262, %v7282
    %v7332 = vmul.f32 %v7263, %v7282
    %v7333 = vmul.f32 %v7264, %v7282
    %v7334 = vmul.f32 %v7265, %v7282
    %v7335 = vmul.f32 %v7266, %v7282
    %v7336 = vmul.f32 %v7267, %v7282
    %v7337 = vmul.f32 %v7268, %v7282
    %v7338 = vmul.f32 %v7269, %v7282
    %v7339 = vmul.f32 %v7270, %v7282
    %v7340 = vmul.f32 %v7271, %v7282
    %v7341 = vmul.f32 %v7272, %v7282
    %v7342 = vmul.f32 %v7273, %v7282
    %v7343 = vmul.f32 %v7274, %v7282
    %v7344 = vmul.f32 %v7275, %v7282
    %v7345 = vmul.f32 %v7276, %v7282
    %v7346 = vmul.f32 %v7277, %v7282
    %v7347 = vadd.f32 %v7150, %v7283
    %v7348 = vadd.f32 %v7151, %v7284
    %v7349 = vadd.f32 %v7152, %v7285
    %v7350 = vadd.f32 %v7153, %v7286
    %v7351 = vadd.f32 %v7154, %v7287
    %v7352 = vadd.f32 %v7155, %v7288
    %v7353 = vadd.f32 %v7156, %v7289
    %v7354 = vadd.f32 %v7157, %v7290
    %v7355 = vadd.f32 %v7158, %v7291
    %v7356 = vadd.f32 %v7159, %v7292
    %v7357 = vadd.f32 %v7160, %v7293
    %v7358 = vadd.f32 %v7161, %v7294
    %v7359 = vadd.f32 %v7162, %v7295
    %v7360 = vadd.f32 %v7163, %v7296
    %v7361 = vadd.f32 %v7164, %v7297
    %v7362 = vadd.f32 %v7165, %v7298
    %v7363 = vadd.f32 %v7166, %v7299
    %v7364 = vadd.f32 %v7167, %v7300
    %v7365 = vadd.f32 %v7168, %v7301
    %v7366 = vadd.f32 %v7169, %v7302
    %v7367 = vadd.f32 %v7170, %v7303
    %v7368 = vadd.f32 %v7171, %v7304
    %v7369 = vadd.f32 %v7172, %v7305
    %v7370 = vadd.f32 %v7173, %v7306
    %v7371 = vadd.f32 %v7174, %v7307
    %v7372 = vadd.f32 %v7175, %v7308
    %v7373 = vadd.f32 %v7176, %v7309
    %v7374 = vadd.f32 %v7177, %v7310
    %v7375 = vadd.f32 %v7178, %v7311
    %v7376 = vadd.f32 %v7179, %v7312
    %v7377 = vadd.f32 %v7180, %v7313
    %v7378 = vadd.f32 %v7181, %v7314
    %v7379 = vadd.f32 %v7182, %v7315
    %v7380 = vadd.f32 %v7183, %v7316
    %v7381 = vadd.f32 %v7184, %v7317
    %v7382 = vadd.f32 %v7185, %v7318
    %v7383 = vadd.f32 %v7186, %v7319
    %v7384 = vadd.f32 %v7187, %v7320
    %v7385 = vadd.f32 %v7188, %v7321
    %v7386 = vadd.f32 %v7189, %v7322
    %v7387 = vadd.f32 %v7190, %v7323
    %v7388 = vadd.f32 %v7191, %v7324
    %v7389 = vadd.f32 %v7192, %v7325
    %v7390 = vadd.f32 %v7193, %v7326
    %v7391 = vadd.f32 %v7194, %v7327
    %v7392 = vadd.f32 %v7195, %v7328
    %v7393 = vadd.f32 %v7196, %v7329
    %v7394 = vadd.f32 %v7197, %v7330
    %v7395 = vadd.f32 %v7198, %v7331
    %v7396 = vadd.f32 %v7199, %v7332
    %v7397 = vadd.f32 %v7200, %v7333
    %v7398 = vadd.f32 %v7201, %v7334
    %v7399 = vadd.f32 %v7202, %v7335
    %v7400 = vadd.f32 %v7203, %v7336
    %v7401 = vadd.f32 %v7204, %v7337
    %v7402 = vadd.f32 %v7205, %v7338
    %v7403 = vadd.f32 %v7206, %v7339
    %v7404 = vadd.f32 %v7207, %v7340
    %v7405 = vadd.f32 %v7208, %v7341
    %v7406 = vadd.f32 %v7209, %v7342
    %v7407 = vadd.f32 %v7210, %v7343
    %v7408 = vadd.f32 %v7211, %v7344
    %v7409 = vadd.f32 %v7212, %v7345
    %v7410 = vadd.f32 %v7213, %v7346
    %v7411 = vld [vmem:[#allocation4 + $0x2] sm:$0xff]
    %v7412 = vld [vmem:[#allocation4 + $0xa] sm:$0xff]
    %v7413 = vld [vmem:[#allocation4 + $0x1a] sm:$0xff]
    %v7414 = vld [vmem:[#allocation4 + $0x22] sm:$0xff]
    %v7415 = vld [vmem:[#allocation4 + $0x32] sm:$0xff]
    %v7416 = vld [vmem:[#allocation4 + $0x3a] sm:$0xff]
    %v7417 = vld [vmem:[#allocation4 + $0x4a] sm:$0xff]
    %v7418 = vld [vmem:[#allocation4 + $0x52] sm:$0xff]
    %v7419 = vld [vmem:[#allocation4 + $0x62] sm:$0xff]
    %v7420 = vld [vmem:[#allocation4 + $0x6a] sm:$0xff]
    %v7421 = vld [vmem:[#allocation4 + $0x7a] sm:$0xff]
    %v7422 = vld [vmem:[#allocation4 + $0x82] sm:$0xff]
    %v7423 = vld [vmem:[#allocation4 + $0x92] sm:$0xff]
    %v7424 = vld [vmem:[#allocation4 + $0x9a] sm:$0xff]
    %v7425 = vld [vmem:[#allocation4 + $0xaa] sm:$0xff]
    %v7426 = vld [vmem:[#allocation4 + $0xb2] sm:$0xff]
    %v7427 = vld [vmem:[#allocation4 + $0xc2] sm:$0xff]
    %v7428 = vld [vmem:[#allocation4 + $0xca] sm:$0xff]
    %v7429 = vld [vmem:[#allocation4 + $0xda] sm:$0xff]
    %v7430 = vld [vmem:[#allocation4 + $0xe2] sm:$0xff]
    %v7431 = vld [vmem:[#allocation4 + $0xf2] sm:$0xff]
    %v7432 = vld [vmem:[#allocation4 + $0xfa] sm:$0xff]
    %v7433 = vld [vmem:[#allocation4 + $0x10a] sm:$0xff]
    %v7434 = vld [vmem:[#allocation4 + $0x112] sm:$0xff]
    %v7435 = vld [vmem:[#allocation4 + $0x122] sm:$0xff]
    %v7436 = vld [vmem:[#allocation4 + $0x12a] sm:$0xff]
    %v7437 = vld [vmem:[#allocation4 + $0x13a] sm:$0xff]
    %v7438 = vld [vmem:[#allocation4 + $0x142] sm:$0xff]
    %v7439 = vld [vmem:[#allocation4 + $0x152] sm:$0xff]
    %v7440 = vld [vmem:[#allocation4 + $0x15a] sm:$0xff]
    %v7441 = vld [vmem:[#allocation4 + $0x16a] sm:$0xff]
    %v7442 = vld [vmem:[#allocation4 + $0x172] sm:$0xff]
    %v7443 = vld [vmem:[#allocation4 + $0x1b2] sm:$0xff]
    %v7444 = vld [vmem:[#allocation4 + $0x1ba] sm:$0xff]
    %v7445 = vld [vmem:[#allocation4 + $0x1ca] sm:$0xff]
    %v7446 = vld [vmem:[#allocation4 + $0x1d2] sm:$0xff]
    %v7447 = vld [vmem:[#allocation4 + $0x1e2] sm:$0xff]
    %v7448 = vld [vmem:[#allocation4 + $0x1ea] sm:$0xff]
    %v7449 = vld [vmem:[#allocation4 + $0x1fa] sm:$0xff]
    %v7450 = vld [vmem:[#allocation4 + $0x202] sm:$0xff]
    %v7451 = vld [vmem:[#allocation4 + $0x212] sm:$0xff]
    %v7452 = vld [vmem:[#allocation4 + $0x21a] sm:$0xff]
    %v7453 = vld [vmem:[#allocation4 + $0x22a] sm:$0xff]
    %v7454 = vld [vmem:[#allocation4 + $0x232] sm:$0xff]
    %v7455 = vld [vmem:[#allocation4 + $0x242] sm:$0xff]
    %v7456 = vld [vmem:[#allocation4 + $0x24a] sm:$0xff]
    %v7457 = vld [vmem:[#allocation4 + $0x25a] sm:$0xff]
    %v7458 = vld [vmem:[#allocation4 + $0x262] sm:$0xff]
    %v7459 = vld [vmem:[#allocation4 + $0x272] sm:$0xff]
    %v7460 = vld [vmem:[#allocation4 + $0x27a] sm:$0xff]
    %v7461 = vld [vmem:[#allocation4 + $0x28a] sm:$0xff]
    %v7462 = vld [vmem:[#allocation4 + $0x292] sm:$0xff]
    %v7463 = vld [vmem:[#allocation4 + $0x2a2] sm:$0xff]
    %v7464 = vld [vmem:[#allocation4 + $0x2aa] sm:$0xff]
    %v7465 = vld [vmem:[#allocation4 + $0x2ba] sm:$0xff]
    %v7466 = vld [vmem:[#allocation4 + $0x2c2] sm:$0xff]
    %v7467 = vld [vmem:[#allocation4 + $0x2d2] sm:$0xff]
    %v7468 = vld [vmem:[#allocation4 + $0x2da] sm:$0xff]
    %v7469 = vld [vmem:[#allocation4 + $0x2ea] sm:$0xff]
    %v7470 = vld [vmem:[#allocation4 + $0x2f2] sm:$0xff]
    %v7471 = vld [vmem:[#allocation4 + $0x302] sm:$0xff]
    %v7472 = vld [vmem:[#allocation4 + $0x30a] sm:$0xff]
    %v7473 = vld [vmem:[#allocation4 + $0x31a] sm:$0xff]
    %v7474 = vld [vmem:[#allocation4 + $0x322] sm:$0xff]
    %v7475 = vld [vmem:[%s7 + $0x2] sm:$0x1]
    %v7476 = vlaneseq
    %v7477 = vshrl.u32 %v7476, 7
    %v7478 = vsub.s32 0, %v7477
    %v7479 = vrot.slane %v7475, %v7478
    %v7480 = vmul.f32 %v7411, %v7479
    %v7481 = vmul.f32 %v7412, %v7479
    %v7482 = vmul.f32 %v7413, %v7479
    %v7483 = vmul.f32 %v7414, %v7479
    %v7484 = vmul.f32 %v7415, %v7479
    %v7485 = vmul.f32 %v7416, %v7479
    %v7486 = vmul.f32 %v7417, %v7479
    %v7487 = vmul.f32 %v7418, %v7479
    %v7488 = vmul.f32 %v7419, %v7479
    %v7489 = vmul.f32 %v7420, %v7479
    %v7490 = vmul.f32 %v7421, %v7479
    %v7491 = vmul.f32 %v7422, %v7479
    %v7492 = vmul.f32 %v7423, %v7479
    %v7493 = vmul.f32 %v7424, %v7479
    %v7494 = vmul.f32 %v7425, %v7479
    %v7495 = vmul.f32 %v7426, %v7479
    %v7496 = vmul.f32 %v7427, %v7479
    %v7497 = vmul.f32 %v7428, %v7479
    %v7498 = vmul.f32 %v7429, %v7479
    %v7499 = vmul.f32 %v7430, %v7479
    %v7500 = vmul.f32 %v7431, %v7479
    %v7501 = vmul.f32 %v7432, %v7479
    %v7502 = vmul.f32 %v7433, %v7479
    %v7503 = vmul.f32 %v7434, %v7479
    %v7504 = vmul.f32 %v7435, %v7479
    %v7505 = vmul.f32 %v7436, %v7479
    %v7506 = vmul.f32 %v7437, %v7479
    %v7507 = vmul.f32 %v7438, %v7479
    %v7508 = vmul.f32 %v7439, %v7479
    %v7509 = vmul.f32 %v7440, %v7479
    %v7510 = vmul.f32 %v7441, %v7479
    %v7511 = vmul.f32 %v7442, %v7479
    %v7512 = vmul.f32 %v7443, %v7479
    %v7513 = vmul.f32 %v7444, %v7479
    %v7514 = vmul.f32 %v7445, %v7479
    %v7515 = vmul.f32 %v7446, %v7479
    %v7516 = vmul.f32 %v7447, %v7479
    %v7517 = vmul.f32 %v7448, %v7479
    %v7518 = vmul.f32 %v7449, %v7479
    %v7519 = vmul.f32 %v7450, %v7479
    %v7520 = vmul.f32 %v7451, %v7479
    %v7521 = vmul.f32 %v7452, %v7479
    %v7522 = vmul.f32 %v7453, %v7479
    %v7523 = vmul.f32 %v7454, %v7479
    %v7524 = vmul.f32 %v7455, %v7479
    %v7525 = vmul.f32 %v7456, %v7479
    %v7526 = vmul.f32 %v7457, %v7479
    %v7527 = vmul.f32 %v7458, %v7479
    %v7528 = vmul.f32 %v7459, %v7479
    %v7529 = vmul.f32 %v7460, %v7479
    %v7530 = vmul.f32 %v7461, %v7479
    %v7531 = vmul.f32 %v7462, %v7479
    %v7532 = vmul.f32 %v7463, %v7479
    %v7533 = vmul.f32 %v7464, %v7479
    %v7534 = vmul.f32 %v7465, %v7479
    %v7535 = vmul.f32 %v7466, %v7479
    %v7536 = vmul.f32 %v7467, %v7479
    %v7537 = vmul.f32 %v7468, %v7479
    %v7538 = vmul.f32 %v7469, %v7479
    %v7539 = vmul.f32 %v7470, %v7479
    %v7540 = vmul.f32 %v7471, %v7479
    %v7541 = vmul.f32 %v7472, %v7479
    %v7542 = vmul.f32 %v7473, %v7479
    %v7543 = vmul.f32 %v7474, %v7479
    %v7544 = vadd.f32 %v7347, %v7480
    %v7545 = vadd.f32 %v7348, %v7481
    %v7546 = vadd.f32 %v7349, %v7482
    %v7547 = vadd.f32 %v7350, %v7483
    %v7548 = vadd.f32 %v7351, %v7484
    %v7549 = vadd.f32 %v7352, %v7485
    %v7550 = vadd.f32 %v7353, %v7486
    %v7551 = vadd.f32 %v7354, %v7487
    %v7552 = vadd.f32 %v7355, %v7488
    %v7553 = vadd.f32 %v7356, %v7489
    %v7554 = vadd.f32 %v7357, %v7490
    %v7555 = vadd.f32 %v7358, %v7491
    %v7556 = vadd.f32 %v7359, %v7492
    %v7557 = vadd.f32 %v7360, %v7493
    %v7558 = vadd.f32 %v7361, %v7494
    %v7559 = vadd.f32 %v7362, %v7495
    %v7560 = vadd.f32 %v7363, %v7496
    %v7561 = vadd.f32 %v7364, %v7497
    %v7562 = vadd.f32 %v7365, %v7498
    %v7563 = vadd.f32 %v7366, %v7499
    %v7564 = vadd.f32 %v7367, %v7500
    %v7565 = vadd.f32 %v7368, %v7501
    %v7566 = vadd.f32 %v7369, %v7502
    %v7567 = vadd.f32 %v7370, %v7503
    %v7568 = vadd.f32 %v7371, %v7504
    %v7569 = vadd.f32 %v7372, %v7505
    %v7570 = vadd.f32 %v7373, %v7506
    %v7571 = vadd.f32 %v7374, %v7507
    %v7572 = vadd.f32 %v7375, %v7508
    %v7573 = vadd.f32 %v7376, %v7509
    %v7574 = vadd.f32 %v7377, %v7510
    %v7575 = vadd.f32 %v7378, %v7511
    %v7576 = vadd.f32 %v7379, %v7512
    %v7577 = vadd.f32 %v7380, %v7513
    %v7578 = vadd.f32 %v7381, %v7514
    %v7579 = vadd.f32 %v7382, %v7515
    %v7580 = vadd.f32 %v7383, %v7516
    %v7581 = vadd.f32 %v7384, %v7517
    %v7582 = vadd.f32 %v7385, %v7518
    %v7583 = vadd.f32 %v7386, %v7519
    %v7584 = vadd.f32 %v7387, %v7520
    %v7585 = vadd.f32 %v7388, %v7521
    %v7586 = vadd.f32 %v7389, %v7522
    %v7587 = vadd.f32 %v7390, %v7523
    %v7588 = vadd.f32 %v7391, %v7524
    %v7589 = vadd.f32 %v7392, %v7525
    %v7590 = vadd.f32 %v7393, %v7526
    %v7591 = vadd.f32 %v7394, %v7527
    %v7592 = vadd.f32 %v7395, %v7528
    %v7593 = vadd.f32 %v7396, %v7529
    %v7594 = vadd.f32 %v7397, %v7530
    %v7595 = vadd.f32 %v7398, %v7531
    %v7596 = vadd.f32 %v7399, %v7532
    %v7597 = vadd.f32 %v7400, %v7533
    %v7598 = vadd.f32 %v7401, %v7534
    %v7599 = vadd.f32 %v7402, %v7535
    %v7600 = vadd.f32 %v7403, %v7536
    %v7601 = vadd.f32 %v7404, %v7537
    %v7602 = vadd.f32 %v7405, %v7538
    %v7603 = vadd.f32 %v7406, %v7539
    %v7604 = vadd.f32 %v7407, %v7540
    %v7605 = vadd.f32 %v7408, %v7541
    %v7606 = vadd.f32 %v7409, %v7542
    %v7607 = vadd.f32 %v7410, %v7543
    %v7608 = vld [vmem:[%s4325] sm:$0xff]
    %v7609 = vld [vmem:[%s4325 + $0x8] sm:$0xff]
    %v7610 = vld [vmem:[%s4325 + $0x18] sm:$0xff]
    %v7611 = vld [vmem:[%s4325 + $0x20] sm:$0xff]
    %v7612 = vld [vmem:[%s4325 + $0x30] sm:$0xff]
    %v7613 = vld [vmem:[%s4325 + $0x38] sm:$0xff]
    %v7614 = vld [vmem:[%s4325 + $0x48] sm:$0xff]
    %v7615 = vld [vmem:[%s4325 + $0x50] sm:$0xff]
    %v7616 = vld [vmem:[%s4325 + $0x60] sm:$0xff]
    %v7617 = vld [vmem:[%s4325 + $0x68] sm:$0xff]
    %v7618 = vld [vmem:[%s4325 + $0x78] sm:$0xff]
    %v7619 = vld [vmem:[%s4325 + $0x80] sm:$0xff]
    %v7620 = vld [vmem:[%s4325 + $0x90] sm:$0xff]
    %v7621 = vld [vmem:[%s4325 + $0x98] sm:$0xff]
    %v7622 = vld [vmem:[%s4325 + $0xa8] sm:$0xff]
    %v7623 = vld [vmem:[%s4325 + $0xb0] sm:$0xff]
    %v7624 = vld [vmem:[%s4325 + $0xc0] sm:$0xff]
    %v7625 = vld [vmem:[%s4325 + $0xc8] sm:$0xff]
    %v7626 = vld [vmem:[%s4325 + $0xd8] sm:$0xff]
    %v7627 = vld [vmem:[%s4325 + $0xe0] sm:$0xff]
    %v7628 = vld [vmem:[%s4325 + $0xf0] sm:$0xff]
    %v7629 = vld [vmem:[%s4325 + $0xf8] sm:$0xff]
    %v7630 = vld [vmem:[%s4325 + $0x108] sm:$0xff]
    %v7631 = vld [vmem:[%s4325 + $0x110] sm:$0xff]
    %v7632 = vld [vmem:[%s4325 + $0x120] sm:$0xff]
    %v7633 = vld [vmem:[%s4325 + $0x128] sm:$0xff]
    %v7634 = vld [vmem:[%s4325 + $0x138] sm:$0xff]
    %v7635 = vld [vmem:[%s4325 + $0x140] sm:$0xff]
    %v7636 = vld [vmem:[%s4325 + $0x150] sm:$0xff]
    %v7637 = vld [vmem:[%s4325 + $0x158] sm:$0xff]
    %v7638 = vld [vmem:[%s4325 + $0x168] sm:$0xff]
    %v7639 = vld [vmem:[%s4325 + $0x170] sm:$0xff]
    %v7640 = vld [vmem:[%s4325 + $0x1b0] sm:$0xff]
    %v7641 = vld [vmem:[%s4325 + $0x1b8] sm:$0xff]
    %v7642 = vld [vmem:[%s4325 + $0x1c8] sm:$0xff]
    %v7643 = vld [vmem:[%s4325 + $0x1d0] sm:$0xff]
    %v7644 = vld [vmem:[%s4325 + $0x1e0] sm:$0xff]
    %v7645 = vld [vmem:[%s4325 + $0x1e8] sm:$0xff]
    %v7646 = vld [vmem:[%s4325 + $0x1f8] sm:$0xff]
    %v7647 = vld [vmem:[%s4325 + $0x200] sm:$0xff]
    %v7648 = vld [vmem:[%s4325 + $0x210] sm:$0xff]
    %v7649 = vld [vmem:[%s4325 + $0x218] sm:$0xff]
    %v7650 = vld [vmem:[%s4325 + $0x228] sm:$0xff]
    %v7651 = vld [vmem:[%s4325 + $0x230] sm:$0xff]
    %v7652 = vld [vmem:[%s4325 + $0x240] sm:$0xff]
    %v7653 = vld [vmem:[%s4325 + $0x248] sm:$0xff]
    %v7654 = vld [vmem:[%s4325 + $0x258] sm:$0xff]
    %v7655 = vld [vmem:[%s4325 + $0x260] sm:$0xff]
    %v7656 = vld [vmem:[%s4325 + $0x270] sm:$0xff]
    %v7657 = vld [vmem:[%s4325 + $0x278] sm:$0xff]
    %v7658 = vld [vmem:[%s4325 + $0x288] sm:$0xff]
    %v7659 = vld [vmem:[%s4325 + $0x290] sm:$0xff]
    %v7660 = vld [vmem:[%s4325 + $0x2a0] sm:$0xff]
    %v7661 = vld [vmem:[%s4325 + $0x2a8] sm:$0xff]
    %v7662 = vld [vmem:[%s4325 + $0x2b8] sm:$0xff]
    %v7663 = vld [vmem:[%s4325 + $0x2c0] sm:$0xff]
    %v7664 = vld [vmem:[%s4325 + $0x2d0] sm:$0xff]
    %v7665 = vld [vmem:[%s4325 + $0x2d8] sm:$0xff]
    %v7666 = vld [vmem:[%s4325 + $0x2e8] sm:$0xff]
    %v7667 = vld [vmem:[%s4325 + $0x2f0] sm:$0xff]
    %v7668 = vld [vmem:[%s4325 + $0x300] sm:$0xff]
    %v7669 = vld [vmem:[%s4325 + $0x308] sm:$0xff]
    %v7670 = vld [vmem:[%s4325 + $0x318] sm:$0xff]
    %v7671 = vld [vmem:[%s4325 + $0x320] sm:$0xff]
    %s7672 = scalar_lea.vmem %s7, 4
    %v7673 = vld [vmem:[%s7672] sm:$0x1]
    %v7674 = vlaneseq
    %v7675 = vshrl.u32 %v7674, 7
    %v7676 = vsub.s32 0, %v7675
    %v7677 = vrot.slane %v7673, %v7676
    %v7678 = vmul.f32 %v7608, %v7677
    %v7679 = vmul.f32 %v7609, %v7677
    %v7680 = vmul.f32 %v7610, %v7677
    %v7681 = vmul.f32 %v7611, %v7677
    %v7682 = vmul.f32 %v7612, %v7677
    %v7683 = vmul.f32 %v7613, %v7677
    %v7684 = vmul.f32 %v7614, %v7677
    %v7685 = vmul.f32 %v7615, %v7677
    %v7686 = vmul.f32 %v7616, %v7677
    %v7687 = vmul.f32 %v7617, %v7677
    %v7688 = vmul.f32 %v7618, %v7677
    %v7689 = vmul.f32 %v7619, %v7677
    %v7690 = vmul.f32 %v7620, %v7677
    %v7691 = vmul.f32 %v7621, %v7677
    %v7692 = vmul.f32 %v7622, %v7677
    %v7693 = vmul.f32 %v7623, %v7677
    %v7694 = vmul.f32 %v7624, %v7677
    %v7695 = vmul.f32 %v7625, %v7677
    %v7696 = vmul.f32 %v7626, %v7677
    %v7697 = vmul.f32 %v7627, %v7677
    %v7698 = vmul.f32 %v7628, %v7677
    %v7699 = vmul.f32 %v7629, %v7677
    %v7700 = vmul.f32 %v7630, %v7677
    %v7701 = vmul.f32 %v7631, %v7677
    %v7702 = vmul.f32 %v7632, %v7677
    %v7703 = vmul.f32 %v7633, %v7677
    %v7704 = vmul.f32 %v7634, %v7677
    %v7705 = vmul.f32 %v7635, %v7677
    %v7706 = vmul.f32 %v7636, %v7677
    %v7707 = vmul.f32 %v7637, %v7677
    %v7708 = vmul.f32 %v7638, %v7677
    %v7709 = vmul.f32 %v7639, %v7677
    %v7710 = vmul.f32 %v7640, %v7677
    %v7711 = vmul.f32 %v7641, %v7677
    %v7712 = vmul.f32 %v7642, %v7677
    %v7713 = vmul.f32 %v7643, %v7677
    %v7714 = vmul.f32 %v7644, %v7677
    %v7715 = vmul.f32 %v7645, %v7677
    %v7716 = vmul.f32 %v7646, %v7677
    %v7717 = vmul.f32 %v7647, %v7677
    %v7718 = vmul.f32 %v7648, %v7677
    %v7719 = vmul.f32 %v7649, %v7677
    %v7720 = vmul.f32 %v7650, %v7677
    %v7721 = vmul.f32 %v7651, %v7677
    %v7722 = vmul.f32 %v7652, %v7677
    %v7723 = vmul.f32 %v7653, %v7677
    %v7724 = vmul.f32 %v7654, %v7677
    %v7725 = vmul.f32 %v7655, %v7677
    %v7726 = vmul.f32 %v7656, %v7677
    %v7727 = vmul.f32 %v7657, %v7677
    %v7728 = vmul.f32 %v7658, %v7677
    %v7729 = vmul.f32 %v7659, %v7677
    %v7730 = vmul.f32 %v7660, %v7677
    %v7731 = vmul.f32 %v7661, %v7677
    %v7732 = vmul.f32 %v7662, %v7677
    %v7733 = vmul.f32 %v7663, %v7677
    %v7734 = vmul.f32 %v7664, %v7677
    %v7735 = vmul.f32 %v7665, %v7677
    %v7736 = vmul.f32 %v7666, %v7677
    %v7737 = vmul.f32 %v7667, %v7677
    %v7738 = vmul.f32 %v7668, %v7677
    %v7739 = vmul.f32 %v7669, %v7677
    %v7740 = vmul.f32 %v7670, %v7677
    %v7741 = vmul.f32 %v7671, %v7677
    %v7742 = vadd.f32 %v7544, %v7678
    %v7743 = vadd.f32 %v7545, %v7679
    %v7744 = vadd.f32 %v7546, %v7680
    %v7745 = vadd.f32 %v7547, %v7681
    %v7746 = vadd.f32 %v7548, %v7682
    %v7747 = vadd.f32 %v7549, %v7683
    %v7748 = vadd.f32 %v7550, %v7684
    %v7749 = vadd.f32 %v7551, %v7685
    %v7750 = vadd.f32 %v7552, %v7686
    %v7751 = vadd.f32 %v7553, %v7687
    %v7752 = vadd.f32 %v7554, %v7688
    %v7753 = vadd.f32 %v7555, %v7689
    %v7754 = vadd.f32 %v7556, %v7690
    %v7755 = vadd.f32 %v7557, %v7691
    %v7756 = vadd.f32 %v7558, %v7692
    %v7757 = vadd.f32 %v7559, %v7693
    %v7758 = vadd.f32 %v7560, %v7694
    %v7759 = vadd.f32 %v7561, %v7695
    %v7760 = vadd.f32 %v7562, %v7696
    %v7761 = vadd.f32 %v7563, %v7697
    %v7762 = vadd.f32 %v7564, %v7698
    %v7763 = vadd.f32 %v7565, %v7699
    %v7764 = vadd.f32 %v7566, %v7700
    %v7765 = vadd.f32 %v7567, %v7701
    %v7766 = vadd.f32 %v7568, %v7702
    %v7767 = vadd.f32 %v7569, %v7703
    %v7768 = vadd.f32 %v7570, %v7704
    %v7769 = vadd.f32 %v7571, %v7705
    %v7770 = vadd.f32 %v7572, %v7706
    %v7771 = vadd.f32 %v7573, %v7707
    %v7772 = vadd.f32 %v7574, %v7708
    %v7773 = vadd.f32 %v7575, %v7709
    %v7774 = vadd.f32 %v7576, %v7710
    %v7775 = vadd.f32 %v7577, %v7711
    %v7776 = vadd.f32 %v7578, %v7712
    %v7777 = vadd.f32 %v7579, %v7713
    %v7778 = vadd.f32 %v7580, %v7714
    %v7779 = vadd.f32 %v7581, %v7715
    %v7780 = vadd.f32 %v7582, %v7716
    %v7781 = vadd.f32 %v7583, %v7717
    %v7782 = vadd.f32 %v7584, %v7718
    %v7783 = vadd.f32 %v7585, %v7719
    %v7784 = vadd.f32 %v7586, %v7720
    %v7785 = vadd.f32 %v7587, %v7721
    %v7786 = vadd.f32 %v7588, %v7722
    %v7787 = vadd.f32 %v7589, %v7723
    %v7788 = vadd.f32 %v7590, %v7724
    %v7789 = vadd.f32 %v7591, %v7725
    %v7790 = vadd.f32 %v7592, %v7726
    %v7791 = vadd.f32 %v7593, %v7727
    %v7792 = vadd.f32 %v7594, %v7728
    %v7793 = vadd.f32 %v7595, %v7729
    %v7794 = vadd.f32 %v7596, %v7730
    %v7795 = vadd.f32 %v7597, %v7731
    %v7796 = vadd.f32 %v7598, %v7732
    %v7797 = vadd.f32 %v7599, %v7733
    %v7798 = vadd.f32 %v7600, %v7734
    %v7799 = vadd.f32 %v7601, %v7735
    %v7800 = vadd.f32 %v7602, %v7736
    %v7801 = vadd.f32 %v7603, %v7737
    %v7802 = vadd.f32 %v7604, %v7738
    %v7803 = vadd.f32 %v7605, %v7739
    %v7804 = vadd.f32 %v7606, %v7740
    %v7805 = vadd.f32 %v7607, %v7741
    %v7806 = vld [vmem:[%s4325 + $0x1] sm:$0xff]
    %v7807 = vld [vmem:[%s4325 + $0x9] sm:$0xff]
    %v7808 = vld [vmem:[%s4325 + $0x19] sm:$0xff]
    %v7809 = vld [vmem:[%s4325 + $0x21] sm:$0xff]
    %v7810 = vld [vmem:[%s4325 + $0x31] sm:$0xff]
    %v7811 = vld [vmem:[%s4325 + $0x39] sm:$0xff]
    %v7812 = vld [vmem:[%s4325 + $0x49] sm:$0xff]
    %v7813 = vld [vmem:[%s4325 + $0x51] sm:$0xff]
    %v7814 = vld [vmem:[%s4325 + $0x61] sm:$0xff]
    %v7815 = vld [vmem:[%s4325 + $0x69] sm:$0xff]
    %v7816 = vld [vmem:[%s4325 + $0x79] sm:$0xff]
    %v7817 = vld [vmem:[%s4325 + $0x81] sm:$0xff]
    %v7818 = vld [vmem:[%s4325 + $0x91] sm:$0xff]
    %v7819 = vld [vmem:[%s4325 + $0x99] sm:$0xff]
    %v7820 = vld [vmem:[%s4325 + $0xa9] sm:$0xff]
    %v7821 = vld [vmem:[%s4325 + $0xb1] sm:$0xff]
    %v7822 = vld [vmem:[%s4325 + $0xc1] sm:$0xff]
    %v7823 = vld [vmem:[%s4325 + $0xc9] sm:$0xff]
    %v7824 = vld [vmem:[%s4325 + $0xd9] sm:$0xff]
    %v7825 = vld [vmem:[%s4325 + $0xe1] sm:$0xff]
    %v7826 = vld [vmem:[%s4325 + $0xf1] sm:$0xff]
    %v7827 = vld [vmem:[%s4325 + $0xf9] sm:$0xff]
    %v7828 = vld [vmem:[%s4325 + $0x109] sm:$0xff]
    %v7829 = vld [vmem:[%s4325 + $0x111] sm:$0xff]
    %v7830 = vld [vmem:[%s4325 + $0x121] sm:$0xff]
    %v7831 = vld [vmem:[%s4325 + $0x129] sm:$0xff]
    %v7832 = vld [vmem:[%s4325 + $0x139] sm:$0xff]
    %v7833 = vld [vmem:[%s4325 + $0x141] sm:$0xff]
    %v7834 = vld [vmem:[%s4325 + $0x151] sm:$0xff]
    %v7835 = vld [vmem:[%s4325 + $0x159] sm:$0xff]
    %v7836 = vld [vmem:[%s4325 + $0x169] sm:$0xff]
    %v7837 = vld [vmem:[%s4325 + $0x171] sm:$0xff]
    %v7838 = vld [vmem:[%s4325 + $0x1b1] sm:$0xff]
    %v7839 = vld [vmem:[%s4325 + $0x1b9] sm:$0xff]
    %v7840 = vld [vmem:[%s4325 + $0x1c9] sm:$0xff]
    %v7841 = vld [vmem:[%s4325 + $0x1d1] sm:$0xff]
    %v7842 = vld [vmem:[%s4325 + $0x1e1] sm:$0xff]
    %v7843 = vld [vmem:[%s4325 + $0x1e9] sm:$0xff]
    %v7844 = vld [vmem:[%s4325 + $0x1f9] sm:$0xff]
    %v7845 = vld [vmem:[%s4325 + $0x201] sm:$0xff]
    %v7846 = vld [vmem:[%s4325 + $0x211] sm:$0xff]
    %v7847 = vld [vmem:[%s4325 + $0x219] sm:$0xff]
    %v7848 = vld [vmem:[%s4325 + $0x229] sm:$0xff]
    %v7849 = vld [vmem:[%s4325 + $0x231] sm:$0xff]
    %v7850 = vld [vmem:[%s4325 + $0x241] sm:$0xff]
    %v7851 = vld [vmem:[%s4325 + $0x249] sm:$0xff]
    %v7852 = vld [vmem:[%s4325 + $0x259] sm:$0xff]
    %v7853 = vld [vmem:[%s4325 + $0x261] sm:$0xff]
    %v7854 = vld [vmem:[%s4325 + $0x271] sm:$0xff]
    %v7855 = vld [vmem:[%s4325 + $0x279] sm:$0xff]
    %v7856 = vld [vmem:[%s4325 + $0x289] sm:$0xff]
    %v7857 = vld [vmem:[%s4325 + $0x291] sm:$0xff]
    %v7858 = vld [vmem:[%s4325 + $0x2a1] sm:$0xff]
    %v7859 = vld [vmem:[%s4325 + $0x2a9] sm:$0xff]
    %v7860 = vld [vmem:[%s4325 + $0x2b9] sm:$0xff]
    %v7861 = vld [vmem:[%s4325 + $0x2c1] sm:$0xff]
    %v7862 = vld [vmem:[%s4325 + $0x2d1] sm:$0xff]
    %v7863 = vld [vmem:[%s4325 + $0x2d9] sm:$0xff]
    %v7864 = vld [vmem:[%s4325 + $0x2e9] sm:$0xff]
    %v7865 = vld [vmem:[%s4325 + $0x2f1] sm:$0xff]
    %v7866 = vld [vmem:[%s4325 + $0x301] sm:$0xff]
    %v7867 = vld [vmem:[%s4325 + $0x309] sm:$0xff]
    %v7868 = vld [vmem:[%s4325 + $0x319] sm:$0xff]
    %v7869 = vld [vmem:[%s4325 + $0x321] sm:$0xff]
    %v7870 = vld [vmem:[%s7672 + $0x1] sm:$0x1]
    %v7871 = vlaneseq
    %v7872 = vshrl.u32 %v7871, 7
    %v7873 = vsub.s32 0, %v7872
    %v7874 = vrot.slane %v7870, %v7873
    %v7875 = vmul.f32 %v7806, %v7874
    %v7876 = vmul.f32 %v7807, %v7874
    %v7877 = vmul.f32 %v7808, %v7874
    %v7878 = vmul.f32 %v7809, %v7874
    %v7879 = vmul.f32 %v7810, %v7874
    %v7880 = vmul.f32 %v7811, %v7874
    %v7881 = vmul.f32 %v7812, %v7874
    %v7882 = vmul.f32 %v7813, %v7874
    %v7883 = vmul.f32 %v7814, %v7874
    %v7884 = vmul.f32 %v7815, %v7874
    %v7885 = vmul.f32 %v7816, %v7874
    %v7886 = vmul.f32 %v7817, %v7874
    %v7887 = vmul.f32 %v7818, %v7874
    %v7888 = vmul.f32 %v7819, %v7874
    %v7889 = vmul.f32 %v7820, %v7874
    %v7890 = vmul.f32 %v7821, %v7874
    %v7891 = vmul.f32 %v7822, %v7874
    %v7892 = vmul.f32 %v7823, %v7874
    %v7893 = vmul.f32 %v7824, %v7874
    %v7894 = vmul.f32 %v7825, %v7874
    %v7895 = vmul.f32 %v7826, %v7874
    %v7896 = vmul.f32 %v7827, %v7874
    %v7897 = vmul.f32 %v7828, %v7874
    %v7898 = vmul.f32 %v7829, %v7874
    %v7899 = vmul.f32 %v7830, %v7874
    %v7900 = vmul.f32 %v7831, %v7874
    %v7901 = vmul.f32 %v7832, %v7874
    %v7902 = vmul.f32 %v7833, %v7874
    %v7903 = vmul.f32 %v7834, %v7874
    %v7904 = vmul.f32 %v7835, %v7874
    %v7905 = vmul.f32 %v7836, %v7874
    %v7906 = vmul.f32 %v7837, %v7874
    %v7907 = vmul.f32 %v7838, %v7874
    %v7908 = vmul.f32 %v7839, %v7874
    %v7909 = vmul.f32 %v7840, %v7874
    %v7910 = vmul.f32 %v7841, %v7874
    %v7911 = vmul.f32 %v7842, %v7874
    %v7912 = vmul.f32 %v7843, %v7874
    %v7913 = vmul.f32 %v7844, %v7874
    %v7914 = vmul.f32 %v7845, %v7874
    %v7915 = vmul.f32 %v7846, %v7874
    %v7916 = vmul.f32 %v7847, %v7874
    %v7917 = vmul.f32 %v7848, %v7874
    %v7918 = vmul.f32 %v7849, %v7874
    %v7919 = vmul.f32 %v7850, %v7874
    %v7920 = vmul.f32 %v7851, %v7874
    %v7921 = vmul.f32 %v7852, %v7874
    %v7922 = vmul.f32 %v7853, %v7874
    %v7923 = vmul.f32 %v7854, %v7874
    %v7924 = vmul.f32 %v7855, %v7874
    %v7925 = vmul.f32 %v7856, %v7874
    %v7926 = vmul.f32 %v7857, %v7874
    %v7927 = vmul.f32 %v7858, %v7874
    %v7928 = vmul.f32 %v7859, %v7874
    %v7929 = vmul.f32 %v7860, %v7874
    %v7930 = vmul.f32 %v7861, %v7874
    %v7931 = vmul.f32 %v7862, %v7874
    %v7932 = vmul.f32 %v7863, %v7874
    %v7933 = vmul.f32 %v7864, %v7874
    %v7934 = vmul.f32 %v7865, %v7874
    %v7935 = vmul.f32 %v7866, %v7874
    %v7936 = vmul.f32 %v7867, %v7874
    %v7937 = vmul.f32 %v7868, %v7874
    %v7938 = vmul.f32 %v7869, %v7874
    %v7939 = vadd.f32 %v7742, %v7875
    %v7940 = vadd.f32 %v7743, %v7876
    %v7941 = vadd.f32 %v7744, %v7877
    %v7942 = vadd.f32 %v7745, %v7878
    %v7943 = vadd.f32 %v7746, %v7879
    %v7944 = vadd.f32 %v7747, %v7880
    %v7945 = vadd.f32 %v7748, %v7881
    %v7946 = vadd.f32 %v7749, %v7882
    %v7947 = vadd.f32 %v7750, %v7883
    %v7948 = vadd.f32 %v7751, %v7884
    %v7949 = vadd.f32 %v7752, %v7885
    %v7950 = vadd.f32 %v7753, %v7886
    %v7951 = vadd.f32 %v7754, %v7887
    %v7952 = vadd.f32 %v7755, %v7888
    %v7953 = vadd.f32 %v7756, %v7889
    %v7954 = vadd.f32 %v7757, %v7890
    %v7955 = vadd.f32 %v7758, %v7891
    %v7956 = vadd.f32 %v7759, %v7892
    %v7957 = vadd.f32 %v7760, %v7893
    %v7958 = vadd.f32 %v7761, %v7894
    %v7959 = vadd.f32 %v7762, %v7895
    %v7960 = vadd.f32 %v7763, %v7896
    %v7961 = vadd.f32 %v7764, %v7897
    %v7962 = vadd.f32 %v7765, %v7898
    %v7963 = vadd.f32 %v7766, %v7899
    %v7964 = vadd.f32 %v7767, %v7900
    %v7965 = vadd.f32 %v7768, %v7901
    %v7966 = vadd.f32 %v7769, %v7902
    %v7967 = vadd.f32 %v7770, %v7903
    %v7968 = vadd.f32 %v7771, %v7904
    %v7969 = vadd.f32 %v7772, %v7905
    %v7970 = vadd.f32 %v7773, %v7906
    %v7971 = vadd.f32 %v7774, %v7907
    %v7972 = vadd.f32 %v7775, %v7908
    %v7973 = vadd.f32 %v7776, %v7909
    %v7974 = vadd.f32 %v7777, %v7910
    %v7975 = vadd.f32 %v7778, %v7911
    %v7976 = vadd.f32 %v7779, %v7912
    %v7977 = vadd.f32 %v7780, %v7913
    %v7978 = vadd.f32 %v7781, %v7914
    %v7979 = vadd.f32 %v7782, %v7915
    %v7980 = vadd.f32 %v7783, %v7916
    %v7981 = vadd.f32 %v7784, %v7917
    %v7982 = vadd.f32 %v7785, %v7918
    %v7983 = vadd.f32 %v7786, %v7919
    %v7984 = vadd.f32 %v7787, %v7920
    %v7985 = vadd.f32 %v7788, %v7921
    %v7986 = vadd.f32 %v7789, %v7922
    %v7987 = vadd.f32 %v7790, %v7923
    %v7988 = vadd.f32 %v7791, %v7924
    %v7989 = vadd.f32 %v7792, %v7925
    %v7990 = vadd.f32 %v7793, %v7926
    %v7991 = vadd.f32 %v7794, %v7927
    %v7992 = vadd.f32 %v7795, %v7928
    %v7993 = vadd.f32 %v7796, %v7929
    %v7994 = vadd.f32 %v7797, %v7930
    %v7995 = vadd.f32 %v7798, %v7931
    %v7996 = vadd.f32 %v7799, %v7932
    %v7997 = vadd.f32 %v7800, %v7933
    %v7998 = vadd.f32 %v7801, %v7934
    %v7999 = vadd.f32 %v7802, %v7935
    %v8000 = vadd.f32 %v7803, %v7936
    %v8001 = vadd.f32 %v7804, %v7937
    %v8002 = vadd.f32 %v7805, %v7938
    %v8003 = vld [vmem:[%s4325 + $0x2] sm:$0xff]
    %v8004 = vld [vmem:[%s4325 + $0xa] sm:$0xff]
    %v8005 = vld [vmem:[%s4325 + $0x1a] sm:$0xff]
    %v8006 = vld [vmem:[%s4325 + $0x22] sm:$0xff]
    %v8007 = vld [vmem:[%s4325 + $0x32] sm:$0xff]
    %v8008 = vld [vmem:[%s4325 + $0x3a] sm:$0xff]
    %v8009 = vld [vmem:[%s4325 + $0x4a] sm:$0xff]
    %v8010 = vld [vmem:[%s4325 + $0x52] sm:$0xff]
    %v8011 = vld [vmem:[%s4325 + $0x62] sm:$0xff]
    %v8012 = vld [vmem:[%s4325 + $0x6a] sm:$0xff]
    %v8013 = vld [vmem:[%s4325 + $0x7a] sm:$0xff]
    %v8014 = vld [vmem:[%s4325 + $0x82] sm:$0xff]
    %v8015 = vld [vmem:[%s4325 + $0x92] sm:$0xff]
    %v8016 = vld [vmem:[%s4325 + $0x9a] sm:$0xff]
    %v8017 = vld [vmem:[%s4325 + $0xaa] sm:$0xff]
    %v8018 = vld [vmem:[%s4325 + $0xb2] sm:$0xff]
    %v8019 = vld [vmem:[%s4325 + $0xc2] sm:$0xff]
    %v8020 = vld [vmem:[%s4325 + $0xca] sm:$0xff]
    %v8021 = vld [vmem:[%s4325 + $0xda] sm:$0xff]
    %v8022 = vld [vmem:[%s4325 + $0xe2] sm:$0xff]
    %v8023 = vld [vmem:[%s4325 + $0xf2] sm:$0xff]
    %v8024 = vld [vmem:[%s4325 + $0xfa] sm:$0xff]
    %v8025 = vld [vmem:[%s4325 + $0x10a] sm:$0xff]
    %v8026 = vld [vmem:[%s4325 + $0x112] sm:$0xff]
    %v8027 = vld [vmem:[%s4325 + $0x122] sm:$0xff]
    %v8028 = vld [vmem:[%s4325 + $0x12a] sm:$0xff]
    %v8029 = vld [vmem:[%s4325 + $0x13a] sm:$0xff]
    %v8030 = vld [vmem:[%s4325 + $0x142] sm:$0xff]
    %v8031 = vld [vmem:[%s4325 + $0x152] sm:$0xff]
    %v8032 = vld [vmem:[%s4325 + $0x15a] sm:$0xff]
    %v8033 = vld [vmem:[%s4325 + $0x16a] sm:$0xff]
    %v8034 = vld [vmem:[%s4325 + $0x172] sm:$0xff]
    %v8035 = vld [vmem:[%s4325 + $0x1b2] sm:$0xff]
    %v8036 = vld [vmem:[%s4325 + $0x1ba] sm:$0xff]
    %v8037 = vld [vmem:[%s4325 + $0x1ca] sm:$0xff]
    %v8038 = vld [vmem:[%s4325 + $0x1d2] sm:$0xff]
    %v8039 = vld [vmem:[%s4325 + $0x1e2] sm:$0xff]
    %v8040 = vld [vmem:[%s4325 + $0x1ea] sm:$0xff]
    %v8041 = vld [vmem:[%s4325 + $0x1fa] sm:$0xff]
    %v8042 = vld [vmem:[%s4325 + $0x202] sm:$0xff]
    %v8043 = vld [vmem:[%s4325 + $0x212] sm:$0xff]
    %v8044 = vld [vmem:[%s4325 + $0x21a] sm:$0xff]
    %v8045 = vld [vmem:[%s4325 + $0x22a] sm:$0xff]
    %v8046 = vld [vmem:[%s4325 + $0x232] sm:$0xff]
    %v8047 = vld [vmem:[%s4325 + $0x242] sm:$0xff]
    %v8048 = vld [vmem:[%s4325 + $0x24a] sm:$0xff]
    %v8049 = vld [vmem:[%s4325 + $0x25a] sm:$0xff]
    %v8050 = vld [vmem:[%s4325 + $0x262] sm:$0xff]
    %v8051 = vld [vmem:[%s4325 + $0x272] sm:$0xff]
    %v8052 = vld [vmem:[%s4325 + $0x27a] sm:$0xff]
    %v8053 = vld [vmem:[%s4325 + $0x28a] sm:$0xff]
    %v8054 = vld [vmem:[%s4325 + $0x292] sm:$0xff]
    %v8055 = vld [vmem:[%s4325 + $0x2a2] sm:$0xff]
    %v8056 = vld [vmem:[%s4325 + $0x2aa] sm:$0xff]
    %v8057 = vld [vmem:[%s4325 + $0x2ba] sm:$0xff]
    %v8058 = vld [vmem:[%s4325 + $0x2c2] sm:$0xff]
    %v8059 = vld [vmem:[%s4325 + $0x2d2] sm:$0xff]
    %v8060 = vld [vmem:[%s4325 + $0x2da] sm:$0xff]
    %v8061 = vld [vmem:[%s4325 + $0x2ea] sm:$0xff]
    %v8062 = vld [vmem:[%s4325 + $0x2f2] sm:$0xff]
    %v8063 = vld [vmem:[%s4325 + $0x302] sm:$0xff]
    %v8064 = vld [vmem:[%s4325 + $0x30a] sm:$0xff]
    %v8065 = vld [vmem:[%s4325 + $0x31a] sm:$0xff]
    %v8066 = vld [vmem:[%s4325 + $0x322] sm:$0xff]
    %v8067 = vld [vmem:[%s7672 + $0x2] sm:$0x1]
    %v8068 = vlaneseq
    %v8069 = vshrl.u32 %v8068, 7
    %v8070 = vsub.s32 0, %v8069
    %v8071 = vrot.slane %v8067, %v8070
    %v8072 = vmul.f32 %v8003, %v8071
    %v8073 = vmul.f32 %v8004, %v8071
    %v8074 = vmul.f32 %v8005, %v8071
    %v8075 = vmul.f32 %v8006, %v8071
    %v8076 = vmul.f32 %v8007, %v8071
    %v8077 = vmul.f32 %v8008, %v8071
    %v8078 = vmul.f32 %v8009, %v8071
    %v8079 = vmul.f32 %v8010, %v8071
    %v8080 = vmul.f32 %v8011, %v8071
    %v8081 = vmul.f32 %v8012, %v8071
    %v8082 = vmul.f32 %v8013, %v8071
    %v8083 = vmul.f32 %v8014, %v8071
    %v8084 = vmul.f32 %v8015, %v8071
    %v8085 = vmul.f32 %v8016, %v8071
    %v8086 = vmul.f32 %v8017, %v8071
    %v8087 = vmul.f32 %v8018, %v8071
    %v8088 = vmul.f32 %v8019, %v8071
    %v8089 = vmul.f32 %v8020, %v8071
    %v8090 = vmul.f32 %v8021, %v8071
    %v8091 = vmul.f32 %v8022, %v8071
    %v8092 = vmul.f32 %v8023, %v8071
    %v8093 = vmul.f32 %v8024, %v8071
    %v8094 = vmul.f32 %v8025, %v8071
    %v8095 = vmul.f32 %v8026, %v8071
    %v8096 = vmul.f32 %v8027, %v8071
    %v8097 = vmul.f32 %v8028, %v8071
    %v8098 = vmul.f32 %v8029, %v8071
    %v8099 = vmul.f32 %v8030, %v8071
    %v8100 = vmul.f32 %v8031, %v8071
    %v8101 = vmul.f32 %v8032, %v8071
    %v8102 = vmul.f32 %v8033, %v8071
    %v8103 = vmul.f32 %v8034, %v8071
    %v8104 = vmul.f32 %v8035, %v8071
    %v8105 = vmul.f32 %v8036, %v8071
    %v8106 = vmul.f32 %v8037, %v8071
    %v8107 = vmul.f32 %v8038, %v8071
    %v8108 = vmul.f32 %v8039, %v8071
    %v8109 = vmul.f32 %v8040, %v8071
    %v8110 = vmul.f32 %v8041, %v8071
    %v8111 = vmul.f32 %v8042, %v8071
    %v8112 = vmul.f32 %v8043, %v8071
    %v8113 = vmul.f32 %v8044, %v8071
    %v8114 = vmul.f32 %v8045, %v8071
    %v8115 = vmul.f32 %v8046, %v8071
    %v8116 = vmul.f32 %v8047, %v8071
    %v8117 = vmul.f32 %v8048, %v8071
    %v8118 = vmul.f32 %v8049, %v8071
    %v8119 = vmul.f32 %v8050, %v8071
    %v8120 = vmul.f32 %v8051, %v8071
    %v8121 = vmul.f32 %v8052, %v8071
    %v8122 = vmul.f32 %v8053, %v8071
    %v8123 = vmul.f32 %v8054, %v8071
    %v8124 = vmul.f32 %v8055, %v8071
    %v8125 = vmul.f32 %v8056, %v8071
    %v8126 = vmul.f32 %v8057, %v8071
    %v8127 = vmul.f32 %v8058, %v8071
    %v8128 = vmul.f32 %v8059, %v8071
    %v8129 = vmul.f32 %v8060, %v8071
    %v8130 = vmul.f32 %v8061, %v8071
    %v8131 = vmul.f32 %v8062, %v8071
    %v8132 = vmul.f32 %v8063, %v8071
    %v8133 = vmul.f32 %v8064, %v8071
    %v8134 = vmul.f32 %v8065, %v8071
    %v8135 = vmul.f32 %v8066, %v8071
    %v8136 = vadd.f32 %v7939, %v8072
    %v8137 = vadd.f32 %v7940, %v8073
    %v8138 = vadd.f32 %v7941, %v8074
    %v8139 = vadd.f32 %v7942, %v8075
    %v8140 = vadd.f32 %v7943, %v8076
    %v8141 = vadd.f32 %v7944, %v8077
    %v8142 = vadd.f32 %v7945, %v8078
    %v8143 = vadd.f32 %v7946, %v8079
    %v8144 = vadd.f32 %v7947, %v8080
    %v8145 = vadd.f32 %v7948, %v8081
    %v8146 = vadd.f32 %v7949, %v8082
    %v8147 = vadd.f32 %v7950, %v8083
    %v8148 = vadd.f32 %v7951, %v8084
    %v8149 = vadd.f32 %v7952, %v8085
    %v8150 = vadd.f32 %v7953, %v8086
    %v8151 = vadd.f32 %v7954, %v8087
    %v8152 = vadd.f32 %v7955, %v8088
    %v8153 = vadd.f32 %v7956, %v8089
    %v8154 = vadd.f32 %v7957, %v8090
    %v8155 = vadd.f32 %v7958, %v8091
    %v8156 = vadd.f32 %v7959, %v8092
    %v8157 = vadd.f32 %v7960, %v8093
    %v8158 = vadd.f32 %v7961, %v8094
    %v8159 = vadd.f32 %v7962, %v8095
    %v8160 = vadd.f32 %v7963, %v8096
    %v8161 = vadd.f32 %v7964, %v8097
    %v8162 = vadd.f32 %v7965, %v8098
    %v8163 = vadd.f32 %v7966, %v8099
    %v8164 = vadd.f32 %v7967, %v8100
    %v8165 = vadd.f32 %v7968, %v8101
    %v8166 = vadd.f32 %v7969, %v8102
    %v8167 = vadd.f32 %v7970, %v8103
    %v8168 = vadd.f32 %v7971, %v8104
    %v8169 = vadd.f32 %v7972, %v8105
    %v8170 = vadd.f32 %v7973, %v8106
    %v8171 = vadd.f32 %v7974, %v8107
    %v8172 = vadd.f32 %v7975, %v8108
    %v8173 = vadd.f32 %v7976, %v8109
    %v8174 = vadd.f32 %v7977, %v8110
    %v8175 = vadd.f32 %v7978, %v8111
    %v8176 = vadd.f32 %v7979, %v8112
    %v8177 = vadd.f32 %v7980, %v8113
    %v8178 = vadd.f32 %v7981, %v8114
    %v8179 = vadd.f32 %v7982, %v8115
    %v8180 = vadd.f32 %v7983, %v8116
    %v8181 = vadd.f32 %v7984, %v8117
    %v8182 = vadd.f32 %v7985, %v8118
    %v8183 = vadd.f32 %v7986, %v8119
    %v8184 = vadd.f32 %v7987, %v8120
    %v8185 = vadd.f32 %v7988, %v8121
    %v8186 = vadd.f32 %v7989, %v8122
    %v8187 = vadd.f32 %v7990, %v8123
    %v8188 = vadd.f32 %v7991, %v8124
    %v8189 = vadd.f32 %v7992, %v8125
    %v8190 = vadd.f32 %v7993, %v8126
    %v8191 = vadd.f32 %v7994, %v8127
    %v8192 = vadd.f32 %v7995, %v8128
    %v8193 = vadd.f32 %v7996, %v8129
    %v8194 = vadd.f32 %v7997, %v8130
    %v8195 = vadd.f32 %v7998, %v8131
    %v8196 = vadd.f32 %v7999, %v8132
    %v8197 = vadd.f32 %v8000, %v8133
    %v8198 = vadd.f32 %v8001, %v8134
    %v8199 = vadd.f32 %v8002, %v8135
    %v8200 = vld [vmem:[%s5573] sm:$0xff]
    %v8201 = vld [vmem:[%s5573 + $0x8] sm:$0xff]
    %v8202 = vld [vmem:[%s5573 + $0x18] sm:$0xff]
    %v8203 = vld [vmem:[%s5573 + $0x20] sm:$0xff]
    %v8204 = vld [vmem:[%s5573 + $0x30] sm:$0xff]
    %v8205 = vld [vmem:[%s5573 + $0x38] sm:$0xff]
    %v8206 = vld [vmem:[%s5573 + $0x48] sm:$0xff]
    %v8207 = vld [vmem:[%s5573 + $0x50] sm:$0xff]
    %v8208 = vld [vmem:[%s5573 + $0x60] sm:$0xff]
    %v8209 = vld [vmem:[%s5573 + $0x68] sm:$0xff]
    %v8210 = vld [vmem:[%s5573 + $0x78] sm:$0xff]
    %v8211 = vld [vmem:[%s5573 + $0x80] sm:$0xff]
    %v8212 = vld [vmem:[%s5573 + $0x90] sm:$0xff]
    %v8213 = vld [vmem:[%s5573 + $0x98] sm:$0xff]
    %v8214 = vld [vmem:[%s5573 + $0xa8] sm:$0xff]
    %v8215 = vld [vmem:[%s5573 + $0xb0] sm:$0xff]
    %v8216 = vld [vmem:[%s5573 + $0xc0] sm:$0xff]
    %v8217 = vld [vmem:[%s5573 + $0xc8] sm:$0xff]
    %v8218 = vld [vmem:[%s5573 + $0xd8] sm:$0xff]
    %v8219 = vld [vmem:[%s5573 + $0xe0] sm:$0xff]
    %v8220 = vld [vmem:[%s5573 + $0xf0] sm:$0xff]
    %v8221 = vld [vmem:[%s5573 + $0xf8] sm:$0xff]
    %v8222 = vld [vmem:[%s5573 + $0x108] sm:$0xff]
    %v8223 = vld [vmem:[%s5573 + $0x110] sm:$0xff]
    %v8224 = vld [vmem:[%s5573 + $0x120] sm:$0xff]
    %v8225 = vld [vmem:[%s5573 + $0x128] sm:$0xff]
    %v8226 = vld [vmem:[%s5573 + $0x138] sm:$0xff]
    %v8227 = vld [vmem:[%s5573 + $0x140] sm:$0xff]
    %v8228 = vld [vmem:[%s5573 + $0x150] sm:$0xff]
    %v8229 = vld [vmem:[%s5573 + $0x158] sm:$0xff]
    %v8230 = vld [vmem:[%s5573 + $0x168] sm:$0xff]
    %v8231 = vld [vmem:[%s5573 + $0x170] sm:$0xff]
    %v8232 = vld [vmem:[%s5573 + $0x1b0] sm:$0xff]
    %v8233 = vld [vmem:[%s5573 + $0x1b8] sm:$0xff]
    %v8234 = vld [vmem:[%s5573 + $0x1c8] sm:$0xff]
    %v8235 = vld [vmem:[%s5573 + $0x1d0] sm:$0xff]
    %v8236 = vld [vmem:[%s5573 + $0x1e0] sm:$0xff]
    %v8237 = vld [vmem:[%s5573 + $0x1e8] sm:$0xff]
    %v8238 = vld [vmem:[%s5573 + $0x1f8] sm:$0xff]
    %v8239 = vld [vmem:[%s5573 + $0x200] sm:$0xff]
    %v8240 = vld [vmem:[%s5573 + $0x210] sm:$0xff]
    %v8241 = vld [vmem:[%s5573 + $0x218] sm:$0xff]
    %v8242 = vld [vmem:[%s5573 + $0x228] sm:$0xff]
    %v8243 = vld [vmem:[%s5573 + $0x230] sm:$0xff]
    %v8244 = vld [vmem:[%s5573 + $0x240] sm:$0xff]
    %v8245 = vld [vmem:[%s5573 + $0x248] sm:$0xff]
    %v8246 = vld [vmem:[%s5573 + $0x258] sm:$0xff]
    %v8247 = vld [vmem:[%s5573 + $0x260] sm:$0xff]
    %v8248 = vld [vmem:[%s5573 + $0x270] sm:$0xff]
    %v8249 = vld [vmem:[%s5573 + $0x278] sm:$0xff]
    %v8250 = vld [vmem:[%s5573 + $0x288] sm:$0xff]
    %v8251 = vld [vmem:[%s5573 + $0x290] sm:$0xff]
    %v8252 = vld [vmem:[%s5573 + $0x2a0] sm:$0xff]
    %v8253 = vld [vmem:[%s5573 + $0x2a8] sm:$0xff]
    %v8254 = vld [vmem:[%s5573 + $0x2b8] sm:$0xff]
    %v8255 = vld [vmem:[%s5573 + $0x2c0] sm:$0xff]
    %v8256 = vld [vmem:[%s5573 + $0x2d0] sm:$0xff]
    %v8257 = vld [vmem:[%s5573 + $0x2d8] sm:$0xff]
    %v8258 = vld [vmem:[%s5573 + $0x2e8] sm:$0xff]
    %v8259 = vld [vmem:[%s5573 + $0x2f0] sm:$0xff]
    %v8260 = vld [vmem:[%s5573 + $0x300] sm:$0xff]
    %v8261 = vld [vmem:[%s5573 + $0x308] sm:$0xff]
    %v8262 = vld [vmem:[%s5573 + $0x318] sm:$0xff]
    %v8263 = vld [vmem:[%s5573 + $0x320] sm:$0xff]
    %s8264 = scalar_lea.vmem %s7, 8
    %v8265 = vld [vmem:[%s8264] sm:$0x1]
    %v8266 = vlaneseq
    %v8267 = vshrl.u32 %v8266, 7
    %v8268 = vsub.s32 0, %v8267
    %v8269 = vrot.slane %v8265, %v8268
    %v8270 = vmul.f32 %v8200, %v8269
    %v8271 = vmul.f32 %v8201, %v8269
    %v8272 = vmul.f32 %v8202, %v8269
    %v8273 = vmul.f32 %v8203, %v8269
    %v8274 = vmul.f32 %v8204, %v8269
    %v8275 = vmul.f32 %v8205, %v8269
    %v8276 = vmul.f32 %v8206, %v8269
    %v8277 = vmul.f32 %v8207, %v8269
    %v8278 = vmul.f32 %v8208, %v8269
    %v8279 = vmul.f32 %v8209, %v8269
    %v8280 = vmul.f32 %v8210, %v8269
    %v8281 = vmul.f32 %v8211, %v8269
    %v8282 = vmul.f32 %v8212, %v8269
    %v8283 = vmul.f32 %v8213, %v8269
    %v8284 = vmul.f32 %v8214, %v8269
    %v8285 = vmul.f32 %v8215, %v8269
    %v8286 = vmul.f32 %v8216, %v8269
    %v8287 = vmul.f32 %v8217, %v8269
    %v8288 = vmul.f32 %v8218, %v8269
    %v8289 = vmul.f32 %v8219, %v8269
    %v8290 = vmul.f32 %v8220, %v8269
    %v8291 = vmul.f32 %v8221, %v8269
    %v8292 = vmul.f32 %v8222, %v8269
    %v8293 = vmul.f32 %v8223, %v8269
    %v8294 = vmul.f32 %v8224, %v8269
    %v8295 = vmul.f32 %v8225, %v8269
    %v8296 = vmul.f32 %v8226, %v8269
    %v8297 = vmul.f32 %v8227, %v8269
    %v8298 = vmul.f32 %v8228, %v8269
    %v8299 = vmul.f32 %v8229, %v8269
    %v8300 = vmul.f32 %v8230, %v8269
    %v8301 = vmul.f32 %v8231, %v8269
    %v8302 = vmul.f32 %v8232, %v8269
    %v8303 = vmul.f32 %v8233, %v8269
    %v8304 = vmul.f32 %v8234, %v8269
    %v8305 = vmul.f32 %v8235, %v8269
    %v8306 = vmul.f32 %v8236, %v8269
    %v8307 = vmul.f32 %v8237, %v8269
    %v8308 = vmul.f32 %v8238, %v8269
    %v8309 = vmul.f32 %v8239, %v8269
    %v8310 = vmul.f32 %v8240, %v8269
    %v8311 = vmul.f32 %v8241, %v8269
    %v8312 = vmul.f32 %v8242, %v8269
    %v8313 = vmul.f32 %v8243, %v8269
    %v8314 = vmul.f32 %v8244, %v8269
    %v8315 = vmul.f32 %v8245, %v8269
    %v8316 = vmul.f32 %v8246, %v8269
    %v8317 = vmul.f32 %v8247, %v8269
    %v8318 = vmul.f32 %v8248, %v8269
    %v8319 = vmul.f32 %v8249, %v8269
    %v8320 = vmul.f32 %v8250, %v8269
    %v8321 = vmul.f32 %v8251, %v8269
    %v8322 = vmul.f32 %v8252, %v8269
    %v8323 = vmul.f32 %v8253, %v8269
    %v8324 = vmul.f32 %v8254, %v8269
    %v8325 = vmul.f32 %v8255, %v8269
    %v8326 = vmul.f32 %v8256, %v8269
    %v8327 = vmul.f32 %v8257, %v8269
    %v8328 = vmul.f32 %v8258, %v8269
    %v8329 = vmul.f32 %v8259, %v8269
    %v8330 = vmul.f32 %v8260, %v8269
    %v8331 = vmul.f32 %v8261, %v8269
    %v8332 = vmul.f32 %v8262, %v8269
    %v8333 = vmul.f32 %v8263, %v8269
    %v8334 = vadd.f32 %v8136, %v8270
    %v8335 = vadd.f32 %v8137, %v8271
    %v8336 = vadd.f32 %v8138, %v8272
    %v8337 = vadd.f32 %v8139, %v8273
    %v8338 = vadd.f32 %v8140, %v8274
    %v8339 = vadd.f32 %v8141, %v8275
    %v8340 = vadd.f32 %v8142, %v8276
    %v8341 = vadd.f32 %v8143, %v8277
    %v8342 = vadd.f32 %v8144, %v8278
    %v8343 = vadd.f32 %v8145, %v8279
    %v8344 = vadd.f32 %v8146, %v8280
    %v8345 = vadd.f32 %v8147, %v8281
    %v8346 = vadd.f32 %v8148, %v8282
    %v8347 = vadd.f32 %v8149, %v8283
    %v8348 = vadd.f32 %v8150, %v8284
    %v8349 = vadd.f32 %v8151, %v8285
    %v8350 = vadd.f32 %v8152, %v8286
    %v8351 = vadd.f32 %v8153, %v8287
    %v8352 = vadd.f32 %v8154, %v8288
    %v8353 = vadd.f32 %v8155, %v8289
    %v8354 = vadd.f32 %v8156, %v8290
    %v8355 = vadd.f32 %v8157, %v8291
    %v8356 = vadd.f32 %v8158, %v8292
    %v8357 = vadd.f32 %v8159, %v8293
    %v8358 = vadd.f32 %v8160, %v8294
    %v8359 = vadd.f32 %v8161, %v8295
    %v8360 = vadd.f32 %v8162, %v8296
    %v8361 = vadd.f32 %v8163, %v8297
    %v8362 = vadd.f32 %v8164, %v8298
    %v8363 = vadd.f32 %v8165, %v8299
    %v8364 = vadd.f32 %v8166, %v8300
    %v8365 = vadd.f32 %v8167, %v8301
    %v8366 = vadd.f32 %v8168, %v8302
    %v8367 = vadd.f32 %v8169, %v8303
    %v8368 = vadd.f32 %v8170, %v8304
    %v8369 = vadd.f32 %v8171, %v8305
    %v8370 = vadd.f32 %v8172, %v8306
    %v8371 = vadd.f32 %v8173, %v8307
    %v8372 = vadd.f32 %v8174, %v8308
    %v8373 = vadd.f32 %v8175, %v8309
    %v8374 = vadd.f32 %v8176, %v8310
    %v8375 = vadd.f32 %v8177, %v8311
    %v8376 = vadd.f32 %v8178, %v8312
    %v8377 = vadd.f32 %v8179, %v8313
    %v8378 = vadd.f32 %v8180, %v8314
    %v8379 = vadd.f32 %v8181, %v8315
    %v8380 = vadd.f32 %v8182, %v8316
    %v8381 = vadd.f32 %v8183, %v8317
    %v8382 = vadd.f32 %v8184, %v8318
    %v8383 = vadd.f32 %v8185, %v8319
    %v8384 = vadd.f32 %v8186, %v8320
    %v8385 = vadd.f32 %v8187, %v8321
    %v8386 = vadd.f32 %v8188, %v8322
    %v8387 = vadd.f32 %v8189, %v8323
    %v8388 = vadd.f32 %v8190, %v8324
    %v8389 = vadd.f32 %v8191, %v8325
    %v8390 = vadd.f32 %v8192, %v8326
    %v8391 = vadd.f32 %v8193, %v8327
    %v8392 = vadd.f32 %v8194, %v8328
    %v8393 = vadd.f32 %v8195, %v8329
    %v8394 = vadd.f32 %v8196, %v8330
    %v8395 = vadd.f32 %v8197, %v8331
    %v8396 = vadd.f32 %v8198, %v8332
    %v8397 = vadd.f32 %v8199, %v8333
    %v8398 = vld [vmem:[%s5573 + $0x1] sm:$0xff]
    %v8399 = vld [vmem:[%s5573 + $0x9] sm:$0xff]
    %v8400 = vld [vmem:[%s5573 + $0x19] sm:$0xff]
    %v8401 = vld [vmem:[%s5573 + $0x21] sm:$0xff]
    %v8402 = vld [vmem:[%s5573 + $0x31] sm:$0xff]
    %v8403 = vld [vmem:[%s5573 + $0x39] sm:$0xff]
    %v8404 = vld [vmem:[%s5573 + $0x49] sm:$0xff]
    %v8405 = vld [vmem:[%s5573 + $0x51] sm:$0xff]
    %v8406 = vld [vmem:[%s5573 + $0x61] sm:$0xff]
    %v8407 = vld [vmem:[%s5573 + $0x69] sm:$0xff]
    %v8408 = vld [vmem:[%s5573 + $0x79] sm:$0xff]
    %v8409 = vld [vmem:[%s5573 + $0x81] sm:$0xff]
    %v8410 = vld [vmem:[%s5573 + $0x91] sm:$0xff]
    %v8411 = vld [vmem:[%s5573 + $0x99] sm:$0xff]
    %v8412 = vld [vmem:[%s5573 + $0xa9] sm:$0xff]
    %v8413 = vld [vmem:[%s5573 + $0xb1] sm:$0xff]
    %v8414 = vld [vmem:[%s5573 + $0xc1] sm:$0xff]
    %v8415 = vld [vmem:[%s5573 + $0xc9] sm:$0xff]
    %v8416 = vld [vmem:[%s5573 + $0xd9] sm:$0xff]
    %v8417 = vld [vmem:[%s5573 + $0xe1] sm:$0xff]
    %v8418 = vld [vmem:[%s5573 + $0xf1] sm:$0xff]
    %v8419 = vld [vmem:[%s5573 + $0xf9] sm:$0xff]
    %v8420 = vld [vmem:[%s5573 + $0x109] sm:$0xff]
    %v8421 = vld [vmem:[%s5573 + $0x111] sm:$0xff]
    %v8422 = vld [vmem:[%s5573 + $0x121] sm:$0xff]
    %v8423 = vld [vmem:[%s5573 + $0x129] sm:$0xff]
    %v8424 = vld [vmem:[%s5573 + $0x139] sm:$0xff]
    %v8425 = vld [vmem:[%s5573 + $0x141] sm:$0xff]
    %v8426 = vld [vmem:[%s5573 + $0x151] sm:$0xff]
    %v8427 = vld [vmem:[%s5573 + $0x159] sm:$0xff]
    %v8428 = vld [vmem:[%s5573 + $0x169] sm:$0xff]
    %v8429 = vld [vmem:[%s5573 + $0x171] sm:$0xff]
    %v8430 = vld [vmem:[%s5573 + $0x1b1] sm:$0xff]
    %v8431 = vld [vmem:[%s5573 + $0x1b9] sm:$0xff]
    %v8432 = vld [vmem:[%s5573 + $0x1c9] sm:$0xff]
    %v8433 = vld [vmem:[%s5573 + $0x1d1] sm:$0xff]
    %v8434 = vld [vmem:[%s5573 + $0x1e1] sm:$0xff]
    %v8435 = vld [vmem:[%s5573 + $0x1e9] sm:$0xff]
    %v8436 = vld [vmem:[%s5573 + $0x1f9] sm:$0xff]
    %v8437 = vld [vmem:[%s5573 + $0x201] sm:$0xff]
    %v8438 = vld [vmem:[%s5573 + $0x211] sm:$0xff]
    %v8439 = vld [vmem:[%s5573 + $0x219] sm:$0xff]
    %v8440 = vld [vmem:[%s5573 + $0x229] sm:$0xff]
    %v8441 = vld [vmem:[%s5573 + $0x231] sm:$0xff]
    %v8442 = vld [vmem:[%s5573 + $0x241] sm:$0xff]
    %v8443 = vld [vmem:[%s5573 + $0x249] sm:$0xff]
    %v8444 = vld [vmem:[%s5573 + $0x259] sm:$0xff]
    %v8445 = vld [vmem:[%s5573 + $0x261] sm:$0xff]
    %v8446 = vld [vmem:[%s5573 + $0x271] sm:$0xff]
    %v8447 = vld [vmem:[%s5573 + $0x279] sm:$0xff]
    %v8448 = vld [vmem:[%s5573 + $0x289] sm:$0xff]
    %v8449 = vld [vmem:[%s5573 + $0x291] sm:$0xff]
    %v8450 = vld [vmem:[%s5573 + $0x2a1] sm:$0xff]
    %v8451 = vld [vmem:[%s5573 + $0x2a9] sm:$0xff]
    %v8452 = vld [vmem:[%s5573 + $0x2b9] sm:$0xff]
    %v8453 = vld [vmem:[%s5573 + $0x2c1] sm:$0xff]
    %v8454 = vld [vmem:[%s5573 + $0x2d1] sm:$0xff]
    %v8455 = vld [vmem:[%s5573 + $0x2d9] sm:$0xff]
    %v8456 = vld [vmem:[%s5573 + $0x2e9] sm:$0xff]
    %v8457 = vld [vmem:[%s5573 + $0x2f1] sm:$0xff]
    %v8458 = vld [vmem:[%s5573 + $0x301] sm:$0xff]
    %v8459 = vld [vmem:[%s5573 + $0x309] sm:$0xff]
    %v8460 = vld [vmem:[%s5573 + $0x319] sm:$0xff]
    %v8461 = vld [vmem:[%s5573 + $0x321] sm:$0xff]
    %v8462 = vld [vmem:[%s8264 + $0x1] sm:$0x1]
    %v8463 = vlaneseq
    %v8464 = vshrl.u32 %v8463, 7
    %v8465 = vsub.s32 0, %v8464
    %v8466 = vrot.slane %v8462, %v8465
    %v8467 = vmul.f32 %v8398, %v8466
    %v8468 = vmul.f32 %v8399, %v8466
    %v8469 = vmul.f32 %v8400, %v8466
    %v8470 = vmul.f32 %v8401, %v8466
    %v8471 = vmul.f32 %v8402, %v8466
    %v8472 = vmul.f32 %v8403, %v8466
    %v8473 = vmul.f32 %v8404, %v8466
    %v8474 = vmul.f32 %v8405, %v8466
    %v8475 = vmul.f32 %v8406, %v8466
    %v8476 = vmul.f32 %v8407, %v8466
    %v8477 = vmul.f32 %v8408, %v8466
    %v8478 = vmul.f32 %v8409, %v8466
    %v8479 = vmul.f32 %v8410, %v8466
    %v8480 = vmul.f32 %v8411, %v8466
    %v8481 = vmul.f32 %v8412, %v8466
    %v8482 = vmul.f32 %v8413, %v8466
    %v8483 = vmul.f32 %v8414, %v8466
    %v8484 = vmul.f32 %v8415, %v8466
    %v8485 = vmul.f32 %v8416, %v8466
    %v8486 = vmul.f32 %v8417, %v8466
    %v8487 = vmul.f32 %v8418, %v8466
    %v8488 = vmul.f32 %v8419, %v8466
    %v8489 = vmul.f32 %v8420, %v8466
    %v8490 = vmul.f32 %v8421, %v8466
    %v8491 = vmul.f32 %v8422, %v8466
    %v8492 = vmul.f32 %v8423, %v8466
    %v8493 = vmul.f32 %v8424, %v8466
    %v8494 = vmul.f32 %v8425, %v8466
    %v8495 = vmul.f32 %v8426, %v8466
    %v8496 = vmul.f32 %v8427, %v8466
    %v8497 = vmul.f32 %v8428, %v8466
    %v8498 = vmul.f32 %v8429, %v8466
    %v8499 = vmul.f32 %v8430, %v8466
    %v8500 = vmul.f32 %v8431, %v8466
    %v8501 = vmul.f32 %v8432, %v8466
    %v8502 = vmul.f32 %v8433, %v8466
    %v8503 = vmul.f32 %v8434, %v8466
    %v8504 = vmul.f32 %v8435, %v8466
    %v8505 = vmul.f32 %v8436, %v8466
    %v8506 = vmul.f32 %v8437, %v8466
    %v8507 = vmul.f32 %v8438, %v8466
    %v8508 = vmul.f32 %v8439, %v8466
    %v8509 = vmul.f32 %v8440, %v8466
    %v8510 = vmul.f32 %v8441, %v8466
    %v8511 = vmul.f32 %v8442, %v8466
    %v8512 = vmul.f32 %v8443, %v8466
    %v8513 = vmul.f32 %v8444, %v8466
    %v8514 = vmul.f32 %v8445, %v8466
    %v8515 = vmul.f32 %v8446, %v8466
    %v8516 = vmul.f32 %v8447, %v8466
    %v8517 = vmul.f32 %v8448, %v8466
    %v8518 = vmul.f32 %v8449, %v8466
    %v8519 = vmul.f32 %v8450, %v8466
    %v8520 = vmul.f32 %v8451, %v8466
    %v8521 = vmul.f32 %v8452, %v8466
    %v8522 = vmul.f32 %v8453, %v8466
    %v8523 = vmul.f32 %v8454, %v8466
    %v8524 = vmul.f32 %v8455, %v8466
    %v8525 = vmul.f32 %v8456, %v8466
    %v8526 = vmul.f32 %v8457, %v8466
    %v8527 = vmul.f32 %v8458, %v8466
    %v8528 = vmul.f32 %v8459, %v8466
    %v8529 = vmul.f32 %v8460, %v8466
    %v8530 = vmul.f32 %v8461, %v8466
    %v8531 = vadd.f32 %v8334, %v8467
    %v8532 = vadd.f32 %v8335, %v8468
    %v8533 = vadd.f32 %v8336, %v8469
    %v8534 = vadd.f32 %v8337, %v8470
    %v8535 = vadd.f32 %v8338, %v8471
    %v8536 = vadd.f32 %v8339, %v8472
    %v8537 = vadd.f32 %v8340, %v8473
    %v8538 = vadd.f32 %v8341, %v8474
    %v8539 = vadd.f32 %v8342, %v8475
    %v8540 = vadd.f32 %v8343, %v8476
    %v8541 = vadd.f32 %v8344, %v8477
    %v8542 = vadd.f32 %v8345, %v8478
    %v8543 = vadd.f32 %v8346, %v8479
    %v8544 = vadd.f32 %v8347, %v8480
    %v8545 = vadd.f32 %v8348, %v8481
    %v8546 = vadd.f32 %v8349, %v8482
    %v8547 = vadd.f32 %v8350, %v8483
    %v8548 = vadd.f32 %v8351, %v8484
    %v8549 = vadd.f32 %v8352, %v8485
    %v8550 = vadd.f32 %v8353, %v8486
    %v8551 = vadd.f32 %v8354, %v8487
    %v8552 = vadd.f32 %v8355, %v8488
    %v8553 = vadd.f32 %v8356, %v8489
    %v8554 = vadd.f32 %v8357, %v8490
    %v8555 = vadd.f32 %v8358, %v8491
    %v8556 = vadd.f32 %v8359, %v8492
    %v8557 = vadd.f32 %v8360, %v8493
    %v8558 = vadd.f32 %v8361, %v8494
    %v8559 = vadd.f32 %v8362, %v8495
    %v8560 = vadd.f32 %v8363, %v8496
    %v8561 = vadd.f32 %v8364, %v8497
    %v8562 = vadd.f32 %v8365, %v8498
    %v8563 = vadd.f32 %v8366, %v8499
    %v8564 = vadd.f32 %v8367, %v8500
    %v8565 = vadd.f32 %v8368, %v8501
    %v8566 = vadd.f32 %v8369, %v8502
    %v8567 = vadd.f32 %v8370, %v8503
    %v8568 = vadd.f32 %v8371, %v8504
    %v8569 = vadd.f32 %v8372, %v8505
    %v8570 = vadd.f32 %v8373, %v8506
    %v8571 = vadd.f32 %v8374, %v8507
    %v8572 = vadd.f32 %v8375, %v8508
    %v8573 = vadd.f32 %v8376, %v8509
    %v8574 = vadd.f32 %v8377, %v8510
    %v8575 = vadd.f32 %v8378, %v8511
    %v8576 = vadd.f32 %v8379, %v8512
    %v8577 = vadd.f32 %v8380, %v8513
    %v8578 = vadd.f32 %v8381, %v8514
    %v8579 = vadd.f32 %v8382, %v8515
    %v8580 = vadd.f32 %v8383, %v8516
    %v8581 = vadd.f32 %v8384, %v8517
    %v8582 = vadd.f32 %v8385, %v8518
    %v8583 = vadd.f32 %v8386, %v8519
    %v8584 = vadd.f32 %v8387, %v8520
    %v8585 = vadd.f32 %v8388, %v8521
    %v8586 = vadd.f32 %v8389, %v8522
    %v8587 = vadd.f32 %v8390, %v8523
    %v8588 = vadd.f32 %v8391, %v8524
    %v8589 = vadd.f32 %v8392, %v8525
    %v8590 = vadd.f32 %v8393, %v8526
    %v8591 = vadd.f32 %v8394, %v8527
    %v8592 = vadd.f32 %v8395, %v8528
    %v8593 = vadd.f32 %v8396, %v8529
    %v8594 = vadd.f32 %v8397, %v8530
    %v8595 = vld [vmem:[%s5573 + $0x2] sm:$0xff]
    %v8596 = vld [vmem:[%s5573 + $0xa] sm:$0xff]
    %v8597 = vld [vmem:[%s5573 + $0x1a] sm:$0xff]
    %v8598 = vld [vmem:[%s5573 + $0x22] sm:$0xff]
    %v8599 = vld [vmem:[%s5573 + $0x32] sm:$0xff]
    %v8600 = vld [vmem:[%s5573 + $0x3a] sm:$0xff]
    %v8601 = vld [vmem:[%s5573 + $0x4a] sm:$0xff]
    %v8602 = vld [vmem:[%s5573 + $0x52] sm:$0xff]
    %v8603 = vld [vmem:[%s5573 + $0x62] sm:$0xff]
    %v8604 = vld [vmem:[%s5573 + $0x6a] sm:$0xff]
    %v8605 = vld [vmem:[%s5573 + $0x7a] sm:$0xff]
    %v8606 = vld [vmem:[%s5573 + $0x82] sm:$0xff]
    %v8607 = vld [vmem:[%s5573 + $0x92] sm:$0xff]
    %v8608 = vld [vmem:[%s5573 + $0x9a] sm:$0xff]
    %v8609 = vld [vmem:[%s5573 + $0xaa] sm:$0xff]
    %v8610 = vld [vmem:[%s5573 + $0xb2] sm:$0xff]
    %v8611 = vld [vmem:[%s5573 + $0xc2] sm:$0xff]
    %v8612 = vld [vmem:[%s5573 + $0xca] sm:$0xff]
    %v8613 = vld [vmem:[%s5573 + $0xda] sm:$0xff]
    %v8614 = vld [vmem:[%s5573 + $0xe2] sm:$0xff]
    %v8615 = vld [vmem:[%s5573 + $0xf2] sm:$0xff]
    %v8616 = vld [vmem:[%s5573 + $0xfa] sm:$0xff]
    %v8617 = vld [vmem:[%s5573 + $0x10a] sm:$0xff]
    %v8618 = vld [vmem:[%s5573 + $0x112] sm:$0xff]
    %v8619 = vld [vmem:[%s5573 + $0x122] sm:$0xff]
    %v8620 = vld [vmem:[%s5573 + $0x12a] sm:$0xff]
    %v8621 = vld [vmem:[%s5573 + $0x13a] sm:$0xff]
    %v8622 = vld [vmem:[%s5573 + $0x142] sm:$0xff]
    %v8623 = vld [vmem:[%s5573 + $0x152] sm:$0xff]
    %v8624 = vld [vmem:[%s5573 + $0x15a] sm:$0xff]
    %v8625 = vld [vmem:[%s5573 + $0x16a] sm:$0xff]
    %v8626 = vld [vmem:[%s5573 + $0x172] sm:$0xff]
    %v8627 = vld [vmem:[%s5573 + $0x1b2] sm:$0xff]
    %v8628 = vld [vmem:[%s5573 + $0x1ba] sm:$0xff]
    %v8629 = vld [vmem:[%s5573 + $0x1ca] sm:$0xff]
    %v8630 = vld [vmem:[%s5573 + $0x1d2] sm:$0xff]
    %v8631 = vld [vmem:[%s5573 + $0x1e2] sm:$0xff]
    %v8632 = vld [vmem:[%s5573 + $0x1ea] sm:$0xff]
    %v8633 = vld [vmem:[%s5573 + $0x1fa] sm:$0xff]
    %v8634 = vld [vmem:[%s5573 + $0x202] sm:$0xff]
    %v8635 = vld [vmem:[%s5573 + $0x212] sm:$0xff]
    %v8636 = vld [vmem:[%s5573 + $0x21a] sm:$0xff]
    %v8637 = vld [vmem:[%s5573 + $0x22a] sm:$0xff]
    %v8638 = vld [vmem:[%s5573 + $0x232] sm:$0xff]
    %v8639 = vld [vmem:[%s5573 + $0x242] sm:$0xff]
    %v8640 = vld [vmem:[%s5573 + $0x24a] sm:$0xff]
    %v8641 = vld [vmem:[%s5573 + $0x25a] sm:$0xff]
    %v8642 = vld [vmem:[%s5573 + $0x262] sm:$0xff]
    %v8643 = vld [vmem:[%s5573 + $0x272] sm:$0xff]
    %v8644 = vld [vmem:[%s5573 + $0x27a] sm:$0xff]
    %v8645 = vld [vmem:[%s5573 + $0x28a] sm:$0xff]
    %v8646 = vld [vmem:[%s5573 + $0x292] sm:$0xff]
    %v8647 = vld [vmem:[%s5573 + $0x2a2] sm:$0xff]
    %v8648 = vld [vmem:[%s5573 + $0x2aa] sm:$0xff]
    %v8649 = vld [vmem:[%s5573 + $0x2ba] sm:$0xff]
    %v8650 = vld [vmem:[%s5573 + $0x2c2] sm:$0xff]
    %v8651 = vld [vmem:[%s5573 + $0x2d2] sm:$0xff]
    %v8652 = vld [vmem:[%s5573 + $0x2da] sm:$0xff]
    %v8653 = vld [vmem:[%s5573 + $0x2ea] sm:$0xff]
    %v8654 = vld [vmem:[%s5573 + $0x2f2] sm:$0xff]
    %v8655 = vld [vmem:[%s5573 + $0x302] sm:$0xff]
    %v8656 = vld [vmem:[%s5573 + $0x30a] sm:$0xff]
    %v8657 = vld [vmem:[%s5573 + $0x31a] sm:$0xff]
    %v8658 = vld [vmem:[%s5573 + $0x322] sm:$0xff]
    %v8659 = vld [vmem:[%s8264 + $0x2] sm:$0x1]
    %v8660 = vlaneseq
    %v8661 = vshrl.u32 %v8660, 7
    %v8662 = vsub.s32 0, %v8661
    %v8663 = vrot.slane %v8659, %v8662
    %v8664 = vmul.f32 %v8595, %v8663
    %v8665 = vmul.f32 %v8596, %v8663
    %v8666 = vmul.f32 %v8597, %v8663
    %v8667 = vmul.f32 %v8598, %v8663
    %v8668 = vmul.f32 %v8599, %v8663
    %v8669 = vmul.f32 %v8600, %v8663
    %v8670 = vmul.f32 %v8601, %v8663
    %v8671 = vmul.f32 %v8602, %v8663
    %v8672 = vmul.f32 %v8603, %v8663
    %v8673 = vmul.f32 %v8604, %v8663
    %v8674 = vmul.f32 %v8605, %v8663
    %v8675 = vmul.f32 %v8606, %v8663
    %v8676 = vmul.f32 %v8607, %v8663
    %v8677 = vmul.f32 %v8608, %v8663
    %v8678 = vmul.f32 %v8609, %v8663
    %v8679 = vmul.f32 %v8610, %v8663
    %v8680 = vmul.f32 %v8611, %v8663
    %v8681 = vmul.f32 %v8612, %v8663
    %v8682 = vmul.f32 %v8613, %v8663
    %v8683 = vmul.f32 %v8614, %v8663
    %v8684 = vmul.f32 %v8615, %v8663
    %v8685 = vmul.f32 %v8616, %v8663
    %v8686 = vmul.f32 %v8617, %v8663
    %v8687 = vmul.f32 %v8618, %v8663
    %v8688 = vmul.f32 %v8619, %v8663
    %v8689 = vmul.f32 %v8620, %v8663
    %v8690 = vmul.f32 %v8621, %v8663
    %v8691 = vmul.f32 %v8622, %v8663
    %v8692 = vmul.f32 %v8623, %v8663
    %v8693 = vmul.f32 %v8624, %v8663
    %v8694 = vmul.f32 %v8625, %v8663
    %v8695 = vmul.f32 %v8626, %v8663
    %v8696 = vmul.f32 %v8627, %v8663
    %v8697 = vmul.f32 %v8628, %v8663
    %v8698 = vmul.f32 %v8629, %v8663
    %v8699 = vmul.f32 %v8630, %v8663
    %v8700 = vmul.f32 %v8631, %v8663
    %v8701 = vmul.f32 %v8632, %v8663
    %v8702 = vmul.f32 %v8633, %v8663
    %v8703 = vmul.f32 %v8634, %v8663
    %v8704 = vmul.f32 %v8635, %v8663
    %v8705 = vmul.f32 %v8636, %v8663
    %v8706 = vmul.f32 %v8637, %v8663
    %v8707 = vmul.f32 %v8638, %v8663
    %v8708 = vmul.f32 %v8639, %v8663
    %v8709 = vmul.f32 %v8640, %v8663
    %v8710 = vmul.f32 %v8641, %v8663
    %v8711 = vmul.f32 %v8642, %v8663
    %v8712 = vmul.f32 %v8643, %v8663
    %v8713 = vmul.f32 %v8644, %v8663
    %v8714 = vmul.f32 %v8645, %v8663
    %v8715 = vmul.f32 %v8646, %v8663
    %v8716 = vmul.f32 %v8647, %v8663
    %v8717 = vmul.f32 %v8648, %v8663
    %v8718 = vmul.f32 %v8649, %v8663
    %v8719 = vmul.f32 %v8650, %v8663
    %v8720 = vmul.f32 %v8651, %v8663
    %v8721 = vmul.f32 %v8652, %v8663
    %v8722 = vmul.f32 %v8653, %v8663
    %v8723 = vmul.f32 %v8654, %v8663
    %v8724 = vmul.f32 %v8655, %v8663
    %v8725 = vmul.f32 %v8656, %v8663
    %v8726 = vmul.f32 %v8657, %v8663
    %v8727 = vmul.f32 %v8658, %v8663
    %v8728 = vadd.f32 %v8531, %v8664
    %v8729 = vadd.f32 %v8532, %v8665
    %v8730 = vadd.f32 %v8533, %v8666
    %v8731 = vadd.f32 %v8534, %v8667
    %v8732 = vadd.f32 %v8535, %v8668
    %v8733 = vadd.f32 %v8536, %v8669
    %v8734 = vadd.f32 %v8537, %v8670
    %v8735 = vadd.f32 %v8538, %v8671
    %v8736 = vadd.f32 %v8539, %v8672
    %v8737 = vadd.f32 %v8540, %v8673
    %v8738 = vadd.f32 %v8541, %v8674
    %v8739 = vadd.f32 %v8542, %v8675
    %v8740 = vadd.f32 %v8543, %v8676
    %v8741 = vadd.f32 %v8544, %v8677
    %v8742 = vadd.f32 %v8545, %v8678
    %v8743 = vadd.f32 %v8546, %v8679
    %v8744 = vadd.f32 %v8547, %v8680
    %v8745 = vadd.f32 %v8548, %v8681
    %v8746 = vadd.f32 %v8549, %v8682
    %v8747 = vadd.f32 %v8550, %v8683
    %v8748 = vadd.f32 %v8551, %v8684
    %v8749 = vadd.f32 %v8552, %v8685
    %v8750 = vadd.f32 %v8553, %v8686
    %v8751 = vadd.f32 %v8554, %v8687
    %v8752 = vadd.f32 %v8555, %v8688
    %v8753 = vadd.f32 %v8556, %v8689
    %v8754 = vadd.f32 %v8557, %v8690
    %v8755 = vadd.f32 %v8558, %v8691
    %v8756 = vadd.f32 %v8559, %v8692
    %v8757 = vadd.f32 %v8560, %v8693
    %v8758 = vadd.f32 %v8561, %v8694
    %v8759 = vadd.f32 %v8562, %v8695
    %v8760 = vadd.f32 %v8563, %v8696
    %v8761 = vadd.f32 %v8564, %v8697
    %v8762 = vadd.f32 %v8565, %v8698
    %v8763 = vadd.f32 %v8566, %v8699
    %v8764 = vadd.f32 %v8567, %v8700
    %v8765 = vadd.f32 %v8568, %v8701
    %v8766 = vadd.f32 %v8569, %v8702
    %v8767 = vadd.f32 %v8570, %v8703
    %v8768 = vadd.f32 %v8571, %v8704
    %v8769 = vadd.f32 %v8572, %v8705
    %v8770 = vadd.f32 %v8573, %v8706
    %v8771 = vadd.f32 %v8574, %v8707
    %v8772 = vadd.f32 %v8575, %v8708
    %v8773 = vadd.f32 %v8576, %v8709
    %v8774 = vadd.f32 %v8577, %v8710
    %v8775 = vadd.f32 %v8578, %v8711
    %v8776 = vadd.f32 %v8579, %v8712
    %v8777 = vadd.f32 %v8580, %v8713
    %v8778 = vadd.f32 %v8581, %v8714
    %v8779 = vadd.f32 %v8582, %v8715
    %v8780 = vadd.f32 %v8583, %v8716
    %v8781 = vadd.f32 %v8584, %v8717
    %v8782 = vadd.f32 %v8585, %v8718
    %v8783 = vadd.f32 %v8586, %v8719
    %v8784 = vadd.f32 %v8587, %v8720
    %v8785 = vadd.f32 %v8588, %v8721
    %v8786 = vadd.f32 %v8589, %v8722
    %v8787 = vadd.f32 %v8590, %v8723
    %v8788 = vadd.f32 %v8591, %v8724
    %v8789 = vadd.f32 %v8592, %v8725
    %v8790 = vadd.f32 %v8593, %v8726
    %v8791 = vadd.f32 %v8594, %v8727
    %v8792 = vld [vmem:[%s8] sm:$0x1]
    %v8794 = vlaneseq
    %v8795 = vshrl.u32 %v8794, 7
    %v8796 = vsub.s32 0, %v8795
    %v8797 = vrot.slane %v8792, %v8796
    %v8799 = vadd.f32 %v8728, %v8797
    %v8800 = vadd.f32 %v8729, %v8797
    %v8801 = vadd.f32 %v8730, %v8797
    %v8802 = vadd.f32 %v8731, %v8797
    %v8803 = vadd.f32 %v8732, %v8797
    %v8804 = vadd.f32 %v8733, %v8797
    %v8805 = vadd.f32 %v8734, %v8797
    %v8806 = vadd.f32 %v8735, %v8797
    %v8807 = vadd.f32 %v8736, %v8797
    %v8808 = vadd.f32 %v8737, %v8797
    %v8809 = vadd.f32 %v8738, %v8797
    %v8810 = vadd.f32 %v8739, %v8797
    %v8811 = vadd.f32 %v8740, %v8797
    %v8812 = vadd.f32 %v8741, %v8797
    %v8813 = vadd.f32 %v8742, %v8797
    %v8814 = vadd.f32 %v8743, %v8797
    %v8815 = vadd.f32 %v8744, %v8797
    %v8816 = vadd.f32 %v8745, %v8797
    %v8817 = vadd.f32 %v8746, %v8797
    %v8818 = vadd.f32 %v8747, %v8797
    %v8819 = vadd.f32 %v8748, %v8797
    %v8820 = vadd.f32 %v8749, %v8797
    %v8821 = vadd.f32 %v8750, %v8797
    %v8822 = vadd.f32 %v8751, %v8797
    %v8823 = vadd.f32 %v8752, %v8797
    %v8824 = vadd.f32 %v8753, %v8797
    %v8825 = vadd.f32 %v8754, %v8797
    %v8826 = vadd.f32 %v8755, %v8797
    %v8827 = vadd.f32 %v8756, %v8797
    %v8828 = vadd.f32 %v8757, %v8797
    %v8829 = vadd.f32 %v8758, %v8797
    %v8830 = vadd.f32 %v8759, %v8797
    %v8831 = vadd.f32 %v8760, %v8797
    %v8832 = vadd.f32 %v8761, %v8797
    %v8833 = vadd.f32 %v8762, %v8797
    %v8834 = vadd.f32 %v8763, %v8797
    %v8835 = vadd.f32 %v8764, %v8797
    %v8836 = vadd.f32 %v8765, %v8797
    %v8837 = vadd.f32 %v8766, %v8797
    %v8838 = vadd.f32 %v8767, %v8797
    %v8839 = vadd.f32 %v8768, %v8797
    %v8840 = vadd.f32 %v8769, %v8797
    %v8841 = vadd.f32 %v8770, %v8797
    %v8842 = vadd.f32 %v8771, %v8797
    %v8843 = vadd.f32 %v8772, %v8797
    %v8844 = vadd.f32 %v8773, %v8797
    %v8845 = vadd.f32 %v8774, %v8797
    %v8846 = vadd.f32 %v8775, %v8797
    %v8847 = vadd.f32 %v8776, %v8797
    %v8848 = vadd.f32 %v8777, %v8797
    %v8849 = vadd.f32 %v8778, %v8797
    %v8850 = vadd.f32 %v8779, %v8797
    %v8851 = vadd.f32 %v8780, %v8797
    %v8852 = vadd.f32 %v8781, %v8797
    %v8853 = vadd.f32 %v8782, %v8797
    %v8854 = vadd.f32 %v8783, %v8797
    %v8855 = vadd.f32 %v8784, %v8797
    %v8856 = vadd.f32 %v8785, %v8797
    %v8857 = vadd.f32 %v8786, %v8797
    %v8858 = vadd.f32 %v8787, %v8797
    %v8859 = vadd.f32 %v8788, %v8797
    %v8860 = vadd.f32 %v8789, %v8797
    %v8861 = vadd.f32 %v8790, %v8797
    %v8862 = vadd.f32 %v8791, %v8797
    %v8863 = vmax.f32 %v8799, 0.0
    %v8864 = vmax.f32 %v8800, 0.0
    %v8865 = vmax.f32 %v8801, 0.0
    %v8866 = vmax.f32 %v8802, 0.0
    %v8867 = vmax.f32 %v8803, 0.0
    %v8868 = vmax.f32 %v8804, 0.0
    %v8869 = vmax.f32 %v8805, 0.0
    %v8870 = vmax.f32 %v8806, 0.0
    %v8871 = vmax.f32 %v8807, 0.0
    %v8872 = vmax.f32 %v8808, 0.0
    %v8873 = vmax.f32 %v8809, 0.0
    %v8874 = vmax.f32 %v8810, 0.0
    %v8875 = vmax.f32 %v8811, 0.0
    %v8876 = vmax.f32 %v8812, 0.0
    %v8877 = vmax.f32 %v8813, 0.0
    %v8878 = vmax.f32 %v8814, 0.0
    %v8879 = vmax.f32 %v8815, 0.0
    %v8880 = vmax.f32 %v8816, 0.0
    %v8881 = vmax.f32 %v8817, 0.0
    %v8882 = vmax.f32 %v8818, 0.0
    %v8883 = vmax.f32 %v8819, 0.0
    %v8884 = vmax.f32 %v8820, 0.0
    %v8885 = vmax.f32 %v8821, 0.0
    %v8886 = vmax.f32 %v8822, 0.0
    %v8887 = vmax.f32 %v8823, 0.0
    %v8888 = vmax.f32 %v8824, 0.0
    %v8889 = vmax.f32 %v8825, 0.0
    %v8890 = vmax.f32 %v8826, 0.0
    %v8891 = vmax.f32 %v8827, 0.0
    %v8892 = vmax.f32 %v8828, 0.0
    %v8893 = vmax.f32 %v8829, 0.0
    %v8894 = vmax.f32 %v8830, 0.0
    %v8895 = vmax.f32 %v8831, 0.0
    %v8896 = vmax.f32 %v8832, 0.0
    %v8897 = vmax.f32 %v8833, 0.0
    %v8898 = vmax.f32 %v8834, 0.0
    %v8899 = vmax.f32 %v8835, 0.0
    %v8900 = vmax.f32 %v8836, 0.0
    %v8901 = vmax.f32 %v8837, 0.0
    %v8902 = vmax.f32 %v8838, 0.0
    %v8903 = vmax.f32 %v8839, 0.0
    %v8904 = vmax.f32 %v8840, 0.0
    %v8905 = vmax.f32 %v8841, 0.0
    %v8906 = vmax.f32 %v8842, 0.0
    %v8907 = vmax.f32 %v8843, 0.0
    %v8908 = vmax.f32 %v8844, 0.0
    %v8909 = vmax.f32 %v8845, 0.0
    %v8910 = vmax.f32 %v8846, 0.0
    %v8911 = vmax.f32 %v8847, 0.0
    %v8912 = vmax.f32 %v8848, 0.0
    %v8913 = vmax.f32 %v8849, 0.0
    %v8914 = vmax.f32 %v8850, 0.0
    %v8915 = vmax.f32 %v8851, 0.0
    %v8916 = vmax.f32 %v8852, 0.0
    %v8917 = vmax.f32 %v8853, 0.0
    %v8918 = vmax.f32 %v8854, 0.0
    %v8919 = vmax.f32 %v8855, 0.0
    %v8920 = vmax.f32 %v8856, 0.0
    %v8921 = vmax.f32 %v8857, 0.0
    %v8922 = vmax.f32 %v8858, 0.0
    %v8923 = vmax.f32 %v8859, 0.0
    %v8924 = vmax.f32 %v8860, 0.0
    %v8925 = vmax.f32 %v8861, 0.0
    %v8926 = vmax.f32 %v8862, 0.0
    %v8927 = vld [vmem:[%s9] sm:$0xff]
    %v8928 = vld [vmem:[%s9 + $0x8] sm:$0xff]
    %v8929 = vld [vmem:[%s9 + $0x10] sm:$0xff]
    %v8930 = vld [vmem:[%s9 + $0x18] sm:$0xff]
    %v8931 = vld [vmem:[%s10] sm:$0x1]
    %v8933 = vlaneseq
    %v8934 = vshrl.u32 %v8933, 7
    %v8935 = vsub.s32 0, %v8934
    %v8936 = vrot.slane %v8931, %v8935
    %v8939 = vsel %vm155, %v8863, 0
    %v8942 = vsel %vm155, %v8864, 0
    %v8945 = vsel %vm155, %v8865, 0
    %v8948 = vsel %vm155, %v8866, 0
    %v8951 = vsel %vm155, %v8867, 0
    %v8954 = vsel %vm155, %v8868, 0
    %v8957 = vsel %vm155, %v8869, 0
    %v8960 = vsel %vm155, %v8870, 0
    %v8963 = vsel %vm155, %v8871, 0
    %v8966 = vsel %vm155, %v8872, 0
    %v8969 = vsel %vm155, %v8873, 0
    %v8972 = vsel %vm155, %v8874, 0
    %v8975 = vsel %vm155, %v8875, 0
    %v8978 = vsel %vm155, %v8876, 0
    %v8981 = vsel %vm155, %v8877, 0
    %v8984 = vsel %vm155, %v8878, 0
    %v8987 = vsel %vm155, %v8879, 0
    %v8990 = vsel %vm155, %v8880, 0
    %v8993 = vsel %vm155, %v8881, 0
    %v8996 = vsel %vm155, %v8882, 0
    %v8999 = vsel %vm155, %v8883, 0
    %v9002 = vsel %vm155, %v8884, 0
    %v9005 = vsel %vm155, %v8885, 0
    %v9008 = vsel %vm155, %v8886, 0
    %v9011 = vsel %vm155, %v8887, 0
    %v9014 = vsel %vm155, %v8888, 0
    %v9017 = vsel %vm155, %v8889, 0
    %v9020 = vsel %vm155, %v8890, 0
    %v9023 = vsel %vm155, %v8891, 0
    %v9026 = vsel %vm155, %v8892, 0
    %v9029 = vsel %vm155, %v8893, 0
    %v9032 = vsel %vm155, %v8894, 0
    %v9035 = vsel %vm155, %v8895, 0
    %v9038 = vsel %vm155, %v8896, 0
    %v9041 = vsel %vm155, %v8897, 0
    %v9044 = vsel %vm155, %v8898, 0
    %v9047 = vsel %vm155, %v8899, 0
    %v9050 = vsel %vm155, %v8900, 0
    %v9053 = vsel %vm155, %v8901, 0
    %v9056 = vsel %vm155, %v8902, 0
    %v9059 = vsel %vm155, %v8903, 0
    %v9062 = vsel %vm155, %v8904, 0
    %v9065 = vsel %vm155, %v8905, 0
    %v9068 = vsel %vm155, %v8906, 0
    %v9071 = vsel %vm155, %v8907, 0
    %v9074 = vsel %vm155, %v8908, 0
    %v9077 = vsel %vm155, %v8909, 0
    %v9080 = vsel %vm155, %v8910, 0
    %v9083 = vsel %vm155, %v8911, 0
    %v9086 = vsel %vm155, %v8912, 0
    %v9089 = vsel %vm155, %v8913, 0
    %v9092 = vsel %vm155, %v8914, 0
    %v9095 = vsel %vm155, %v8915, 0
    %v9098 = vsel %vm155, %v8916, 0
    %v9101 = vsel %vm155, %v8917, 0
    %v9104 = vsel %vm155, %v8918, 0
    %v9107 = vsel %vm155, %v8919, 0
    %v9110 = vsel %vm155, %v8920, 0
    %v9113 = vsel %vm155, %v8921, 0
    %v9116 = vsel %vm155, %v8922, 0
    %v9119 = vsel %vm155, %v8923, 0
    %v9122 = vsel %vm155, %v8924, 0
    %v9125 = vsel %vm155, %v8925, 0
    %v9128 = vsel %vm155, %v8926, 0
    %9130 = vmatprep.subr.mxu0 0.0
    %9131 = vmatpush1.msra.mxu0 %v8927
    %9132 = vmatprep.subr.mxu0 0.0
    %9133 = vmatpush1.msra.mxu0 %v8928
    %9134 = vmatprep.subr.mxu0 0.0
    %9135 = vmatpush1.msra.mxu0 %v8929
    %9136 = vmatprep.subr.mxu0 0.0
    %9137 = vmatpush1.msra.mxu0 %v8930
    %9138 = vmatprep.subr.mxu0 0.0
    %9139 = vmatpush1.msra.mxu0 0.0
    %9140 = vmatprep.subr.mxu0 0.0
    %9141 = vmatpush1.msra.mxu0 0.0
    %9142 = vmatprep.subr.mxu0 0.0
    %9143 = vmatpush1.msra.mxu0 0.0
    %9144 = vmatprep.subr.mxu0 0.0
    %9145 = vmatpush1.msra.mxu0 0.0
    %9146 = vmatprep.subr.mxu0 0.0
    %9147 = vmatpush1.msra.mxu0 0.0
    %9148 = vmatprep.subr.mxu0 0.0
    %9149 = vmatpush1.msra.mxu0 0.0
    %9150 = vmatprep.subr.mxu0 0.0
    %9151 = vmatpush1.msra.mxu0 0.0
    %9152 = vmatprep.subr.mxu0 0.0
    %9153 = vmatpush1.msra.mxu0 0.0
    %9154 = vmatprep.subr.mxu0 0.0
    %9155 = vmatpush1.msra.mxu0 0.0
    %9156 = vmatprep.subr.mxu0 0.0
    %9157 = vmatpush1.msra.mxu0 0.0
    %9158 = vmatprep.subr.mxu0 0.0
    %9159 = vmatpush1.msra.mxu0 0.0
    %9160 = vmatprep.subr.mxu0 0.0
    %9161 = vmatpush1.msra.mxu0 0.0
    %9162 = vmatprep.subr.mxu0 0.0
    %9163 = vmatpush1.msra.mxu0 0.0
    %9164 = vmatprep.subr.mxu0 0.0
    %9165 = vmatpush1.msra.mxu0 0.0
    %9166 = vmatprep.subr.mxu0 0.0
    %9167 = vmatpush1.msra.mxu0 0.0
    %9168 = vmatprep.subr.mxu0 0.0
    %9169 = vmatpush1.msra.mxu0 0.0
    %9170 = vmatprep.subr.mxu0 0.0
    %9171 = vmatpush1.msra.mxu0 0.0
    %9172 = vmatprep.subr.mxu0 0.0
    %9173 = vmatpush1.msra.mxu0 0.0
    %9174 = vmatprep.subr.mxu0 0.0
    %9175 = vmatpush1.msra.mxu0 0.0
    %9176 = vmatprep.subr.mxu0 0.0
    %9177 = vmatpush1.msra.mxu0 0.0
    %9178 = vmatprep.subr.mxu0 0.0
    %9179 = vmatpush1.msra.mxu0 0.0
    %9180 = vmatprep.subr.mxu0 0.0
    %9181 = vmatpush1.msra.mxu0 0.0
    %9182 = vmatprep.subr.mxu0 0.0
    %9183 = vmatpush1.msra.mxu0 0.0
    %9184 = vmatprep.subr.mxu0 0.0
    %9185 = vmatpush1.msra.mxu0 0.0
    %9186 = vmatprep.subr.mxu0 0.0
    %9187 = vmatpush1.msra.mxu0 0.0
    %9188 = vmatprep.subr.mxu0 0.0
    %9189 = vmatpush1.msra.mxu0 0.0
    %9190 = vmatprep.subr.mxu0 0.0
    %9191 = vmatpush1.msra.mxu0 0.0
    %9192 = vmatprep.subr.mxu0 0.0
    %9193 = vmatpush1.msra.mxu0 0.0
    %9194 = vmatprep.mubr.f32.mxu0 0.0
    %9195 = vmatmul.mubr.f32.gmra.mrb[0].mxu0 %v8939
    %v9196 = vpop.f32.mrb[0].mxu0
    %v9197 = vadd.f32 %v8936, %v9196
    %v9198 = vpop.f32.mrb[0].mxu0
    %9199 = vmatprep.mubr.f32.mxu0 0.0
    %9200 = vmatmul.mubr.f32.gmra.mrb[0].mxu0 %v8942
    %v9201 = vpop.f32.mrb[0].mxu0
    %v9202 = vadd.f32 %v8936, %v9201
    %v9203 = vpop.f32.mrb[0].mxu0
    %9204 = vmatprep.mubr.f32.mxu0 0.0
    %9205 = vmatmul.mubr.f32.gmra.mrb[0].mxu0 %v8945
    %v9206 = vpop.f32.mrb[0].mxu0
    %v9207 = vadd.f32 %v8936, %v9206
    %v9208 = vpop.f32.mrb[0].mxu0
    %9209 = vmatprep.mubr.f32.mxu0 0.0
    %9210 = vmatmul.mubr.f32.gmra.mrb[0].mxu0 %v8948
    %v9211 = vpop.f32.mrb[0].mxu0
    %v9212 = vadd.f32 %v8936, %v9211
    %v9213 = vpop.f32.mrb[0].mxu0
    %9214 = vmatprep.mubr.f32.mxu0 0.0
    %9215 = vmatmul.mubr.f32.gmra.mrb[0].mxu0 %v8951
    %v9216 = vpop.f32.mrb[0].mxu0
    %v9217 = vadd.f32 %v8936, %v9216
    %v9218 = vpop.f32.mrb[0].mxu0
    %9219 = vmatprep.mubr.f32.mxu0 0.0
    %9220 = vmatmul.mubr.f32.gmra.mrb[0].mxu0 %v8954
    %v9221 = vpop.f32.mrb[0].mxu0
    %v9222 = vadd.f32 %v8936, %v9221
    %v9223 = vpop.f32.mrb[0].mxu0
    %9224 = vmatprep.mubr.f32.mxu0 0.0
    %9225 = vmatmul.mubr.f32.gmra.mrb[0].mxu0 %v8957
    %v9226 = vpop.f32.mrb[0].mxu0
    %v9227 = vadd.f32 %v8936, %v9226
    %v9228 = vpop.f32.mrb[0].mxu0
    %9229 = vmatprep.mubr.f32.mxu0 0.0
    %9230 = vmatmul.mubr.f32.gmra.mrb[0].mxu0 %v8960
    %v9231 = vpop.f32.mrb[0].mxu0
    %v9232 = vadd.f32 %v8936, %v9231
    %v9233 = vpop.f32.mrb[0].mxu0
    %9234 = vmatprep.mubr.f32.mxu0 0.0
    %9235 = vmatmul.mubr.f32.gmra.mrb[0].mxu0 %v8963
    %v9236 = vpop.f32.mrb[0].mxu0
    %v9237 = vadd.f32 %v8936, %v9236
    %v9238 = vpop.f32.mrb[0].mxu0
    %9239 = vmatprep.mubr.f32.mxu0 0.0
    %9240 = vmatmul.mubr.f32.gmra.mrb[0].mxu0 %v8966
    %v9241 = vpop.f32.mrb[0].mxu0
    %v9242 = vadd.f32 %v8936, %v9241
    %v9243 = vpop.f32.mrb[0].mxu0
    %9244 = vmatprep.mubr.f32.mxu0 0.0
    %9245 = vmatmul.mubr.f32.gmra.mrb[0].mxu0 %v8969
    %v9246 = vpop.f32.mrb[0].mxu0
    %v9247 = vadd.f32 %v8936, %v9246
    %v9248 = vpop.f32.mrb[0].mxu0
    %9249 = vmatprep.mubr.f32.mxu0 0.0
    %9250 = vmatmul.mubr.f32.gmra.mrb[0].mxu0 %v8972
    %v9251 = vpop.f32.mrb[0].mxu0
    %v9252 = vadd.f32 %v8936, %v9251
    %v9253 = vpop.f32.mrb[0].mxu0
    %9254 = vmatprep.mubr.f32.mxu0 0.0
    %9255 = vmatmul.mubr.f32.gmra.mrb[0].mxu0 %v8975
    %v9256 = vpop.f32.mrb[0].mxu0
    %v9257 = vadd.f32 %v8936, %v9256
    %v9258 = vpop.f32.mrb[0].mxu0
    %9259 = vmatprep.mubr.f32.mxu0 0.0
    %9260 = vmatmul.mubr.f32.gmra.mrb[0].mxu0 %v8978
    %v9261 = vpop.f32.mrb[0].mxu0
    %v9262 = vadd.f32 %v8936, %v9261
    %v9263 = vpop.f32.mrb[0].mxu0
    %9264 = vmatprep.mubr.f32.mxu0 0.0
    %9265 = vmatmul.mubr.f32.gmra.mrb[0].mxu0 %v8981
    %v9266 = vpop.f32.mrb[0].mxu0
    %v9267 = vadd.f32 %v8936, %v9266
    %v9268 = vpop.f32.mrb[0].mxu0
    %9269 = vmatprep.mubr.f32.mxu0 0.0
    %9270 = vmatmul.mubr.f32.gmra.mrb[0].mxu0 %v8984
    %v9271 = vpop.f32.mrb[0].mxu0
    %v9272 = vadd.f32 %v8936, %v9271
    %v9273 = vpop.f32.mrb[0].mxu0
    %9274 = vmatprep.mubr.f32.mxu0 0.0
    %9275 = vmatmul.mubr.f32.gmra.mrb[0].mxu0 %v8987
    %v9276 = vpop.f32.mrb[0].mxu0
    %v9277 = vadd.f32 %v8936, %v9276
    %v9278 = vpop.f32.mrb[0].mxu0
    %9279 = vmatprep.mubr.f32.mxu0 0.0
    %9280 = vmatmul.mubr.f32.gmra.mrb[0].mxu0 %v8990
    %v9281 = vpop.f32.mrb[0].mxu0
    %v9282 = vadd.f32 %v8936, %v9281
    %v9283 = vpop.f32.mrb[0].mxu0
    %9284 = vmatprep.mubr.f32.mxu0 0.0
    %9285 = vmatmul.mubr.f32.gmra.mrb[0].mxu0 %v8993
    %v9286 = vpop.f32.mrb[0].mxu0
    %v9287 = vadd.f32 %v8936, %v9286
    %v9288 = vpop.f32.mrb[0].mxu0
    %9289 = vmatprep.mubr.f32.mxu0 0.0
    %9290 = vmatmul.mubr.f32.gmra.mrb[0].mxu0 %v8996
    %v9291 = vpop.f32.mrb[0].mxu0
    %v9292 = vadd.f32 %v8936, %v9291
    %v9293 = vpop.f32.mrb[0].mxu0
    %9294 = vmatprep.mubr.f32.mxu0 0.0
    %9295 = vmatmul.mubr.f32.gmra.mrb[0].mxu0 %v8999
    %v9296 = vpop.f32.mrb[0].mxu0
    %v9297 = vadd.f32 %v8936, %v9296
    %v9298 = vpop.f32.mrb[0].mxu0
    %9299 = vmatprep.mubr.f32.mxu0 0.0
    %9300 = vmatmul.mubr.f32.gmra.mrb[0].mxu0 %v9002
    %v9301 = vpop.f32.mrb[0].mxu0
    %v9302 = vadd.f32 %v8936, %v9301
    %v9303 = vpop.f32.mrb[0].mxu0
    %9304 = vmatprep.mubr.f32.mxu0 0.0
    %9305 = vmatmul.mubr.f32.gmra.mrb[0].mxu0 %v9005
    %v9306 = vpop.f32.mrb[0].mxu0
    %v9307 = vadd.f32 %v8936, %v9306
    %v9308 = vpop.f32.mrb[0].mxu0
    %9309 = vmatprep.mubr.f32.mxu0 0.0
    %9310 = vmatmul.mubr.f32.gmra.mrb[0].mxu0 %v9008
    %v9311 = vpop.f32.mrb[0].mxu0
    %v9312 = vadd.f32 %v8936, %v9311
    %v9313 = vpop.f32.mrb[0].mxu0
    %9314 = vmatprep.mubr.f32.mxu0 0.0
    %9315 = vmatmul.mubr.f32.gmra.mrb[0].mxu0 %v9011
    %v9316 = vpop.f32.mrb[0].mxu0
    %v9317 = vadd.f32 %v8936, %v9316
    %v9318 = vpop.f32.mrb[0].mxu0
    %9319 = vmatprep.mubr.f32.mxu0 0.0
    %9320 = vmatmul.mubr.f32.gmra.mrb[0].mxu0 %v9014
    %v9321 = vpop.f32.mrb[0].mxu0
    %v9322 = vadd.f32 %v8936, %v9321
    %v9323 = vpop.f32.mrb[0].mxu0
    %9324 = vmatprep.mubr.f32.mxu0 0.0
    %9325 = vmatmul.mubr.f32.gmra.mrb[0].mxu0 %v9017
    %v9326 = vpop.f32.mrb[0].mxu0
    %v9327 = vadd.f32 %v8936, %v9326
    %v9328 = vpop.f32.mrb[0].mxu0
    %9329 = vmatprep.mubr.f32.mxu0 0.0
    %9330 = vmatmul.mubr.f32.gmra.mrb[0].mxu0 %v9020
    %v9331 = vpop.f32.mrb[0].mxu0
    %v9332 = vadd.f32 %v8936, %v9331
    %v9333 = vpop.f32.mrb[0].mxu0
    %9334 = vmatprep.mubr.f32.mxu0 0.0
    %9335 = vmatmul.mubr.f32.gmra.mrb[0].mxu0 %v9023
    %v9336 = vpop.f32.mrb[0].mxu0
    %v9337 = vadd.f32 %v8936, %v9336
    %v9338 = vpop.f32.mrb[0].mxu0
    %9339 = vmatprep.mubr.f32.mxu0 0.0
    %9340 = vmatmul.mubr.f32.gmra.mrb[0].mxu0 %v9026
    %v9341 = vpop.f32.mrb[0].mxu0
    %v9342 = vadd.f32 %v8936, %v9341
    %v9343 = vpop.f32.mrb[0].mxu0
    %9344 = vmatprep.mubr.f32.mxu0 0.0
    %9345 = vmatmul.mubr.f32.gmra.mrb[0].mxu0 %v9029
    %v9346 = vpop.f32.mrb[0].mxu0
    %v9347 = vadd.f32 %v8936, %v9346
    %v9348 = vpop.f32.mrb[0].mxu0
    %9349 = vmatprep.mubr.f32.mxu0 0.0
    %9350 = vmatmul.mubr.f32.gmra.mrb[0].mxu0 %v9032
    %v9351 = vpop.f32.mrb[0].mxu0
    %v9352 = vadd.f32 %v8936, %v9351
    %v9353 = vpop.f32.mrb[0].mxu0
    %9354 = vmatprep.mubr.f32.mxu0 0.0
    %9355 = vmatmul.mubr.f32.gmra.mrb[0].mxu0 %v9035
    %v9356 = vpop.f32.mrb[0].mxu0
    %v9357 = vadd.f32 %v8936, %v9356
    %v9358 = vpop.f32.mrb[0].mxu0
    %9359 = vmatprep.mubr.f32.mxu0 0.0
    %9360 = vmatmul.mubr.f32.gmra.mrb[0].mxu0 %v9038
    %v9361 = vpop.f32.mrb[0].mxu0
    %v9362 = vadd.f32 %v8936, %v9361
    %v9363 = vpop.f32.mrb[0].mxu0
    %9364 = vmatprep.mubr.f32.mxu0 0.0
    %9365 = vmatmul.mubr.f32.gmra.mrb[0].mxu0 %v9041
    %v9366 = vpop.f32.mrb[0].mxu0
    %v9367 = vadd.f32 %v8936, %v9366
    %v9368 = vpop.f32.mrb[0].mxu0
    %9369 = vmatprep.mubr.f32.mxu0 0.0
    %9370 = vmatmul.mubr.f32.gmra.mrb[0].mxu0 %v9044
    %v9371 = vpop.f32.mrb[0].mxu0
    %v9372 = vadd.f32 %v8936, %v9371
    %v9373 = vpop.f32.mrb[0].mxu0
    %9374 = vmatprep.mubr.f32.mxu0 0.0
    %9375 = vmatmul.mubr.f32.gmra.mrb[0].mxu0 %v9047
    %v9376 = vpop.f32.mrb[0].mxu0
    %v9377 = vadd.f32 %v8936, %v9376
    %v9378 = vpop.f32.mrb[0].mxu0
    %9379 = vmatprep.mubr.f32.mxu0 0.0
    %9380 = vmatmul.mubr.f32.gmra.mrb[0].mxu0 %v9050
    %v9381 = vpop.f32.mrb[0].mxu0
    %v9382 = vadd.f32 %v8936, %v9381
    %v9383 = vpop.f32.mrb[0].mxu0
    %9384 = vmatprep.mubr.f32.mxu0 0.0
    %9385 = vmatmul.mubr.f32.gmra.mrb[0].mxu0 %v9053
    %v9386 = vpop.f32.mrb[0].mxu0
    %v9387 = vadd.f32 %v8936, %v9386
    %v9388 = vpop.f32.mrb[0].mxu0
    %9389 = vmatprep.mubr.f32.mxu0 0.0
    %9390 = vmatmul.mubr.f32.gmra.mrb[0].mxu0 %v9056
    %v9391 = vpop.f32.mrb[0].mxu0
    %v9392 = vadd.f32 %v8936, %v9391
    %v9393 = vpop.f32.mrb[0].mxu0
    %9394 = vmatprep.mubr.f32.mxu0 0.0
    %9395 = vmatmul.mubr.f32.gmra.mrb[0].mxu0 %v9059
    %v9396 = vpop.f32.mrb[0].mxu0
    %v9397 = vadd.f32 %v8936, %v9396
    %v9398 = vpop.f32.mrb[0].mxu0
    %9399 = vmatprep.mubr.f32.mxu0 0.0
    %9400 = vmatmul.mubr.f32.gmra.mrb[0].mxu0 %v9062
    %v9401 = vpop.f32.mrb[0].mxu0
    %v9402 = vadd.f32 %v8936, %v9401
    %v9403 = vpop.f32.mrb[0].mxu0
    %9404 = vmatprep.mubr.f32.mxu0 0.0
    %9405 = vmatmul.mubr.f32.gmra.mrb[0].mxu0 %v9065
    %v9406 = vpop.f32.mrb[0].mxu0
    %v9407 = vadd.f32 %v8936, %v9406
    %v9408 = vpop.f32.mrb[0].mxu0
    %9409 = vmatprep.mubr.f32.mxu0 0.0
    %9410 = vmatmul.mubr.f32.gmra.mrb[0].mxu0 %v9068
    %v9411 = vpop.f32.mrb[0].mxu0
    %v9412 = vadd.f32 %v8936, %v9411
    %v9413 = vpop.f32.mrb[0].mxu0
    %9414 = vmatprep.mubr.f32.mxu0 0.0
    %9415 = vmatmul.mubr.f32.gmra.mrb[0].mxu0 %v9071
    %v9416 = vpop.f32.mrb[0].mxu0
    %v9417 = vadd.f32 %v8936, %v9416
    %v9418 = vpop.f32.mrb[0].mxu0
    %9419 = vmatprep.mubr.f32.mxu0 0.0
    %9420 = vmatmul.mubr.f32.gmra.mrb[0].mxu0 %v9074
    %v9421 = vpop.f32.mrb[0].mxu0
    %v9422 = vadd.f32 %v8936, %v9421
    %v9423 = vpop.f32.mrb[0].mxu0
    %9424 = vmatprep.mubr.f32.mxu0 0.0
    %9425 = vmatmul.mubr.f32.gmra.mrb[0].mxu0 %v9077
    %v9426 = vpop.f32.mrb[0].mxu0
    %v9427 = vadd.f32 %v8936, %v9426
    %v9428 = vpop.f32.mrb[0].mxu0
    %9429 = vmatprep.mubr.f32.mxu0 0.0
    %9430 = vmatmul.mubr.f32.gmra.mrb[0].mxu0 %v9080
    %v9431 = vpop.f32.mrb[0].mxu0
    %v9432 = vadd.f32 %v8936, %v9431
    %v9433 = vpop.f32.mrb[0].mxu0
    %9434 = vmatprep.mubr.f32.mxu0 0.0
    %9435 = vmatmul.mubr.f32.gmra.mrb[0].mxu0 %v9083
    %v9436 = vpop.f32.mrb[0].mxu0
    %v9437 = vadd.f32 %v8936, %v9436
    %v9438 = vpop.f32.mrb[0].mxu0
    %9439 = vmatprep.mubr.f32.mxu0 0.0
    %9440 = vmatmul.mubr.f32.gmra.mrb[0].mxu0 %v9086
    %v9441 = vpop.f32.mrb[0].mxu0
    %v9442 = vadd.f32 %v8936, %v9441
    %v9443 = vpop.f32.mrb[0].mxu0
    %9444 = vmatprep.mubr.f32.mxu0 0.0
    %9445 = vmatmul.mubr.f32.gmra.mrb[0].mxu0 %v9089
    %v9446 = vpop.f32.mrb[0].mxu0
    %v9447 = vadd.f32 %v8936, %v9446
    %v9448 = vpop.f32.mrb[0].mxu0
    %9449 = vmatprep.mubr.f32.mxu0 0.0
    %9450 = vmatmul.mubr.f32.gmra.mrb[0].mxu0 %v9092
    %v9451 = vpop.f32.mrb[0].mxu0
    %v9452 = vadd.f32 %v8936, %v9451
    %v9453 = vpop.f32.mrb[0].mxu0
    %9454 = vmatprep.mubr.f32.mxu0 0.0
    %9455 = vmatmul.mubr.f32.gmra.mrb[0].mxu0 %v9095
    %v9456 = vpop.f32.mrb[0].mxu0
    %v9457 = vadd.f32 %v8936, %v9456
    %v9458 = vpop.f32.mrb[0].mxu0
    %9459 = vmatprep.mubr.f32.mxu0 0.0
    %9460 = vmatmul.mubr.f32.gmra.mrb[0].mxu0 %v9098
    %v9461 = vpop.f32.mrb[0].mxu0
    %v9462 = vadd.f32 %v8936, %v9461
    %v9463 = vpop.f32.mrb[0].mxu0
    %9464 = vmatprep.mubr.f32.mxu0 0.0
    %9465 = vmatmul.mubr.f32.gmra.mrb[0].mxu0 %v9101
    %v9466 = vpop.f32.mrb[0].mxu0
    %v9467 = vadd.f32 %v8936, %v9466
    %v9468 = vpop.f32.mrb[0].mxu0
    %9469 = vmatprep.mubr.f32.mxu0 0.0
    %9470 = vmatmul.mubr.f32.gmra.mrb[0].mxu0 %v9104
    %v9471 = vpop.f32.mrb[0].mxu0
    %v9472 = vadd.f32 %v8936, %v9471
    %v9473 = vpop.f32.mrb[0].mxu0
    %9474 = vmatprep.mubr.f32.mxu0 0.0
    %9475 = vmatmul.mubr.f32.gmra.mrb[0].mxu0 %v9107
    %v9476 = vpop.f32.mrb[0].mxu0
    %v9477 = vadd.f32 %v8936, %v9476
    %v9478 = vpop.f32.mrb[0].mxu0
    %9479 = vmatprep.mubr.f32.mxu0 0.0
    %9480 = vmatmul.mubr.f32.gmra.mrb[0].mxu0 %v9110
    %v9481 = vpop.f32.mrb[0].mxu0
    %v9482 = vadd.f32 %v8936, %v9481
    %v9483 = vpop.f32.mrb[0].mxu0
    %9484 = vmatprep.mubr.f32.mxu0 0.0
    %9485 = vmatmul.mubr.f32.gmra.mrb[0].mxu0 %v9113
    %v9486 = vpop.f32.mrb[0].mxu0
    %v9487 = vadd.f32 %v8936, %v9486
    %v9488 = vpop.f32.mrb[0].mxu0
    %9489 = vmatprep.mubr.f32.mxu0 0.0
    %9490 = vmatmul.mubr.f32.gmra.mrb[0].mxu0 %v9116
    %v9491 = vpop.f32.mrb[0].mxu0
    %v9492 = vadd.f32 %v8936, %v9491
    %v9493 = vpop.f32.mrb[0].mxu0
    %9494 = vmatprep.mubr.f32.mxu0 0.0
    %9495 = vmatmul.mubr.f32.gmra.mrb[0].mxu0 %v9119
    %v9496 = vpop.f32.mrb[0].mxu0
    %v9497 = vadd.f32 %v8936, %v9496
    %v9498 = vpop.f32.mrb[0].mxu0
    %9499 = vmatprep.mubr.f32.mxu0 0.0
    %9500 = vmatmul.mubr.f32.gmra.mrb[0].mxu0 %v9122
    %v9501 = vpop.f32.mrb[0].mxu0
    %v9502 = vadd.f32 %v8936, %v9501
    %v9503 = vpop.f32.mrb[0].mxu0
    %9504 = vmatprep.mubr.f32.mxu0 0.0
    %9505 = vmatmul.mubr.f32.gmra.mrb[0].mxu0 %v9125
    %v9506 = vpop.f32.mrb[0].mxu0
    %v9507 = vadd.f32 %v8936, %v9506
    %v9508 = vpop.f32.mrb[0].mxu0
    %9509 = vmatprep.mubr.f32.mxu0 0.0
    %9510 = vmatmul.mubr.f32.gmra.mrb[0].mxu0 %v9128
    %v9511 = vpop.f32.mrb[0].mxu0
    %v9512 = vadd.f32 %v8936, %v9511
    %v9513 = vpop.f32.mrb[0].mxu0
    %9514 = vdwg.mxu0
    %v9515 = vmax.f32 %v9197, 0.0
    %v9516 = vmax.f32 %v9202, 0.0
    %v9517 = vmax.f32 %v9207, 0.0
    %v9518 = vmax.f32 %v9212, 0.0
    %v9519 = vmax.f32 %v9217, 0.0
    %v9520 = vmax.f32 %v9222, 0.0
    %v9521 = vmax.f32 %v9227, 0.0
    %v9522 = vmax.f32 %v9232, 0.0
    %v9523 = vmax.f32 %v9237, 0.0
    %v9524 = vmax.f32 %v9242, 0.0
    %v9525 = vmax.f32 %v9247, 0.0
    %v9526 = vmax.f32 %v9252, 0.0
    %v9527 = vmax.f32 %v9257, 0.0
    %v9528 = vmax.f32 %v9262, 0.0
    %v9529 = vmax.f32 %v9267, 0.0
    %v9530 = vmax.f32 %v9272, 0.0
    %v9531 = vmax.f32 %v9277, 0.0
    %v9532 = vmax.f32 %v9282, 0.0
    %v9533 = vmax.f32 %v9287, 0.0
    %v9534 = vmax.f32 %v9292, 0.0
    %v9535 = vmax.f32 %v9297, 0.0
    %v9536 = vmax.f32 %v9302, 0.0
    %v9537 = vmax.f32 %v9307, 0.0
    %v9538 = vmax.f32 %v9312, 0.0
    %v9539 = vmax.f32 %v9317, 0.0
    %v9540 = vmax.f32 %v9322, 0.0
    %v9541 = vmax.f32 %v9327, 0.0
    %v9542 = vmax.f32 %v9332, 0.0
    %v9543 = vmax.f32 %v9337, 0.0
    %v9544 = vmax.f32 %v9342, 0.0
    %v9545 = vmax.f32 %v9347, 0.0
    %v9546 = vmax.f32 %v9352, 0.0
    %v9547 = vmax.f32 %v9357, 0.0
    %v9548 = vmax.f32 %v9362, 0.0
    %v9549 = vmax.f32 %v9367, 0.0
    %v9550 = vmax.f32 %v9372, 0.0
    %v9551 = vmax.f32 %v9377, 0.0
    %v9552 = vmax.f32 %v9382, 0.0
    %v9553 = vmax.f32 %v9387, 0.0
    %v9554 = vmax.f32 %v9392, 0.0
    %v9555 = vmax.f32 %v9397, 0.0
    %v9556 = vmax.f32 %v9402, 0.0
    %v9557 = vmax.f32 %v9407, 0.0
    %v9558 = vmax.f32 %v9412, 0.0
    %v9559 = vmax.f32 %v9417, 0.0
    %v9560 = vmax.f32 %v9422, 0.0
    %v9561 = vmax.f32 %v9427, 0.0
    %v9562 = vmax.f32 %v9432, 0.0
    %v9563 = vmax.f32 %v9437, 0.0
    %v9564 = vmax.f32 %v9442, 0.0
    %v9565 = vmax.f32 %v9447, 0.0
    %v9566 = vmax.f32 %v9452, 0.0
    %v9567 = vmax.f32 %v9457, 0.0
    %v9568 = vmax.f32 %v9462, 0.0
    %v9569 = vmax.f32 %v9467, 0.0
    %v9570 = vmax.f32 %v9472, 0.0
    %v9571 = vmax.f32 %v9477, 0.0
    %v9572 = vmax.f32 %v9482, 0.0
    %v9573 = vmax.f32 %v9487, 0.0
    %v9574 = vmax.f32 %v9492, 0.0
    %v9575 = vmax.f32 %v9497, 0.0
    %v9576 = vmax.f32 %v9502, 0.0
    %v9577 = vmax.f32 %v9507, 0.0
    %v9578 = vmax.f32 %v9512, 0.0
    %v9579 = vsel %vm155, %v9515, 0.0
    %v9580 = vsel %vm155, %v9516, 0.0
    %v9581 = vadd.f32 %v9579, %v9580
    %v9582 = vsel %vm155, %v9517, 0.0
    %v9583 = vadd.f32 %v9581, %v9582
    %v9584 = vsel %vm155, %v9518, 0.0
    %v9585 = vadd.f32 %v9583, %v9584
    %v9586 = vsel %vm155, %v9519, 0.0
    %v9587 = vadd.f32 %v9585, %v9586
    %v9588 = vsel %vm155, %v9520, 0.0
    %v9589 = vadd.f32 %v9587, %v9588
    %v9590 = vsel %vm155, %v9521, 0.0
    %v9591 = vadd.f32 %v9589, %v9590
    %v9592 = vsel %vm155, %v9522, 0.0
    %v9593 = vadd.f32 %v9591, %v9592
    %v9594 = vsel %vm155, %v9523, 0.0
    %v9595 = vadd.f32 %v9593, %v9594
    %v9596 = vsel %vm155, %v9524, 0.0
    %v9597 = vadd.f32 %v9595, %v9596
    %v9598 = vsel %vm155, %v9525, 0.0
    %v9599 = vadd.f32 %v9597, %v9598
    %v9600 = vsel %vm155, %v9526, 0.0
    %v9601 = vadd.f32 %v9599, %v9600
    %v9602 = vsel %vm155, %v9527, 0.0
    %v9603 = vadd.f32 %v9601, %v9602
    %v9604 = vsel %vm155, %v9528, 0.0
    %v9605 = vadd.f32 %v9603, %v9604
    %v9606 = vsel %vm155, %v9529, 0.0
    %v9607 = vadd.f32 %v9605, %v9606
    %v9608 = vsel %vm155, %v9530, 0.0
    %v9609 = vadd.f32 %v9607, %v9608
    %v9610 = vsel %vm155, %v9531, 0.0
    %v9611 = vadd.f32 %v9609, %v9610
    %v9612 = vsel %vm155, %v9532, 0.0
    %v9613 = vadd.f32 %v9611, %v9612
    %v9614 = vsel %vm155, %v9533, 0.0
    %v9615 = vadd.f32 %v9613, %v9614
    %v9616 = vsel %vm155, %v9534, 0.0
    %v9617 = vadd.f32 %v9615, %v9616
    %v9618 = vsel %vm155, %v9535, 0.0
    %v9619 = vadd.f32 %v9617, %v9618
    %v9620 = vsel %vm155, %v9536, 0.0
    %v9621 = vadd.f32 %v9619, %v9620
    %v9622 = vsel %vm155, %v9537, 0.0
    %v9623 = vadd.f32 %v9621, %v9622
    %v9624 = vsel %vm155, %v9538, 0.0
    %v9625 = vadd.f32 %v9623, %v9624
    %v9626 = vsel %vm155, %v9539, 0.0
    %v9627 = vadd.f32 %v9625, %v9626
    %v9628 = vsel %vm155, %v9540, 0.0
    %v9629 = vadd.f32 %v9627, %v9628
    %v9630 = vsel %vm155, %v9541, 0.0
    %v9631 = vadd.f32 %v9629, %v9630
    %v9632 = vsel %vm155, %v9542, 0.0
    %v9633 = vadd.f32 %v9631, %v9632
    %v9634 = vsel %vm155, %v9543, 0.0
    %v9635 = vadd.f32 %v9633, %v9634
    %v9636 = vsel %vm155, %v9544, 0.0
    %v9637 = vadd.f32 %v9635, %v9636
    %v9638 = vsel %vm155, %v9545, 0.0
    %v9639 = vadd.f32 %v9637, %v9638
    %v9640 = vsel %vm155, %v9546, 0.0
    %v9641 = vadd.f32 %v9639, %v9640
    %v9642 = vrot.slane %v9641, 4
    %v9643 = vadd.f32 %v9641, %v9642
    %v9644 = vrot.slane %v9643, 2
    %v9645 = vadd.f32 %v9643, %v9644
    %v9646 = vrot.slane %v9645, 1
    %v9647 = vadd.f32 %v9645, %v9646
    %v9648 = vsel %vm155, %v9547, 0.0
    %v9649 = vsel %vm155, %v9548, 0.0
    %v9650 = vadd.f32 %v9648, %v9649
    %v9651 = vsel %vm155, %v9549, 0.0
    %v9652 = vadd.f32 %v9650, %v9651
    %v9653 = vsel %vm155, %v9550, 0.0
    %v9654 = vadd.f32 %v9652, %v9653
    %v9655 = vsel %vm155, %v9551, 0.0
    %v9656 = vadd.f32 %v9654, %v9655
    %v9657 = vsel %vm155, %v9552, 0.0
    %v9658 = vadd.f32 %v9656, %v9657
    %v9659 = vsel %vm155, %v9553, 0.0
    %v9660 = vadd.f32 %v9658, %v9659
    %v9661 = vsel %vm155, %v9554, 0.0
    %v9662 = vadd.f32 %v9660, %v9661
    %v9663 = vsel %vm155, %v9555, 0.0
    %v9664 = vadd.f32 %v9662, %v9663
    %v9665 = vsel %vm155, %v9556, 0.0
    %v9666 = vadd.f32 %v9664, %v9665
    %v9667 = vsel %vm155, %v9557, 0.0
    %v9668 = vadd.f32 %v9666, %v9667
    %v9669 = vsel %vm155, %v9558, 0.0
    %v9670 = vadd.f32 %v9668, %v9669
    %v9671 = vsel %vm155, %v9559, 0.0
    %v9672 = vadd.f32 %v9670, %v9671
    %v9673 = vsel %vm155, %v9560, 0.0
    %v9674 = vadd.f32 %v9672, %v9673
    %v9675 = vsel %vm155, %v9561, 0.0
    %v9676 = vadd.f32 %v9674, %v9675
    %v9677 = vsel %vm155, %v9562, 0.0
    %v9678 = vadd.f32 %v9676, %v9677
    %v9679 = vsel %vm155, %v9563, 0.0
    %v9680 = vadd.f32 %v9678, %v9679
    %v9681 = vsel %vm155, %v9564, 0.0
    %v9682 = vadd.f32 %v9680, %v9681
    %v9683 = vsel %vm155, %v9565, 0.0
    %v9684 = vadd.f32 %v9682, %v9683
    %v9685 = vsel %vm155, %v9566, 0.0
    %v9686 = vadd.f32 %v9684, %v9685
    %v9687 = vsel %vm155, %v9567, 0.0
    %v9688 = vadd.f32 %v9686, %v9687
    %v9689 = vsel %vm155, %v9568, 0.0
    %v9690 = vadd.f32 %v9688, %v9689
    %v9691 = vsel %vm155, %v9569, 0.0
    %v9692 = vadd.f32 %v9690, %v9691
    %v9693 = vsel %vm155, %v9570, 0.0
    %v9694 = vadd.f32 %v9692, %v9693
    %v9695 = vsel %vm155, %v9571, 0.0
    %v9696 = vadd.f32 %v9694, %v9695
    %v9697 = vsel %vm155, %v9572, 0.0
    %v9698 = vadd.f32 %v9696, %v9697
    %v9699 = vsel %vm155, %v9573, 0.0
    %v9700 = vadd.f32 %v9698, %v9699
    %v9701 = vsel %vm155, %v9574, 0.0
    %v9702 = vadd.f32 %v9700, %v9701
    %v9703 = vsel %vm155, %v9575, 0.0
    %v9704 = vadd.f32 %v9702, %v9703
    %v9705 = vsel %vm155, %v9576, 0.0
    %v9706 = vadd.f32 %v9704, %v9705
    %v9707 = vsel %vm155, %v9577, 0.0
    %v9708 = vadd.f32 %v9706, %v9707
    %v9709 = vsel %vm155, %v9578, 0.0
    %v9710 = vadd.f32 %v9708, %v9709
    %v9711 = vrot.slane %v9710, 4
    %v9712 = vadd.f32 %v9710, %v9711
    %v9713 = vrot.slane %v9712, 2
    %v9714 = vadd.f32 %v9712, %v9713
    %v9715 = vrot.slane %v9714, 1
    %v9716 = vadd.f32 %v9714, %v9715
    %v9717 = vmul.f32 %v9647, 0.00390625
    %v9718 = vmul.f32 %v9716, 0.00390625
    %v9719 = vld [vmem:[%s11] sm:$0xff]
    %v9720 = vld [vmem:[%s11 + $0x8] sm:$0xff]
    %v9721 = vld [vmem:[%s11 + $0x10] sm:$0xff]
    %v9722 = vld [vmem:[%s11 + $0x18] sm:$0xff]
    %v9723 = vld [vmem:[%s12] sm:$0x1]
    %v9725 = vlaneseq
    %v9726 = vshrl.u32 %v9725, 7
    %v9727 = vsub.s32 0, %v9726
    %v9728 = vrot.slane %v9723, %v9727
    %vm9732 = vcmask 1041409
    %v9733 = vsel %vm9732, %v9718, %v9717
    %v9734 = vsel %vm155, %v9733, 0
    %9736 = vmatprep.subr.mxu0 0.0
    %9737 = vmatpush1.msra.mxu0 %v9719
    %9738 = vmatprep.subr.mxu0 0.0
    %9739 = vmatpush1.msra.mxu0 %v9720
    %9740 = vmatprep.subr.mxu0 0.0
    %9741 = vmatpush1.msra.mxu0 %v9721
    %9742 = vmatprep.subr.mxu0 0.0
    %9743 = vmatpush1.msra.mxu0 %v9722
    %9744 = vmatprep.subr.mxu0 0.0
    %9745 = vmatpush1.msra.mxu0 0.0
    %9746 = vmatprep.subr.mxu0 0.0
    %9747 = vmatpush1.msra.mxu0 0.0
    %9748 = vmatprep.subr.mxu0 0.0
    %9749 = vmatpush1.msra.mxu0 0.0
    %9750 = vmatprep.subr.mxu0 0.0
    %9751 = vmatpush1.msra.mxu0 0.0
    %9752 = vmatprep.subr.mxu0 0.0
    %9753 = vmatpush1.msra.mxu0 0.0
    %9754 = vmatprep.subr.mxu0 0.0
    %9755 = vmatpush1.msra.mxu0 0.0
    %9756 = vmatprep.subr.mxu0 0.0
    %9757 = vmatpush1.msra.mxu0 0.0
    %9758 = vmatprep.subr.mxu0 0.0
    %9759 = vmatpush1.msra.mxu0 0.0
    %9760 = vmatprep.subr.mxu0 0.0
    %9761 = vmatpush1.msra.mxu0 0.0
    %9762 = vmatprep.subr.mxu0 0.0
    %9763 = vmatpush1.msra.mxu0 0.0
    %9764 = vmatprep.subr.mxu0 0.0
    %9765 = vmatpush1.msra.mxu0 0.0
    %9766 = vmatprep.subr.mxu0 0.0
    %9767 = vmatpush1.msra.mxu0 0.0
    %9768 = vmatprep.subr.mxu0 0.0
    %9769 = vmatpush1.msra.mxu0 0.0
    %9770 = vmatprep.subr.mxu0 0.0
    %9771 = vmatpush1.msra.mxu0 0.0
    %9772 = vmatprep.subr.mxu0 0.0
    %9773 = vmatpush1.msra.mxu0 0.0
    %9774 = vmatprep.subr.mxu0 0.0
    %9775 = vmatpush1.msra.mxu0 0.0
    %9776 = vmatprep.subr.mxu0 0.0
    %9777 = vmatpush1.msra.mxu0 0.0
    %9778 = vmatprep.subr.mxu0 0.0
    %9779 = vmatpush1.msra.mxu0 0.0
    %9780 = vmatprep.subr.mxu0 0.0
    %9781 = vmatpush1.msra.mxu0 0.0
    %9782 = vmatprep.subr.mxu0 0.0
    %9783 = vmatpush1.msra.mxu0 0.0
    %9784 = vmatprep.subr.mxu0 0.0
    %9785 = vmatpush1.msra.mxu0 0.0
    %9786 = vmatprep.subr.mxu0 0.0
    %9787 = vmatpush1.msra.mxu0 0.0
    %9788 = vmatprep.subr.mxu0 0.0
    %9789 = vmatpush1.msra.mxu0 0.0
    %9790 = vmatprep.subr.mxu0 0.0
    %9791 = vmatpush1.msra.mxu0 0.0
    %9792 = vmatprep.subr.mxu0 0.0
    %9793 = vmatpush1.msra.mxu0 0.0
    %9794 = vmatprep.subr.mxu0 0.0
    %9795 = vmatpush1.msra.mxu0 0.0
    %9796 = vmatprep.subr.mxu0 0.0
    %9797 = vmatpush1.msra.mxu0 0.0
    %9798 = vmatprep.subr.mxu0 0.0
    %9799 = vmatpush1.msra.mxu0 0.0
    %9800 = vmatprep.mubr.f32.mxu0 0.0
    %9801 = vmatmul.mubr.f32.gmra.mrb[0].mxu0 %v9734
    %v9802 = vpop.f32.mrb[0].mxu0
    %v9803 = vadd.f32 %v9728, %v9802
    %v9804 = vpop.f32.mrb[0].mxu0
    %9805 = vdwg.mxu0
    %vm9806 = vcmask 58368
    %9807 = vst.msk [vmem:[#allocation5] sm:$0x3] %vm9806, %v9803
    // Predicated region
    $region54: #{tpu_custom_call.1} parent=1 // pred_check
      _
    $region55: #{tpu_custom_call.1} parent=1 // pred_check_branch
      %9809 = sbr.rel (0) target = $region57
    $region56: #{tpu_custom_call.1} parent=1 // pred_region
      %s9811 = ssub.s32 32, 32
      %9812 = vsyncadd [#allocation6], %s9811
      %s9814 = sshll.u32 [#allocation5], 4
      %s9815 = int_to_ptr.vmem [resolvable:$true] %s9814
      %9817 = dma.vmem_to_hbm [thread:$0]  %s9815, 32, %s13, [#allocation6]
    $region57: #{tpu_custom_call.1} parent=1 // pred_fallthru
      _
    // Predicated region
    $region58: #{tpu_custom_call.1} parent=1 // pred_check
      _
    $region59: #{tpu_custom_call.1} parent=1 // pred_check_branch
      %9819 = sbr.rel (0) target = $region61
    $region60: #{tpu_custom_call.1} parent=1 // pred_region
      %9820 = dma.done [#allocation6], 32
    $region61: #{tpu_custom_call.1} parent=1 // pred_fallthru
      _
    %9821 = vsyncpa [#allocation6], 1

</llo_original>
